<compile_context>
chip_gen: v7x
topology: tpu7x:2x2x1
jax: 0.10.0
libtpu: 0.0.40
codegen_flags: <defaults>
</compile_context>

<pallas_src>
import jax
import jax.numpy as jnp
from jax.experimental import pallas as pl
from jax.experimental.pallas import tpu as pltpu


# --------------------------------------------------------------------------
# Pallas kernels
# --------------------------------------------------------------------------
def _fused_block_kernel_factory(n_conv, n_pool):
    """Kernel computing `n_conv` independent conv-as-matmul(+BN+ReLU) ops and
    `n_pool` 9-tap max-pool reductions, all resident in VMEM."""

    def kernel(*refs):
        conv_ins = refs[: 4 * n_conv]
        pool_ins = refs[4 * n_conv: 4 * n_conv + n_pool]
        outs = refs[4 * n_conv + n_pool:]
        for i in range(n_conv):
            p_ref, w_ref, s_ref, b_ref = conv_ins[4 * i: 4 * i + 4]
            # bf16 operands on the MXU, f32 accumulation.
            acc = jnp.dot(p_ref[...], w_ref[...],
                          preferred_element_type=jnp.float32)
            # Folded BN + ReLU epilogue in f32.
            y = jnp.maximum(acc * s_ref[...] + b_ref[...], 0.0)
            outs[i][...] = y.astype(outs[i].dtype)
        for j in range(n_pool):
            t_ref = pool_ins[j]
            o_ref = outs[n_conv + j]
            # Max over the kh*kw pooling taps (leading axis), computed in f32.
            o_ref[...] = jnp.max(t_ref[...].astype(jnp.float32),
                                 axis=0).astype(o_ref.dtype)

    return kernel


def _vmem_spec():
    return pl.BlockSpec(memory_space=pltpu.MemorySpace.VMEM)


def fused_block(convs, pools=()):
    """One pallas_call fusing several convs (patches, w, scale, bias) and
    optional max-pool tap stacks.  Returns a list of 2-D outputs."""
    args, out_shapes = [], []
    flops, bytes_acc = 0, 0
    for (p, w, s, b) in convs:
        m, k = p.shape
        cout = w.shape[1]
        args += [p, w, s, b]
        out_shapes.append(jax.ShapeDtypeStruct((m, cout), jnp.bfloat16))
        flops += 2 * m * k * cout
        bytes_acc += (p.size * p.dtype.itemsize + w.size * w.dtype.itemsize +
                      s.size * s.dtype.itemsize + b.size * b.dtype.itemsize +
                      m * cout * 2)
    for t in pools:
        _, m, c = t.shape
        args.append(t)
        out_shapes.append(jax.ShapeDtypeStruct((m, c), t.dtype))
        bytes_acc += t.size * t.dtype.itemsize + m * c * t.dtype.itemsize

    return pl.pallas_call(
        _fused_block_kernel_factory(len(convs), len(pools)),
        out_shape=out_shapes,
        in_specs=[_vmem_spec() for _ in args],
        out_specs=[_vmem_spec() for _ in out_shapes],
        compiler_params=pltpu.CompilerParams(vmem_limit_bytes=32 * 1024 * 1024),
        cost_estimate=pl.CostEstimate(flops=flops, transcendentals=0,
                                      bytes_accessed=bytes_acc),
    )(*args)


# --------------------------------------------------------------------------
# Plain-JAX glue: patch / tap extraction (tiny copies at these shapes)
# --------------------------------------------------------------------------
def _extract_patches(x, kh, kw, sh, sw, ph, pw):
    """x: (N,H,W,C) -> (N*Ho*Wo, kh*kw*C) patches, plus (Ho, Wo)."""
    n, h, w, c = x.shape
    if kh == 1 and kw == 1 and sh == 1 and sw == 1 and ph == 0 and pw == 0:
        return x.reshape(n * h * w, c), h, w          # 1x1 conv: free reshape
    xp = jnp.pad(x, ((0, 0), (ph, ph), (pw, pw), (0, 0)))
    hp, wp = h + 2 * ph, w + 2 * pw
    ho = (hp - kh) // sh + 1
    wo = (wp - kw) // sw + 1
    taps = []
    for di in range(kh):
        for dj in range(kw):
            taps.append(xp[:, di:di + sh * (ho - 1) + 1:sh,
                              dj:dj + sw * (wo - 1) + 1:sw, :])
    patches = jnp.stack(taps, axis=3)                  # (N,Ho,Wo,kh*kw,C)
    return patches.reshape(n * ho * wo, kh * kw * c), ho, wo


def _pool_taps(x, kh, kw, sh, sw):
    """x: (N,H,W,C) -> (kh*kw, N*Ho*Wo, C) tap stack for max pooling."""
    n, h, w, c = x.shape
    ho = (h - kh) // sh + 1
    wo = (w - kw) // sw + 1
    taps = [x[:, di:di + sh * (ho - 1) + 1:sh, dj:dj + sw * (wo - 1) + 1:sw, :]
            for di in range(kh) for dj in range(kw)]
    return jnp.stack(taps, axis=0).reshape(kh * kw, n * ho * wo, c)


def conv_block(x, p, k, s, pad):
    w, scale, bias = p                                  # w: (K, Cout) bf16
    a, ho, wo = _extract_patches(x, k[0], k[1], s[0], s[1], pad[0], pad[1])
    (y,) = fused_block([(a, w, scale, bias)])
    return y.reshape(x.shape[0], ho, wo, w.shape[1])


# --------------------------------------------------------------------------
# InceptInitBlock forward
# --------------------------------------------------------------------------
def incept_init_block(x_nchw, params):
    n = x_nchw.shape[0]
    x = jnp.transpose(x_nchw, (0, 2, 3, 1)).astype(jnp.bfloat16)  # NCHW->NHWC

    # stem: conv1 (3x3,s2) -> conv2 (3x3,s1) -> conv3 (3x3,s1,p1)
    x = conv_block(x, params["conv1"], (3, 3), (2, 2), (0, 0))
    x = conv_block(x, params["conv2"], (3, 3), (1, 1), (0, 0))
    x = conv_block(x, params["conv3"], (3, 3), (1, 1), (1, 1))

    # Mixed-3a: [maxpool 3x3 s2, conv 3x3 s2 (64->96)] — one fused kernel
    pa, ho, wo = _extract_patches(x, 3, 3, 2, 2, 0, 0)
    pt = _pool_taps(x, 3, 3, 2, 2)
    conv_o, pool_o = fused_block([(pa, *params["b1_conv"])], pools=[pt])
    x = jnp.concatenate([pool_o, conv_o], axis=-1).reshape(n, ho, wo, -1)

    # Mixed-4a
    h4, w4, c4 = x.shape[1], x.shape[2], x.shape[3]
    a0 = x.reshape(n * h4 * w4, c4)                     # shared 1x1 "patches"
    (cd,) = fused_block([(a0, *params["b2_c1d1"])])     # both 1x1s, Cout=128
    c1 = cd[:, :64].reshape(n, h4, w4, 64)              # branch1 1x1 output
    d1 = cd[:, 64:].reshape(n, h4, w4, 64)              # branch2 1x1 output

    p_c2, h5, w5 = _extract_patches(c1, 3, 3, 1, 1, 0, 0)   # branch1 3x3
    p_d2, _, _ = _extract_patches(d1, 1, 7, 1, 1, 0, 3)     # branch2 1x7
    c2, d2 = fused_block([(p_c2, *params["b2_c2"]), (p_d2, *params["b2_d2"])])
    d2 = d2.reshape(n, h4, w4, 64)

    p_d3, _, _ = _extract_patches(d2, 7, 1, 1, 1, 3, 0)     # branch2 7x1
    (d3,) = fused_block([(p_d3, *params["b2_d3"])])
    d3 = d3.reshape(n, h4, w4, 64)

    p_d4, _, _ = _extract_patches(d3, 3, 3, 1, 1, 0, 0)     # branch2 3x3
    (d4,) = fused_block([(p_d4, *params["b2_d4"])])

    x = jnp.concatenate([c2, d4], axis=-1).reshape(n, h5, w5, -1)  # [b1, b2]

    # Mixed-5a: [conv 3x3 s2 (192->192), maxpool 3x3 s2] — one fused kernel
    pa, ho, wo = _extract_patches(x, 3, 3, 2, 2, 0, 0)
    pt = _pool_taps(x, 3, 3, 2, 2)
    conv_o, pool_o = fused_block([(pa, *params["b3_conv"])], pools=[pt])
    x = jnp.concatenate([conv_o, pool_o], axis=-1).reshape(n, ho, wo, -1)

    return jnp.transpose(x, (0, 3, 1, 2)).astype(jnp.float32)  # NHWC -> NCHW


# --------------------------------------------------------------------------
# Deterministic synthetic parameters (fresh-module shapes, folded BN)
# --------------------------------------------------------------------------
def make_conv_params(key, kh, kw, cin, cout, bn_eps):
    kw_, kg, kb, km, kv = jax.random.split(key, 5)
    w = 0.05 * jax.random.normal(kw_, (kh, kw, cin, cout), jnp.float32)
    gamma = 1.0 + 0.1 * jax.random.normal(kg, (cout,), jnp.float32)
    beta = 0.1 * jax.random.normal(kb, (cout,), jnp.float32)
    rmean = 0.1 * jax.random.normal(km, (cout,), jnp.float32)
    rvar = 1.0 + 0.1 * jnp.abs(jax.random.normal(kv, (cout,), jnp.float32))
    scale = gamma / jnp.sqrt(rvar + bn_eps)
    bias = beta - rmean * scale
    # Pre-folded: (kh*kw*cin, cout) bf16 weight, (1, cout) f32 scale/bias.
    w2 = w.reshape(kh * kw * cin, cout).astype(jnp.bfloat16)
    return (w2, scale.reshape(1, cout), bias.reshape(1, cout))


def init_params(key, in_channels, bn_eps):
    ks = jax.random.split(key, 11)
    p = {
        "conv1": make_conv_params(ks[0], 3, 3, in_channels, 32, bn_eps),
        "conv2": make_conv_params(ks[1], 3, 3, 32, 32, bn_eps),
        "conv3": make_conv_params(ks[2], 3, 3, 32, 64, bn_eps),
        # Mixed-3a conv branch
        "b1_conv": make_conv_params(ks[3], 3, 3, 64, 96, bn_eps),
        # Mixed-4a branch1: 1x1(64) -> 3x3(96); branch2: 1x1(64) -> 1x7 -> 7x1 -> 3x3(96)
        "b2_c2": make_conv_params(ks[5], 3, 3, 64, 96, bn_eps),
        "b2_d2": make_conv_params(ks[7], 1, 7, 64, 64, bn_eps),
        "b2_d3": make_conv_params(ks[8], 7, 1, 64, 64, bn_eps),
        "b2_d4": make_conv_params(ks[9], 3, 3, 64, 96, bn_eps),
        # Mixed-5a conv branch
        "b3_conv": make_conv_params(ks[10], 3, 3, 192, 192, bn_eps),
    }
    # Merge Mixed-4a's two parallel 1x1 convs (same input) into one lane-dense
    # (160, 128) matmul: one launch instead of two, unmasked 128-wide stores.
    c1 = make_conv_params(ks[4], 1, 1, 160, 64, bn_eps)   # branch1 1x1
    d1 = make_conv_params(ks[6], 1, 1, 160, 64, bn_eps)   # branch2 1x1
    p["b2_c1d1"] = tuple(jnp.concatenate([a, b], axis=-1)
                         for a, b in zip(c1, d1))
    return p


if __name__ == "__main__":
    key = jax.random.PRNGKey(0)
    kx, kp = jax.random.split(key)

    bn_eps = 1e-5
    # Small-but-consistent shapes: 35x35 survives all three stride-2 stages.
    N, C, H, W = 2, 3, 35, 35
    x = jax.random.normal(kx, (N, C, H, W), jnp.float32)
    params = init_params(kp, C, bn_eps)

    fwd = jax.jit(incept_init_block)
    out = fwd(x, params)
    jax.block_until_ready(out)

    # spatial: 35 ->17 ->15 ->15 ->7 ->5 ->2 ; channels: 64+96 -> 96+96 -> 192+192
    assert out.shape == (N, 384, 2, 2), out.shape
    assert bool(jnp.all(jnp.isfinite(out)))
    print("KERNEL_OK")
</pallas_src>

<mosaic_0001>
module attributes {stable_mosaic.version = 11 : i64} {
  func.func @kernel(%arg0: memref<578x27xbf16, #tpu.memory_space<vmem>>, %arg1: memref<27x32xbf16, #tpu.memory_space<vmem>>, %arg2: memref<1x32xf32, #tpu.memory_space<vmem>>, %arg3: memref<1x32xf32, #tpu.memory_space<vmem>>, %arg4: memref<578x32xbf16, #tpu.memory_space<vmem>>) attributes {dimension_semantics = [], scalar_prefetch = 0 : i64, scratch_operands = 0 : i64, tpu.core_type = #tpu.core_type<tc>} {
    %c0 = arith.constant 0 : index
    %c0_0 = arith.constant 0 : index
    %0 = vector.load %arg0[%c0, %c0_0] : memref<578x27xbf16, #tpu.memory_space<vmem>>, vector<578x27xbf16>
    %c0_1 = arith.constant 0 : index
    %c0_2 = arith.constant 0 : index
    %1 = vector.load %arg1[%c0_1, %c0_2] : memref<27x32xbf16, #tpu.memory_space<vmem>>, vector<27x32xbf16>
    %cst = arith.constant dense<0.000000e+00> : vector<578x32xf32>
    %2 = tpu.matmul %0, %1, %cst {dimension_numbers = #tpu.dot_dimension_numbers<[1], [0], [0], [1], [0, 0, 1, 1], [], []>} : vector<578x27xbf16>, vector<27x32xbf16>, vector<578x32xf32> -> vector<578x32xf32>
    %c0_3 = arith.constant 0 : index
    %c0_4 = arith.constant 0 : index
    %3 = vector.load %arg2[%c0_3, %c0_4] : memref<1x32xf32, #tpu.memory_space<vmem>>, vector<1x32xf32>
    %4 = vector.broadcast %3 : vector<1x32xf32> to vector<578x32xf32>
    %5 = arith.mulf %2, %4 : vector<578x32xf32>
    %c0_5 = arith.constant 0 : index
    %c0_6 = arith.constant 0 : index
    %6 = vector.load %arg3[%c0_5, %c0_6] : memref<1x32xf32, #tpu.memory_space<vmem>>, vector<1x32xf32>
    %7 = vector.broadcast %6 : vector<1x32xf32> to vector<578x32xf32>
    %8 = arith.addf %5, %7 : vector<578x32xf32>
    %cst_7 = arith.constant 0.000000e+00 : f32
    %9 = vector.broadcast %cst_7 : f32 to vector<578x32xf32>
    %10 = arith.maximumf %8, %9 : vector<578x32xf32>
    %11 = arith.truncf %10 : vector<578x32xf32> to vector<578x32xbf16>
    %c0_8 = arith.constant 0 : index
    %c0_9 = arith.constant 0 : index
    %12 = vector.load %arg4[%c0_8, %c0_9] : memref<578x32xbf16, #tpu.memory_space<vmem>>, vector<578x32xbf16>
    tpu.vector_store %arg4[%c0_8, %c0_9], %11 {strides = array<i32>} : memref<578x32xbf16, #tpu.memory_space<vmem>>, vector<578x32xbf16>,
    return
  }
}

module attributes {stable_mosaic.version = 11 : i64} {
  func.func @kernel(%arg0: memref<450x288xbf16, #tpu.memory_space<vmem>>, %arg1: memref<288x32xbf16, #tpu.memory_space<vmem>>, %arg2: memref<1x32xf32, #tpu.memory_space<vmem>>, %arg3: memref<1x32xf32, #tpu.memory_space<vmem>>, %arg4: memref<450x32xbf16, #tpu.memory_space<vmem>>) attributes {dimension_semantics = [], scalar_prefetch = 0 : i64, scratch_operands = 0 : i64, tpu.core_type = #tpu.core_type<tc>} {
    %c0 = arith.constant 0 : index
    %c0_0 = arith.constant 0 : index
    %0 = vector.load %arg0[%c0, %c0_0] : memref<450x288xbf16, #tpu.memory_space<vmem>>, vector<450x288xbf16>
    %c0_1 = arith.constant 0 : index
    %c0_2 = arith.constant 0 : index
    %1 = vector.load %arg1[%c0_1, %c0_2] : memref<288x32xbf16, #tpu.memory_space<vmem>>, vector<288x32xbf16>
    %cst = arith.constant dense<0.000000e+00> : vector<450x32xf32>
    %2 = tpu.matmul %0, %1, %cst {dimension_numbers = #tpu.dot_dimension_numbers<[1], [0], [0], [1], [0, 0, 1, 1], [], []>} : vector<450x288xbf16>, vector<288x32xbf16>, vector<450x32xf32> -> vector<450x32xf32>
    %c0_3 = arith.constant 0 : index
    %c0_4 = arith.constant 0 : index
    %3 = vector.load %arg2[%c0_3, %c0_4] : memref<1x32xf32, #tpu.memory_space<vmem>>, vector<1x32xf32>
    %4 = vector.broadcast %3 : vector<1x32xf32> to vector<450x32xf32>
    %5 = arith.mulf %2, %4 : vector<450x32xf32>
    %c0_5 = arith.constant 0 : index
    %c0_6 = arith.constant 0 : index
    %6 = vector.load %arg3[%c0_5, %c0_6] : memref<1x32xf32, #tpu.memory_space<vmem>>, vector<1x32xf32>
    %7 = vector.broadcast %6 : vector<1x32xf32> to vector<450x32xf32>
    %8 = arith.addf %5, %7 : vector<450x32xf32>
    %cst_7 = arith.constant 0.000000e+00 : f32
    %9 = vector.broadcast %cst_7 : f32 to vector<450x32xf32>
    %10 = arith.maximumf %8, %9 : vector<450x32xf32>
    %11 = arith.truncf %10 : vector<450x32xf32> to vector<450x32xbf16>
    %c0_8 = arith.constant 0 : index
    %c0_9 = arith.constant 0 : index
    %12 = vector.load %arg4[%c0_8, %c0_9] : memref<450x32xbf16, #tpu.memory_space<vmem>>, vector<450x32xbf16>
    tpu.vector_store %arg4[%c0_8, %c0_9], %11 {strides = array<i32>} : memref<450x32xbf16, #tpu.memory_space<vmem>>, vector<450x32xbf16>,
    return
  }
}

module attributes {stable_mosaic.version = 11 : i64} {
  func.func @kernel(%arg0: memref<450x288xbf16, #tpu.memory_space<vmem>>, %arg1: memref<288x64xbf16, #tpu.memory_space<vmem>>, %arg2: memref<1x64xf32, #tpu.memory_space<vmem>>, %arg3: memref<1x64xf32, #tpu.memory_space<vmem>>, %arg4: memref<450x64xbf16, #tpu.memory_space<vmem>>) attributes {dimension_semantics = [], scalar_prefetch = 0 : i64, scratch_operands = 0 : i64, tpu.core_type = #tpu.core_type<tc>} {
    %c0 = arith.constant 0 : index
    %c0_0 = arith.constant 0 : index
    %0 = vector.load %arg0[%c0, %c0_0] : memref<450x288xbf16, #tpu.memory_space<vmem>>, vector<450x288xbf16>
    %c0_1 = arith.constant 0 : index
    %c0_2 = arith.constant 0 : index
    %1 = vector.load %arg1[%c0_1, %c0_2] : memref<288x64xbf16, #tpu.memory_space<vmem>>, vector<288x64xbf16>
    %cst = arith.constant dense<0.000000e+00> : vector<450x64xf32>
    %2 = tpu.matmul %0, %1, %cst {dimension_numbers = #tpu.dot_dimension_numbers<[1], [0], [0], [1], [0, 0, 1, 1], [], []>} : vector<450x288xbf16>, vector<288x64xbf16>, vector<450x64xf32> -> vector<450x64xf32>
    %c0_3 = arith.constant 0 : index
    %c0_4 = arith.constant 0 : index
    %3 = vector.load %arg2[%c0_3, %c0_4] : memref<1x64xf32, #tpu.memory_space<vmem>>, vector<1x64xf32>
    %4 = vector.broadcast %3 : vector<1x64xf32> to vector<450x64xf32>
    %5 = arith.mulf %2, %4 : vector<450x64xf32>
    %c0_5 = arith.constant 0 : index
    %c0_6 = arith.constant 0 : index
    %6 = vector.load %arg3[%c0_5, %c0_6] : memref<1x64xf32, #tpu.memory_space<vmem>>, vector<1x64xf32>
    %7 = vector.broadcast %6 : vector<1x64xf32> to vector<450x64xf32>
    %8 = arith.addf %5, %7 : vector<450x64xf32>
    %cst_7 = arith.constant 0.000000e+00 : f32
    %9 = vector.broadcast %cst_7 : f32 to vector<450x64xf32>
    %10 = arith.maximumf %8, %9 : vector<450x64xf32>
    %11 = arith.truncf %10 : vector<450x64xf32> to vector<450x64xbf16>
    %c0_8 = arith.constant 0 : index
    %c0_9 = arith.constant 0 : index
    %12 = vector.load %arg4[%c0_8, %c0_9] : memref<450x64xbf16, #tpu.memory_space<vmem>>, vector<450x64xbf16>
    tpu.vector_store %arg4[%c0_8, %c0_9], %11 {strides = array<i32>} : memref<450x64xbf16, #tpu.memory_space<vmem>>, vector<450x64xbf16>,
    return
  }
}

module attributes {stable_mosaic.version = 11 : i64} {
  func.func @kernel(%arg0: memref<98x576xbf16, #tpu.memory_space<vmem>>, %arg1: memref<576x96xbf16, #tpu.memory_space<vmem>>, %arg2: memref<1x96xf32, #tpu.memory_space<vmem>>, %arg3: memref<1x96xf32, #tpu.memory_space<vmem>>, %arg4: memref<9x98x64xbf16, #tpu.memory_space<vmem>>, %arg5: memref<98x96xbf16, #tpu.memory_space<vmem>>, %arg6: memref<98x64xbf16, #tpu.memory_space<vmem>>) attributes {dimension_semantics = [], scalar_prefetch = 0 : i64, scratch_operands = 0 : i64, tpu.core_type = #tpu.core_type<tc>} {
    %c0 = arith.constant 0 : index
    %c0_0 = arith.constant 0 : index
    %0 = vector.load %arg0[%c0, %c0_0] : memref<98x576xbf16, #tpu.memory_space<vmem>>, vector<98x576xbf16>
    %c0_1 = arith.constant 0 : index
    %c0_2 = arith.constant 0 : index
    %1 = vector.load %arg1[%c0_1, %c0_2] : memref<576x96xbf16, #tpu.memory_space<vmem>>, vector<576x96xbf16>
    %cst = arith.constant dense<0.000000e+00> : vector<98x96xf32>
    %2 = tpu.matmul %0, %1, %cst {dimension_numbers = #tpu.dot_dimension_numbers<[1], [0], [0], [1], [0, 0, 1, 1], [], []>} : vector<98x576xbf16>, vector<576x96xbf16>, vector<98x96xf32> -> vector<98x96xf32>
    %c0_3 = arith.constant 0 : index
    %c0_4 = arith.constant 0 : index
    %3 = vector.load %arg2[%c0_3, %c0_4] : memref<1x96xf32, #tpu.memory_space<vmem>>, vector<1x96xf32>
    %4 = vector.broadcast %3 : vector<1x96xf32> to vector<98x96xf32>
    %5 = arith.mulf %2, %4 : vector<98x96xf32>
    %c0_5 = arith.constant 0 : index
    %c0_6 = arith.constant 0 : index
    %6 = vector.load %arg3[%c0_5, %c0_6] : memref<1x96xf32, #tpu.memory_space<vmem>>, vector<1x96xf32>
    %7 = vector.broadcast %6 : vector<1x96xf32> to vector<98x96xf32>
    %8 = arith.addf %5, %7 : vector<98x96xf32>
    %cst_7 = arith.constant 0.000000e+00 : f32
    %9 = vector.broadcast %cst_7 : f32 to vector<98x96xf32>
    %10 = arith.maximumf %8, %9 : vector<98x96xf32>
    %11 = arith.truncf %10 : vector<98x96xf32> to vector<98x96xbf16>
    %c0_8 = arith.constant 0 : index
    %c0_9 = arith.constant 0 : index
    %12 = vector.load %arg5[%c0_8, %c0_9] : memref<98x96xbf16, #tpu.memory_space<vmem>>, vector<98x96xbf16>
    tpu.vector_store %arg5[%c0_8, %c0_9], %11 {strides = array<i32>} : memref<98x96xbf16, #tpu.memory_space<vmem>>, vector<98x96xbf16>,
    %c0_10 = arith.constant 0 : index
    %c0_11 = arith.constant 0 : index
    %c0_12 = arith.constant 0 : index
    %13 = vector.load %arg4[%c0_10, %c0_11, %c0_12] : memref<9x98x64xbf16, #tpu.memory_space<vmem>>, vector<9x98x64xbf16>
    %14 = arith.extf %13 : vector<9x98x64xbf16> to vector<9x98x64xf32>
    %cst_13 = arith.constant dense<0xFF800000> : vector<98x64xf32>
    %15 = vector.multi_reduction <maximumf>, %14, %cst_13 [0] : vector<9x98x64xf32> to vector<98x64xf32>
    %16 = arith.truncf %15 : vector<98x64xf32> to vector<98x64xbf16>
    %c0_14 = arith.constant 0 : index
    %c0_15 = arith.constant 0 : index
    %17 = vector.load %arg6[%c0_14, %c0_15] : memref<98x64xbf16, #tpu.memory_space<vmem>>, vector<98x64xbf16>
    tpu.vector_store %arg6[%c0_14, %c0_15], %16 {strides = array<i32>} : memref<98x64xbf16, #tpu.memory_space<vmem>>, vector<98x64xbf16>,
    return
  }
}

module attributes {stable_mosaic.version = 11 : i64} {
  func.func @kernel(%arg0: memref<98x160xbf16, #tpu.memory_space<vmem>>, %arg1: memref<160x128xbf16, #tpu.memory_space<vmem>>, %arg2: memref<1x128xf32, #tpu.memory_space<vmem>>, %arg3: memref<1x128xf32, #tpu.memory_space<vmem>>, %arg4: memref<98x128xbf16, #tpu.memory_space<vmem>>) attributes {dimension_semantics = [], scalar_prefetch = 0 : i64, scratch_operands = 0 : i64, tpu.core_type = #tpu.core_type<tc>} {
    %c0 = arith.constant 0 : index
    %c0_0 = arith.constant 0 : index
    %0 = vector.load %arg0[%c0, %c0_0] : memref<98x160xbf16, #tpu.memory_space<vmem>>, vector<98x160xbf16>
    %c0_1 = arith.constant 0 : index
    %c0_2 = arith.constant 0 : index
    %1 = vector.load %arg1[%c0_1, %c0_2] : memref<160x128xbf16, #tpu.memory_space<vmem>>, vector<160x128xbf16>
    %cst = arith.constant dense<0.000000e+00> : vector<98x128xf32>
    %2 = tpu.matmul %0, %1, %cst {dimension_numbers = #tpu.dot_dimension_numbers<[1], [0], [0], [1], [0, 0, 1, 1], [], []>} : vector<98x160xbf16>, vector<160x128xbf16>, vector<98x128xf32> -> vector<98x128xf32>
    %c0_3 = arith.constant 0 : index
    %c0_4 = arith.constant 0 : index
    %3 = vector.load %arg2[%c0_3, %c0_4] : memref<1x128xf32, #tpu.memory_space<vmem>>, vector<1x128xf32>
    %4 = vector.broadcast %3 : vector<1x128xf32> to vector<98x128xf32>
    %5 = arith.mulf %2, %4 : vector<98x128xf32>
    %c0_5 = arith.constant 0 : index
    %c0_6 = arith.constant 0 : index
    %6 = vector.load %arg3[%c0_5, %c0_6] : memref<1x128xf32, #tpu.memory_space<vmem>>, vector<1x128xf32>
    %7 = vector.broadcast %6 : vector<1x128xf32> to vector<98x128xf32>
    %8 = arith.addf %5, %7 : vector<98x128xf32>
    %cst_7 = arith.constant 0.000000e+00 : f32
    %9 = vector.broadcast %cst_7 : f32 to vector<98x128xf32>
    %10 = arith.maximumf %8, %9 : vector<98x128xf32>
    %11 = arith.truncf %10 : vector<98x128xf32> to vector<98x128xbf16>
    %c0_8 = arith.constant 0 : index
    %c0_9 = arith.constant 0 : index
    %12 = vector.load %arg4[%c0_8, %c0_9] : memref<98x128xbf16, #tpu.memory_space<vmem>>, vector<98x128xbf16>
    tpu.vector_store %arg4[%c0_8, %c0_9], %11 {strides = array<i32>} : memref<98x128xbf16, #tpu.memory_space<vmem>>, vector<98x128xbf16>,
    return
  }
}

module attributes {stable_mosaic.version = 11 : i64} {
  func.func @kernel(%arg0: memref<50x576xbf16, #tpu.memory_space<vmem>>, %arg1: memref<576x96xbf16, #tpu.memory_space<vmem>>, %arg2: memref<1x96xf32, #tpu.memory_space<vmem>>, %arg3: memref<1x96xf32, #tpu.memory_space<vmem>>, %arg4: memref<98x448xbf16, #tpu.memory_space<vmem>>, %arg5: memref<448x64xbf16, #tpu.memory_space<vmem>>, %arg6: memref<1x64xf32, #tpu.memory_space<vmem>>, %arg7: memref<1x64xf32, #tpu.memory_space<vmem>>, %arg8: memref<50x96xbf16, #tpu.memory_space<vmem>>, %arg9: memref<98x64xbf16, #tpu.memory_space<vmem>>) attributes {dimension_semantics = [], scalar_prefetch = 0 : i64, scratch_operands = 0 : i64, tpu.core_type = #tpu.core_type<tc>} {
    %c0 = arith.constant 0 : index
    %c0_0 = arith.constant 0 : index
    %0 = vector.load %arg0[%c0, %c0_0] : memref<50x576xbf16, #tpu.memory_space<vmem>>, vector<50x576xbf16>
    %c0_1 = arith.constant 0 : index
    %c0_2 = arith.constant 0 : index
    %1 = vector.load %arg1[%c0_1, %c0_2] : memref<576x96xbf16, #tpu.memory_space<vmem>>, vector<576x96xbf16>
    %cst = arith.constant dense<0.000000e+00> : vector<50x96xf32>
    %2 = tpu.matmul %0, %1, %cst {dimension_numbers = #tpu.dot_dimension_numbers<[1], [0], [0], [1], [0, 0, 1, 1], [], []>} : vector<50x576xbf16>, vector<576x96xbf16>, vector<50x96xf32> -> vector<50x96xf32>
    %c0_3 = arith.constant 0 : index
    %c0_4 = arith.constant 0 : index
    %3 = vector.load %arg2[%c0_3, %c0_4] : memref<1x96xf32, #tpu.memory_space<vmem>>, vector<1x96xf32>
    %4 = vector.broadcast %3 : vector<1x96xf32> to vector<50x96xf32>
    %5 = arith.mulf %2, %4 : vector<50x96xf32>
    %c0_5 = arith.constant 0 : index
    %c0_6 = arith.constant 0 : index
    %6 = vector.load %arg3[%c0_5, %c0_6] : memref<1x96xf32, #tpu.memory_space<vmem>>, vector<1x96xf32>
    %7 = vector.broadcast %6 : vector<1x96xf32> to vector<50x96xf32>
    %8 = arith.addf %5, %7 : vector<50x96xf32>
    %cst_7 = arith.constant 0.000000e+00 : f32
    %9 = vector.broadcast %cst_7 : f32 to vector<50x96xf32>
    %10 = arith.maximumf %8, %9 : vector<50x96xf32>
    %11 = arith.truncf %10 : vector<50x96xf32> to vector<50x96xbf16>
    %c0_8 = arith.constant 0 : index
    %c0_9 = arith.constant 0 : index
    %12 = vector.load %arg8[%c0_8, %c0_9] : memref<50x96xbf16, #tpu.memory_space<vmem>>, vector<50x96xbf16>
    tpu.vector_store %arg8[%c0_8, %c0_9], %11 {strides = array<i32>} : memref<50x96xbf16, #tpu.memory_space<vmem>>, vector<50x96xbf16>,
    %c0_10 = arith.constant 0 : index
    %c0_11 = arith.constant 0 : index
    %13 = vector.load %arg4[%c0_10, %c0_11] : memref<98x448xbf16, #tpu.memory_space<vmem>>, vector<98x448xbf16>
    %c0_12 = arith.constant 0 : index
    %c0_13 = arith.constant 0 : index
    %14 = vector.load %arg5[%c0_12, %c0_13] : memref<448x64xbf16, #tpu.memory_space<vmem>>, vector<448x64xbf16>
    %cst_14 = arith.constant dense<0.000000e+00> : vector<98x64xf32>
    %15 = tpu.matmul %13, %14, %cst_14 {dimension_numbers = #tpu.dot_dimension_numbers<[1], [0], [0], [1], [0, 0, 1, 1], [], []>} : vector<98x448xbf16>, vector<448x64xbf16>, vector<98x64xf32> -> vector<98x64xf32>
    %c0_15 = arith.constant 0 : index
    %c0_16 = arith.constant 0 : index
    %16 = vector.load %arg6[%c0_15, %c0_16] : memref<1x64xf32, #tpu.memory_space<vmem>>, vector<1x64xf32>
    %17 = vector.broadcast %16 : vector<1x64xf32> to vector<98x64xf32>
    %18 = arith.mulf %15, %17 : vector<98x64xf32>
    %c0_17 = arith.constant 0 : index
    %c0_18 = arith.constant 0 : index
    %19 = vector.load %arg7[%c0_17, %c0_18] : memref<1x64xf32, #tpu.memory_space<vmem>>, vector<1x64xf32>
    %20 = vector.broadcast %19 : vector<1x64xf32> to vector<98x64xf32>
    %21 = arith.addf %18, %20 : vector<98x64xf32>
    %cst_19 = arith.constant 0.000000e+00 : f32
    %22 = vector.broadcast %cst_19 : f32 to vector<98x64xf32>
    %23 = arith.maximumf %21, %22 : vector<98x64xf32>
    %24 = arith.truncf %23 : vector<98x64xf32> to vector<98x64xbf16>
    %c0_20 = arith.constant 0 : index
    %c0_21 = arith.constant 0 : index
    %25 = vector.load %arg9[%c0_20, %c0_21] : memref<98x64xbf16, #tpu.memory_space<vmem>>, vector<98x64xbf16>
    tpu.vector_store %arg9[%c0_20, %c0_21], %24 {strides = array<i32>} : memref<98x64xbf16, #tpu.memory_space<vmem>>, vector<98x64xbf16>,
    return
  }
}

module attributes {stable_mosaic.version = 11 : i64} {
  func.func @kernel(%arg0: memref<50x576xbf16, #tpu.memory_space<vmem>>, %arg1: memref<576x96xbf16, #tpu.memory_space<vmem>>, %arg2: memref<1x96xf32, #tpu.memory_space<vmem>>, %arg3: memref<1x96xf32, #tpu.memory_space<vmem>>, %arg4: memref<50x96xbf16, #tpu.memory_space<vmem>>) attributes {dimension_semantics = [], scalar_prefetch = 0 : i64, scratch_operands = 0 : i64, tpu.core_type = #tpu.core_type<tc>} {
    %c0 = arith.constant 0 : index
    %c0_0 = arith.constant 0 : index
    %0 = vector.load %arg0[%c0, %c0_0] : memref<50x576xbf16, #tpu.memory_space<vmem>>, vector<50x576xbf16>
    %c0_1 = arith.constant 0 : index
    %c0_2 = arith.constant 0 : index
    %1 = vector.load %arg1[%c0_1, %c0_2] : memref<576x96xbf16, #tpu.memory_space<vmem>>, vector<576x96xbf16>
    %cst = arith.constant dense<0.000000e+00> : vector<50x96xf32>
    %2 = tpu.matmul %0, %1, %cst {dimension_numbers = #tpu.dot_dimension_numbers<[1], [0], [0], [1], [0, 0, 1, 1], [], []>} : vector<50x576xbf16>, vector<576x96xbf16>, vector<50x96xf32> -> vector<50x96xf32>
    %c0_3 = arith.constant 0 : index
    %c0_4 = arith.constant 0 : index
    %3 = vector.load %arg2[%c0_3, %c0_4] : memref<1x96xf32, #tpu.memory_space<vmem>>, vector<1x96xf32>
    %4 = vector.broadcast %3 : vector<1x96xf32> to vector<50x96xf32>
    %5 = arith.mulf %2, %4 : vector<50x96xf32>
    %c0_5 = arith.constant 0 : index
    %c0_6 = arith.constant 0 : index
    %6 = vector.load %arg3[%c0_5, %c0_6] : memref<1x96xf32, #tpu.memory_space<vmem>>, vector<1x96xf32>
    %7 = vector.broadcast %6 : vector<1x96xf32> to vector<50x96xf32>
    %8 = arith.addf %5, %7 : vector<50x96xf32>
    %cst_7 = arith.constant 0.000000e+00 : f32
    %9 = vector.broadcast %cst_7 : f32 to vector<50x96xf32>
    %10 = arith.maximumf %8, %9 : vector<50x96xf32>
    %11 = arith.truncf %10 : vector<50x96xf32> to vector<50x96xbf16>
    %c0_8 = arith.constant 0 : index
    %c0_9 = arith.constant 0 : index
    %12 = vector.load %arg4[%c0_8, %c0_9] : memref<50x96xbf16, #tpu.memory_space<vmem>>, vector<50x96xbf16>
    tpu.vector_store %arg4[%c0_8, %c0_9], %11 {strides = array<i32>} : memref<50x96xbf16, #tpu.memory_space<vmem>>, vector<50x96xbf16>,
    return
  }
}

module attributes {stable_mosaic.version = 11 : i64} {
  func.func @kernel(%arg0: memref<98x448xbf16, #tpu.memory_space<vmem>>, %arg1: memref<448x64xbf16, #tpu.memory_space<vmem>>, %arg2: memref<1x64xf32, #tpu.memory_space<vmem>>, %arg3: memref<1x64xf32, #tpu.memory_space<vmem>>, %arg4: memref<98x64xbf16, #tpu.memory_space<vmem>>) attributes {dimension_semantics = [], scalar_prefetch = 0 : i64, scratch_operands = 0 : i64, tpu.core_type = #tpu.core_type<tc>} {
    %c0 = arith.constant 0 : index
    %c0_0 = arith.constant 0 : index
    %0 = vector.load %arg0[%c0, %c0_0] : memref<98x448xbf16, #tpu.memory_space<vmem>>, vector<98x448xbf16>
    %c0_1 = arith.constant 0 : index
    %c0_2 = arith.constant 0 : index
    %1 = vector.load %arg1[%c0_1, %c0_2] : memref<448x64xbf16, #tpu.memory_space<vmem>>, vector<448x64xbf16>
    %cst = arith.constant dense<0.000000e+00> : vector<98x64xf32>
    %2 = tpu.matmul %0, %1, %cst {dimension_numbers = #tpu.dot_dimension_numbers<[1], [0], [0], [1], [0, 0, 1, 1], [], []>} : vector<98x448xbf16>, vector<448x64xbf16>, vector<98x64xf32> -> vector<98x64xf32>
    %c0_3 = arith.constant 0 : index
    %c0_4 = arith.constant 0 : index
    %3 = vector.load %arg2[%c0_3, %c0_4] : memref<1x64xf32, #tpu.memory_space<vmem>>, vector<1x64xf32>
    %4 = vector.broadcast %3 : vector<1x64xf32> to vector<98x64xf32>
    %5 = arith.mulf %2, %4 : vector<98x64xf32>
    %c0_5 = arith.constant 0 : index
    %c0_6 = arith.constant 0 : index
    %6 = vector.load %arg3[%c0_5, %c0_6] : memref<1x64xf32, #tpu.memory_space<vmem>>, vector<1x64xf32>
    %7 = vector.broadcast %6 : vector<1x64xf32> to vector<98x64xf32>
    %8 = arith.addf %5, %7 : vector<98x64xf32>
    %cst_7 = arith.constant 0.000000e+00 : f32
    %9 = vector.broadcast %cst_7 : f32 to vector<98x64xf32>
    %10 = arith.maximumf %8, %9 : vector<98x64xf32>
    %11 = arith.truncf %10 : vector<98x64xf32> to vector<98x64xbf16>
    %c0_8 = arith.constant 0 : index
    %c0_9 = arith.constant 0 : index
    %12 = vector.load %arg4[%c0_8, %c0_9] : memref<98x64xbf16, #tpu.memory_space<vmem>>, vector<98x64xbf16>
    tpu.vector_store %arg4[%c0_8, %c0_9], %11 {strides = array<i32>} : memref<98x64xbf16, #tpu.memory_space<vmem>>, vector<98x64xbf16>,
    return
  }
}

module attributes {stable_mosaic.version = 11 : i64} {
  func.func @kernel(%arg0: memref<8x1728xbf16, #tpu.memory_space<vmem>>, %arg1: memref<1728x192xbf16, #tpu.memory_space<vmem>>, %arg2: memref<1x192xf32, #tpu.memory_space<vmem>>, %arg3: memref<1x192xf32, #tpu.memory_space<vmem>>, %arg4: memref<9x8x192xbf16, #tpu.memory_space<vmem>>, %arg5: memref<8x192xbf16, #tpu.memory_space<vmem>>, %arg6: memref<8x192xbf16, #tpu.memory_space<vmem>>) attributes {dimension_semantics = [], scalar_prefetch = 0 : i64, scratch_operands = 0 : i64, tpu.core_type = #tpu.core_type<tc>} {
    %c0 = arith.constant 0 : index
    %c0_0 = arith.constant 0 : index
    %0 = vector.load %arg0[%c0, %c0_0] : memref<8x1728xbf16, #tpu.memory_space<vmem>>, vector<8x1728xbf16>
    %c0_1 = arith.constant 0 : index
    %c0_2 = arith.constant 0 : index
    %1 = vector.load %arg1[%c0_1, %c0_2] : memref<1728x192xbf16, #tpu.memory_space<vmem>>, vector<1728x192xbf16>
    %cst = arith.constant dense<0.000000e+00> : vector<8x192xf32>
    %2 = tpu.matmul %0, %1, %cst {dimension_numbers = #tpu.dot_dimension_numbers<[1], [0], [0], [1], [0, 0, 1, 1], [], []>} : vector<8x1728xbf16>, vector<1728x192xbf16>, vector<8x192xf32> -> vector<8x192xf32>
    %c0_3 = arith.constant 0 : index
    %c0_4 = arith.constant 0 : index
    %3 = vector.load %arg2[%c0_3, %c0_4] : memref<1x192xf32, #tpu.memory_space<vmem>>, vector<1x192xf32>
    %4 = vector.broadcast %3 : vector<1x192xf32> to vector<8x192xf32>
    %5 = arith.mulf %2, %4 : vector<8x192xf32>
    %c0_5 = arith.constant 0 : index
    %c0_6 = arith.constant 0 : index
    %6 = vector.load %arg3[%c0_5, %c0_6] : memref<1x192xf32, #tpu.memory_space<vmem>>, vector<1x192xf32>
    %7 = vector.broadcast %6 : vector<1x192xf32> to vector<8x192xf32>
    %8 = arith.addf %5, %7 : vector<8x192xf32>
    %cst_7 = arith.constant 0.000000e+00 : f32
    %9 = vector.broadcast %cst_7 : f32 to vector<8x192xf32>
    %10 = arith.maximumf %8, %9 : vector<8x192xf32>
    %11 = arith.truncf %10 : vector<8x192xf32> to vector<8x192xbf16>
    %c0_8 = arith.constant 0 : index
    %c0_9 = arith.constant 0 : index
    %12 = vector.load %arg5[%c0_8, %c0_9] : memref<8x192xbf16, #tpu.memory_space<vmem>>, vector<8x192xbf16>
    tpu.vector_store %arg5[%c0_8, %c0_9], %11 {strides = array<i32>} : memref<8x192xbf16, #tpu.memory_space<vmem>>, vector<8x192xbf16>,
    %c0_10 = arith.constant 0 : index
    %c0_11 = arith.constant 0 : index
    %c0_12 = arith.constant 0 : index
    %13 = vector.load %arg4[%c0_10, %c0_11, %c0_12] : memref<9x8x192xbf16, #tpu.memory_space<vmem>>, vector<9x8x192xbf16>
    %14 = arith.extf %13 : vector<9x8x192xbf16> to vector<9x8x192xf32>
    %cst_13 = arith.constant dense<0xFF800000> : vector<8x192xf32>
    %15 = vector.multi_reduction <maximumf>, %14, %cst_13 [0] : vector<9x8x192xf32> to vector<8x192xf32>
    %16 = arith.truncf %15 : vector<8x192xf32> to vector<8x192xbf16>
    %c0_14 = arith.constant 0 : index
    %c0_15 = arith.constant 0 : index
    %17 = vector.load %arg6[%c0_14, %c0_15] : memref<8x192xbf16, #tpu.memory_space<vmem>>, vector<8x192xbf16>
    tpu.vector_store %arg6[%c0_14, %c0_15], %16 {strides = array<i32>} : memref<8x192xbf16, #tpu.memory_space<vmem>>, vector<8x192xbf16>,
    return
  }
}

</mosaic_0001>

<llo_original>
// kernel: incept_init_block.9
$region0: #{incept_init_block.9}
  #allocation0 [shape = 'u32[]', space=smem, size = 0x4, offset = 0x4, fixed_abs, tag = 'smem constant byte address 0x4 - core index']
  #allocation1 [shape = 'u32[144,128]{1,0:T(1,128)}', space=vmem, size = 0x12000, scoped, tag = 'internal scratch']
  %s0 = inlined_call_operand.vmem [shape: bf16[578,27], index: 0, kind: input, shape index: {}]
  %s1 = inlined_call_operand.vmem [shape: bf16[27,32], index: 1, kind: input, shape index: {}]
  %s2 = inlined_call_operand.vmem [shape: f32[1,32], index: 2, kind: input, shape index: {}]
  %s3 = inlined_call_operand.vmem [shape: f32[1,32], index: 3, kind: input, shape index: {}]
  %s4 = inlined_call_operand.vmem [shape: bf16[578,32], index: 4, kind: output, shape index: {}]
  %s5 = sld [smem:[#allocation0]]
  $region26: #{incept_init_block.9} parent=0
    _
  %s7 = ssub.s32 1, %s5
  %s8 = scalar_select 0, %s7, %s5
  // Predicated region
  $region2: #{incept_init_block.9} parent=0 // pred_check
    _
  $region3: #{incept_init_block.9} parent=0 // pred_check_branch
    %10 = sbr.rel (0) target = $region5
  $region4: #{incept_init_block.9} parent=0 // pred_region
    _
  $region5: #{incept_init_block.9} parent=0 // pred_fallthru
    _
  // Predicated region
  $region6: #{incept_init_block.9} parent=0 // pred_check
    _
  $region7: #{incept_init_block.9} parent=0 // pred_check_branch
    %12 = sbr.rel (0) target = $region9
  $region8: #{incept_init_block.9} parent=0 // pred_region
    _
  $region9: #{incept_init_block.9} parent=0 // pred_fallthru
    _
  // Predicated region
  $region10: #{incept_init_block.9} parent=0 // pred_check
    _
  $region11: #{incept_init_block.9} parent=0 // pred_check_branch
    %14 = sbr.rel (0) target = $region13
  $region12: #{incept_init_block.9} parent=0 // pred_region
    _
  $region13: #{incept_init_block.9} parent=0 // pred_fallthru
    _
  // Predicated region
  $region14: #{incept_init_block.9} parent=0 // pred_check
    _
  $region15: #{incept_init_block.9} parent=0 // pred_check_branch
    %16 = sbr.rel (0) target = $region17
  $region16: #{incept_init_block.9} parent=0 // pred_region
    _
  $region17: #{incept_init_block.9} parent=0 // pred_fallthru
    _
  %v18 = vld [vmem:[%s0] sm:$0xf]
  %v19 = vld [vmem:[%s0 + $0x4] sm:$0xf]
  %v20 = vld [vmem:[%s0 + $0x8] sm:$0xf]
  %v21 = vld [vmem:[%s0 + $0xc] sm:$0xf]
  %v22 = vld [vmem:[%s0 + $0x10] sm:$0xf]
  %v23 = vld [vmem:[%s0 + $0x14] sm:$0xf]
  %v24 = vld [vmem:[%s0 + $0x18] sm:$0xf]
  %v25 = vld [vmem:[%s0 + $0x1c] sm:$0xf]
  %v26 = vld [vmem:[%s0 + $0x20] sm:$0xf]
  %v27 = vld [vmem:[%s0 + $0x24] sm:$0xf]
  %v28 = vld [vmem:[%s0 + $0x28] sm:$0xf]
  %v29 = vld [vmem:[%s0 + $0x2c] sm:$0xf]
  %v30 = vld [vmem:[%s0 + $0x30] sm:$0xf]
  %v31 = vld [vmem:[%s0 + $0x34] sm:$0xf]
  %v32 = vld [vmem:[%s0 + $0x38] sm:$0xf]
  %v33 = vld [vmem:[%s0 + $0x3c] sm:$0xf]
  %v34 = vld [vmem:[%s0 + $0x40] sm:$0xf]
  %v35 = vld [vmem:[%s0 + $0x44] sm:$0xf]
  %v36 = vld [vmem:[%s0 + $0x48] sm:$0xf]
  %v37 = vld [vmem:[%s0 + $0x4c] sm:$0xf]
  %v38 = vld [vmem:[%s0 + $0x50] sm:$0xf]
  %v39 = vld [vmem:[%s0 + $0x54] sm:$0xf]
  %v40 = vld [vmem:[%s0 + $0x58] sm:$0xf]
  %v41 = vld [vmem:[%s0 + $0x5c] sm:$0xf]
  %v42 = vld [vmem:[%s0 + $0x60] sm:$0xf]
  %v43 = vld [vmem:[%s0 + $0x64] sm:$0xf]
  %v44 = vld [vmem:[%s0 + $0x68] sm:$0xf]
  %v45 = vld [vmem:[%s0 + $0x6c] sm:$0xf]
  %v46 = vld [vmem:[%s0 + $0x70] sm:$0xf]
  %v47 = vld [vmem:[%s0 + $0x74] sm:$0xf]
  %v48 = vld [vmem:[%s0 + $0x78] sm:$0xf]
  %v49 = vld [vmem:[%s0 + $0x7c] sm:$0xf]
  %v50 = vld [vmem:[%s0 + $0x80] sm:$0xf]
  %v51 = vld [vmem:[%s0 + $0x84] sm:$0xf]
  %v52 = vld [vmem:[%s0 + $0x88] sm:$0xf]
  %v53 = vld [vmem:[%s0 + $0x8c] sm:$0xf]
  %v54 = vld [vmem:[%s0 + $0x90] sm:$0xf]
  %v55 = vld [vmem:[%s0 + $0x94] sm:$0xf]
  %v56 = vld [vmem:[%s0 + $0x98] sm:$0xf]
  %v57 = vld [vmem:[%s0 + $0x9c] sm:$0xf]
  %v58 = vld [vmem:[%s0 + $0xa0] sm:$0xf]
  %v59 = vld [vmem:[%s0 + $0xa4] sm:$0xf]
  %v60 = vld [vmem:[%s0 + $0xa8] sm:$0xf]
  %v61 = vld [vmem:[%s0 + $0xac] sm:$0xf]
  %v62 = vld [vmem:[%s0 + $0xb0] sm:$0xf]
  %v63 = vld [vmem:[%s0 + $0xb4] sm:$0xf]
  %v64 = vld [vmem:[%s0 + $0xb8] sm:$0xf]
  %v65 = vld [vmem:[%s0 + $0xbc] sm:$0xf]
  %v66 = vld [vmem:[%s0 + $0xc0] sm:$0xf]
  %v67 = vld [vmem:[%s0 + $0xc4] sm:$0xf]
  %v68 = vld [vmem:[%s0 + $0xc8] sm:$0xf]
  %v69 = vld [vmem:[%s0 + $0xcc] sm:$0xf]
  %v70 = vld [vmem:[%s0 + $0xd0] sm:$0xf]
  %v71 = vld [vmem:[%s0 + $0xd4] sm:$0xf]
  %v72 = vld [vmem:[%s0 + $0xd8] sm:$0xf]
  %v73 = vld [vmem:[%s0 + $0xdc] sm:$0xf]
  %v74 = vld [vmem:[%s0 + $0xe0] sm:$0xf]
  %v75 = vld [vmem:[%s0 + $0xe4] sm:$0xf]
  %v76 = vld [vmem:[%s0 + $0xe8] sm:$0xf]
  %v77 = vld [vmem:[%s0 + $0xec] sm:$0xf]
  %v78 = vld [vmem:[%s0 + $0xf0] sm:$0xf]
  %v79 = vld [vmem:[%s0 + $0xf4] sm:$0xf]
  %v80 = vld [vmem:[%s0 + $0xf8] sm:$0xf]
  %v81 = vld [vmem:[%s0 + $0xfc] sm:$0xf]
  %v82 = vld [vmem:[%s0 + $0x100] sm:$0xf]
  %v83 = vld [vmem:[%s0 + $0x104] sm:$0xf]
  %v84 = vld [vmem:[%s0 + $0x108] sm:$0xf]
  %v85 = vld [vmem:[%s0 + $0x10c] sm:$0xf]
  %v86 = vld [vmem:[%s0 + $0x110] sm:$0xf]
  %v87 = vld [vmem:[%s0 + $0x114] sm:$0xf]
  %v88 = vld [vmem:[%s0 + $0x118] sm:$0xf]
  %v89 = vld [vmem:[%s0 + $0x11c] sm:$0xf]
  %v90 = vld [vmem:[%s0 + $0x120] sm:$0x1]
  %v91 = vld [vmem:[%s1] sm:$0xf]
  %v92 = vld [vmem:[%s1 + $0x4] sm:$0xf]
  %v93 = vld [vmem:[%s1 + $0x8] sm:$0xf]
  %v94 = vld [vmem:[%s1 + $0xc] sm:$0x3]
  %v168 = vunpack.c.l.b16 %v18
  %v169 = vunpack.c.l.b16 %v19
  %v170 = vunpack.c.l.b16 %v20
  %v171 = vunpack.c.l.b16 %v21
  %v172 = vunpack.c.l.b16 %v22
  %v173 = vunpack.c.l.b16 %v23
  %v174 = vunpack.c.l.b16 %v24
  %v175 = vunpack.c.l.b16 %v25
  %v176 = vunpack.c.l.b16 %v26
  %v177 = vunpack.c.l.b16 %v27
  %v178 = vunpack.c.l.b16 %v28
  %v179 = vunpack.c.l.b16 %v29
  %v180 = vunpack.c.l.b16 %v30
  %v181 = vunpack.c.l.b16 %v31
  %v182 = vunpack.c.l.b16 %v32
  %v183 = vunpack.c.l.b16 %v33
  %v184 = vunpack.c.l.b16 %v34
  %v185 = vunpack.c.l.b16 %v35
  %v186 = vunpack.c.l.b16 %v36
  %v187 = vunpack.c.l.b16 %v37
  %v188 = vunpack.c.l.b16 %v38
  %v189 = vunpack.c.l.b16 %v39
  %v190 = vunpack.c.l.b16 %v40
  %v191 = vunpack.c.l.b16 %v41
  %v192 = vunpack.c.l.b16 %v42
  %v193 = vunpack.c.l.b16 %v43
  %v194 = vunpack.c.l.b16 %v44
  %v195 = vunpack.c.l.b16 %v45
  %v196 = vunpack.c.l.b16 %v46
  %v197 = vunpack.c.l.b16 %v47
  %v198 = vunpack.c.l.b16 %v48
  %v199 = vunpack.c.l.b16 %v49
  %v200 = vunpack.c.l.b16 %v50
  %v201 = vunpack.c.l.b16 %v51
  %v202 = vunpack.c.l.b16 %v52
  %v203 = vunpack.c.l.b16 %v53
  %v204 = vunpack.c.l.b16 %v54
  %v205 = vunpack.c.l.b16 %v55
  %v206 = vunpack.c.l.b16 %v56
  %v207 = vunpack.c.l.b16 %v57
  %v208 = vunpack.c.l.b16 %v58
  %v209 = vunpack.c.l.b16 %v59
  %v210 = vunpack.c.l.b16 %v60
  %v211 = vunpack.c.l.b16 %v61
  %v212 = vunpack.c.l.b16 %v62
  %v213 = vunpack.c.l.b16 %v63
  %v214 = vunpack.c.l.b16 %v64
  %v215 = vunpack.c.l.b16 %v65
  %v216 = vunpack.c.l.b16 %v66
  %v217 = vunpack.c.l.b16 %v67
  %v218 = vunpack.c.l.b16 %v68
  %v219 = vunpack.c.l.b16 %v69
  %v220 = vunpack.c.l.b16 %v70
  %v221 = vunpack.c.l.b16 %v71
  %v222 = vunpack.c.l.b16 %v72
  %v223 = vunpack.c.l.b16 %v73
  %v224 = vunpack.c.l.b16 %v74
  %v225 = vunpack.c.l.b16 %v75
  %v226 = vunpack.c.l.b16 %v76
  %v227 = vunpack.c.l.b16 %v77
  %v228 = vunpack.c.l.b16 %v78
  %v229 = vunpack.c.l.b16 %v79
  %v230 = vunpack.c.l.b16 %v80
  %v231 = vunpack.c.l.b16 %v81
  %v232 = vunpack.c.l.b16 %v82
  %v233 = vunpack.c.l.b16 %v83
  %v234 = vunpack.c.l.b16 %v84
  %v235 = vunpack.c.l.b16 %v85
  %v236 = vunpack.c.l.b16 %v86
  %v237 = vunpack.c.l.b16 %v87
  %v238 = vunpack.c.l.b16 %v88
  %v239 = vunpack.c.l.b16 %v89
  %v240 = vunpack.c.l.b16 %v90
  %v241 = vpack.c.b16 %v169, %v168
  %v242 = vpack.c.b16 %v171, %v170
  %v243 = vpack.c.b16 %v173, %v172
  %v244 = vpack.c.b16 %v175, %v174
  %v245 = vpack.c.b16 %v177, %v176
  %v246 = vpack.c.b16 %v179, %v178
  %v247 = vpack.c.b16 %v181, %v180
  %v248 = vpack.c.b16 %v183, %v182
  %v249 = vpack.c.b16 %v185, %v184
  %v250 = vpack.c.b16 %v187, %v186
  %v251 = vpack.c.b16 %v189, %v188
  %v252 = vpack.c.b16 %v191, %v190
  %v253 = vpack.c.b16 %v193, %v192
  %v254 = vpack.c.b16 %v195, %v194
  %v255 = vpack.c.b16 %v197, %v196
  %v256 = vpack.c.b16 %v199, %v198
  %v257 = vpack.c.b16 %v201, %v200
  %v258 = vpack.c.b16 %v203, %v202
  %v259 = vpack.c.b16 %v205, %v204
  %v260 = vpack.c.b16 %v207, %v206
  %v261 = vpack.c.b16 %v209, %v208
  %v262 = vpack.c.b16 %v211, %v210
  %v263 = vpack.c.b16 %v213, %v212
  %v264 = vpack.c.b16 %v215, %v214
  %v265 = vpack.c.b16 %v217, %v216
  %v266 = vpack.c.b16 %v219, %v218
  %v267 = vpack.c.b16 %v221, %v220
  %v268 = vpack.c.b16 %v223, %v222
  %v269 = vpack.c.b16 %v225, %v224
  %v270 = vpack.c.b16 %v227, %v226
  %v271 = vpack.c.b16 %v229, %v228
  %v272 = vpack.c.b16 %v231, %v230
  %v273 = vpack.c.b16 %v233, %v232
  %v274 = vpack.c.b16 %v235, %v234
  %v275 = vpack.c.b16 %v237, %v236
  %v276 = vpack.c.b16 %v239, %v238
  %v277 = vpack.c.b16 %v240, %v240
  %v282 = vunpack.c.l.b16 %v91
  %v283 = vunpack.c.l.b16 %v92
  %v284 = vunpack.c.l.b16 %v93
  %v285 = vunpack.c.l.b16 %v94
  %v286 = vpack.c.b16 %v283, %v282
  %v287 = vpack.c.b16 %v285, %v284
  %vm289 = vcmask 220160
  %v291 = vsel %vm289, %v241, 0
  %v294 = vsel %vm289, %v242, 0
  %v297 = vsel %vm289, %v243, 0
  %v300 = vsel %vm289, %v244, 0
  %v303 = vsel %vm289, %v245, 0
  %v306 = vsel %vm289, %v246, 0
  %v309 = vsel %vm289, %v247, 0
  %v312 = vsel %vm289, %v248, 0
  %v315 = vsel %vm289, %v249, 0
  %v318 = vsel %vm289, %v250, 0
  %v321 = vsel %vm289, %v251, 0
  %v324 = vsel %vm289, %v252, 0
  %v327 = vsel %vm289, %v253, 0
  %v330 = vsel %vm289, %v254, 0
  %v333 = vsel %vm289, %v255, 0
  %v336 = vsel %vm289, %v256, 0
  %v339 = vsel %vm289, %v257, 0
  %v342 = vsel %vm289, %v258, 0
  %v345 = vsel %vm289, %v259, 0
  %v348 = vsel %vm289, %v260, 0
  %v351 = vsel %vm289, %v261, 0
  %v354 = vsel %vm289, %v262, 0
  %v357 = vsel %vm289, %v263, 0
  %v360 = vsel %vm289, %v264, 0
  %v363 = vsel %vm289, %v265, 0
  %v366 = vsel %vm289, %v266, 0
  %v369 = vsel %vm289, %v267, 0
  %v372 = vsel %vm289, %v268, 0
  %v375 = vsel %vm289, %v269, 0
  %v378 = vsel %vm289, %v270, 0
  %v381 = vsel %vm289, %v271, 0
  %v384 = vsel %vm289, %v272, 0
  %v387 = vsel %vm289, %v273, 0
  %v390 = vsel %vm289, %v274, 0
  %v393 = vsel %vm289, %v275, 0
  %v396 = vsel %vm289, %v276, 0
  %v399 = vsel %vm289, %v277, 0
  %vm401 = vcmask 1044480
  %vm402 = vcmask 1045504
  %v403 = vsel %vm401, 4294967295, 65535
  %v404 = vsel %vm402, %v403, 0
  %v406 = vand.u32 %v287, %v404
  %408 = vmatprep.subr.bf16.mxu0 0
  %409 = vmatpush1.bf16.msra.mxu0 %v286
  %410 = vmatprep.subr.bf16.mxu0 0
  %411 = vmatpush1.bf16.msra.mxu0 %v406
  %412 = vmatprep.subr.bf16.mxu0 0
  %413 = vmatpush1.bf16.msra.mxu0 0
  %414 = vmatprep.subr.bf16.mxu0 0
  %415 = vmatpush1.bf16.msra.mxu0 0
  %416 = vmatprep.subr.bf16.mxu0 0
  %417 = vmatpush1.bf16.msra.mxu0 0
  %418 = vmatprep.subr.bf16.mxu0 0
  %419 = vmatpush1.bf16.msra.mxu0 0
  %420 = vmatprep.subr.bf16.mxu0 0
  %421 = vmatpush1.bf16.msra.mxu0 0
  %422 = vmatprep.subr.bf16.mxu0 0
  %423 = vmatpush1.bf16.msra.mxu0 0
  %424 = vmatprep.subr.bf16.mxu0 0
  %425 = vmatpush1.bf16.msra.mxu0 0
  %426 = vmatprep.subr.bf16.mxu0 0
  %427 = vmatpush1.bf16.msra.mxu0 0
  %428 = vmatprep.subr.bf16.mxu0 0
  %429 = vmatpush1.bf16.msra.mxu0 0
  %430 = vmatprep.subr.bf16.mxu0 0
  %431 = vmatpush1.bf16.msra.mxu0 0
  %432 = vmatprep.subr.bf16.mxu0 0
  %433 = vmatpush1.bf16.msra.mxu0 0
  %434 = vmatprep.subr.bf16.mxu0 0
  %435 = vmatpush1.bf16.msra.mxu0 0
  %436 = vmatprep.subr.bf16.mxu0 0
  %437 = vmatpush1.bf16.msra.mxu0 0
  %438 = vmatprep.subr.bf16.mxu0 0
  %439 = vmatpush1.bf16.msra.mxu0 0
  %440 = vmatprep.mubr.bf16.mxu0 0
  %441 = vmatmul.mubr.bf16.gmra.mrb[0].mxu0 %v291
  %v442 = vpop.f32.mrb[0].mxu0
  %v443 = vadd.f32 0.0, %v442
  %v444 = vpop.f32.mrb[0].mxu0
  %v445 = vpop.f32.mrb[0].mxu0
  %v446 = vadd.f32 0.0, %v445
  %v447 = vpop.f32.mrb[0].mxu0
  %448 = vmatprep.mubr.bf16.mxu0 0
  %449 = vmatmul.mubr.bf16.gmra.mrb[0].mxu0 %v294
  %v450 = vpop.f32.mrb[0].mxu0
  %v451 = vadd.f32 0.0, %v450
  %v452 = vpop.f32.mrb[0].mxu0
  %v453 = vpop.f32.mrb[0].mxu0
  %v454 = vadd.f32 0.0, %v453
  %v455 = vpop.f32.mrb[0].mxu0
  %456 = vmatprep.mubr.bf16.mxu0 0
  %457 = vmatmul.mubr.bf16.gmra.mrb[0].mxu0 %v297
  %v458 = vpop.f32.mrb[0].mxu0
  %v459 = vadd.f32 0.0, %v458
  %v460 = vpop.f32.mrb[0].mxu0
  %v461 = vpop.f32.mrb[0].mxu0
  %v462 = vadd.f32 0.0, %v461
  %v463 = vpop.f32.mrb[0].mxu0
  %464 = vmatprep.mubr.bf16.mxu0 0
  %465 = vmatmul.mubr.bf16.gmra.mrb[0].mxu0 %v300
  %v466 = vpop.f32.mrb[0].mxu0
  %v467 = vadd.f32 0.0, %v466
  %v468 = vpop.f32.mrb[0].mxu0
  %v469 = vpop.f32.mrb[0].mxu0
  %v470 = vadd.f32 0.0, %v469
  %v471 = vpop.f32.mrb[0].mxu0
  %472 = vmatprep.mubr.bf16.mxu0 0
  %473 = vmatmul.mubr.bf16.gmra.mrb[0].mxu0 %v303
  %v474 = vpop.f32.mrb[0].mxu0
  %v475 = vadd.f32 0.0, %v474
  %v476 = vpop.f32.mrb[0].mxu0
  %v477 = vpop.f32.mrb[0].mxu0
  %v478 = vadd.f32 0.0, %v477
  %v479 = vpop.f32.mrb[0].mxu0
  %480 = vmatprep.mubr.bf16.mxu0 0
  %481 = vmatmul.mubr.bf16.gmra.mrb[0].mxu0 %v306
  %v482 = vpop.f32.mrb[0].mxu0
  %v483 = vadd.f32 0.0, %v482
  %v484 = vpop.f32.mrb[0].mxu0
  %v485 = vpop.f32.mrb[0].mxu0
  %v486 = vadd.f32 0.0, %v485
  %v487 = vpop.f32.mrb[0].mxu0
  %488 = vmatprep.mubr.bf16.mxu0 0
  %489 = vmatmul.mubr.bf16.gmra.mrb[0].mxu0 %v309
  %v490 = vpop.f32.mrb[0].mxu0
  %v491 = vadd.f32 0.0, %v490
  %v492 = vpop.f32.mrb[0].mxu0
  %v493 = vpop.f32.mrb[0].mxu0
  %v494 = vadd.f32 0.0, %v493
  %v495 = vpop.f32.mrb[0].mxu0
  %496 = vmatprep.mubr.bf16.mxu0 0
  %497 = vmatmul.mubr.bf16.gmra.mrb[0].mxu0 %v312
  %v498 = vpop.f32.mrb[0].mxu0
  %v499 = vadd.f32 0.0, %v498
  %v500 = vpop.f32.mrb[0].mxu0
  %v501 = vpop.f32.mrb[0].mxu0
  %v502 = vadd.f32 0.0, %v501
  %v503 = vpop.f32.mrb[0].mxu0
  %504 = vmatprep.mubr.bf16.mxu0 0
  %505 = vmatmul.mubr.bf16.gmra.mrb[0].mxu0 %v315
  %v506 = vpop.f32.mrb[0].mxu0
  %v507 = vadd.f32 0.0, %v506
  %v508 = vpop.f32.mrb[0].mxu0
  %v509 = vpop.f32.mrb[0].mxu0
  %v510 = vadd.f32 0.0, %v509
  %v511 = vpop.f32.mrb[0].mxu0
  %512 = vmatprep.mubr.bf16.mxu0 0
  %513 = vmatmul.mubr.bf16.gmra.mrb[0].mxu0 %v318
  %v514 = vpop.f32.mrb[0].mxu0
  %v515 = vadd.f32 0.0, %v514
  %v516 = vpop.f32.mrb[0].mxu0
  %v517 = vpop.f32.mrb[0].mxu0
  %v518 = vadd.f32 0.0, %v517
  %v519 = vpop.f32.mrb[0].mxu0
  %520 = vmatprep.mubr.bf16.mxu0 0
  %521 = vmatmul.mubr.bf16.gmra.mrb[0].mxu0 %v321
  %v522 = vpop.f32.mrb[0].mxu0
  %v523 = vadd.f32 0.0, %v522
  %v524 = vpop.f32.mrb[0].mxu0
  %v525 = vpop.f32.mrb[0].mxu0
  %v526 = vadd.f32 0.0, %v525
  %v527 = vpop.f32.mrb[0].mxu0
  %528 = vmatprep.mubr.bf16.mxu0 0
  %529 = vmatmul.mubr.bf16.gmra.mrb[0].mxu0 %v324
  %v530 = vpop.f32.mrb[0].mxu0
  %v531 = vadd.f32 0.0, %v530
  %v532 = vpop.f32.mrb[0].mxu0
  %v533 = vpop.f32.mrb[0].mxu0
  %v534 = vadd.f32 0.0, %v533
  %v535 = vpop.f32.mrb[0].mxu0
  %536 = vmatprep.mubr.bf16.mxu0 0
  %537 = vmatmul.mubr.bf16.gmra.mrb[0].mxu0 %v327
  %v538 = vpop.f32.mrb[0].mxu0
  %v539 = vadd.f32 0.0, %v538
  %v540 = vpop.f32.mrb[0].mxu0
  %v541 = vpop.f32.mrb[0].mxu0
  %v542 = vadd.f32 0.0, %v541
  %v543 = vpop.f32.mrb[0].mxu0
  %544 = vmatprep.mubr.bf16.mxu0 0
  %545 = vmatmul.mubr.bf16.gmra.mrb[0].mxu0 %v330
  %v546 = vpop.f32.mrb[0].mxu0
  %v547 = vadd.f32 0.0, %v546
  %v548 = vpop.f32.mrb[0].mxu0
  %v549 = vpop.f32.mrb[0].mxu0
  %v550 = vadd.f32 0.0, %v549
  %v551 = vpop.f32.mrb[0].mxu0
  %552 = vmatprep.mubr.bf16.mxu0 0
  %553 = vmatmul.mubr.bf16.gmra.mrb[0].mxu0 %v333
  %v554 = vpop.f32.mrb[0].mxu0
  %v555 = vadd.f32 0.0, %v554
  %v556 = vpop.f32.mrb[0].mxu0
  %v557 = vpop.f32.mrb[0].mxu0
  %v558 = vadd.f32 0.0, %v557
  %v559 = vpop.f32.mrb[0].mxu0
  %560 = vmatprep.mubr.bf16.mxu0 0
  %561 = vmatmul.mubr.bf16.gmra.mrb[0].mxu0 %v336
  %v562 = vpop.f32.mrb[0].mxu0
  %v563 = vadd.f32 0.0, %v562
  %v564 = vpop.f32.mrb[0].mxu0
  %v565 = vpop.f32.mrb[0].mxu0
  %v566 = vadd.f32 0.0, %v565
  %v567 = vpop.f32.mrb[0].mxu0
  %568 = vmatprep.mubr.bf16.mxu0 0
  %569 = vmatmul.mubr.bf16.gmra.mrb[0].mxu0 %v339
  %v570 = vpop.f32.mrb[0].mxu0
  %v571 = vadd.f32 0.0, %v570
  %v572 = vpop.f32.mrb[0].mxu0
  %v573 = vpop.f32.mrb[0].mxu0
  %v574 = vadd.f32 0.0, %v573
  %v575 = vpop.f32.mrb[0].mxu0
  %576 = vmatprep.mubr.bf16.mxu0 0
  %577 = vmatmul.mubr.bf16.gmra.mrb[0].mxu0 %v342
  %v578 = vpop.f32.mrb[0].mxu0
  %v579 = vadd.f32 0.0, %v578
  %v580 = vpop.f32.mrb[0].mxu0
  %v581 = vpop.f32.mrb[0].mxu0
  %v582 = vadd.f32 0.0, %v581
  %v583 = vpop.f32.mrb[0].mxu0
  %584 = vmatprep.mubr.bf16.mxu0 0
  %585 = vmatmul.mubr.bf16.gmra.mrb[0].mxu0 %v345
  %v586 = vpop.f32.mrb[0].mxu0
  %v587 = vadd.f32 0.0, %v586
  %v588 = vpop.f32.mrb[0].mxu0
  %v589 = vpop.f32.mrb[0].mxu0
  %v590 = vadd.f32 0.0, %v589
  %v591 = vpop.f32.mrb[0].mxu0
  %592 = vmatprep.mubr.bf16.mxu0 0
  %593 = vmatmul.mubr.bf16.gmra.mrb[0].mxu0 %v348
  %v594 = vpop.f32.mrb[0].mxu0
  %v595 = vadd.f32 0.0, %v594
  %v596 = vpop.f32.mrb[0].mxu0
  %v597 = vpop.f32.mrb[0].mxu0
  %v598 = vadd.f32 0.0, %v597
  %v599 = vpop.f32.mrb[0].mxu0
  %600 = vmatprep.mubr.bf16.mxu0 0
  %601 = vmatmul.mubr.bf16.gmra.mrb[0].mxu0 %v351
  %v602 = vpop.f32.mrb[0].mxu0
  %v603 = vadd.f32 0.0, %v602
  %v604 = vpop.f32.mrb[0].mxu0
  %v605 = vpop.f32.mrb[0].mxu0
  %v606 = vadd.f32 0.0, %v605
  %v607 = vpop.f32.mrb[0].mxu0
  %608 = vmatprep.mubr.bf16.mxu0 0
  %609 = vmatmul.mubr.bf16.gmra.mrb[0].mxu0 %v354
  %v610 = vpop.f32.mrb[0].mxu0
  %v611 = vadd.f32 0.0, %v610
  %v612 = vpop.f32.mrb[0].mxu0
  %v613 = vpop.f32.mrb[0].mxu0
  %v614 = vadd.f32 0.0, %v613
  %v615 = vpop.f32.mrb[0].mxu0
  %616 = vmatprep.mubr.bf16.mxu0 0
  %617 = vmatmul.mubr.bf16.gmra.mrb[0].mxu0 %v357
  %v618 = vpop.f32.mrb[0].mxu0
  %v619 = vadd.f32 0.0, %v618
  %v620 = vpop.f32.mrb[0].mxu0
  %v621 = vpop.f32.mrb[0].mxu0
  %v622 = vadd.f32 0.0, %v621
  %v623 = vpop.f32.mrb[0].mxu0
  %624 = vmatprep.mubr.bf16.mxu0 0
  %625 = vmatmul.mubr.bf16.gmra.mrb[0].mxu0 %v360
  %v626 = vpop.f32.mrb[0].mxu0
  %v627 = vadd.f32 0.0, %v626
  %v628 = vpop.f32.mrb[0].mxu0
  %v629 = vpop.f32.mrb[0].mxu0
  %v630 = vadd.f32 0.0, %v629
  %v631 = vpop.f32.mrb[0].mxu0
  %632 = vmatprep.mubr.bf16.mxu0 0
  %633 = vmatmul.mubr.bf16.gmra.mrb[0].mxu0 %v363
  %v634 = vpop.f32.mrb[0].mxu0
  %v635 = vadd.f32 0.0, %v634
  %v636 = vpop.f32.mrb[0].mxu0
  %v637 = vpop.f32.mrb[0].mxu0
  %v638 = vadd.f32 0.0, %v637
  %v639 = vpop.f32.mrb[0].mxu0
  %640 = vmatprep.mubr.bf16.mxu0 0
  %641 = vmatmul.mubr.bf16.gmra.mrb[0].mxu0 %v366
  %v642 = vpop.f32.mrb[0].mxu0
  %v643 = vadd.f32 0.0, %v642
  %v644 = vpop.f32.mrb[0].mxu0
  %v645 = vpop.f32.mrb[0].mxu0
  %v646 = vadd.f32 0.0, %v645
  %v647 = vpop.f32.mrb[0].mxu0
  %648 = vmatprep.mubr.bf16.mxu0 0
  %649 = vmatmul.mubr.bf16.gmra.mrb[0].mxu0 %v369
  %v650 = vpop.f32.mrb[0].mxu0
  %v651 = vadd.f32 0.0, %v650
  %v652 = vpop.f32.mrb[0].mxu0
  %v653 = vpop.f32.mrb[0].mxu0
  %v654 = vadd.f32 0.0, %v653
  %v655 = vpop.f32.mrb[0].mxu0
  %656 = vmatprep.mubr.bf16.mxu0 0
  %657 = vmatmul.mubr.bf16.gmra.mrb[0].mxu0 %v372
  %v658 = vpop.f32.mrb[0].mxu0
  %v659 = vadd.f32 0.0, %v658
  %v660 = vpop.f32.mrb[0].mxu0
  %v661 = vpop.f32.mrb[0].mxu0
  %v662 = vadd.f32 0.0, %v661
  %v663 = vpop.f32.mrb[0].mxu0
  %664 = vmatprep.mubr.bf16.mxu0 0
  %665 = vmatmul.mubr.bf16.gmra.mrb[0].mxu0 %v375
  %v666 = vpop.f32.mrb[0].mxu0
  %v667 = vadd.f32 0.0, %v666
  %v668 = vpop.f32.mrb[0].mxu0
  %v669 = vpop.f32.mrb[0].mxu0
  %v670 = vadd.f32 0.0, %v669
  %v671 = vpop.f32.mrb[0].mxu0
  %672 = vmatprep.mubr.bf16.mxu0 0
  %673 = vmatmul.mubr.bf16.gmra.mrb[0].mxu0 %v378
  %v674 = vpop.f32.mrb[0].mxu0
  %v675 = vadd.f32 0.0, %v674
  %v676 = vpop.f32.mrb[0].mxu0
  %v677 = vpop.f32.mrb[0].mxu0
  %v678 = vadd.f32 0.0, %v677
  %v679 = vpop.f32.mrb[0].mxu0
  %680 = vmatprep.mubr.bf16.mxu0 0
  %681 = vmatmul.mubr.bf16.gmra.mrb[0].mxu0 %v381
  %v682 = vpop.f32.mrb[0].mxu0
  %v683 = vadd.f32 0.0, %v682
  %v684 = vpop.f32.mrb[0].mxu0
  %v685 = vpop.f32.mrb[0].mxu0
  %v686 = vadd.f32 0.0, %v685
  %v687 = vpop.f32.mrb[0].mxu0
  %688 = vmatprep.mubr.bf16.mxu0 0
  %689 = vmatmul.mubr.bf16.gmra.mrb[0].mxu0 %v384
  %v690 = vpop.f32.mrb[0].mxu0
  %v691 = vadd.f32 0.0, %v690
  %v692 = vpop.f32.mrb[0].mxu0
  %v693 = vpop.f32.mrb[0].mxu0
  %v694 = vadd.f32 0.0, %v693
  %v695 = vpop.f32.mrb[0].mxu0
  %696 = vmatprep.mubr.bf16.mxu0 0
  %697 = vmatmul.mubr.bf16.gmra.mrb[0].mxu0 %v387
  %v698 = vpop.f32.mrb[0].mxu0
  %v699 = vadd.f32 0.0, %v698
  %v700 = vpop.f32.mrb[0].mxu0
  %v701 = vpop.f32.mrb[0].mxu0
  %v702 = vadd.f32 0.0, %v701
  %v703 = vpop.f32.mrb[0].mxu0
  %704 = vmatprep.mubr.bf16.mxu0 0
  %705 = vmatmul.mubr.bf16.gmra.mrb[0].mxu0 %v390
  %v706 = vpop.f32.mrb[0].mxu0
  %v707 = vadd.f32 0.0, %v706
  %v708 = vpop.f32.mrb[0].mxu0
  %v709 = vpop.f32.mrb[0].mxu0
  %v710 = vadd.f32 0.0, %v709
  %v711 = vpop.f32.mrb[0].mxu0
  %712 = vmatprep.mubr.bf16.mxu0 0
  %713 = vmatmul.mubr.bf16.gmra.mrb[0].mxu0 %v393
  %v714 = vpop.f32.mrb[0].mxu0
  %v715 = vadd.f32 0.0, %v714
  %v716 = vpop.f32.mrb[0].mxu0
  %v717 = vpop.f32.mrb[0].mxu0
  %v718 = vadd.f32 0.0, %v717
  %v719 = vpop.f32.mrb[0].mxu0
  %720 = vmatprep.mubr.bf16.mxu0 0
  %721 = vmatmul.mubr.bf16.gmra.mrb[0].mxu0 %v396
  %v722 = vpop.f32.mrb[0].mxu0
  %v723 = vadd.f32 0.0, %v722
  %v724 = vpop.f32.mrb[0].mxu0
  %v725 = vpop.f32.mrb[0].mxu0
  %v726 = vadd.f32 0.0, %v725
  %v727 = vpop.f32.mrb[0].mxu0
  %728 = vmatprep.mubr.bf16.mxu0 0
  %729 = vmatmul.mubr.bf16.gmra.mrb[0].mxu0 %v399
  %v730 = vpop.f32.mrb[0].mxu0
  %v731 = vadd.f32 0.0, %v730
  %v732 = vpop.f32.mrb[0].mxu0
  %v733 = vpop.f32.mrb[0].mxu0
  %v734 = vpop.f32.mrb[0].mxu0
  %735 = vdwg.mxu0
  %v736 = vld [vmem:[%s2] sm:$0x1]
  %v738 = vlaneseq
  %v739 = vshrl.u32 %v738, 7
  %v740 = vsub.s32 0, %v739
  %v741 = vrot.slane %v736, %v740
  %v743 = vmul.f32 %v443, %v741
  %v744 = vmul.f32 %v446, %v741
  %v745 = vmul.f32 %v451, %v741
  %v746 = vmul.f32 %v454, %v741
  %v747 = vmul.f32 %v459, %v741
  %v748 = vmul.f32 %v462, %v741
  %v749 = vmul.f32 %v467, %v741
  %v750 = vmul.f32 %v470, %v741
  %v751 = vmul.f32 %v475, %v741
  %v752 = vmul.f32 %v478, %v741
  %v753 = vmul.f32 %v483, %v741
  %v754 = vmul.f32 %v486, %v741
  %v755 = vmul.f32 %v491, %v741
  %v756 = vmul.f32 %v494, %v741
  %v757 = vmul.f32 %v499, %v741
  %v758 = vmul.f32 %v502, %v741
  %v759 = vmul.f32 %v507, %v741
  %v760 = vmul.f32 %v510, %v741
  %v761 = vmul.f32 %v515, %v741
  %v762 = vmul.f32 %v518, %v741
  %v763 = vmul.f32 %v523, %v741
  %v764 = vmul.f32 %v526, %v741
  %v765 = vmul.f32 %v531, %v741
  %v766 = vmul.f32 %v534, %v741
  %v767 = vmul.f32 %v539, %v741
  %v768 = vmul.f32 %v542, %v741
  %v769 = vmul.f32 %v547, %v741
  %v770 = vmul.f32 %v550, %v741
  %v771 = vmul.f32 %v555, %v741
  %v772 = vmul.f32 %v558, %v741
  %v773 = vmul.f32 %v563, %v741
  %v774 = vmul.f32 %v566, %v741
  %v775 = vmul.f32 %v571, %v741
  %v776 = vmul.f32 %v574, %v741
  %v777 = vmul.f32 %v579, %v741
  %v778 = vmul.f32 %v582, %v741
  %v779 = vmul.f32 %v587, %v741
  %v780 = vmul.f32 %v590, %v741
  %v781 = vmul.f32 %v595, %v741
  %v782 = vmul.f32 %v598, %v741
  %v783 = vmul.f32 %v603, %v741
  %v784 = vmul.f32 %v606, %v741
  %v785 = vmul.f32 %v611, %v741
  %v786 = vmul.f32 %v614, %v741
  %v787 = vmul.f32 %v619, %v741
  %v788 = vmul.f32 %v622, %v741
  %v789 = vmul.f32 %v627, %v741
  %v790 = vmul.f32 %v630, %v741
  %v791 = vmul.f32 %v635, %v741
  %v792 = vmul.f32 %v638, %v741
  %v793 = vmul.f32 %v643, %v741
  %v794 = vmul.f32 %v646, %v741
  %v795 = vmul.f32 %v651, %v741
  %v796 = vmul.f32 %v654, %v741
  %v797 = vmul.f32 %v659, %v741
  %v798 = vmul.f32 %v662, %v741
  %v799 = vmul.f32 %v667, %v741
  %v800 = vmul.f32 %v670, %v741
  %v801 = vmul.f32 %v675, %v741
  %v802 = vmul.f32 %v678, %v741
  %v803 = vmul.f32 %v683, %v741
  %v804 = vmul.f32 %v686, %v741
  %v805 = vmul.f32 %v691, %v741
  %v806 = vmul.f32 %v694, %v741
  %v807 = vmul.f32 %v699, %v741
  %v808 = vmul.f32 %v702, %v741
  %v809 = vmul.f32 %v707, %v741
  %v810 = vmul.f32 %v710, %v741
  %v811 = vmul.f32 %v715, %v741
  %v812 = vmul.f32 %v718, %v741
  %v813 = vmul.f32 %v723, %v741
  %v814 = vmul.f32 %v726, %v741
  %v815 = vmul.f32 %v731, %v741
  %v816 = vld [vmem:[%s3] sm:$0x1]
  %v818 = vlaneseq
  %v819 = vshrl.u32 %v818, 7
  %v820 = vsub.s32 0, %v819
  %v821 = vrot.slane %v816, %v820
  %v823 = vadd.f32 %v743, %v821
  %v824 = vadd.f32 %v744, %v821
  %v825 = vadd.f32 %v745, %v821
  %v826 = vadd.f32 %v746, %v821
  %v827 = vadd.f32 %v747, %v821
  %v828 = vadd.f32 %v748, %v821
  %v829 = vadd.f32 %v749, %v821
  %v830 = vadd.f32 %v750, %v821
  %v831 = vadd.f32 %v751, %v821
  %v832 = vadd.f32 %v752, %v821
  %v833 = vadd.f32 %v753, %v821
  %v834 = vadd.f32 %v754, %v821
  %v835 = vadd.f32 %v755, %v821
  %v836 = vadd.f32 %v756, %v821
  %v837 = vadd.f32 %v757, %v821
  %v838 = vadd.f32 %v758, %v821
  %v839 = vadd.f32 %v759, %v821
  %v840 = vadd.f32 %v760, %v821
  %v841 = vadd.f32 %v761, %v821
  %v842 = vadd.f32 %v762, %v821
  %v843 = vadd.f32 %v763, %v821
  %v844 = vadd.f32 %v764, %v821
  %v845 = vadd.f32 %v765, %v821
  %v846 = vadd.f32 %v766, %v821
  %v847 = vadd.f32 %v767, %v821
  %v848 = vadd.f32 %v768, %v821
  %v849 = vadd.f32 %v769, %v821
  %v850 = vadd.f32 %v770, %v821
  %v851 = vadd.f32 %v771, %v821
  %v852 = vadd.f32 %v772, %v821
  %v853 = vadd.f32 %v773, %v821
  %v854 = vadd.f32 %v774, %v821
  %v855 = vadd.f32 %v775, %v821
  %v856 = vadd.f32 %v776, %v821
  %v857 = vadd.f32 %v777, %v821
  %v858 = vadd.f32 %v778, %v821
  %v859 = vadd.f32 %v779, %v821
  %v860 = vadd.f32 %v780, %v821
  %v861 = vadd.f32 %v781, %v821
  %v862 = vadd.f32 %v782, %v821
  %v863 = vadd.f32 %v783, %v821
  %v864 = vadd.f32 %v784, %v821
  %v865 = vadd.f32 %v785, %v821
  %v866 = vadd.f32 %v786, %v821
  %v867 = vadd.f32 %v787, %v821
  %v868 = vadd.f32 %v788, %v821
  %v869 = vadd.f32 %v789, %v821
  %v870 = vadd.f32 %v790, %v821
  %v871 = vadd.f32 %v791, %v821
  %v872 = vadd.f32 %v792, %v821
  %v873 = vadd.f32 %v793, %v821
  %v874 = vadd.f32 %v794, %v821
  %v875 = vadd.f32 %v795, %v821
  %v876 = vadd.f32 %v796, %v821
  %v877 = vadd.f32 %v797, %v821
  %v878 = vadd.f32 %v798, %v821
  %v879 = vadd.f32 %v799, %v821
  %v880 = vadd.f32 %v800, %v821
  %v881 = vadd.f32 %v801, %v821
  %v882 = vadd.f32 %v802, %v821
  %v883 = vadd.f32 %v803, %v821
  %v884 = vadd.f32 %v804, %v821
  %v885 = vadd.f32 %v805, %v821
  %v886 = vadd.f32 %v806, %v821
  %v887 = vadd.f32 %v807, %v821
  %v888 = vadd.f32 %v808, %v821
  %v889 = vadd.f32 %v809, %v821
  %v890 = vadd.f32 %v810, %v821
  %v891 = vadd.f32 %v811, %v821
  %v892 = vadd.f32 %v812, %v821
  %v893 = vadd.f32 %v813, %v821
  %v894 = vadd.f32 %v814, %v821
  %v895 = vadd.f32 %v815, %v821
  %v896 = vmax.f32 %v823, 0.0
  %v897 = vmax.f32 %v824, 0.0
  %v898 = vmax.f32 %v825, 0.0
  %v899 = vmax.f32 %v826, 0.0
  %v900 = vmax.f32 %v827, 0.0
  %v901 = vmax.f32 %v828, 0.0
  %v902 = vmax.f32 %v829, 0.0
  %v903 = vmax.f32 %v830, 0.0
  %v904 = vmax.f32 %v831, 0.0
  %v905 = vmax.f32 %v832, 0.0
  %v906 = vmax.f32 %v833, 0.0
  %v907 = vmax.f32 %v834, 0.0
  %v908 = vmax.f32 %v835, 0.0
  %v909 = vmax.f32 %v836, 0.0
  %v910 = vmax.f32 %v837, 0.0
  %v911 = vmax.f32 %v838, 0.0
  %v912 = vmax.f32 %v839, 0.0
  %v913 = vmax.f32 %v840, 0.0
  %v914 = vmax.f32 %v841, 0.0
  %v915 = vmax.f32 %v842, 0.0
  %v916 = vmax.f32 %v843, 0.0
  %v917 = vmax.f32 %v844, 0.0
  %v918 = vmax.f32 %v845, 0.0
  %v919 = vmax.f32 %v846, 0.0
  %v920 = vmax.f32 %v847, 0.0
  %v921 = vmax.f32 %v848, 0.0
  %v922 = vmax.f32 %v849, 0.0
  %v923 = vmax.f32 %v850, 0.0
  %v924 = vmax.f32 %v851, 0.0
  %v925 = vmax.f32 %v852, 0.0
  %v926 = vmax.f32 %v853, 0.0
  %v927 = vmax.f32 %v854, 0.0
  %v928 = vmax.f32 %v855, 0.0
  %v929 = vmax.f32 %v856, 0.0
  %v930 = vmax.f32 %v857, 0.0
  %v931 = vmax.f32 %v858, 0.0
  %v932 = vmax.f32 %v859, 0.0
  %v933 = vmax.f32 %v860, 0.0
  %v934 = vmax.f32 %v861, 0.0
  %v935 = vmax.f32 %v862, 0.0
  %v936 = vmax.f32 %v863, 0.0
  %v937 = vmax.f32 %v864, 0.0
  %v938 = vmax.f32 %v865, 0.0
  %v939 = vmax.f32 %v866, 0.0
  %v940 = vmax.f32 %v867, 0.0
  %v941 = vmax.f32 %v868, 0.0
  %v942 = vmax.f32 %v869, 0.0
  %v943 = vmax.f32 %v870, 0.0
  %v944 = vmax.f32 %v871, 0.0
  %v945 = vmax.f32 %v872, 0.0
  %v946 = vmax.f32 %v873, 0.0
  %v947 = vmax.f32 %v874, 0.0
  %v948 = vmax.f32 %v875, 0.0
  %v949 = vmax.f32 %v876, 0.0
  %v950 = vmax.f32 %v877, 0.0
  %v951 = vmax.f32 %v878, 0.0
  %v952 = vmax.f32 %v879, 0.0
  %v953 = vmax.f32 %v880, 0.0
  %v954 = vmax.f32 %v881, 0.0
  %v955 = vmax.f32 %v882, 0.0
  %v956 = vmax.f32 %v883, 0.0
  %v957 = vmax.f32 %v884, 0.0
  %v958 = vmax.f32 %v885, 0.0
  %v959 = vmax.f32 %v886, 0.0
  %v960 = vmax.f32 %v887, 0.0
  %v961 = vmax.f32 %v888, 0.0
  %v962 = vmax.f32 %v889, 0.0
  %v963 = vmax.f32 %v890, 0.0
  %v964 = vmax.f32 %v891, 0.0
  %v965 = vmax.f32 %v892, 0.0
  %v966 = vmax.f32 %v893, 0.0
  %v967 = vmax.f32 %v894, 0.0
  %v968 = vmax.f32 %v895, 0.0
  %v969 = vpack.c.bf16 %v897, %v896
  %v970 = vpack.c.bf16 %v899, %v898
  %v971 = vpack.c.bf16 %v901, %v900
  %v972 = vpack.c.bf16 %v903, %v902
  %v973 = vpack.c.bf16 %v905, %v904
  %v974 = vpack.c.bf16 %v907, %v906
  %v975 = vpack.c.bf16 %v909, %v908
  %v976 = vpack.c.bf16 %v911, %v910
  %v977 = vpack.c.bf16 %v913, %v912
  %v978 = vpack.c.bf16 %v915, %v914
  %v979 = vpack.c.bf16 %v917, %v916
  %v980 = vpack.c.bf16 %v919, %v918
  %v981 = vpack.c.bf16 %v921, %v920
  %v982 = vpack.c.bf16 %v923, %v922
  %v983 = vpack.c.bf16 %v925, %v924
  %v984 = vpack.c.bf16 %v927, %v926
  %v985 = vpack.c.bf16 %v929, %v928
  %v986 = vpack.c.bf16 %v931, %v930
  %v987 = vpack.c.bf16 %v933, %v932
  %v988 = vpack.c.bf16 %v935, %v934
  %v989 = vpack.c.bf16 %v937, %v936
  %v990 = vpack.c.bf16 %v939, %v938
  %v991 = vpack.c.bf16 %v941, %v940
  %v992 = vpack.c.bf16 %v943, %v942
  %v993 = vpack.c.bf16 %v945, %v944
  %v994 = vpack.c.bf16 %v947, %v946
  %v995 = vpack.c.bf16 %v949, %v948
  %v996 = vpack.c.bf16 %v951, %v950
  %v997 = vpack.c.bf16 %v953, %v952
  %v998 = vpack.c.bf16 %v955, %v954
  %v999 = vpack.c.bf16 %v957, %v956
  %v1000 = vpack.c.bf16 %v959, %v958
  %v1001 = vpack.c.bf16 %v961, %v960
  %v1002 = vpack.c.bf16 %v963, %v962
  %v1003 = vpack.c.bf16 %v965, %v964
  %v1004 = vpack.c.bf16 %v967, %v966
  %v1005 = vpack.c.bf16 %v968, %v968
  %v1043 = vunpack.c.l.b16 %v969
  %v1044 = vunpack.c.h.b16 %v969
  %v1045 = vunpack.c.l.b16 %v970
  %v1046 = vunpack.c.h.b16 %v970
  %v1047 = vunpack.c.l.b16 %v971
  %v1048 = vunpack.c.h.b16 %v971
  %v1049 = vunpack.c.l.b16 %v972
  %v1050 = vunpack.c.h.b16 %v972
  %v1051 = vunpack.c.l.b16 %v973
  %v1052 = vunpack.c.h.b16 %v973
  %v1053 = vunpack.c.l.b16 %v974
  %v1054 = vunpack.c.h.b16 %v974
  %v1055 = vunpack.c.l.b16 %v975
  %v1056 = vunpack.c.h.b16 %v975
  %v1057 = vunpack.c.l.b16 %v976
  %v1058 = vunpack.c.h.b16 %v976
  %v1059 = vunpack.c.l.b16 %v977
  %v1060 = vunpack.c.h.b16 %v977
  %v1061 = vunpack.c.l.b16 %v978
  %v1062 = vunpack.c.h.b16 %v978
  %v1063 = vunpack.c.l.b16 %v979
  %v1064 = vunpack.c.h.b16 %v979
  %v1065 = vunpack.c.l.b16 %v980
  %v1066 = vunpack.c.h.b16 %v980
  %v1067 = vunpack.c.l.b16 %v981
  %v1068 = vunpack.c.h.b16 %v981
  %v1069 = vunpack.c.l.b16 %v982
  %v1070 = vunpack.c.h.b16 %v982
  %v1071 = vunpack.c.l.b16 %v983
  %v1072 = vunpack.c.h.b16 %v983
  %v1073 = vunpack.c.l.b16 %v984
  %v1074 = vunpack.c.h.b16 %v984
  %v1075 = vunpack.c.l.b16 %v985
  %v1076 = vunpack.c.h.b16 %v985
  %v1077 = vunpack.c.l.b16 %v986
  %v1078 = vunpack.c.h.b16 %v986
  %v1079 = vunpack.c.l.b16 %v987
  %v1080 = vunpack.c.h.b16 %v987
  %v1081 = vunpack.c.l.b16 %v988
  %v1082 = vunpack.c.h.b16 %v988
  %v1083 = vunpack.c.l.b16 %v989
  %v1084 = vunpack.c.h.b16 %v989
  %v1085 = vunpack.c.l.b16 %v990
  %v1086 = vunpack.c.h.b16 %v990
  %v1087 = vunpack.c.l.b16 %v991
  %v1088 = vunpack.c.h.b16 %v991
  %v1089 = vunpack.c.l.b16 %v992
  %v1090 = vunpack.c.h.b16 %v992
  %v1091 = vunpack.c.l.b16 %v993
  %v1092 = vunpack.c.h.b16 %v993
  %v1093 = vunpack.c.l.b16 %v994
  %v1094 = vunpack.c.h.b16 %v994
  %v1095 = vunpack.c.l.b16 %v995
  %v1096 = vunpack.c.h.b16 %v995
  %v1097 = vunpack.c.l.b16 %v996
  %v1098 = vunpack.c.h.b16 %v996
  %v1099 = vunpack.c.l.b16 %v997
  %v1100 = vunpack.c.h.b16 %v997
  %v1101 = vunpack.c.l.b16 %v998
  %v1102 = vunpack.c.h.b16 %v998
  %v1103 = vunpack.c.l.b16 %v999
  %v1104 = vunpack.c.h.b16 %v999
  %v1105 = vunpack.c.l.b16 %v1000
  %v1106 = vunpack.c.h.b16 %v1000
  %v1107 = vunpack.c.l.b16 %v1001
  %v1108 = vunpack.c.h.b16 %v1001
  %v1109 = vunpack.c.l.b16 %v1002
  %v1110 = vunpack.c.h.b16 %v1002
  %v1111 = vunpack.c.l.b16 %v1003
  %v1112 = vunpack.c.h.b16 %v1003
  %v1113 = vunpack.c.l.b16 %v1004
  %v1114 = vunpack.c.h.b16 %v1004
  %v1115 = vunpack.c.l.b16 %v1005
  %v1116 = vpack.c.b16 %v1043, %v1043
  %v1117 = vpack.c.b16 %v1044, %v1044
  %v1118 = vpack.c.b16 %v1045, %v1045
  %v1119 = vpack.c.b16 %v1046, %v1046
  %v1120 = vpack.c.b16 %v1047, %v1047
  %v1121 = vpack.c.b16 %v1048, %v1048
  %v1122 = vpack.c.b16 %v1049, %v1049
  %v1123 = vpack.c.b16 %v1050, %v1050
  %v1124 = vpack.c.b16 %v1051, %v1051
  %v1125 = vpack.c.b16 %v1052, %v1052
  %v1126 = vpack.c.b16 %v1053, %v1053
  %v1127 = vpack.c.b16 %v1054, %v1054
  %v1128 = vpack.c.b16 %v1055, %v1055
  %v1129 = vpack.c.b16 %v1056, %v1056
  %v1130 = vpack.c.b16 %v1057, %v1057
  %v1131 = vpack.c.b16 %v1058, %v1058
  %v1132 = vpack.c.b16 %v1059, %v1059
  %v1133 = vpack.c.b16 %v1060, %v1060
  %v1134 = vpack.c.b16 %v1061, %v1061
  %v1135 = vpack.c.b16 %v1062, %v1062
  %v1136 = vpack.c.b16 %v1063, %v1063
  %v1137 = vpack.c.b16 %v1064, %v1064
  %v1138 = vpack.c.b16 %v1065, %v1065
  %v1139 = vpack.c.b16 %v1066, %v1066
  %v1140 = vpack.c.b16 %v1067, %v1067
  %v1141 = vpack.c.b16 %v1068, %v1068
  %v1142 = vpack.c.b16 %v1069, %v1069
  %v1143 = vpack.c.b16 %v1070, %v1070
  %v1144 = vpack.c.b16 %v1071, %v1071
  %v1145 = vpack.c.b16 %v1072, %v1072
  %v1146 = vpack.c.b16 %v1073, %v1073
  %v1147 = vpack.c.b16 %v1074, %v1074
  %v1148 = vpack.c.b16 %v1075, %v1075
  %v1149 = vpack.c.b16 %v1076, %v1076
  %v1150 = vpack.c.b16 %v1077, %v1077
  %v1151 = vpack.c.b16 %v1078, %v1078
  %v1152 = vpack.c.b16 %v1079, %v1079
  %v1153 = vpack.c.b16 %v1080, %v1080
  %v1154 = vpack.c.b16 %v1081, %v1081
  %v1155 = vpack.c.b16 %v1082, %v1082
  %v1156 = vpack.c.b16 %v1083, %v1083
  %v1157 = vpack.c.b16 %v1084, %v1084
  %v1158 = vpack.c.b16 %v1085, %v1085
  %v1159 = vpack.c.b16 %v1086, %v1086
  %v1160 = vpack.c.b16 %v1087, %v1087
  %v1161 = vpack.c.b16 %v1088, %v1088
  %v1162 = vpack.c.b16 %v1089, %v1089
  %v1163 = vpack.c.b16 %v1090, %v1090
  %v1164 = vpack.c.b16 %v1091, %v1091
  %v1165 = vpack.c.b16 %v1092, %v1092
  %v1166 = vpack.c.b16 %v1093, %v1093
  %v1167 = vpack.c.b16 %v1094, %v1094
  %v1168 = vpack.c.b16 %v1095, %v1095
  %v1169 = vpack.c.b16 %v1096, %v1096
  %v1170 = vpack.c.b16 %v1097, %v1097
  %v1171 = vpack.c.b16 %v1098, %v1098
  %v1172 = vpack.c.b16 %v1099, %v1099
  %v1173 = vpack.c.b16 %v1100, %v1100
  %v1174 = vpack.c.b16 %v1101, %v1101
  %v1175 = vpack.c.b16 %v1102, %v1102
  %v1176 = vpack.c.b16 %v1103, %v1103
  %v1177 = vpack.c.b16 %v1104, %v1104
  %v1178 = vpack.c.b16 %v1105, %v1105
  %v1179 = vpack.c.b16 %v1106, %v1106
  %v1180 = vpack.c.b16 %v1107, %v1107
  %v1181 = vpack.c.b16 %v1108, %v1108
  %v1182 = vpack.c.b16 %v1109, %v1109
  %v1183 = vpack.c.b16 %v1110, %v1110
  %v1184 = vpack.c.b16 %v1111, %v1111
  %v1185 = vpack.c.b16 %v1112, %v1112
  %v1186 = vpack.c.b16 %v1113, %v1113
  %v1187 = vpack.c.b16 %v1114, %v1114
  %v1188 = vpack.c.b16 %v1115, %v1115
  %vm1262 = vcmask 257024
  %1263 = vst.msk [vmem:[%s4] sm:$0xf] %vm1262, %v1116
  %1264 = vst.msk [vmem:[%s4 + $0x4] sm:$0xf] %vm1262, %v1117
  %1265 = vst.msk [vmem:[%s4 + $0x8] sm:$0xf] %vm1262, %v1118
  %1266 = vst.msk [vmem:[%s4 + $0xc] sm:$0xf] %vm1262, %v1119
  %1267 = vst.msk [vmem:[%s4 + $0x10] sm:$0xf] %vm1262, %v1120
  %1268 = vst.msk [vmem:[%s4 + $0x14] sm:$0xf] %vm1262, %v1121
  %1269 = vst.msk [vmem:[%s4 + $0x18] sm:$0xf] %vm1262, %v1122
  %1270 = vst.msk [vmem:[%s4 + $0x1c] sm:$0xf] %vm1262, %v1123
  %1271 = vst.msk [vmem:[%s4 + $0x20] sm:$0xf] %vm1262, %v1124
  %1272 = vst.msk [vmem:[%s4 + $0x24] sm:$0xf] %vm1262, %v1125
  %1273 = vst.msk [vmem:[%s4 + $0x28] sm:$0xf] %vm1262, %v1126
  %1274 = vst.msk [vmem:[%s4 + $0x2c] sm:$0xf] %vm1262, %v1127
  %1275 = vst.msk [vmem:[%s4 + $0x30] sm:$0xf] %vm1262, %v1128
  %1276 = vst.msk [vmem:[%s4 + $0x34] sm:$0xf] %vm1262, %v1129
  %1277 = vst.msk [vmem:[%s4 + $0x38] sm:$0xf] %vm1262, %v1130
  %1278 = vst.msk [vmem:[%s4 + $0x3c] sm:$0xf] %vm1262, %v1131
  %1279 = vst.msk [vmem:[%s4 + $0x40] sm:$0xf] %vm1262, %v1132
  %1280 = vst.msk [vmem:[%s4 + $0x44] sm:$0xf] %vm1262, %v1133
  %1281 = vst.msk [vmem:[%s4 + $0x48] sm:$0xf] %vm1262, %v1134
  %1282 = vst.msk [vmem:[%s4 + $0x4c] sm:$0xf] %vm1262, %v1135
  %1283 = vst.msk [vmem:[%s4 + $0x50] sm:$0xf] %vm1262, %v1136
  %1284 = vst.msk [vmem:[%s4 + $0x54] sm:$0xf] %vm1262, %v1137
  %1285 = vst.msk [vmem:[%s4 + $0x58] sm:$0xf] %vm1262, %v1138
  %1286 = vst.msk [vmem:[%s4 + $0x5c] sm:$0xf] %vm1262, %v1139
  %1287 = vst.msk [vmem:[%s4 + $0x60] sm:$0xf] %vm1262, %v1140
  %1288 = vst.msk [vmem:[%s4 + $0x64] sm:$0xf] %vm1262, %v1141
  %1289 = vst.msk [vmem:[%s4 + $0x68] sm:$0xf] %vm1262, %v1142
  %1290 = vst.msk [vmem:[%s4 + $0x6c] sm:$0xf] %vm1262, %v1143
  %1291 = vst.msk [vmem:[%s4 + $0x70] sm:$0xf] %vm1262, %v1144
  %1292 = vst.msk [vmem:[%s4 + $0x74] sm:$0xf] %vm1262, %v1145
  %1293 = vst.msk [vmem:[%s4 + $0x78] sm:$0xf] %vm1262, %v1146
  %1294 = vst.msk [vmem:[%s4 + $0x7c] sm:$0xf] %vm1262, %v1147
  %1295 = vst.msk [vmem:[%s4 + $0x80] sm:$0xf] %vm1262, %v1148
  %1296 = vst.msk [vmem:[%s4 + $0x84] sm:$0xf] %vm1262, %v1149
  %1297 = vst.msk [vmem:[%s4 + $0x88] sm:$0xf] %vm1262, %v1150
  %1298 = vst.msk [vmem:[%s4 + $0x8c] sm:$0xf] %vm1262, %v1151
  %1299 = vst.msk [vmem:[%s4 + $0x90] sm:$0xf] %vm1262, %v1152
  %1300 = vst.msk [vmem:[%s4 + $0x94] sm:$0xf] %vm1262, %v1153
  %1301 = vst.msk [vmem:[%s4 + $0x98] sm:$0xf] %vm1262, %v1154
  %1302 = vst.msk [vmem:[%s4 + $0x9c] sm:$0xf] %vm1262, %v1155
  %1303 = vst.msk [vmem:[%s4 + $0xa0] sm:$0xf] %vm1262, %v1156
  %1304 = vst.msk [vmem:[%s4 + $0xa4] sm:$0xf] %vm1262, %v1157
  %1305 = vst.msk [vmem:[%s4 + $0xa8] sm:$0xf] %vm1262, %v1158
  %1306 = vst.msk [vmem:[%s4 + $0xac] sm:$0xf] %vm1262, %v1159
  %1307 = vst.msk [vmem:[%s4 + $0xb0] sm:$0xf] %vm1262, %v1160
  %1308 = vst.msk [vmem:[%s4 + $0xb4] sm:$0xf] %vm1262, %v1161
  %1309 = vst.msk [vmem:[%s4 + $0xb8] sm:$0xf] %vm1262, %v1162
  %1310 = vst.msk [vmem:[%s4 + $0xbc] sm:$0xf] %vm1262, %v1163
  %1311 = vst.msk [vmem:[%s4 + $0xc0] sm:$0xf] %vm1262, %v1164
  %1312 = vst.msk [vmem:[%s4 + $0xc4] sm:$0xf] %vm1262, %v1165
  %1313 = vst.msk [vmem:[%s4 + $0xc8] sm:$0xf] %vm1262, %v1166
  %1314 = vst.msk [vmem:[%s4 + $0xcc] sm:$0xf] %vm1262, %v1167
  %1315 = vst.msk [vmem:[%s4 + $0xd0] sm:$0xf] %vm1262, %v1168
  %1316 = vst.msk [vmem:[%s4 + $0xd4] sm:$0xf] %vm1262, %v1169
  %1317 = vst.msk [vmem:[%s4 + $0xd8] sm:$0xf] %vm1262, %v1170
  %1318 = vst.msk [vmem:[%s4 + $0xdc] sm:$0xf] %vm1262, %v1171
  %1319 = vst.msk [vmem:[%s4 + $0xe0] sm:$0xf] %vm1262, %v1172
  %1320 = vst.msk [vmem:[%s4 + $0xe4] sm:$0xf] %vm1262, %v1173
  %1321 = vst.msk [vmem:[%s4 + $0xe8] sm:$0xf] %vm1262, %v1174
  %1322 = vst.msk [vmem:[%s4 + $0xec] sm:$0xf] %vm1262, %v1175
  %1323 = vst.msk [vmem:[%s4 + $0xf0] sm:$0xf] %vm1262, %v1176
  %1324 = vst.msk [vmem:[%s4 + $0xf4] sm:$0xf] %vm1262, %v1177
  %1325 = vst.msk [vmem:[%s4 + $0xf8] sm:$0xf] %vm1262, %v1178
  %1326 = vst.msk [vmem:[%s4 + $0xfc] sm:$0xf] %vm1262, %v1179
  %1327 = vst.msk [vmem:[%s4 + $0x100] sm:$0xf] %vm1262, %v1180
  %1328 = vst.msk [vmem:[%s4 + $0x104] sm:$0xf] %vm1262, %v1181
  %1329 = vst.msk [vmem:[%s4 + $0x108] sm:$0xf] %vm1262, %v1182
  %1330 = vst.msk [vmem:[%s4 + $0x10c] sm:$0xf] %vm1262, %v1183
  %1331 = vst.msk [vmem:[%s4 + $0x110] sm:$0xf] %vm1262, %v1184
  %1332 = vst.msk [vmem:[%s4 + $0x114] sm:$0xf] %vm1262, %v1185
  %1333 = vst.msk [vmem:[%s4 + $0x118] sm:$0xf] %vm1262, %v1186
  %1334 = vst.msk [vmem:[%s4 + $0x11c] sm:$0xf] %vm1262, %v1187
  %vm1335 = vcmask 253952
  %1336 = vst.msk [vmem:[%s4 + $0x120] sm:$0x1] %vm1335, %v1188
  // Predicated region
  $region18: #{incept_init_block.9} parent=0 // pred_check
    _
  $region19: #{incept_init_block.9} parent=0 // pred_check_branch
    %1338 = sbr.rel (0) target = $region21
  $region20: #{incept_init_block.9} parent=0 // pred_region
    _
  $region21: #{incept_init_block.9} parent=0 // pred_fallthru
    _
  // Predicated region
  $region22: #{incept_init_block.9} parent=0 // pred_check
    _
  $region23: #{incept_init_block.9} parent=0 // pred_check_branch
    %1340 = sbr.rel (0) target = $region25
  $region24: #{incept_init_block.9} parent=0 // pred_region
    _
  $region25: #{incept_init_block.9} parent=0 // pred_fallthru
    _

// kernel: incept_init_block.10
$region0: #{incept_init_block.10}
  #allocation0 [shape = 'u32[]', space=smem, size = 0x4, offset = 0x4, fixed_abs, tag = 'smem constant byte address 0x4 - core index']
  #allocation1 [shape = 'u32[144,128]{1,0:T(1,128)}', space=vmem, size = 0x12000, scoped, tag = 'internal scratch']
  %s0 = inlined_call_operand.vmem [shape: bf16[450,288], index: 0, kind: input, shape index: {}]
  %s1 = inlined_call_operand.vmem [shape: bf16[288,32], index: 1, kind: input, shape index: {}]
  %s2 = inlined_call_operand.vmem [shape: f32[1,32], index: 2, kind: input, shape index: {}]
  %s3 = inlined_call_operand.vmem [shape: f32[1,32], index: 3, kind: input, shape index: {}]
  %s4 = inlined_call_operand.vmem [shape: bf16[450,32], index: 4, kind: output, shape index: {}]
  %s5 = sld [smem:[#allocation0]]
  $region26: #{incept_init_block.10} parent=0
    _
  %s7 = ssub.s32 1, %s5
  %s8 = scalar_select 0, %s7, %s5
  // Predicated region
  $region2: #{incept_init_block.10} parent=0 // pred_check
    _
  $region3: #{incept_init_block.10} parent=0 // pred_check_branch
    %10 = sbr.rel (0) target = $region5
  $region4: #{incept_init_block.10} parent=0 // pred_region
    _
  $region5: #{incept_init_block.10} parent=0 // pred_fallthru
    _
  // Predicated region
  $region6: #{incept_init_block.10} parent=0 // pred_check
    _
  $region7: #{incept_init_block.10} parent=0 // pred_check_branch
    %12 = sbr.rel (0) target = $region9
  $region8: #{incept_init_block.10} parent=0 // pred_region
    _
  $region9: #{incept_init_block.10} parent=0 // pred_fallthru
    _
  // Predicated region
  $region10: #{incept_init_block.10} parent=0 // pred_check
    _
  $region11: #{incept_init_block.10} parent=0 // pred_check_branch
    %14 = sbr.rel (0) target = $region13
  $region12: #{incept_init_block.10} parent=0 // pred_region
    _
  $region13: #{incept_init_block.10} parent=0 // pred_fallthru
    _
  // Predicated region
  $region14: #{incept_init_block.10} parent=0 // pred_check
    _
  $region15: #{incept_init_block.10} parent=0 // pred_check_branch
    %16 = sbr.rel (0) target = $region17
  $region16: #{incept_init_block.10} parent=0 // pred_region
    _
  $region17: #{incept_init_block.10} parent=0 // pred_fallthru
    _
  %v18 = vld [vmem:[%s0] sm:$0xff]
  %v19 = vld [vmem:[%s0 + $0x8] sm:$0xf]
  %v20 = vld [vmem:[%s0 + $0xc] sm:$0xff]
  %v21 = vld [vmem:[%s0 + $0x14] sm:$0xf]
  %v22 = vld [vmem:[%s0 + $0x18] sm:$0xff]
  %v23 = vld [vmem:[%s0 + $0x20] sm:$0xf]
  %v24 = vld [vmem:[%s0 + $0x24] sm:$0xff]
  %v25 = vld [vmem:[%s0 + $0x2c] sm:$0xf]
  %v26 = vld [vmem:[%s0 + $0x30] sm:$0xff]
  %v27 = vld [vmem:[%s0 + $0x38] sm:$0xf]
  %v28 = vld [vmem:[%s0 + $0x3c] sm:$0xff]
  %v29 = vld [vmem:[%s0 + $0x44] sm:$0xf]
  %v30 = vld [vmem:[%s0 + $0x48] sm:$0xff]
  %v31 = vld [vmem:[%s0 + $0x50] sm:$0xf]
  %v32 = vld [vmem:[%s0 + $0x54] sm:$0xff]
  %v33 = vld [vmem:[%s0 + $0x5c] sm:$0xf]
  %v34 = vld [vmem:[%s0 + $0x60] sm:$0xff]
  %v35 = vld [vmem:[%s0 + $0x68] sm:$0xf]
  %v36 = vld [vmem:[%s0 + $0x6c] sm:$0xff]
  %v37 = vld [vmem:[%s0 + $0x74] sm:$0xf]
  %v38 = vld [vmem:[%s0 + $0x78] sm:$0xff]
  %v39 = vld [vmem:[%s0 + $0x80] sm:$0xf]
  %v40 = vld [vmem:[%s0 + $0x84] sm:$0xff]
  %v41 = vld [vmem:[%s0 + $0x8c] sm:$0xf]
  %v42 = vld [vmem:[%s0 + $0x90] sm:$0xff]
  %v43 = vld [vmem:[%s0 + $0x98] sm:$0xf]
  %v44 = vld [vmem:[%s0 + $0x9c] sm:$0xff]
  %v45 = vld [vmem:[%s0 + $0xa4] sm:$0xf]
  %v46 = vld [vmem:[%s0 + $0xa8] sm:$0xff]
  %v47 = vld [vmem:[%s0 + $0xb0] sm:$0xf]
  %v48 = vld [vmem:[%s0 + $0xb4] sm:$0xff]
  %v49 = vld [vmem:[%s0 + $0xbc] sm:$0xf]
  %v50 = vld [vmem:[%s0 + $0xc0] sm:$0xff]
  %v51 = vld [vmem:[%s0 + $0xc8] sm:$0xf]
  %v52 = vld [vmem:[%s0 + $0xcc] sm:$0xff]
  %v53 = vld [vmem:[%s0 + $0xd4] sm:$0xf]
  %v54 = vld [vmem:[%s0 + $0xd8] sm:$0xff]
  %v55 = vld [vmem:[%s0 + $0xe0] sm:$0xf]
  %v56 = vld [vmem:[%s0 + $0xe4] sm:$0xff]
  %v57 = vld [vmem:[%s0 + $0xec] sm:$0xf]
  %v58 = vld [vmem:[%s0 + $0xf0] sm:$0xff]
  %v59 = vld [vmem:[%s0 + $0xf8] sm:$0xf]
  %v60 = vld [vmem:[%s0 + $0xfc] sm:$0xff]
  %v61 = vld [vmem:[%s0 + $0x104] sm:$0xf]
  %v62 = vld [vmem:[%s0 + $0x108] sm:$0xff]
  %v63 = vld [vmem:[%s0 + $0x110] sm:$0xf]
  %v64 = vld [vmem:[%s0 + $0x114] sm:$0xff]
  %v65 = vld [vmem:[%s0 + $0x11c] sm:$0xf]
  %v66 = vld [vmem:[%s0 + $0x120] sm:$0xff]
  %v67 = vld [vmem:[%s0 + $0x128] sm:$0xf]
  %v68 = vld [vmem:[%s0 + $0x12c] sm:$0xff]
  %v69 = vld [vmem:[%s0 + $0x134] sm:$0xf]
  %v70 = vld [vmem:[%s0 + $0x138] sm:$0xff]
  %v71 = vld [vmem:[%s0 + $0x140] sm:$0xf]
  %v72 = vld [vmem:[%s0 + $0x144] sm:$0xff]
  %v73 = vld [vmem:[%s0 + $0x14c] sm:$0xf]
  %v74 = vld [vmem:[%s0 + $0x150] sm:$0xff]
  %v75 = vld [vmem:[%s0 + $0x158] sm:$0xf]
  %v76 = vld [vmem:[%s0 + $0x15c] sm:$0xff]
  %v77 = vld [vmem:[%s0 + $0x164] sm:$0xf]
  %v78 = vld [vmem:[%s0 + $0x168] sm:$0xff]
  %v79 = vld [vmem:[%s0 + $0x170] sm:$0xf]
  %v80 = vld [vmem:[%s0 + $0x174] sm:$0xff]
  %v81 = vld [vmem:[%s0 + $0x17c] sm:$0xf]
  %v82 = vld [vmem:[%s0 + $0x180] sm:$0xff]
  %v83 = vld [vmem:[%s0 + $0x188] sm:$0xf]
  %v84 = vld [vmem:[%s0 + $0x18c] sm:$0xff]
  %v85 = vld [vmem:[%s0 + $0x194] sm:$0xf]
  %v86 = vld [vmem:[%s0 + $0x198] sm:$0xff]
  %v87 = vld [vmem:[%s0 + $0x1a0] sm:$0xf]
  %v88 = vld [vmem:[%s0 + $0x1a4] sm:$0xff]
  %v89 = vld [vmem:[%s0 + $0x1ac] sm:$0xf]
  %v90 = vld [vmem:[%s0 + $0x1b0] sm:$0xff]
  %v91 = vld [vmem:[%s0 + $0x1b8] sm:$0xf]
  %v92 = vld [vmem:[%s0 + $0x1bc] sm:$0xff]
  %v93 = vld [vmem:[%s0 + $0x1c4] sm:$0xf]
  %v94 = vld [vmem:[%s0 + $0x1c8] sm:$0xff]
  %v95 = vld [vmem:[%s0 + $0x1d0] sm:$0xf]
  %v96 = vld [vmem:[%s0 + $0x1d4] sm:$0xff]
  %v97 = vld [vmem:[%s0 + $0x1dc] sm:$0xf]
  %v98 = vld [vmem:[%s0 + $0x1e0] sm:$0xff]
  %v99 = vld [vmem:[%s0 + $0x1e8] sm:$0xf]
  %v100 = vld [vmem:[%s0 + $0x1ec] sm:$0xff]
  %v101 = vld [vmem:[%s0 + $0x1f4] sm:$0xf]
  %v102 = vld [vmem:[%s0 + $0x1f8] sm:$0xff]
  %v103 = vld [vmem:[%s0 + $0x200] sm:$0xf]
  %v104 = vld [vmem:[%s0 + $0x204] sm:$0xff]
  %v105 = vld [vmem:[%s0 + $0x20c] sm:$0xf]
  %v106 = vld [vmem:[%s0 + $0x210] sm:$0xff]
  %v107 = vld [vmem:[%s0 + $0x218] sm:$0xf]
  %v108 = vld [vmem:[%s0 + $0x21c] sm:$0xff]
  %v109 = vld [vmem:[%s0 + $0x224] sm:$0xf]
  %v110 = vld [vmem:[%s0 + $0x228] sm:$0xff]
  %v111 = vld [vmem:[%s0 + $0x230] sm:$0xf]
  %v112 = vld [vmem:[%s0 + $0x234] sm:$0xff]
  %v113 = vld [vmem:[%s0 + $0x23c] sm:$0xf]
  %v114 = vld [vmem:[%s0 + $0x240] sm:$0xff]
  %v115 = vld [vmem:[%s0 + $0x248] sm:$0xf]
  %v116 = vld [vmem:[%s0 + $0x24c] sm:$0xff]
  %v117 = vld [vmem:[%s0 + $0x254] sm:$0xf]
  %v118 = vld [vmem:[%s0 + $0x258] sm:$0xff]
  %v119 = vld [vmem:[%s0 + $0x260] sm:$0xf]
  %v120 = vld [vmem:[%s0 + $0x264] sm:$0xff]
  %v121 = vld [vmem:[%s0 + $0x26c] sm:$0xf]
  %v122 = vld [vmem:[%s0 + $0x270] sm:$0xff]
  %v123 = vld [vmem:[%s0 + $0x278] sm:$0xf]
  %v124 = vld [vmem:[%s0 + $0x27c] sm:$0xff]
  %v125 = vld [vmem:[%s0 + $0x284] sm:$0xf]
  %v126 = vld [vmem:[%s0 + $0x288] sm:$0xff]
  %v127 = vld [vmem:[%s0 + $0x290] sm:$0xf]
  %v128 = vld [vmem:[%s0 + $0x294] sm:$0xff]
  %v129 = vld [vmem:[%s0 + $0x29c] sm:$0xf]
  %v130 = vld [vmem:[%s0 + $0x2a0] sm:$0x11]
  %v131 = vld [vmem:[%s0 + $0x2a8] sm:$0x1]
  %v132 = vld [vmem:[%s1] sm:$0xf]
  %v133 = vld [vmem:[%s1 + $0x4] sm:$0xf]
  %v134 = vld [vmem:[%s1 + $0x8] sm:$0xf]
  %v135 = vld [vmem:[%s1 + $0xc] sm:$0xf]
  %v136 = vld [vmem:[%s1 + $0x10] sm:$0xf]
  %v137 = vld [vmem:[%s1 + $0x14] sm:$0xf]
  %v138 = vld [vmem:[%s1 + $0x18] sm:$0xf]
  %v139 = vld [vmem:[%s1 + $0x1c] sm:$0xf]
  %v140 = vld [vmem:[%s1 + $0x20] sm:$0xf]
  %v141 = vld [vmem:[%s1 + $0x24] sm:$0xf]
  %v142 = vld [vmem:[%s1 + $0x28] sm:$0xf]
  %v143 = vld [vmem:[%s1 + $0x2c] sm:$0xf]
  %v144 = vld [vmem:[%s1 + $0x30] sm:$0xf]
  %v145 = vld [vmem:[%s1 + $0x34] sm:$0xf]
  %v146 = vld [vmem:[%s1 + $0x38] sm:$0xf]
  %v147 = vld [vmem:[%s1 + $0x3c] sm:$0xf]
  %v148 = vld [vmem:[%s1 + $0x40] sm:$0xf]
  %v149 = vld [vmem:[%s1 + $0x44] sm:$0xf]
  %v150 = vld [vmem:[%s1 + $0x48] sm:$0xf]
  %v151 = vld [vmem:[%s1 + $0x4c] sm:$0xf]
  %v152 = vld [vmem:[%s1 + $0x50] sm:$0xf]
  %v153 = vld [vmem:[%s1 + $0x54] sm:$0xf]
  %v154 = vld [vmem:[%s1 + $0x58] sm:$0xf]
  %v155 = vld [vmem:[%s1 + $0x5c] sm:$0xf]
  %v156 = vld [vmem:[%s1 + $0x60] sm:$0xf]
  %v157 = vld [vmem:[%s1 + $0x64] sm:$0xf]
  %v158 = vld [vmem:[%s1 + $0x68] sm:$0xf]
  %v159 = vld [vmem:[%s1 + $0x6c] sm:$0xf]
  %v160 = vld [vmem:[%s1 + $0x70] sm:$0xf]
  %v161 = vld [vmem:[%s1 + $0x74] sm:$0xf]
  %v162 = vld [vmem:[%s1 + $0x78] sm:$0xf]
  %v163 = vld [vmem:[%s1 + $0x7c] sm:$0xf]
  %v164 = vld [vmem:[%s1 + $0x80] sm:$0xf]
  %v165 = vld [vmem:[%s1 + $0x84] sm:$0xf]
  %v166 = vld [vmem:[%s1 + $0x88] sm:$0xf]
  %v167 = vld [vmem:[%s1 + $0x8c] sm:$0xf]
  %v282 = vunpack.c.l.b16 %v18
  %v283 = vunpack.c.h.b16 %v18
  %v284 = vunpack.c.l.b16 %v19
  %v285 = vunpack.c.l.b16 %v20
  %v286 = vunpack.c.h.b16 %v20
  %v287 = vunpack.c.l.b16 %v21
  %v288 = vunpack.c.l.b16 %v22
  %v289 = vunpack.c.h.b16 %v22
  %v290 = vunpack.c.l.b16 %v23
  %v291 = vunpack.c.l.b16 %v24
  %v292 = vunpack.c.h.b16 %v24
  %v293 = vunpack.c.l.b16 %v25
  %v294 = vunpack.c.l.b16 %v26
  %v295 = vunpack.c.h.b16 %v26
  %v296 = vunpack.c.l.b16 %v27
  %v297 = vunpack.c.l.b16 %v28
  %v298 = vunpack.c.h.b16 %v28
  %v299 = vunpack.c.l.b16 %v29
  %v300 = vunpack.c.l.b16 %v30
  %v301 = vunpack.c.h.b16 %v30
  %v302 = vunpack.c.l.b16 %v31
  %v303 = vunpack.c.l.b16 %v32
  %v304 = vunpack.c.h.b16 %v32
  %v305 = vunpack.c.l.b16 %v33
  %v306 = vunpack.c.l.b16 %v34
  %v307 = vunpack.c.h.b16 %v34
  %v308 = vunpack.c.l.b16 %v35
  %v309 = vunpack.c.l.b16 %v36
  %v310 = vunpack.c.h.b16 %v36
  %v311 = vunpack.c.l.b16 %v37
  %v312 = vunpack.c.l.b16 %v38
  %v313 = vunpack.c.h.b16 %v38
  %v314 = vunpack.c.l.b16 %v39
  %v315 = vunpack.c.l.b16 %v40
  %v316 = vunpack.c.h.b16 %v40
  %v317 = vunpack.c.l.b16 %v41
  %v318 = vunpack.c.l.b16 %v42
  %v319 = vunpack.c.h.b16 %v42
  %v320 = vunpack.c.l.b16 %v43
  %v321 = vunpack.c.l.b16 %v44
  %v322 = vunpack.c.h.b16 %v44
  %v323 = vunpack.c.l.b16 %v45
  %v324 = vunpack.c.l.b16 %v46
  %v325 = vunpack.c.h.b16 %v46
  %v326 = vunpack.c.l.b16 %v47
  %v327 = vunpack.c.l.b16 %v48
  %v328 = vunpack.c.h.b16 %v48
  %v329 = vunpack.c.l.b16 %v49
  %v330 = vunpack.c.l.b16 %v50
  %v331 = vunpack.c.h.b16 %v50
  %v332 = vunpack.c.l.b16 %v51
  %v333 = vunpack.c.l.b16 %v52
  %v334 = vunpack.c.h.b16 %v52
  %v335 = vunpack.c.l.b16 %v53
  %v336 = vunpack.c.l.b16 %v54
  %v337 = vunpack.c.h.b16 %v54
  %v338 = vunpack.c.l.b16 %v55
  %v339 = vunpack.c.l.b16 %v56
  %v340 = vunpack.c.h.b16 %v56
  %v341 = vunpack.c.l.b16 %v57
  %v342 = vunpack.c.l.b16 %v58
  %v343 = vunpack.c.h.b16 %v58
  %v344 = vunpack.c.l.b16 %v59
  %v345 = vunpack.c.l.b16 %v60
  %v346 = vunpack.c.h.b16 %v60
  %v347 = vunpack.c.l.b16 %v61
  %v348 = vunpack.c.l.b16 %v62
  %v349 = vunpack.c.h.b16 %v62
  %v350 = vunpack.c.l.b16 %v63
  %v351 = vunpack.c.l.b16 %v64
  %v352 = vunpack.c.h.b16 %v64
  %v353 = vunpack.c.l.b16 %v65
  %v354 = vunpack.c.l.b16 %v66
  %v355 = vunpack.c.h.b16 %v66
  %v356 = vunpack.c.l.b16 %v67
  %v357 = vunpack.c.l.b16 %v68
  %v358 = vunpack.c.h.b16 %v68
  %v359 = vunpack.c.l.b16 %v69
  %v360 = vunpack.c.l.b16 %v70
  %v361 = vunpack.c.h.b16 %v70
  %v362 = vunpack.c.l.b16 %v71
  %v363 = vunpack.c.l.b16 %v72
  %v364 = vunpack.c.h.b16 %v72
  %v365 = vunpack.c.l.b16 %v73
  %v366 = vunpack.c.l.b16 %v74
  %v367 = vunpack.c.h.b16 %v74
  %v368 = vunpack.c.l.b16 %v75
  %v369 = vunpack.c.l.b16 %v76
  %v370 = vunpack.c.h.b16 %v76
  %v371 = vunpack.c.l.b16 %v77
  %v372 = vunpack.c.l.b16 %v78
  %v373 = vunpack.c.h.b16 %v78
  %v374 = vunpack.c.l.b16 %v79
  %v375 = vunpack.c.l.b16 %v80
  %v376 = vunpack.c.h.b16 %v80
  %v377 = vunpack.c.l.b16 %v81
  %v378 = vunpack.c.l.b16 %v82
  %v379 = vunpack.c.h.b16 %v82
  %v380 = vunpack.c.l.b16 %v83
  %v381 = vunpack.c.l.b16 %v84
  %v382 = vunpack.c.h.b16 %v84
  %v383 = vunpack.c.l.b16 %v85
  %v384 = vunpack.c.l.b16 %v86
  %v385 = vunpack.c.h.b16 %v86
  %v386 = vunpack.c.l.b16 %v87
  %v387 = vunpack.c.l.b16 %v88
  %v388 = vunpack.c.h.b16 %v88
  %v389 = vunpack.c.l.b16 %v89
  %v390 = vunpack.c.l.b16 %v90
  %v391 = vunpack.c.h.b16 %v90
  %v392 = vunpack.c.l.b16 %v91
  %v393 = vunpack.c.l.b16 %v92
  %v394 = vunpack.c.h.b16 %v92
  %v395 = vunpack.c.l.b16 %v93
  %v396 = vunpack.c.l.b16 %v94
  %v397 = vunpack.c.h.b16 %v94
  %v398 = vunpack.c.l.b16 %v95
  %v399 = vunpack.c.l.b16 %v96
  %v400 = vunpack.c.h.b16 %v96
  %v401 = vunpack.c.l.b16 %v97
  %v402 = vunpack.c.l.b16 %v98
  %v403 = vunpack.c.h.b16 %v98
  %v404 = vunpack.c.l.b16 %v99
  %v405 = vunpack.c.l.b16 %v100
  %v406 = vunpack.c.h.b16 %v100
  %v407 = vunpack.c.l.b16 %v101
  %v408 = vunpack.c.l.b16 %v102
  %v409 = vunpack.c.h.b16 %v102
  %v410 = vunpack.c.l.b16 %v103
  %v411 = vunpack.c.l.b16 %v104
  %v412 = vunpack.c.h.b16 %v104
  %v413 = vunpack.c.l.b16 %v105
  %v414 = vunpack.c.l.b16 %v106
  %v415 = vunpack.c.h.b16 %v106
  %v416 = vunpack.c.l.b16 %v107
  %v417 = vunpack.c.l.b16 %v108
  %v418 = vunpack.c.h.b16 %v108
  %v419 = vunpack.c.l.b16 %v109
  %v420 = vunpack.c.l.b16 %v110
  %v421 = vunpack.c.h.b16 %v110
  %v422 = vunpack.c.l.b16 %v111
  %v423 = vunpack.c.l.b16 %v112
  %v424 = vunpack.c.h.b16 %v112
  %v425 = vunpack.c.l.b16 %v113
  %v426 = vunpack.c.l.b16 %v114
  %v427 = vunpack.c.h.b16 %v114
  %v428 = vunpack.c.l.b16 %v115
  %v429 = vunpack.c.l.b16 %v116
  %v430 = vunpack.c.h.b16 %v116
  %v431 = vunpack.c.l.b16 %v117
  %v432 = vunpack.c.l.b16 %v118
  %v433 = vunpack.c.h.b16 %v118
  %v434 = vunpack.c.l.b16 %v119
  %v435 = vunpack.c.l.b16 %v120
  %v436 = vunpack.c.h.b16 %v120
  %v437 = vunpack.c.l.b16 %v121
  %v438 = vunpack.c.l.b16 %v122
  %v439 = vunpack.c.h.b16 %v122
  %v440 = vunpack.c.l.b16 %v123
  %v441 = vunpack.c.l.b16 %v124
  %v442 = vunpack.c.h.b16 %v124
  %v443 = vunpack.c.l.b16 %v125
  %v444 = vunpack.c.l.b16 %v126
  %v445 = vunpack.c.h.b16 %v126
  %v446 = vunpack.c.l.b16 %v127
  %v447 = vunpack.c.l.b16 %v128
  %v448 = vunpack.c.h.b16 %v128
  %v449 = vunpack.c.l.b16 %v129
  %v450 = vunpack.c.l.b16 %v130
  %v451 = vunpack.c.h.b16 %v130
  %v452 = vunpack.c.l.b16 %v131
  %v453 = vpack.c.b16 %v285, %v282
  %v454 = vpack.c.b16 %v286, %v283
  %v455 = vpack.c.b16 %v287, %v284
  %v456 = vpack.c.b16 %v291, %v288
  %v457 = vpack.c.b16 %v292, %v289
  %v458 = vpack.c.b16 %v293, %v290
  %v459 = vpack.c.b16 %v297, %v294
  %v460 = vpack.c.b16 %v298, %v295
  %v461 = vpack.c.b16 %v299, %v296
  %v462 = vpack.c.b16 %v303, %v300
  %v463 = vpack.c.b16 %v304, %v301
  %v464 = vpack.c.b16 %v305, %v302
  %v465 = vpack.c.b16 %v309, %v306
  %v466 = vpack.c.b16 %v310, %v307
  %v467 = vpack.c.b16 %v311, %v308
  %v468 = vpack.c.b16 %v315, %v312
  %v469 = vpack.c.b16 %v316, %v313
  %v470 = vpack.c.b16 %v317, %v314
  %v471 = vpack.c.b16 %v321, %v318
  %v472 = vpack.c.b16 %v322, %v319
  %v473 = vpack.c.b16 %v323, %v320
  %v474 = vpack.c.b16 %v327, %v324
  %v475 = vpack.c.b16 %v328, %v325
  %v476 = vpack.c.b16 %v329, %v326
  %v477 = vpack.c.b16 %v333, %v330
  %v478 = vpack.c.b16 %v334, %v331
  %v479 = vpack.c.b16 %v335, %v332
  %v480 = vpack.c.b16 %v339, %v336
  %v481 = vpack.c.b16 %v340, %v337
  %v482 = vpack.c.b16 %v341, %v338
  %v483 = vpack.c.b16 %v345, %v342
  %v484 = vpack.c.b16 %v346, %v343
  %v485 = vpack.c.b16 %v347, %v344
  %v486 = vpack.c.b16 %v351, %v348
  %v487 = vpack.c.b16 %v352, %v349
  %v488 = vpack.c.b16 %v353, %v350
  %v489 = vpack.c.b16 %v357, %v354
  %v490 = vpack.c.b16 %v358, %v355
  %v491 = vpack.c.b16 %v359, %v356
  %v492 = vpack.c.b16 %v363, %v360
  %v493 = vpack.c.b16 %v364, %v361
  %v494 = vpack.c.b16 %v365, %v362
  %v495 = vpack.c.b16 %v369, %v366
  %v496 = vpack.c.b16 %v370, %v367
  %v497 = vpack.c.b16 %v371, %v368
  %v498 = vpack.c.b16 %v375, %v372
  %v499 = vpack.c.b16 %v376, %v373
  %v500 = vpack.c.b16 %v377, %v374
  %v501 = vpack.c.b16 %v381, %v378
  %v502 = vpack.c.b16 %v382, %v379
  %v503 = vpack.c.b16 %v383, %v380
  %v504 = vpack.c.b16 %v387, %v384
  %v505 = vpack.c.b16 %v388, %v385
  %v506 = vpack.c.b16 %v389, %v386
  %v507 = vpack.c.b16 %v393, %v390
  %v508 = vpack.c.b16 %v394, %v391
  %v509 = vpack.c.b16 %v395, %v392
  %v510 = vpack.c.b16 %v399, %v396
  %v511 = vpack.c.b16 %v400, %v397
  %v512 = vpack.c.b16 %v401, %v398
  %v513 = vpack.c.b16 %v405, %v402
  %v514 = vpack.c.b16 %v406, %v403
  %v515 = vpack.c.b16 %v407, %v404
  %v516 = vpack.c.b16 %v411, %v408
  %v517 = vpack.c.b16 %v412, %v409
  %v518 = vpack.c.b16 %v413, %v410
  %v519 = vpack.c.b16 %v417, %v414
  %v520 = vpack.c.b16 %v418, %v415
  %v521 = vpack.c.b16 %v419, %v416
  %v522 = vpack.c.b16 %v423, %v420
  %v523 = vpack.c.b16 %v424, %v421
  %v524 = vpack.c.b16 %v425, %v422
  %v525 = vpack.c.b16 %v429, %v426
  %v526 = vpack.c.b16 %v430, %v427
  %v527 = vpack.c.b16 %v431, %v428
  %v528 = vpack.c.b16 %v435, %v432
  %v529 = vpack.c.b16 %v436, %v433
  %v530 = vpack.c.b16 %v437, %v434
  %v531 = vpack.c.b16 %v441, %v438
  %v532 = vpack.c.b16 %v442, %v439
  %v533 = vpack.c.b16 %v443, %v440
  %v534 = vpack.c.b16 %v447, %v444
  %v535 = vpack.c.b16 %v448, %v445
  %v536 = vpack.c.b16 %v449, %v446
  %v537 = vpack.c.b16 %v450, %v450
  %v538 = vpack.c.b16 %v451, %v451
  %v539 = vpack.c.b16 %v452, %v452
  %v634 = vunpack.c.l.b16 %v132
  %v635 = vunpack.c.l.b16 %v133
  %v636 = vunpack.c.l.b16 %v134
  %v637 = vunpack.c.l.b16 %v135
  %v638 = vunpack.c.l.b16 %v136
  %v639 = vunpack.c.l.b16 %v137
  %v640 = vunpack.c.l.b16 %v138
  %v641 = vunpack.c.l.b16 %v139
  %v642 = vunpack.c.l.b16 %v140
  %v643 = vunpack.c.l.b16 %v141
  %v644 = vunpack.c.l.b16 %v142
  %v645 = vunpack.c.l.b16 %v143
  %v646 = vunpack.c.l.b16 %v144
  %v647 = vunpack.c.l.b16 %v145
  %v648 = vunpack.c.l.b16 %v146
  %v649 = vunpack.c.l.b16 %v147
  %v650 = vunpack.c.l.b16 %v148
  %v651 = vunpack.c.l.b16 %v149
  %v652 = vunpack.c.l.b16 %v150
  %v653 = vunpack.c.l.b16 %v151
  %v654 = vunpack.c.l.b16 %v152
  %v655 = vunpack.c.l.b16 %v153
  %v656 = vunpack.c.l.b16 %v154
  %v657 = vunpack.c.l.b16 %v155
  %v658 = vunpack.c.l.b16 %v156
  %v659 = vunpack.c.l.b16 %v157
  %v660 = vunpack.c.l.b16 %v158
  %v661 = vunpack.c.l.b16 %v159
  %v662 = vunpack.c.l.b16 %v160
  %v663 = vunpack.c.l.b16 %v161
  %v664 = vunpack.c.l.b16 %v162
  %v665 = vunpack.c.l.b16 %v163
  %v666 = vunpack.c.l.b16 %v164
  %v667 = vunpack.c.l.b16 %v165
  %v668 = vunpack.c.l.b16 %v166
  %v669 = vunpack.c.l.b16 %v167
  %v670 = vpack.c.b16 %v635, %v634
  %v671 = vpack.c.b16 %v637, %v636
  %v672 = vpack.c.b16 %v639, %v638
  %v673 = vpack.c.b16 %v641, %v640
  %v674 = vpack.c.b16 %v643, %v642
  %v675 = vpack.c.b16 %v645, %v644
  %v676 = vpack.c.b16 %v647, %v646
  %v677 = vpack.c.b16 %v649, %v648
  %v678 = vpack.c.b16 %v651, %v650
  %v679 = vpack.c.b16 %v653, %v652
  %v680 = vpack.c.b16 %v655, %v654
  %v681 = vpack.c.b16 %v657, %v656
  %v682 = vpack.c.b16 %v659, %v658
  %v683 = vpack.c.b16 %v661, %v660
  %v684 = vpack.c.b16 %v663, %v662
  %v685 = vpack.c.b16 %v665, %v664
  %v686 = vpack.c.b16 %v667, %v666
  %v687 = vpack.c.b16 %v669, %v668
  %vm706 = vcmask 261120
  %v708 = vsel %vm706, %v455, 0
  %v711 = vsel %vm706, %v458, 0
  %v714 = vsel %vm706, %v461, 0
  %v717 = vsel %vm706, %v464, 0
  %v720 = vsel %vm706, %v467, 0
  %v723 = vsel %vm706, %v470, 0
  %v726 = vsel %vm706, %v473, 0
  %v729 = vsel %vm706, %v476, 0
  %v732 = vsel %vm706, %v479, 0
  %v735 = vsel %vm706, %v482, 0
  %v738 = vsel %vm706, %v485, 0
  %v741 = vsel %vm706, %v488, 0
  %v744 = vsel %vm706, %v491, 0
  %v747 = vsel %vm706, %v494, 0
  %v750 = vsel %vm706, %v497, 0
  %v753 = vsel %vm706, %v500, 0
  %v756 = vsel %vm706, %v503, 0
  %v759 = vsel %vm706, %v506, 0
  %v762 = vsel %vm706, %v509, 0
  %v765 = vsel %vm706, %v512, 0
  %v768 = vsel %vm706, %v515, 0
  %v771 = vsel %vm706, %v518, 0
  %v774 = vsel %vm706, %v521, 0
  %v777 = vsel %vm706, %v524, 0
  %v780 = vsel %vm706, %v527, 0
  %v783 = vsel %vm706, %v530, 0
  %v786 = vsel %vm706, %v533, 0
  %v789 = vsel %vm706, %v536, 0
  %v792 = vsel %vm706, %v539, 0
  %794 = vmatprep.subr.bf16.mxu0 0
  %795 = vmatpush1.bf16.msra.mxu0 %v670
  %796 = vmatprep.subr.bf16.mxu0 0
  %797 = vmatpush1.bf16.msra.mxu0 %v671
  %798 = vmatprep.subr.bf16.mxu0 0
  %799 = vmatpush1.bf16.msra.mxu0 %v672
  %800 = vmatprep.subr.bf16.mxu0 0
  %801 = vmatpush1.bf16.msra.mxu0 %v673
  %802 = vmatprep.subr.bf16.mxu0 0
  %803 = vmatpush1.bf16.msra.mxu0 %v674
  %804 = vmatprep.subr.bf16.mxu0 0
  %805 = vmatpush1.bf16.msra.mxu0 %v675
  %806 = vmatprep.subr.bf16.mxu0 0
  %807 = vmatpush1.bf16.msra.mxu0 %v676
  %808 = vmatprep.subr.bf16.mxu0 0
  %809 = vmatpush1.bf16.msra.mxu0 %v677
  %810 = vmatprep.subr.bf16.mxu0 0
  %811 = vmatpush1.bf16.msra.mxu0 %v678
  %812 = vmatprep.subr.bf16.mxu0 0
  %813 = vmatpush1.bf16.msra.mxu0 %v679
  %814 = vmatprep.subr.bf16.mxu0 0
  %815 = vmatpush1.bf16.msra.mxu0 %v680
  %816 = vmatprep.subr.bf16.mxu0 0
  %817 = vmatpush1.bf16.msra.mxu0 %v681
  %818 = vmatprep.subr.bf16.mxu0 0
  %819 = vmatpush1.bf16.msra.mxu0 %v682
  %820 = vmatprep.subr.bf16.mxu0 0
  %821 = vmatpush1.bf16.msra.mxu0 %v683
  %822 = vmatprep.subr.bf16.mxu0 0
  %823 = vmatpush1.bf16.msra.mxu0 %v684
  %824 = vmatprep.subr.bf16.mxu0 0
  %825 = vmatpush1.bf16.msra.mxu0 %v685
  %826 = vmatprep.mubr.bf16.mxu0 %v454
  %827 = vmatmul.mubr.bf16.gmra.mrb[0].mxu0 %v453
  %v828 = vpop.f32.mrb[0].mxu0
  %v829 = vadd.f32 0.0, %v828
  %v830 = vpop.f32.mrb[0].mxu0
  %v831 = vpop.f32.mrb[0].mxu0
  %v832 = vadd.f32 0.0, %v831
  %v833 = vpop.f32.mrb[0].mxu0
  %834 = vmatprep.mubr.bf16.mxu0 %v457
  %835 = vmatmul.mubr.bf16.gmra.mrb[0].mxu0 %v456
  %v836 = vpop.f32.mrb[0].mxu0
  %v837 = vadd.f32 0.0, %v836
  %v838 = vpop.f32.mrb[0].mxu0
  %v839 = vpop.f32.mrb[0].mxu0
  %v840 = vadd.f32 0.0, %v839
  %v841 = vpop.f32.mrb[0].mxu0
  %842 = vmatprep.mubr.bf16.mxu0 %v460
  %843 = vmatmul.mubr.bf16.gmra.mrb[0].mxu0 %v459
  %v844 = vpop.f32.mrb[0].mxu0
  %v845 = vadd.f32 0.0, %v844
  %v846 = vpop.f32.mrb[0].mxu0
  %v847 = vpop.f32.mrb[0].mxu0
  %v848 = vadd.f32 0.0, %v847
  %v849 = vpop.f32.mrb[0].mxu0
  %850 = vmatprep.mubr.bf16.mxu0 %v463
  %851 = vmatmul.mubr.bf16.gmra.mrb[0].mxu0 %v462
  %v852 = vpop.f32.mrb[0].mxu0
  %v853 = vadd.f32 0.0, %v852
  %v854 = vpop.f32.mrb[0].mxu0
  %v855 = vpop.f32.mrb[0].mxu0
  %v856 = vadd.f32 0.0, %v855
  %v857 = vpop.f32.mrb[0].mxu0
  %858 = vmatprep.mubr.bf16.mxu0 %v466
  %859 = vmatmul.mubr.bf16.gmra.mrb[0].mxu0 %v465
  %v860 = vpop.f32.mrb[0].mxu0
  %v861 = vadd.f32 0.0, %v860
  %v862 = vpop.f32.mrb[0].mxu0
  %v863 = vpop.f32.mrb[0].mxu0
  %v864 = vadd.f32 0.0, %v863
  %v865 = vpop.f32.mrb[0].mxu0
  %866 = vmatprep.mubr.bf16.mxu0 %v469
  %867 = vmatmul.mubr.bf16.gmra.mrb[0].mxu0 %v468
  %v868 = vpop.f32.mrb[0].mxu0
  %v869 = vadd.f32 0.0, %v868
  %v870 = vpop.f32.mrb[0].mxu0
  %v871 = vpop.f32.mrb[0].mxu0
  %v872 = vadd.f32 0.0, %v871
  %v873 = vpop.f32.mrb[0].mxu0
  %874 = vmatprep.mubr.bf16.mxu0 %v472
  %875 = vmatmul.mubr.bf16.gmra.mrb[0].mxu0 %v471
  %v876 = vpop.f32.mrb[0].mxu0
  %v877 = vadd.f32 0.0, %v876
  %v878 = vpop.f32.mrb[0].mxu0
  %v879 = vpop.f32.mrb[0].mxu0
  %v880 = vadd.f32 0.0, %v879
  %v881 = vpop.f32.mrb[0].mxu0
  %882 = vmatprep.mubr.bf16.mxu0 %v475
  %883 = vmatmul.mubr.bf16.gmra.mrb[0].mxu0 %v474
  %v884 = vpop.f32.mrb[0].mxu0
  %v885 = vadd.f32 0.0, %v884
  %v886 = vpop.f32.mrb[0].mxu0
  %v887 = vpop.f32.mrb[0].mxu0
  %v888 = vadd.f32 0.0, %v887
  %v889 = vpop.f32.mrb[0].mxu0
  %890 = vmatprep.mubr.bf16.mxu0 %v478
  %891 = vmatmul.mubr.bf16.gmra.mrb[0].mxu0 %v477
  %v892 = vpop.f32.mrb[0].mxu0
  %v893 = vadd.f32 0.0, %v892
  %v894 = vpop.f32.mrb[0].mxu0
  %v895 = vpop.f32.mrb[0].mxu0
  %v896 = vadd.f32 0.0, %v895
  %v897 = vpop.f32.mrb[0].mxu0
  %898 = vmatprep.mubr.bf16.mxu0 %v481
  %899 = vmatmul.mubr.bf16.gmra.mrb[0].mxu0 %v480
  %v900 = vpop.f32.mrb[0].mxu0
  %v901 = vadd.f32 0.0, %v900
  %v902 = vpop.f32.mrb[0].mxu0
  %v903 = vpop.f32.mrb[0].mxu0
  %v904 = vadd.f32 0.0, %v903
  %v905 = vpop.f32.mrb[0].mxu0
  %906 = vmatprep.mubr.bf16.mxu0 %v484
  %907 = vmatmul.mubr.bf16.gmra.mrb[0].mxu0 %v483
  %v908 = vpop.f32.mrb[0].mxu0
  %v909 = vadd.f32 0.0, %v908
  %v910 = vpop.f32.mrb[0].mxu0
  %v911 = vpop.f32.mrb[0].mxu0
  %v912 = vadd.f32 0.0, %v911
  %v913 = vpop.f32.mrb[0].mxu0
  %914 = vmatprep.mubr.bf16.mxu0 %v487
  %915 = vmatmul.mubr.bf16.gmra.mrb[0].mxu0 %v486
  %v916 = vpop.f32.mrb[0].mxu0
  %v917 = vadd.f32 0.0, %v916
  %v918 = vpop.f32.mrb[0].mxu0
  %v919 = vpop.f32.mrb[0].mxu0
  %v920 = vadd.f32 0.0, %v919
  %v921 = vpop.f32.mrb[0].mxu0
  %922 = vmatprep.mubr.bf16.mxu0 %v490
  %923 = vmatmul.mubr.bf16.gmra.mrb[0].mxu0 %v489
  %v924 = vpop.f32.mrb[0].mxu0
  %v925 = vadd.f32 0.0, %v924
  %v926 = vpop.f32.mrb[0].mxu0
  %v927 = vpop.f32.mrb[0].mxu0
  %v928 = vadd.f32 0.0, %v927
  %v929 = vpop.f32.mrb[0].mxu0
  %930 = vmatprep.mubr.bf16.mxu0 %v493
  %931 = vmatmul.mubr.bf16.gmra.mrb[0].mxu0 %v492
  %v932 = vpop.f32.mrb[0].mxu0
  %v933 = vadd.f32 0.0, %v932
  %v934 = vpop.f32.mrb[0].mxu0
  %v935 = vpop.f32.mrb[0].mxu0
  %v936 = vadd.f32 0.0, %v935
  %v937 = vpop.f32.mrb[0].mxu0
  %938 = vmatprep.mubr.bf16.mxu0 %v496
  %939 = vmatmul.mubr.bf16.gmra.mrb[0].mxu0 %v495
  %v940 = vpop.f32.mrb[0].mxu0
  %v941 = vadd.f32 0.0, %v940
  %v942 = vpop.f32.mrb[0].mxu0
  %v943 = vpop.f32.mrb[0].mxu0
  %v944 = vadd.f32 0.0, %v943
  %v945 = vpop.f32.mrb[0].mxu0
  %946 = vmatprep.mubr.bf16.mxu0 %v499
  %947 = vmatmul.mubr.bf16.gmra.mrb[0].mxu0 %v498
  %v948 = vpop.f32.mrb[0].mxu0
  %v949 = vadd.f32 0.0, %v948
  %v950 = vpop.f32.mrb[0].mxu0
  %v951 = vpop.f32.mrb[0].mxu0
  %v952 = vadd.f32 0.0, %v951
  %v953 = vpop.f32.mrb[0].mxu0
  %954 = vmatprep.mubr.bf16.mxu0 %v502
  %955 = vmatmul.mubr.bf16.gmra.mrb[0].mxu0 %v501
  %v956 = vpop.f32.mrb[0].mxu0
  %v957 = vadd.f32 0.0, %v956
  %v958 = vpop.f32.mrb[0].mxu0
  %v959 = vpop.f32.mrb[0].mxu0
  %v960 = vadd.f32 0.0, %v959
  %v961 = vpop.f32.mrb[0].mxu0
  %962 = vmatprep.mubr.bf16.mxu0 %v505
  %963 = vmatmul.mubr.bf16.gmra.mrb[0].mxu0 %v504
  %v964 = vpop.f32.mrb[0].mxu0
  %v965 = vadd.f32 0.0, %v964
  %v966 = vpop.f32.mrb[0].mxu0
  %v967 = vpop.f32.mrb[0].mxu0
  %v968 = vadd.f32 0.0, %v967
  %v969 = vpop.f32.mrb[0].mxu0
  %970 = vmatprep.mubr.bf16.mxu0 %v508
  %971 = vmatmul.mubr.bf16.gmra.mrb[0].mxu0 %v507
  %v972 = vpop.f32.mrb[0].mxu0
  %v973 = vadd.f32 0.0, %v972
  %v974 = vpop.f32.mrb[0].mxu0
  %v975 = vpop.f32.mrb[0].mxu0
  %v976 = vadd.f32 0.0, %v975
  %v977 = vpop.f32.mrb[0].mxu0
  %978 = vmatprep.mubr.bf16.mxu0 %v511
  %979 = vmatmul.mubr.bf16.gmra.mrb[0].mxu0 %v510
  %v980 = vpop.f32.mrb[0].mxu0
  %v981 = vadd.f32 0.0, %v980
  %v982 = vpop.f32.mrb[0].mxu0
  %v983 = vpop.f32.mrb[0].mxu0
  %v984 = vadd.f32 0.0, %v983
  %v985 = vpop.f32.mrb[0].mxu0
  %986 = vmatprep.mubr.bf16.mxu0 %v514
  %987 = vmatmul.mubr.bf16.gmra.mrb[0].mxu0 %v513
  %v988 = vpop.f32.mrb[0].mxu0
  %v989 = vadd.f32 0.0, %v988
  %v990 = vpop.f32.mrb[0].mxu0
  %v991 = vpop.f32.mrb[0].mxu0
  %v992 = vadd.f32 0.0, %v991
  %v993 = vpop.f32.mrb[0].mxu0
  %994 = vmatprep.mubr.bf16.mxu0 %v517
  %995 = vmatmul.mubr.bf16.gmra.mrb[0].mxu0 %v516
  %v996 = vpop.f32.mrb[0].mxu0
  %v997 = vadd.f32 0.0, %v996
  %v998 = vpop.f32.mrb[0].mxu0
  %v999 = vpop.f32.mrb[0].mxu0
  %v1000 = vadd.f32 0.0, %v999
  %v1001 = vpop.f32.mrb[0].mxu0
  %1002 = vmatprep.mubr.bf16.mxu0 %v520
  %1003 = vmatmul.mubr.bf16.gmra.mrb[0].mxu0 %v519
  %v1004 = vpop.f32.mrb[0].mxu0
  %v1005 = vadd.f32 0.0, %v1004
  %v1006 = vpop.f32.mrb[0].mxu0
  %v1007 = vpop.f32.mrb[0].mxu0
  %v1008 = vadd.f32 0.0, %v1007
  %v1009 = vpop.f32.mrb[0].mxu0
  %1010 = vmatprep.mubr.bf16.mxu0 %v523
  %1011 = vmatmul.mubr.bf16.gmra.mrb[0].mxu0 %v522
  %v1012 = vpop.f32.mrb[0].mxu0
  %v1013 = vadd.f32 0.0, %v1012
  %v1014 = vpop.f32.mrb[0].mxu0
  %v1015 = vpop.f32.mrb[0].mxu0
  %v1016 = vadd.f32 0.0, %v1015
  %v1017 = vpop.f32.mrb[0].mxu0
  %1018 = vmatprep.mubr.bf16.mxu0 %v526
  %1019 = vmatmul.mubr.bf16.gmra.mrb[0].mxu0 %v525
  %v1020 = vpop.f32.mrb[0].mxu0
  %v1021 = vadd.f32 0.0, %v1020
  %v1022 = vpop.f32.mrb[0].mxu0
  %v1023 = vpop.f32.mrb[0].mxu0
  %v1024 = vadd.f32 0.0, %v1023
  %v1025 = vpop.f32.mrb[0].mxu0
  %1026 = vmatprep.mubr.bf16.mxu0 %v529
  %1027 = vmatmul.mubr.bf16.gmra.mrb[0].mxu0 %v528
  %v1028 = vpop.f32.mrb[0].mxu0
  %v1029 = vadd.f32 0.0, %v1028
  %v1030 = vpop.f32.mrb[0].mxu0
  %v1031 = vpop.f32.mrb[0].mxu0
  %v1032 = vadd.f32 0.0, %v1031
  %v1033 = vpop.f32.mrb[0].mxu0
  %1034 = vmatprep.mubr.bf16.mxu0 %v532
  %1035 = vmatmul.mubr.bf16.gmra.mrb[0].mxu0 %v531
  %v1036 = vpop.f32.mrb[0].mxu0
  %v1037 = vadd.f32 0.0, %v1036
  %v1038 = vpop.f32.mrb[0].mxu0
  %v1039 = vpop.f32.mrb[0].mxu0
  %v1040 = vadd.f32 0.0, %v1039
  %v1041 = vpop.f32.mrb[0].mxu0
  %1042 = vmatprep.mubr.bf16.mxu0 %v535
  %1043 = vmatmul.mubr.bf16.gmra.mrb[0].mxu0 %v534
  %v1044 = vpop.f32.mrb[0].mxu0
  %v1045 = vadd.f32 0.0, %v1044
  %v1046 = vpop.f32.mrb[0].mxu0
  %v1047 = vpop.f32.mrb[0].mxu0
  %v1048 = vadd.f32 0.0, %v1047
  %v1049 = vpop.f32.mrb[0].mxu0
  %1050 = vmatprep.mubr.bf16.mxu0 %v538
  %1051 = vmatmul.mubr.bf16.gmra.mrb[0].mxu0 %v537
  %v1052 = vpop.f32.mrb[0].mxu0
  %v1053 = vadd.f32 0.0, %v1052
  %v1054 = vpop.f32.mrb[0].mxu0
  %v1055 = vpop.f32.mrb[0].mxu0
  %v1056 = vpop.f32.mrb[0].mxu0
  %1057 = vdwg.mxu0
  %1058 = vmatprep.subr.bf16.mxu0 0
  %1059 = vmatpush1.bf16.msra.mxu0 %v686
  %1060 = vmatprep.subr.bf16.mxu0 0
  %1061 = vmatpush1.bf16.msra.mxu0 %v687
  %1062 = vmatprep.subr.bf16.mxu0 0
  %1063 = vmatpush1.bf16.msra.mxu0 0
  %1064 = vmatprep.subr.bf16.mxu0 0
  %1065 = vmatpush1.bf16.msra.mxu0 0
  %1066 = vmatprep.subr.bf16.mxu0 0
  %1067 = vmatpush1.bf16.msra.mxu0 0
  %1068 = vmatprep.subr.bf16.mxu0 0
  %1069 = vmatpush1.bf16.msra.mxu0 0
  %1070 = vmatprep.subr.bf16.mxu0 0
  %1071 = vmatpush1.bf16.msra.mxu0 0
  %1072 = vmatprep.subr.bf16.mxu0 0
  %1073 = vmatpush1.bf16.msra.mxu0 0
  %1074 = vmatprep.subr.bf16.mxu0 0
  %1075 = vmatpush1.bf16.msra.mxu0 0
  %1076 = vmatprep.subr.bf16.mxu0 0
  %1077 = vmatpush1.bf16.msra.mxu0 0
  %1078 = vmatprep.subr.bf16.mxu0 0
  %1079 = vmatpush1.bf16.msra.mxu0 0
  %1080 = vmatprep.subr.bf16.mxu0 0
  %1081 = vmatpush1.bf16.msra.mxu0 0
  %1082 = vmatprep.subr.bf16.mxu0 0
  %1083 = vmatpush1.bf16.msra.mxu0 0
  %1084 = vmatprep.subr.bf16.mxu0 0
  %1085 = vmatpush1.bf16.msra.mxu0 0
  %1086 = vmatprep.subr.bf16.mxu0 0
  %1087 = vmatpush1.bf16.msra.mxu0 0
  %1088 = vmatprep.subr.bf16.mxu0 0
  %1089 = vmatpush1.bf16.msra.mxu0 0
  %1090 = vmatprep.mubr.bf16.mxu0 0
  %1091 = vmatmul.mubr.bf16.gmra.mrb[0].mxu0 %v708
  %v1092 = vpop.f32.mrb[0].mxu0
  %v1093 = vadd.f32 %v829, %v1092
  %v1094 = vpop.f32.mrb[0].mxu0
  %v1095 = vpop.f32.mrb[0].mxu0
  %v1096 = vadd.f32 %v832, %v1095
  %v1097 = vpop.f32.mrb[0].mxu0
  %1098 = vmatprep.mubr.bf16.mxu0 0
  %1099 = vmatmul.mubr.bf16.gmra.mrb[0].mxu0 %v711
  %v1100 = vpop.f32.mrb[0].mxu0
  %v1101 = vadd.f32 %v837, %v1100
  %v1102 = vpop.f32.mrb[0].mxu0
  %v1103 = vpop.f32.mrb[0].mxu0
  %v1104 = vadd.f32 %v840, %v1103
  %v1105 = vpop.f32.mrb[0].mxu0
  %1106 = vmatprep.mubr.bf16.mxu0 0
  %1107 = vmatmul.mubr.bf16.gmra.mrb[0].mxu0 %v714
  %v1108 = vpop.f32.mrb[0].mxu0
  %v1109 = vadd.f32 %v845, %v1108
  %v1110 = vpop.f32.mrb[0].mxu0
  %v1111 = vpop.f32.mrb[0].mxu0
  %v1112 = vadd.f32 %v848, %v1111
  %v1113 = vpop.f32.mrb[0].mxu0
  %1114 = vmatprep.mubr.bf16.mxu0 0
  %1115 = vmatmul.mubr.bf16.gmra.mrb[0].mxu0 %v717
  %v1116 = vpop.f32.mrb[0].mxu0
  %v1117 = vadd.f32 %v853, %v1116
  %v1118 = vpop.f32.mrb[0].mxu0
  %v1119 = vpop.f32.mrb[0].mxu0
  %v1120 = vadd.f32 %v856, %v1119
  %v1121 = vpop.f32.mrb[0].mxu0
  %1122 = vmatprep.mubr.bf16.mxu0 0
  %1123 = vmatmul.mubr.bf16.gmra.mrb[0].mxu0 %v720
  %v1124 = vpop.f32.mrb[0].mxu0
  %v1125 = vadd.f32 %v861, %v1124
  %v1126 = vpop.f32.mrb[0].mxu0
  %v1127 = vpop.f32.mrb[0].mxu0
  %v1128 = vadd.f32 %v864, %v1127
  %v1129 = vpop.f32.mrb[0].mxu0
  %1130 = vmatprep.mubr.bf16.mxu0 0
  %1131 = vmatmul.mubr.bf16.gmra.mrb[0].mxu0 %v723
  %v1132 = vpop.f32.mrb[0].mxu0
  %v1133 = vadd.f32 %v869, %v1132
  %v1134 = vpop.f32.mrb[0].mxu0
  %v1135 = vpop.f32.mrb[0].mxu0
  %v1136 = vadd.f32 %v872, %v1135
  %v1137 = vpop.f32.mrb[0].mxu0
  %1138 = vmatprep.mubr.bf16.mxu0 0
  %1139 = vmatmul.mubr.bf16.gmra.mrb[0].mxu0 %v726
  %v1140 = vpop.f32.mrb[0].mxu0
  %v1141 = vadd.f32 %v877, %v1140
  %v1142 = vpop.f32.mrb[0].mxu0
  %v1143 = vpop.f32.mrb[0].mxu0
  %v1144 = vadd.f32 %v880, %v1143
  %v1145 = vpop.f32.mrb[0].mxu0
  %1146 = vmatprep.mubr.bf16.mxu0 0
  %1147 = vmatmul.mubr.bf16.gmra.mrb[0].mxu0 %v729
  %v1148 = vpop.f32.mrb[0].mxu0
  %v1149 = vadd.f32 %v885, %v1148
  %v1150 = vpop.f32.mrb[0].mxu0
  %v1151 = vpop.f32.mrb[0].mxu0
  %v1152 = vadd.f32 %v888, %v1151
  %v1153 = vpop.f32.mrb[0].mxu0
  %1154 = vmatprep.mubr.bf16.mxu0 0
  %1155 = vmatmul.mubr.bf16.gmra.mrb[0].mxu0 %v732
  %v1156 = vpop.f32.mrb[0].mxu0
  %v1157 = vadd.f32 %v893, %v1156
  %v1158 = vpop.f32.mrb[0].mxu0
  %v1159 = vpop.f32.mrb[0].mxu0
  %v1160 = vadd.f32 %v896, %v1159
  %v1161 = vpop.f32.mrb[0].mxu0
  %1162 = vmatprep.mubr.bf16.mxu0 0
  %1163 = vmatmul.mubr.bf16.gmra.mrb[0].mxu0 %v735
  %v1164 = vpop.f32.mrb[0].mxu0
  %v1165 = vadd.f32 %v901, %v1164
  %v1166 = vpop.f32.mrb[0].mxu0
  %v1167 = vpop.f32.mrb[0].mxu0
  %v1168 = vadd.f32 %v904, %v1167
  %v1169 = vpop.f32.mrb[0].mxu0
  %1170 = vmatprep.mubr.bf16.mxu0 0
  %1171 = vmatmul.mubr.bf16.gmra.mrb[0].mxu0 %v738
  %v1172 = vpop.f32.mrb[0].mxu0
  %v1173 = vadd.f32 %v909, %v1172
  %v1174 = vpop.f32.mrb[0].mxu0
  %v1175 = vpop.f32.mrb[0].mxu0
  %v1176 = vadd.f32 %v912, %v1175
  %v1177 = vpop.f32.mrb[0].mxu0
  %1178 = vmatprep.mubr.bf16.mxu0 0
  %1179 = vmatmul.mubr.bf16.gmra.mrb[0].mxu0 %v741
  %v1180 = vpop.f32.mrb[0].mxu0
  %v1181 = vadd.f32 %v917, %v1180
  %v1182 = vpop.f32.mrb[0].mxu0
  %v1183 = vpop.f32.mrb[0].mxu0
  %v1184 = vadd.f32 %v920, %v1183
  %v1185 = vpop.f32.mrb[0].mxu0
  %1186 = vmatprep.mubr.bf16.mxu0 0
  %1187 = vmatmul.mubr.bf16.gmra.mrb[0].mxu0 %v744
  %v1188 = vpop.f32.mrb[0].mxu0
  %v1189 = vadd.f32 %v925, %v1188
  %v1190 = vpop.f32.mrb[0].mxu0
  %v1191 = vpop.f32.mrb[0].mxu0
  %v1192 = vadd.f32 %v928, %v1191
  %v1193 = vpop.f32.mrb[0].mxu0
  %1194 = vmatprep.mubr.bf16.mxu0 0
  %1195 = vmatmul.mubr.bf16.gmra.mrb[0].mxu0 %v747
  %v1196 = vpop.f32.mrb[0].mxu0
  %v1197 = vadd.f32 %v933, %v1196
  %v1198 = vpop.f32.mrb[0].mxu0
  %v1199 = vpop.f32.mrb[0].mxu0
  %v1200 = vadd.f32 %v936, %v1199
  %v1201 = vpop.f32.mrb[0].mxu0
  %1202 = vmatprep.mubr.bf16.mxu0 0
  %1203 = vmatmul.mubr.bf16.gmra.mrb[0].mxu0 %v750
  %v1204 = vpop.f32.mrb[0].mxu0
  %v1205 = vadd.f32 %v941, %v1204
  %v1206 = vpop.f32.mrb[0].mxu0
  %v1207 = vpop.f32.mrb[0].mxu0
  %v1208 = vadd.f32 %v944, %v1207
  %v1209 = vpop.f32.mrb[0].mxu0
  %1210 = vmatprep.mubr.bf16.mxu0 0
  %1211 = vmatmul.mubr.bf16.gmra.mrb[0].mxu0 %v753
  %v1212 = vpop.f32.mrb[0].mxu0
  %v1213 = vadd.f32 %v949, %v1212
  %v1214 = vpop.f32.mrb[0].mxu0
  %v1215 = vpop.f32.mrb[0].mxu0
  %v1216 = vadd.f32 %v952, %v1215
  %v1217 = vpop.f32.mrb[0].mxu0
  %1218 = vmatprep.mubr.bf16.mxu0 0
  %1219 = vmatmul.mubr.bf16.gmra.mrb[0].mxu0 %v756
  %v1220 = vpop.f32.mrb[0].mxu0
  %v1221 = vadd.f32 %v957, %v1220
  %v1222 = vpop.f32.mrb[0].mxu0
  %v1223 = vpop.f32.mrb[0].mxu0
  %v1224 = vadd.f32 %v960, %v1223
  %v1225 = vpop.f32.mrb[0].mxu0
  %1226 = vmatprep.mubr.bf16.mxu0 0
  %1227 = vmatmul.mubr.bf16.gmra.mrb[0].mxu0 %v759
  %v1228 = vpop.f32.mrb[0].mxu0
  %v1229 = vadd.f32 %v965, %v1228
  %v1230 = vpop.f32.mrb[0].mxu0
  %v1231 = vpop.f32.mrb[0].mxu0
  %v1232 = vadd.f32 %v968, %v1231
  %v1233 = vpop.f32.mrb[0].mxu0
  %1234 = vmatprep.mubr.bf16.mxu0 0
  %1235 = vmatmul.mubr.bf16.gmra.mrb[0].mxu0 %v762
  %v1236 = vpop.f32.mrb[0].mxu0
  %v1237 = vadd.f32 %v973, %v1236
  %v1238 = vpop.f32.mrb[0].mxu0
  %v1239 = vpop.f32.mrb[0].mxu0
  %v1240 = vadd.f32 %v976, %v1239
  %v1241 = vpop.f32.mrb[0].mxu0
  %1242 = vmatprep.mubr.bf16.mxu0 0
  %1243 = vmatmul.mubr.bf16.gmra.mrb[0].mxu0 %v765
  %v1244 = vpop.f32.mrb[0].mxu0
  %v1245 = vadd.f32 %v981, %v1244
  %v1246 = vpop.f32.mrb[0].mxu0
  %v1247 = vpop.f32.mrb[0].mxu0
  %v1248 = vadd.f32 %v984, %v1247
  %v1249 = vpop.f32.mrb[0].mxu0
  %1250 = vmatprep.mubr.bf16.mxu0 0
  %1251 = vmatmul.mubr.bf16.gmra.mrb[0].mxu0 %v768
  %v1252 = vpop.f32.mrb[0].mxu0
  %v1253 = vadd.f32 %v989, %v1252
  %v1254 = vpop.f32.mrb[0].mxu0
  %v1255 = vpop.f32.mrb[0].mxu0
  %v1256 = vadd.f32 %v992, %v1255
  %v1257 = vpop.f32.mrb[0].mxu0
  %1258 = vmatprep.mubr.bf16.mxu0 0
  %1259 = vmatmul.mubr.bf16.gmra.mrb[0].mxu0 %v771
  %v1260 = vpop.f32.mrb[0].mxu0
  %v1261 = vadd.f32 %v997, %v1260
  %v1262 = vpop.f32.mrb[0].mxu0
  %v1263 = vpop.f32.mrb[0].mxu0
  %v1264 = vadd.f32 %v1000, %v1263
  %v1265 = vpop.f32.mrb[0].mxu0
  %1266 = vmatprep.mubr.bf16.mxu0 0
  %1267 = vmatmul.mubr.bf16.gmra.mrb[0].mxu0 %v774
  %v1268 = vpop.f32.mrb[0].mxu0
  %v1269 = vadd.f32 %v1005, %v1268
  %v1270 = vpop.f32.mrb[0].mxu0
  %v1271 = vpop.f32.mrb[0].mxu0
  %v1272 = vadd.f32 %v1008, %v1271
  %v1273 = vpop.f32.mrb[0].mxu0
  %1274 = vmatprep.mubr.bf16.mxu0 0
  %1275 = vmatmul.mubr.bf16.gmra.mrb[0].mxu0 %v777
  %v1276 = vpop.f32.mrb[0].mxu0
  %v1277 = vadd.f32 %v1013, %v1276
  %v1278 = vpop.f32.mrb[0].mxu0
  %v1279 = vpop.f32.mrb[0].mxu0
  %v1280 = vadd.f32 %v1016, %v1279
  %v1281 = vpop.f32.mrb[0].mxu0
  %1282 = vmatprep.mubr.bf16.mxu0 0
  %1283 = vmatmul.mubr.bf16.gmra.mrb[0].mxu0 %v780
  %v1284 = vpop.f32.mrb[0].mxu0
  %v1285 = vadd.f32 %v1021, %v1284
  %v1286 = vpop.f32.mrb[0].mxu0
  %v1287 = vpop.f32.mrb[0].mxu0
  %v1288 = vadd.f32 %v1024, %v1287
  %v1289 = vpop.f32.mrb[0].mxu0
  %1290 = vmatprep.mubr.bf16.mxu0 0
  %1291 = vmatmul.mubr.bf16.gmra.mrb[0].mxu0 %v783
  %v1292 = vpop.f32.mrb[0].mxu0
  %v1293 = vadd.f32 %v1029, %v1292
  %v1294 = vpop.f32.mrb[0].mxu0
  %v1295 = vpop.f32.mrb[0].mxu0
  %v1296 = vadd.f32 %v1032, %v1295
  %v1297 = vpop.f32.mrb[0].mxu0
  %1298 = vmatprep.mubr.bf16.mxu0 0
  %1299 = vmatmul.mubr.bf16.gmra.mrb[0].mxu0 %v786
  %v1300 = vpop.f32.mrb[0].mxu0
  %v1301 = vadd.f32 %v1037, %v1300
  %v1302 = vpop.f32.mrb[0].mxu0
  %v1303 = vpop.f32.mrb[0].mxu0
  %v1304 = vadd.f32 %v1040, %v1303
  %v1305 = vpop.f32.mrb[0].mxu0
  %1306 = vmatprep.mubr.bf16.mxu0 0
  %1307 = vmatmul.mubr.bf16.gmra.mrb[0].mxu0 %v789
  %v1308 = vpop.f32.mrb[0].mxu0
  %v1309 = vadd.f32 %v1045, %v1308
  %v1310 = vpop.f32.mrb[0].mxu0
  %v1311 = vpop.f32.mrb[0].mxu0
  %v1312 = vadd.f32 %v1048, %v1311
  %v1313 = vpop.f32.mrb[0].mxu0
  %1314 = vmatprep.mubr.bf16.mxu0 0
  %1315 = vmatmul.mubr.bf16.gmra.mrb[0].mxu0 %v792
  %v1316 = vpop.f32.mrb[0].mxu0
  %v1317 = vadd.f32 %v1053, %v1316
  %v1318 = vpop.f32.mrb[0].mxu0
  %v1319 = vpop.f32.mrb[0].mxu0
  %v1320 = vpop.f32.mrb[0].mxu0
  %1321 = vdwg.mxu0
  %v1322 = vld [vmem:[%s2] sm:$0x1]
  %v1324 = vlaneseq
  %v1325 = vshrl.u32 %v1324, 7
  %v1326 = vsub.s32 0, %v1325
  %v1327 = vrot.slane %v1322, %v1326
  %v1329 = vmul.f32 %v1093, %v1327
  %v1330 = vmul.f32 %v1096, %v1327
  %v1331 = vmul.f32 %v1101, %v1327
  %v1332 = vmul.f32 %v1104, %v1327
  %v1333 = vmul.f32 %v1109, %v1327
  %v1334 = vmul.f32 %v1112, %v1327
  %v1335 = vmul.f32 %v1117, %v1327
  %v1336 = vmul.f32 %v1120, %v1327
  %v1337 = vmul.f32 %v1125, %v1327
  %v1338 = vmul.f32 %v1128, %v1327
  %v1339 = vmul.f32 %v1133, %v1327
  %v1340 = vmul.f32 %v1136, %v1327
  %v1341 = vmul.f32 %v1141, %v1327
  %v1342 = vmul.f32 %v1144, %v1327
  %v1343 = vmul.f32 %v1149, %v1327
  %v1344 = vmul.f32 %v1152, %v1327
  %v1345 = vmul.f32 %v1157, %v1327
  %v1346 = vmul.f32 %v1160, %v1327
  %v1347 = vmul.f32 %v1165, %v1327
  %v1348 = vmul.f32 %v1168, %v1327
  %v1349 = vmul.f32 %v1173, %v1327
  %v1350 = vmul.f32 %v1176, %v1327
  %v1351 = vmul.f32 %v1181, %v1327
  %v1352 = vmul.f32 %v1184, %v1327
  %v1353 = vmul.f32 %v1189, %v1327
  %v1354 = vmul.f32 %v1192, %v1327
  %v1355 = vmul.f32 %v1197, %v1327
  %v1356 = vmul.f32 %v1200, %v1327
  %v1357 = vmul.f32 %v1205, %v1327
  %v1358 = vmul.f32 %v1208, %v1327
  %v1359 = vmul.f32 %v1213, %v1327
  %v1360 = vmul.f32 %v1216, %v1327
  %v1361 = vmul.f32 %v1221, %v1327
  %v1362 = vmul.f32 %v1224, %v1327
  %v1363 = vmul.f32 %v1229, %v1327
  %v1364 = vmul.f32 %v1232, %v1327
  %v1365 = vmul.f32 %v1237, %v1327
  %v1366 = vmul.f32 %v1240, %v1327
  %v1367 = vmul.f32 %v1245, %v1327
  %v1368 = vmul.f32 %v1248, %v1327
  %v1369 = vmul.f32 %v1253, %v1327
  %v1370 = vmul.f32 %v1256, %v1327
  %v1371 = vmul.f32 %v1261, %v1327
  %v1372 = vmul.f32 %v1264, %v1327
  %v1373 = vmul.f32 %v1269, %v1327
  %v1374 = vmul.f32 %v1272, %v1327
  %v1375 = vmul.f32 %v1277, %v1327
  %v1376 = vmul.f32 %v1280, %v1327
  %v1377 = vmul.f32 %v1285, %v1327
  %v1378 = vmul.f32 %v1288, %v1327
  %v1379 = vmul.f32 %v1293, %v1327
  %v1380 = vmul.f32 %v1296, %v1327
  %v1381 = vmul.f32 %v1301, %v1327
  %v1382 = vmul.f32 %v1304, %v1327
  %v1383 = vmul.f32 %v1309, %v1327
  %v1384 = vmul.f32 %v1312, %v1327
  %v1385 = vmul.f32 %v1317, %v1327
  %v1386 = vld [vmem:[%s3] sm:$0x1]
  %v1388 = vlaneseq
  %v1389 = vshrl.u32 %v1388, 7
  %v1390 = vsub.s32 0, %v1389
  %v1391 = vrot.slane %v1386, %v1390
  %v1393 = vadd.f32 %v1329, %v1391
  %v1394 = vadd.f32 %v1330, %v1391
  %v1395 = vadd.f32 %v1331, %v1391
  %v1396 = vadd.f32 %v1332, %v1391
  %v1397 = vadd.f32 %v1333, %v1391
  %v1398 = vadd.f32 %v1334, %v1391
  %v1399 = vadd.f32 %v1335, %v1391
  %v1400 = vadd.f32 %v1336, %v1391
  %v1401 = vadd.f32 %v1337, %v1391
  %v1402 = vadd.f32 %v1338, %v1391
  %v1403 = vadd.f32 %v1339, %v1391
  %v1404 = vadd.f32 %v1340, %v1391
  %v1405 = vadd.f32 %v1341, %v1391
  %v1406 = vadd.f32 %v1342, %v1391
  %v1407 = vadd.f32 %v1343, %v1391
  %v1408 = vadd.f32 %v1344, %v1391
  %v1409 = vadd.f32 %v1345, %v1391
  %v1410 = vadd.f32 %v1346, %v1391
  %v1411 = vadd.f32 %v1347, %v1391
  %v1412 = vadd.f32 %v1348, %v1391
  %v1413 = vadd.f32 %v1349, %v1391
  %v1414 = vadd.f32 %v1350, %v1391
  %v1415 = vadd.f32 %v1351, %v1391
  %v1416 = vadd.f32 %v1352, %v1391
  %v1417 = vadd.f32 %v1353, %v1391
  %v1418 = vadd.f32 %v1354, %v1391
  %v1419 = vadd.f32 %v1355, %v1391
  %v1420 = vadd.f32 %v1356, %v1391
  %v1421 = vadd.f32 %v1357, %v1391
  %v1422 = vadd.f32 %v1358, %v1391
  %v1423 = vadd.f32 %v1359, %v1391
  %v1424 = vadd.f32 %v1360, %v1391
  %v1425 = vadd.f32 %v1361, %v1391
  %v1426 = vadd.f32 %v1362, %v1391
  %v1427 = vadd.f32 %v1363, %v1391
  %v1428 = vadd.f32 %v1364, %v1391
  %v1429 = vadd.f32 %v1365, %v1391
  %v1430 = vadd.f32 %v1366, %v1391
  %v1431 = vadd.f32 %v1367, %v1391
  %v1432 = vadd.f32 %v1368, %v1391
  %v1433 = vadd.f32 %v1369, %v1391
  %v1434 = vadd.f32 %v1370, %v1391
  %v1435 = vadd.f32 %v1371, %v1391
  %v1436 = vadd.f32 %v1372, %v1391
  %v1437 = vadd.f32 %v1373, %v1391
  %v1438 = vadd.f32 %v1374, %v1391
  %v1439 = vadd.f32 %v1375, %v1391
  %v1440 = vadd.f32 %v1376, %v1391
  %v1441 = vadd.f32 %v1377, %v1391
  %v1442 = vadd.f32 %v1378, %v1391
  %v1443 = vadd.f32 %v1379, %v1391
  %v1444 = vadd.f32 %v1380, %v1391
  %v1445 = vadd.f32 %v1381, %v1391
  %v1446 = vadd.f32 %v1382, %v1391
  %v1447 = vadd.f32 %v1383, %v1391
  %v1448 = vadd.f32 %v1384, %v1391
  %v1449 = vadd.f32 %v1385, %v1391
  %v1450 = vmax.f32 %v1393, 0.0
  %v1451 = vmax.f32 %v1394, 0.0
  %v1452 = vmax.f32 %v1395, 0.0
  %v1453 = vmax.f32 %v1396, 0.0
  %v1454 = vmax.f32 %v1397, 0.0
  %v1455 = vmax.f32 %v1398, 0.0
  %v1456 = vmax.f32 %v1399, 0.0
  %v1457 = vmax.f32 %v1400, 0.0
  %v1458 = vmax.f32 %v1401, 0.0
  %v1459 = vmax.f32 %v1402, 0.0
  %v1460 = vmax.f32 %v1403, 0.0
  %v1461 = vmax.f32 %v1404, 0.0
  %v1462 = vmax.f32 %v1405, 0.0
  %v1463 = vmax.f32 %v1406, 0.0
  %v1464 = vmax.f32 %v1407, 0.0
  %v1465 = vmax.f32 %v1408, 0.0
  %v1466 = vmax.f32 %v1409, 0.0
  %v1467 = vmax.f32 %v1410, 0.0
  %v1468 = vmax.f32 %v1411, 0.0
  %v1469 = vmax.f32 %v1412, 0.0
  %v1470 = vmax.f32 %v1413, 0.0
  %v1471 = vmax.f32 %v1414, 0.0
  %v1472 = vmax.f32 %v1415, 0.0
  %v1473 = vmax.f32 %v1416, 0.0
  %v1474 = vmax.f32 %v1417, 0.0
  %v1475 = vmax.f32 %v1418, 0.0
  %v1476 = vmax.f32 %v1419, 0.0
  %v1477 = vmax.f32 %v1420, 0.0
  %v1478 = vmax.f32 %v1421, 0.0
  %v1479 = vmax.f32 %v1422, 0.0
  %v1480 = vmax.f32 %v1423, 0.0
  %v1481 = vmax.f32 %v1424, 0.0
  %v1482 = vmax.f32 %v1425, 0.0
  %v1483 = vmax.f32 %v1426, 0.0
  %v1484 = vmax.f32 %v1427, 0.0
  %v1485 = vmax.f32 %v1428, 0.0
  %v1486 = vmax.f32 %v1429, 0.0
  %v1487 = vmax.f32 %v1430, 0.0
  %v1488 = vmax.f32 %v1431, 0.0
  %v1489 = vmax.f32 %v1432, 0.0
  %v1490 = vmax.f32 %v1433, 0.0
  %v1491 = vmax.f32 %v1434, 0.0
  %v1492 = vmax.f32 %v1435, 0.0
  %v1493 = vmax.f32 %v1436, 0.0
  %v1494 = vmax.f32 %v1437, 0.0
  %v1495 = vmax.f32 %v1438, 0.0
  %v1496 = vmax.f32 %v1439, 0.0
  %v1497 = vmax.f32 %v1440, 0.0
  %v1498 = vmax.f32 %v1441, 0.0
  %v1499 = vmax.f32 %v1442, 0.0
  %v1500 = vmax.f32 %v1443, 0.0
  %v1501 = vmax.f32 %v1444, 0.0
  %v1502 = vmax.f32 %v1445, 0.0
  %v1503 = vmax.f32 %v1446, 0.0
  %v1504 = vmax.f32 %v1447, 0.0
  %v1505 = vmax.f32 %v1448, 0.0
  %v1506 = vmax.f32 %v1449, 0.0
  %v1507 = vpack.c.bf16 %v1451, %v1450
  %v1508 = vpack.c.bf16 %v1453, %v1452
  %v1509 = vpack.c.bf16 %v1455, %v1454
  %v1510 = vpack.c.bf16 %v1457, %v1456
  %v1511 = vpack.c.bf16 %v1459, %v1458
  %v1512 = vpack.c.bf16 %v1461, %v1460
  %v1513 = vpack.c.bf16 %v1463, %v1462
  %v1514 = vpack.c.bf16 %v1465, %v1464
  %v1515 = vpack.c.bf16 %v1467, %v1466
  %v1516 = vpack.c.bf16 %v1469, %v1468
  %v1517 = vpack.c.bf16 %v1471, %v1470
  %v1518 = vpack.c.bf16 %v1473, %v1472
  %v1519 = vpack.c.bf16 %v1475, %v1474
  %v1520 = vpack.c.bf16 %v1477, %v1476
  %v1521 = vpack.c.bf16 %v1479, %v1478
  %v1522 = vpack.c.bf16 %v1481, %v1480
  %v1523 = vpack.c.bf16 %v1483, %v1482
  %v1524 = vpack.c.bf16 %v1485, %v1484
  %v1525 = vpack.c.bf16 %v1487, %v1486
  %v1526 = vpack.c.bf16 %v1489, %v1488
  %v1527 = vpack.c.bf16 %v1491, %v1490
  %v1528 = vpack.c.bf16 %v1493, %v1492
  %v1529 = vpack.c.bf16 %v1495, %v1494
  %v1530 = vpack.c.bf16 %v1497, %v1496
  %v1531 = vpack.c.bf16 %v1499, %v1498
  %v1532 = vpack.c.bf16 %v1501, %v1500
  %v1533 = vpack.c.bf16 %v1503, %v1502
  %v1534 = vpack.c.bf16 %v1505, %v1504
  %v1535 = vpack.c.bf16 %v1506, %v1506
  %v1565 = vunpack.c.l.b16 %v1507
  %v1566 = vunpack.c.h.b16 %v1507
  %v1567 = vunpack.c.l.b16 %v1508
  %v1568 = vunpack.c.h.b16 %v1508
  %v1569 = vunpack.c.l.b16 %v1509
  %v1570 = vunpack.c.h.b16 %v1509
  %v1571 = vunpack.c.l.b16 %v1510
  %v1572 = vunpack.c.h.b16 %v1510
  %v1573 = vunpack.c.l.b16 %v1511
  %v1574 = vunpack.c.h.b16 %v1511
  %v1575 = vunpack.c.l.b16 %v1512
  %v1576 = vunpack.c.h.b16 %v1512
  %v1577 = vunpack.c.l.b16 %v1513
  %v1578 = vunpack.c.h.b16 %v1513
  %v1579 = vunpack.c.l.b16 %v1514
  %v1580 = vunpack.c.h.b16 %v1514
  %v1581 = vunpack.c.l.b16 %v1515
  %v1582 = vunpack.c.h.b16 %v1515
  %v1583 = vunpack.c.l.b16 %v1516
  %v1584 = vunpack.c.h.b16 %v1516
  %v1585 = vunpack.c.l.b16 %v1517
  %v1586 = vunpack.c.h.b16 %v1517
  %v1587 = vunpack.c.l.b16 %v1518
  %v1588 = vunpack.c.h.b16 %v1518
  %v1589 = vunpack.c.l.b16 %v1519
  %v1590 = vunpack.c.h.b16 %v1519
  %v1591 = vunpack.c.l.b16 %v1520
  %v1592 = vunpack.c.h.b16 %v1520
  %v1593 = vunpack.c.l.b16 %v1521
  %v1594 = vunpack.c.h.b16 %v1521
  %v1595 = vunpack.c.l.b16 %v1522
  %v1596 = vunpack.c.h.b16 %v1522
  %v1597 = vunpack.c.l.b16 %v1523
  %v1598 = vunpack.c.h.b16 %v1523
  %v1599 = vunpack.c.l.b16 %v1524
  %v1600 = vunpack.c.h.b16 %v1524
  %v1601 = vunpack.c.l.b16 %v1525
  %v1602 = vunpack.c.h.b16 %v1525
  %v1603 = vunpack.c.l.b16 %v1526
  %v1604 = vunpack.c.h.b16 %v1526
  %v1605 = vunpack.c.l.b16 %v1527
  %v1606 = vunpack.c.h.b16 %v1527
  %v1607 = vunpack.c.l.b16 %v1528
  %v1608 = vunpack.c.h.b16 %v1528
  %v1609 = vunpack.c.l.b16 %v1529
  %v1610 = vunpack.c.h.b16 %v1529
  %v1611 = vunpack.c.l.b16 %v1530
  %v1612 = vunpack.c.h.b16 %v1530
  %v1613 = vunpack.c.l.b16 %v1531
  %v1614 = vunpack.c.h.b16 %v1531
  %v1615 = vunpack.c.l.b16 %v1532
  %v1616 = vunpack.c.h.b16 %v1532
  %v1617 = vunpack.c.l.b16 %v1533
  %v1618 = vunpack.c.h.b16 %v1533
  %v1619 = vunpack.c.l.b16 %v1534
  %v1620 = vunpack.c.h.b16 %v1534
  %v1621 = vunpack.c.l.b16 %v1535
  %v1622 = vpack.c.b16 %v1565, %v1565
  %v1623 = vpack.c.b16 %v1566, %v1566
  %v1624 = vpack.c.b16 %v1567, %v1567
  %v1625 = vpack.c.b16 %v1568, %v1568
  %v1626 = vpack.c.b16 %v1569, %v1569
  %v1627 = vpack.c.b16 %v1570, %v1570
  %v1628 = vpack.c.b16 %v1571, %v1571
  %v1629 = vpack.c.b16 %v1572, %v1572
  %v1630 = vpack.c.b16 %v1573, %v1573
  %v1631 = vpack.c.b16 %v1574, %v1574
  %v1632 = vpack.c.b16 %v1575, %v1575
  %v1633 = vpack.c.b16 %v1576, %v1576
  %v1634 = vpack.c.b16 %v1577, %v1577
  %v1635 = vpack.c.b16 %v1578, %v1578
  %v1636 = vpack.c.b16 %v1579, %v1579
  %v1637 = vpack.c.b16 %v1580, %v1580
  %v1638 = vpack.c.b16 %v1581, %v1581
  %v1639 = vpack.c.b16 %v1582, %v1582
  %v1640 = vpack.c.b16 %v1583, %v1583
  %v1641 = vpack.c.b16 %v1584, %v1584
  %v1642 = vpack.c.b16 %v1585, %v1585
  %v1643 = vpack.c.b16 %v1586, %v1586
  %v1644 = vpack.c.b16 %v1587, %v1587
  %v1645 = vpack.c.b16 %v1588, %v1588
  %v1646 = vpack.c.b16 %v1589, %v1589
  %v1647 = vpack.c.b16 %v1590, %v1590
  %v1648 = vpack.c.b16 %v1591, %v1591
  %v1649 = vpack.c.b16 %v1592, %v1592
  %v1650 = vpack.c.b16 %v1593, %v1593
  %v1651 = vpack.c.b16 %v1594, %v1594
  %v1652 = vpack.c.b16 %v1595, %v1595
  %v1653 = vpack.c.b16 %v1596, %v1596
  %v1654 = vpack.c.b16 %v1597, %v1597
  %v1655 = vpack.c.b16 %v1598, %v1598
  %v1656 = vpack.c.b16 %v1599, %v1599
  %v1657 = vpack.c.b16 %v1600, %v1600
  %v1658 = vpack.c.b16 %v1601, %v1601
  %v1659 = vpack.c.b16 %v1602, %v1602
  %v1660 = vpack.c.b16 %v1603, %v1603
  %v1661 = vpack.c.b16 %v1604, %v1604
  %v1662 = vpack.c.b16 %v1605, %v1605
  %v1663 = vpack.c.b16 %v1606, %v1606
  %v1664 = vpack.c.b16 %v1607, %v1607
  %v1665 = vpack.c.b16 %v1608, %v1608
  %v1666 = vpack.c.b16 %v1609, %v1609
  %v1667 = vpack.c.b16 %v1610, %v1610
  %v1668 = vpack.c.b16 %v1611, %v1611
  %v1669 = vpack.c.b16 %v1612, %v1612
  %v1670 = vpack.c.b16 %v1613, %v1613
  %v1671 = vpack.c.b16 %v1614, %v1614
  %v1672 = vpack.c.b16 %v1615, %v1615
  %v1673 = vpack.c.b16 %v1616, %v1616
  %v1674 = vpack.c.b16 %v1617, %v1617
  %v1675 = vpack.c.b16 %v1618, %v1618
  %v1676 = vpack.c.b16 %v1619, %v1619
  %v1677 = vpack.c.b16 %v1620, %v1620
  %v1678 = vpack.c.b16 %v1621, %v1621
  %vm1736 = vcmask 257024
  %1737 = vst.msk [vmem:[%s4] sm:$0xf] %vm1736, %v1622
  %1738 = vst.msk [vmem:[%s4 + $0x4] sm:$0xf] %vm1736, %v1623
  %1739 = vst.msk [vmem:[%s4 + $0x8] sm:$0xf] %vm1736, %v1624
  %1740 = vst.msk [vmem:[%s4 + $0xc] sm:$0xf] %vm1736, %v1625
  %1741 = vst.msk [vmem:[%s4 + $0x10] sm:$0xf] %vm1736, %v1626
  %1742 = vst.msk [vmem:[%s4 + $0x14] sm:$0xf] %vm1736, %v1627
  %1743 = vst.msk [vmem:[%s4 + $0x18] sm:$0xf] %vm1736, %v1628
  %1744 = vst.msk [vmem:[%s4 + $0x1c] sm:$0xf] %vm1736, %v1629
  %1745 = vst.msk [vmem:[%s4 + $0x20] sm:$0xf] %vm1736, %v1630
  %1746 = vst.msk [vmem:[%s4 + $0x24] sm:$0xf] %vm1736, %v1631
  %1747 = vst.msk [vmem:[%s4 + $0x28] sm:$0xf] %vm1736, %v1632
  %1748 = vst.msk [vmem:[%s4 + $0x2c] sm:$0xf] %vm1736, %v1633
  %1749 = vst.msk [vmem:[%s4 + $0x30] sm:$0xf] %vm1736, %v1634
  %1750 = vst.msk [vmem:[%s4 + $0x34] sm:$0xf] %vm1736, %v1635
  %1751 = vst.msk [vmem:[%s4 + $0x38] sm:$0xf] %vm1736, %v1636
  %1752 = vst.msk [vmem:[%s4 + $0x3c] sm:$0xf] %vm1736, %v1637
  %1753 = vst.msk [vmem:[%s4 + $0x40] sm:$0xf] %vm1736, %v1638
  %1754 = vst.msk [vmem:[%s4 + $0x44] sm:$0xf] %vm1736, %v1639
  %1755 = vst.msk [vmem:[%s4 + $0x48] sm:$0xf] %vm1736, %v1640
  %1756 = vst.msk [vmem:[%s4 + $0x4c] sm:$0xf] %vm1736, %v1641
  %1757 = vst.msk [vmem:[%s4 + $0x50] sm:$0xf] %vm1736, %v1642
  %1758 = vst.msk [vmem:[%s4 + $0x54] sm:$0xf] %vm1736, %v1643
  %1759 = vst.msk [vmem:[%s4 + $0x58] sm:$0xf] %vm1736, %v1644
  %1760 = vst.msk [vmem:[%s4 + $0x5c] sm:$0xf] %vm1736, %v1645
  %1761 = vst.msk [vmem:[%s4 + $0x60] sm:$0xf] %vm1736, %v1646
  %1762 = vst.msk [vmem:[%s4 + $0x64] sm:$0xf] %vm1736, %v1647
  %1763 = vst.msk [vmem:[%s4 + $0x68] sm:$0xf] %vm1736, %v1648
  %1764 = vst.msk [vmem:[%s4 + $0x6c] sm:$0xf] %vm1736, %v1649
  %1765 = vst.msk [vmem:[%s4 + $0x70] sm:$0xf] %vm1736, %v1650
  %1766 = vst.msk [vmem:[%s4 + $0x74] sm:$0xf] %vm1736, %v1651
  %1767 = vst.msk [vmem:[%s4 + $0x78] sm:$0xf] %vm1736, %v1652
  %1768 = vst.msk [vmem:[%s4 + $0x7c] sm:$0xf] %vm1736, %v1653
  %1769 = vst.msk [vmem:[%s4 + $0x80] sm:$0xf] %vm1736, %v1654
  %1770 = vst.msk [vmem:[%s4 + $0x84] sm:$0xf] %vm1736, %v1655
  %1771 = vst.msk [vmem:[%s4 + $0x88] sm:$0xf] %vm1736, %v1656
  %1772 = vst.msk [vmem:[%s4 + $0x8c] sm:$0xf] %vm1736, %v1657
  %1773 = vst.msk [vmem:[%s4 + $0x90] sm:$0xf] %vm1736, %v1658
  %1774 = vst.msk [vmem:[%s4 + $0x94] sm:$0xf] %vm1736, %v1659
  %1775 = vst.msk [vmem:[%s4 + $0x98] sm:$0xf] %vm1736, %v1660
  %1776 = vst.msk [vmem:[%s4 + $0x9c] sm:$0xf] %vm1736, %v1661
  %1777 = vst.msk [vmem:[%s4 + $0xa0] sm:$0xf] %vm1736, %v1662
  %1778 = vst.msk [vmem:[%s4 + $0xa4] sm:$0xf] %vm1736, %v1663
  %1779 = vst.msk [vmem:[%s4 + $0xa8] sm:$0xf] %vm1736, %v1664
  %1780 = vst.msk [vmem:[%s4 + $0xac] sm:$0xf] %vm1736, %v1665
  %1781 = vst.msk [vmem:[%s4 + $0xb0] sm:$0xf] %vm1736, %v1666
  %1782 = vst.msk [vmem:[%s4 + $0xb4] sm:$0xf] %vm1736, %v1667
  %1783 = vst.msk [vmem:[%s4 + $0xb8] sm:$0xf] %vm1736, %v1668
  %1784 = vst.msk [vmem:[%s4 + $0xbc] sm:$0xf] %vm1736, %v1669
  %1785 = vst.msk [vmem:[%s4 + $0xc0] sm:$0xf] %vm1736, %v1670
  %1786 = vst.msk [vmem:[%s4 + $0xc4] sm:$0xf] %vm1736, %v1671
  %1787 = vst.msk [vmem:[%s4 + $0xc8] sm:$0xf] %vm1736, %v1672
  %1788 = vst.msk [vmem:[%s4 + $0xcc] sm:$0xf] %vm1736, %v1673
  %1789 = vst.msk [vmem:[%s4 + $0xd0] sm:$0xf] %vm1736, %v1674
  %1790 = vst.msk [vmem:[%s4 + $0xd4] sm:$0xf] %vm1736, %v1675
  %1791 = vst.msk [vmem:[%s4 + $0xd8] sm:$0xf] %vm1736, %v1676
  %1792 = vst.msk [vmem:[%s4 + $0xdc] sm:$0xf] %vm1736, %v1677
  %vm1793 = vcmask 253952
  %1794 = vst.msk [vmem:[%s4 + $0xe0] sm:$0x1] %vm1793, %v1678
  // Predicated region
  $region18: #{incept_init_block.10} parent=0 // pred_check
    _
  $region19: #{incept_init_block.10} parent=0 // pred_check_branch
    %1796 = sbr.rel (0) target = $region21
  $region20: #{incept_init_block.10} parent=0 // pred_region
    _
  $region21: #{incept_init_block.10} parent=0 // pred_fallthru
    _
  // Predicated region
  $region22: #{incept_init_block.10} parent=0 // pred_check
    _
  $region23: #{incept_init_block.10} parent=0 // pred_check_branch
    %1798 = sbr.rel (0) target = $region25
  $region24: #{incept_init_block.10} parent=0 // pred_region
    _
  $region25: #{incept_init_block.10} parent=0 // pred_fallthru
    _

// kernel: incept_init_block.11
$region0: #{incept_init_block.11}
  #allocation0 [shape = 'u32[]', space=smem, size = 0x4, offset = 0x4, fixed_abs, tag = 'smem constant byte address 0x4 - core index']
  #allocation1 [shape = 'u32[144,128]{1,0:T(1,128)}', space=vmem, size = 0x12000, scoped, tag = 'internal scratch']
  %s0 = inlined_call_operand.vmem [shape: bf16[450,288], index: 0, kind: input, shape index: {}]
  %s1 = inlined_call_operand.vmem [shape: bf16[288,64], index: 1, kind: input, shape index: {}]
  %s2 = inlined_call_operand.vmem [shape: f32[1,64], index: 2, kind: input, shape index: {}]
  %s3 = inlined_call_operand.vmem [shape: f32[1,64], index: 3, kind: input, shape index: {}]
  %s4 = inlined_call_operand.vmem [shape: bf16[450,64], index: 4, kind: output, shape index: {}]
  %s5 = sld [smem:[#allocation0]]
  $region26: #{incept_init_block.11} parent=0
    _
  %s7 = ssub.s32 1, %s5
  %s8 = scalar_select 0, %s7, %s5
  // Predicated region
  $region2: #{incept_init_block.11} parent=0 // pred_check
    _
  $region3: #{incept_init_block.11} parent=0 // pred_check_branch
    %10 = sbr.rel (0) target = $region5
  $region4: #{incept_init_block.11} parent=0 // pred_region
    _
  $region5: #{incept_init_block.11} parent=0 // pred_fallthru
    _
  // Predicated region
  $region6: #{incept_init_block.11} parent=0 // pred_check
    _
  $region7: #{incept_init_block.11} parent=0 // pred_check_branch
    %12 = sbr.rel (0) target = $region9
  $region8: #{incept_init_block.11} parent=0 // pred_region
    _
  $region9: #{incept_init_block.11} parent=0 // pred_fallthru
    _
  // Predicated region
  $region10: #{incept_init_block.11} parent=0 // pred_check
    _
  $region11: #{incept_init_block.11} parent=0 // pred_check_branch
    %14 = sbr.rel (0) target = $region13
  $region12: #{incept_init_block.11} parent=0 // pred_region
    _
  $region13: #{incept_init_block.11} parent=0 // pred_fallthru
    _
  // Predicated region
  $region14: #{incept_init_block.11} parent=0 // pred_check
    _
  $region15: #{incept_init_block.11} parent=0 // pred_check_branch
    %16 = sbr.rel (0) target = $region17
  $region16: #{incept_init_block.11} parent=0 // pred_region
    _
  $region17: #{incept_init_block.11} parent=0 // pred_fallthru
    _
  %v18 = vld [vmem:[%s0] sm:$0xff]
  %v19 = vld [vmem:[%s0 + $0x8] sm:$0xf]
  %v20 = vld [vmem:[%s0 + $0xc] sm:$0xff]
  %v21 = vld [vmem:[%s0 + $0x14] sm:$0xf]
  %v22 = vld [vmem:[%s0 + $0x18] sm:$0xff]
  %v23 = vld [vmem:[%s0 + $0x20] sm:$0xf]
  %v24 = vld [vmem:[%s0 + $0x24] sm:$0xff]
  %v25 = vld [vmem:[%s0 + $0x2c] sm:$0xf]
  %v26 = vld [vmem:[%s0 + $0x30] sm:$0xff]
  %v27 = vld [vmem:[%s0 + $0x38] sm:$0xf]
  %v28 = vld [vmem:[%s0 + $0x3c] sm:$0xff]
  %v29 = vld [vmem:[%s0 + $0x44] sm:$0xf]
  %v30 = vld [vmem:[%s0 + $0x48] sm:$0xff]
  %v31 = vld [vmem:[%s0 + $0x50] sm:$0xf]
  %v32 = vld [vmem:[%s0 + $0x54] sm:$0xff]
  %v33 = vld [vmem:[%s0 + $0x5c] sm:$0xf]
  %v34 = vld [vmem:[%s0 + $0x60] sm:$0xff]
  %v35 = vld [vmem:[%s0 + $0x68] sm:$0xf]
  %v36 = vld [vmem:[%s0 + $0x6c] sm:$0xff]
  %v37 = vld [vmem:[%s0 + $0x74] sm:$0xf]
  %v38 = vld [vmem:[%s0 + $0x78] sm:$0xff]
  %v39 = vld [vmem:[%s0 + $0x80] sm:$0xf]
  %v40 = vld [vmem:[%s0 + $0x84] sm:$0xff]
  %v41 = vld [vmem:[%s0 + $0x8c] sm:$0xf]
  %v42 = vld [vmem:[%s0 + $0x90] sm:$0xff]
  %v43 = vld [vmem:[%s0 + $0x98] sm:$0xf]
  %v44 = vld [vmem:[%s0 + $0x9c] sm:$0xff]
  %v45 = vld [vmem:[%s0 + $0xa4] sm:$0xf]
  %v46 = vld [vmem:[%s0 + $0xa8] sm:$0xff]
  %v47 = vld [vmem:[%s0 + $0xb0] sm:$0xf]
  %v48 = vld [vmem:[%s0 + $0xb4] sm:$0xff]
  %v49 = vld [vmem:[%s0 + $0xbc] sm:$0xf]
  %v50 = vld [vmem:[%s0 + $0xc0] sm:$0xff]
  %v51 = vld [vmem:[%s0 + $0xc8] sm:$0xf]
  %v52 = vld [vmem:[%s0 + $0xcc] sm:$0xff]
  %v53 = vld [vmem:[%s0 + $0xd4] sm:$0xf]
  %v54 = vld [vmem:[%s0 + $0xd8] sm:$0xff]
  %v55 = vld [vmem:[%s0 + $0xe0] sm:$0xf]
  %v56 = vld [vmem:[%s0 + $0xe4] sm:$0xff]
  %v57 = vld [vmem:[%s0 + $0xec] sm:$0xf]
  %v58 = vld [vmem:[%s0 + $0xf0] sm:$0xff]
  %v59 = vld [vmem:[%s0 + $0xf8] sm:$0xf]
  %v60 = vld [vmem:[%s0 + $0xfc] sm:$0xff]
  %v61 = vld [vmem:[%s0 + $0x104] sm:$0xf]
  %v62 = vld [vmem:[%s0 + $0x108] sm:$0xff]
  %v63 = vld [vmem:[%s0 + $0x110] sm:$0xf]
  %v64 = vld [vmem:[%s0 + $0x114] sm:$0xff]
  %v65 = vld [vmem:[%s0 + $0x11c] sm:$0xf]
  %v66 = vld [vmem:[%s0 + $0x120] sm:$0xff]
  %v67 = vld [vmem:[%s0 + $0x128] sm:$0xf]
  %v68 = vld [vmem:[%s0 + $0x12c] sm:$0xff]
  %v69 = vld [vmem:[%s0 + $0x134] sm:$0xf]
  %v70 = vld [vmem:[%s0 + $0x138] sm:$0xff]
  %v71 = vld [vmem:[%s0 + $0x140] sm:$0xf]
  %v72 = vld [vmem:[%s0 + $0x144] sm:$0xff]
  %v73 = vld [vmem:[%s0 + $0x14c] sm:$0xf]
  %v74 = vld [vmem:[%s0 + $0x150] sm:$0xff]
  %v75 = vld [vmem:[%s0 + $0x158] sm:$0xf]
  %v76 = vld [vmem:[%s0 + $0x15c] sm:$0xff]
  %v77 = vld [vmem:[%s0 + $0x164] sm:$0xf]
  %v78 = vld [vmem:[%s0 + $0x168] sm:$0xff]
  %v79 = vld [vmem:[%s0 + $0x170] sm:$0xf]
  %v80 = vld [vmem:[%s0 + $0x174] sm:$0xff]
  %v81 = vld [vmem:[%s0 + $0x17c] sm:$0xf]
  %v82 = vld [vmem:[%s0 + $0x180] sm:$0xff]
  %v83 = vld [vmem:[%s0 + $0x188] sm:$0xf]
  %v84 = vld [vmem:[%s0 + $0x18c] sm:$0xff]
  %v85 = vld [vmem:[%s0 + $0x194] sm:$0xf]
  %v86 = vld [vmem:[%s0 + $0x198] sm:$0xff]
  %v87 = vld [vmem:[%s0 + $0x1a0] sm:$0xf]
  %v88 = vld [vmem:[%s0 + $0x1a4] sm:$0xff]
  %v89 = vld [vmem:[%s0 + $0x1ac] sm:$0xf]
  %v90 = vld [vmem:[%s0 + $0x1b0] sm:$0xff]
  %v91 = vld [vmem:[%s0 + $0x1b8] sm:$0xf]
  %v92 = vld [vmem:[%s0 + $0x1bc] sm:$0xff]
  %v93 = vld [vmem:[%s0 + $0x1c4] sm:$0xf]
  %v94 = vld [vmem:[%s0 + $0x1c8] sm:$0xff]
  %v95 = vld [vmem:[%s0 + $0x1d0] sm:$0xf]
  %v96 = vld [vmem:[%s0 + $0x1d4] sm:$0xff]
  %v97 = vld [vmem:[%s0 + $0x1dc] sm:$0xf]
  %v98 = vld [vmem:[%s0 + $0x1e0] sm:$0xff]
  %v99 = vld [vmem:[%s0 + $0x1e8] sm:$0xf]
  %v100 = vld [vmem:[%s0 + $0x1ec] sm:$0xff]
  %v101 = vld [vmem:[%s0 + $0x1f4] sm:$0xf]
  %v102 = vld [vmem:[%s0 + $0x1f8] sm:$0xff]
  %v103 = vld [vmem:[%s0 + $0x200] sm:$0xf]
  %v104 = vld [vmem:[%s0 + $0x204] sm:$0xff]
  %v105 = vld [vmem:[%s0 + $0x20c] sm:$0xf]
  %v106 = vld [vmem:[%s0 + $0x210] sm:$0xff]
  %v107 = vld [vmem:[%s0 + $0x218] sm:$0xf]
  %v108 = vld [vmem:[%s0 + $0x21c] sm:$0xff]
  %v109 = vld [vmem:[%s0 + $0x224] sm:$0xf]
  %v110 = vld [vmem:[%s0 + $0x228] sm:$0xff]
  %v111 = vld [vmem:[%s0 + $0x230] sm:$0xf]
  %v112 = vld [vmem:[%s0 + $0x234] sm:$0xff]
  %v113 = vld [vmem:[%s0 + $0x23c] sm:$0xf]
  %v114 = vld [vmem:[%s0 + $0x240] sm:$0xff]
  %v115 = vld [vmem:[%s0 + $0x248] sm:$0xf]
  %v116 = vld [vmem:[%s0 + $0x24c] sm:$0xff]
  %v117 = vld [vmem:[%s0 + $0x254] sm:$0xf]
  %v118 = vld [vmem:[%s0 + $0x258] sm:$0xff]
  %v119 = vld [vmem:[%s0 + $0x260] sm:$0xf]
  %v120 = vld [vmem:[%s0 + $0x264] sm:$0xff]
  %v121 = vld [vmem:[%s0 + $0x26c] sm:$0xf]
  %v122 = vld [vmem:[%s0 + $0x270] sm:$0xff]
  %v123 = vld [vmem:[%s0 + $0x278] sm:$0xf]
  %v124 = vld [vmem:[%s0 + $0x27c] sm:$0xff]
  %v125 = vld [vmem:[%s0 + $0x284] sm:$0xf]
  %v126 = vld [vmem:[%s0 + $0x288] sm:$0xff]
  %v127 = vld [vmem:[%s0 + $0x290] sm:$0xf]
  %v128 = vld [vmem:[%s0 + $0x294] sm:$0xff]
  %v129 = vld [vmem:[%s0 + $0x29c] sm:$0xf]
  %v130 = vld [vmem:[%s0 + $0x2a0] sm:$0x11]
  %v131 = vld [vmem:[%s0 + $0x2a8] sm:$0x1]
  %v132 = vld [vmem:[%s1] sm:$0xf]
  %v133 = vld [vmem:[%s1 + $0x4] sm:$0xf]
  %v134 = vld [vmem:[%s1 + $0x8] sm:$0xf]
  %v135 = vld [vmem:[%s1 + $0xc] sm:$0xf]
  %v136 = vld [vmem:[%s1 + $0x10] sm:$0xf]
  %v137 = vld [vmem:[%s1 + $0x14] sm:$0xf]
  %v138 = vld [vmem:[%s1 + $0x18] sm:$0xf]
  %v139 = vld [vmem:[%s1 + $0x1c] sm:$0xf]
  %v140 = vld [vmem:[%s1 + $0x20] sm:$0xf]
  %v141 = vld [vmem:[%s1 + $0x24] sm:$0xf]
  %v142 = vld [vmem:[%s1 + $0x28] sm:$0xf]
  %v143 = vld [vmem:[%s1 + $0x2c] sm:$0xf]
  %v144 = vld [vmem:[%s1 + $0x30] sm:$0xf]
  %v145 = vld [vmem:[%s1 + $0x34] sm:$0xf]
  %v146 = vld [vmem:[%s1 + $0x38] sm:$0xf]
  %v147 = vld [vmem:[%s1 + $0x3c] sm:$0xf]
  %v148 = vld [vmem:[%s1 + $0x40] sm:$0xf]
  %v149 = vld [vmem:[%s1 + $0x44] sm:$0xf]
  %v150 = vld [vmem:[%s1 + $0x48] sm:$0xf]
  %v151 = vld [vmem:[%s1 + $0x4c] sm:$0xf]
  %v152 = vld [vmem:[%s1 + $0x50] sm:$0xf]
  %v153 = vld [vmem:[%s1 + $0x54] sm:$0xf]
  %v154 = vld [vmem:[%s1 + $0x58] sm:$0xf]
  %v155 = vld [vmem:[%s1 + $0x5c] sm:$0xf]
  %v156 = vld [vmem:[%s1 + $0x60] sm:$0xf]
  %v157 = vld [vmem:[%s1 + $0x64] sm:$0xf]
  %v158 = vld [vmem:[%s1 + $0x68] sm:$0xf]
  %v159 = vld [vmem:[%s1 + $0x6c] sm:$0xf]
  %v160 = vld [vmem:[%s1 + $0x70] sm:$0xf]
  %v161 = vld [vmem:[%s1 + $0x74] sm:$0xf]
  %v162 = vld [vmem:[%s1 + $0x78] sm:$0xf]
  %v163 = vld [vmem:[%s1 + $0x7c] sm:$0xf]
  %v164 = vld [vmem:[%s1 + $0x80] sm:$0xf]
  %v165 = vld [vmem:[%s1 + $0x84] sm:$0xf]
  %v166 = vld [vmem:[%s1 + $0x88] sm:$0xf]
  %v167 = vld [vmem:[%s1 + $0x8c] sm:$0xf]
  %v282 = vunpack.c.l.b16 %v18
  %v283 = vunpack.c.h.b16 %v18
  %v284 = vunpack.c.l.b16 %v19
  %v285 = vunpack.c.l.b16 %v20
  %v286 = vunpack.c.h.b16 %v20
  %v287 = vunpack.c.l.b16 %v21
  %v288 = vunpack.c.l.b16 %v22
  %v289 = vunpack.c.h.b16 %v22
  %v290 = vunpack.c.l.b16 %v23
  %v291 = vunpack.c.l.b16 %v24
  %v292 = vunpack.c.h.b16 %v24
  %v293 = vunpack.c.l.b16 %v25
  %v294 = vunpack.c.l.b16 %v26
  %v295 = vunpack.c.h.b16 %v26
  %v296 = vunpack.c.l.b16 %v27
  %v297 = vunpack.c.l.b16 %v28
  %v298 = vunpack.c.h.b16 %v28
  %v299 = vunpack.c.l.b16 %v29
  %v300 = vunpack.c.l.b16 %v30
  %v301 = vunpack.c.h.b16 %v30
  %v302 = vunpack.c.l.b16 %v31
  %v303 = vunpack.c.l.b16 %v32
  %v304 = vunpack.c.h.b16 %v32
  %v305 = vunpack.c.l.b16 %v33
  %v306 = vunpack.c.l.b16 %v34
  %v307 = vunpack.c.h.b16 %v34
  %v308 = vunpack.c.l.b16 %v35
  %v309 = vunpack.c.l.b16 %v36
  %v310 = vunpack.c.h.b16 %v36
  %v311 = vunpack.c.l.b16 %v37
  %v312 = vunpack.c.l.b16 %v38
  %v313 = vunpack.c.h.b16 %v38
  %v314 = vunpack.c.l.b16 %v39
  %v315 = vunpack.c.l.b16 %v40
  %v316 = vunpack.c.h.b16 %v40
  %v317 = vunpack.c.l.b16 %v41
  %v318 = vunpack.c.l.b16 %v42
  %v319 = vunpack.c.h.b16 %v42
  %v320 = vunpack.c.l.b16 %v43
  %v321 = vunpack.c.l.b16 %v44
  %v322 = vunpack.c.h.b16 %v44
  %v323 = vunpack.c.l.b16 %v45
  %v324 = vunpack.c.l.b16 %v46
  %v325 = vunpack.c.h.b16 %v46
  %v326 = vunpack.c.l.b16 %v47
  %v327 = vunpack.c.l.b16 %v48
  %v328 = vunpack.c.h.b16 %v48
  %v329 = vunpack.c.l.b16 %v49
  %v330 = vunpack.c.l.b16 %v50
  %v331 = vunpack.c.h.b16 %v50
  %v332 = vunpack.c.l.b16 %v51
  %v333 = vunpack.c.l.b16 %v52
  %v334 = vunpack.c.h.b16 %v52
  %v335 = vunpack.c.l.b16 %v53
  %v336 = vunpack.c.l.b16 %v54
  %v337 = vunpack.c.h.b16 %v54
  %v338 = vunpack.c.l.b16 %v55
  %v339 = vunpack.c.l.b16 %v56
  %v340 = vunpack.c.h.b16 %v56
  %v341 = vunpack.c.l.b16 %v57
  %v342 = vunpack.c.l.b16 %v58
  %v343 = vunpack.c.h.b16 %v58
  %v344 = vunpack.c.l.b16 %v59
  %v345 = vunpack.c.l.b16 %v60
  %v346 = vunpack.c.h.b16 %v60
  %v347 = vunpack.c.l.b16 %v61
  %v348 = vunpack.c.l.b16 %v62
  %v349 = vunpack.c.h.b16 %v62
  %v350 = vunpack.c.l.b16 %v63
  %v351 = vunpack.c.l.b16 %v64
  %v352 = vunpack.c.h.b16 %v64
  %v353 = vunpack.c.l.b16 %v65
  %v354 = vunpack.c.l.b16 %v66
  %v355 = vunpack.c.h.b16 %v66
  %v356 = vunpack.c.l.b16 %v67
  %v357 = vunpack.c.l.b16 %v68
  %v358 = vunpack.c.h.b16 %v68
  %v359 = vunpack.c.l.b16 %v69
  %v360 = vunpack.c.l.b16 %v70
  %v361 = vunpack.c.h.b16 %v70
  %v362 = vunpack.c.l.b16 %v71
  %v363 = vunpack.c.l.b16 %v72
  %v364 = vunpack.c.h.b16 %v72
  %v365 = vunpack.c.l.b16 %v73
  %v366 = vunpack.c.l.b16 %v74
  %v367 = vunpack.c.h.b16 %v74
  %v368 = vunpack.c.l.b16 %v75
  %v369 = vunpack.c.l.b16 %v76
  %v370 = vunpack.c.h.b16 %v76
  %v371 = vunpack.c.l.b16 %v77
  %v372 = vunpack.c.l.b16 %v78
  %v373 = vunpack.c.h.b16 %v78
  %v374 = vunpack.c.l.b16 %v79
  %v375 = vunpack.c.l.b16 %v80
  %v376 = vunpack.c.h.b16 %v80
  %v377 = vunpack.c.l.b16 %v81
  %v378 = vunpack.c.l.b16 %v82
  %v379 = vunpack.c.h.b16 %v82
  %v380 = vunpack.c.l.b16 %v83
  %v381 = vunpack.c.l.b16 %v84
  %v382 = vunpack.c.h.b16 %v84
  %v383 = vunpack.c.l.b16 %v85
  %v384 = vunpack.c.l.b16 %v86
  %v385 = vunpack.c.h.b16 %v86
  %v386 = vunpack.c.l.b16 %v87
  %v387 = vunpack.c.l.b16 %v88
  %v388 = vunpack.c.h.b16 %v88
  %v389 = vunpack.c.l.b16 %v89
  %v390 = vunpack.c.l.b16 %v90
  %v391 = vunpack.c.h.b16 %v90
  %v392 = vunpack.c.l.b16 %v91
  %v393 = vunpack.c.l.b16 %v92
  %v394 = vunpack.c.h.b16 %v92
  %v395 = vunpack.c.l.b16 %v93
  %v396 = vunpack.c.l.b16 %v94
  %v397 = vunpack.c.h.b16 %v94
  %v398 = vunpack.c.l.b16 %v95
  %v399 = vunpack.c.l.b16 %v96
  %v400 = vunpack.c.h.b16 %v96
  %v401 = vunpack.c.l.b16 %v97
  %v402 = vunpack.c.l.b16 %v98
  %v403 = vunpack.c.h.b16 %v98
  %v404 = vunpack.c.l.b16 %v99
  %v405 = vunpack.c.l.b16 %v100
  %v406 = vunpack.c.h.b16 %v100
  %v407 = vunpack.c.l.b16 %v101
  %v408 = vunpack.c.l.b16 %v102
  %v409 = vunpack.c.h.b16 %v102
  %v410 = vunpack.c.l.b16 %v103
  %v411 = vunpack.c.l.b16 %v104
  %v412 = vunpack.c.h.b16 %v104
  %v413 = vunpack.c.l.b16 %v105
  %v414 = vunpack.c.l.b16 %v106
  %v415 = vunpack.c.h.b16 %v106
  %v416 = vunpack.c.l.b16 %v107
  %v417 = vunpack.c.l.b16 %v108
  %v418 = vunpack.c.h.b16 %v108
  %v419 = vunpack.c.l.b16 %v109
  %v420 = vunpack.c.l.b16 %v110
  %v421 = vunpack.c.h.b16 %v110
  %v422 = vunpack.c.l.b16 %v111
  %v423 = vunpack.c.l.b16 %v112
  %v424 = vunpack.c.h.b16 %v112
  %v425 = vunpack.c.l.b16 %v113
  %v426 = vunpack.c.l.b16 %v114
  %v427 = vunpack.c.h.b16 %v114
  %v428 = vunpack.c.l.b16 %v115
  %v429 = vunpack.c.l.b16 %v116
  %v430 = vunpack.c.h.b16 %v116
  %v431 = vunpack.c.l.b16 %v117
  %v432 = vunpack.c.l.b16 %v118
  %v433 = vunpack.c.h.b16 %v118
  %v434 = vunpack.c.l.b16 %v119
  %v435 = vunpack.c.l.b16 %v120
  %v436 = vunpack.c.h.b16 %v120
  %v437 = vunpack.c.l.b16 %v121
  %v438 = vunpack.c.l.b16 %v122
  %v439 = vunpack.c.h.b16 %v122
  %v440 = vunpack.c.l.b16 %v123
  %v441 = vunpack.c.l.b16 %v124
  %v442 = vunpack.c.h.b16 %v124
  %v443 = vunpack.c.l.b16 %v125
  %v444 = vunpack.c.l.b16 %v126
  %v445 = vunpack.c.h.b16 %v126
  %v446 = vunpack.c.l.b16 %v127
  %v447 = vunpack.c.l.b16 %v128
  %v448 = vunpack.c.h.b16 %v128
  %v449 = vunpack.c.l.b16 %v129
  %v450 = vunpack.c.l.b16 %v130
  %v451 = vunpack.c.h.b16 %v130
  %v452 = vunpack.c.l.b16 %v131
  %v453 = vpack.c.b16 %v285, %v282
  %v454 = vpack.c.b16 %v286, %v283
  %v455 = vpack.c.b16 %v287, %v284
  %v456 = vpack.c.b16 %v291, %v288
  %v457 = vpack.c.b16 %v292, %v289
  %v458 = vpack.c.b16 %v293, %v290
  %v459 = vpack.c.b16 %v297, %v294
  %v460 = vpack.c.b16 %v298, %v295
  %v461 = vpack.c.b16 %v299, %v296
  %v462 = vpack.c.b16 %v303, %v300
  %v463 = vpack.c.b16 %v304, %v301
  %v464 = vpack.c.b16 %v305, %v302
  %v465 = vpack.c.b16 %v309, %v306
  %v466 = vpack.c.b16 %v310, %v307
  %v467 = vpack.c.b16 %v311, %v308
  %v468 = vpack.c.b16 %v315, %v312
  %v469 = vpack.c.b16 %v316, %v313
  %v470 = vpack.c.b16 %v317, %v314
  %v471 = vpack.c.b16 %v321, %v318
  %v472 = vpack.c.b16 %v322, %v319
  %v473 = vpack.c.b16 %v323, %v320
  %v474 = vpack.c.b16 %v327, %v324
  %v475 = vpack.c.b16 %v328, %v325
  %v476 = vpack.c.b16 %v329, %v326
  %v477 = vpack.c.b16 %v333, %v330
  %v478 = vpack.c.b16 %v334, %v331
  %v479 = vpack.c.b16 %v335, %v332
  %v480 = vpack.c.b16 %v339, %v336
  %v481 = vpack.c.b16 %v340, %v337
  %v482 = vpack.c.b16 %v341, %v338
  %v483 = vpack.c.b16 %v345, %v342
  %v484 = vpack.c.b16 %v346, %v343
  %v485 = vpack.c.b16 %v347, %v344
  %v486 = vpack.c.b16 %v351, %v348
  %v487 = vpack.c.b16 %v352, %v349
  %v488 = vpack.c.b16 %v353, %v350
  %v489 = vpack.c.b16 %v357, %v354
  %v490 = vpack.c.b16 %v358, %v355
  %v491 = vpack.c.b16 %v359, %v356
  %v492 = vpack.c.b16 %v363, %v360
  %v493 = vpack.c.b16 %v364, %v361
  %v494 = vpack.c.b16 %v365, %v362
  %v495 = vpack.c.b16 %v369, %v366
  %v496 = vpack.c.b16 %v370, %v367
  %v497 = vpack.c.b16 %v371, %v368
  %v498 = vpack.c.b16 %v375, %v372
  %v499 = vpack.c.b16 %v376, %v373
  %v500 = vpack.c.b16 %v377, %v374
  %v501 = vpack.c.b16 %v381, %v378
  %v502 = vpack.c.b16 %v382, %v379
  %v503 = vpack.c.b16 %v383, %v380
  %v504 = vpack.c.b16 %v387, %v384
  %v505 = vpack.c.b16 %v388, %v385
  %v506 = vpack.c.b16 %v389, %v386
  %v507 = vpack.c.b16 %v393, %v390
  %v508 = vpack.c.b16 %v394, %v391
  %v509 = vpack.c.b16 %v395, %v392
  %v510 = vpack.c.b16 %v399, %v396
  %v511 = vpack.c.b16 %v400, %v397
  %v512 = vpack.c.b16 %v401, %v398
  %v513 = vpack.c.b16 %v405, %v402
  %v514 = vpack.c.b16 %v406, %v403
  %v515 = vpack.c.b16 %v407, %v404
  %v516 = vpack.c.b16 %v411, %v408
  %v517 = vpack.c.b16 %v412, %v409
  %v518 = vpack.c.b16 %v413, %v410
  %v519 = vpack.c.b16 %v417, %v414
  %v520 = vpack.c.b16 %v418, %v415
  %v521 = vpack.c.b16 %v419, %v416
  %v522 = vpack.c.b16 %v423, %v420
  %v523 = vpack.c.b16 %v424, %v421
  %v524 = vpack.c.b16 %v425, %v422
  %v525 = vpack.c.b16 %v429, %v426
  %v526 = vpack.c.b16 %v430, %v427
  %v527 = vpack.c.b16 %v431, %v428
  %v528 = vpack.c.b16 %v435, %v432
  %v529 = vpack.c.b16 %v436, %v433
  %v530 = vpack.c.b16 %v437, %v434
  %v531 = vpack.c.b16 %v441, %v438
  %v532 = vpack.c.b16 %v442, %v439
  %v533 = vpack.c.b16 %v443, %v440
  %v534 = vpack.c.b16 %v447, %v444
  %v535 = vpack.c.b16 %v448, %v445
  %v536 = vpack.c.b16 %v449, %v446
  %v537 = vpack.c.b16 %v450, %v450
  %v538 = vpack.c.b16 %v451, %v451
  %v539 = vpack.c.b16 %v452, %v452
  %v634 = vunpack.c.l.b16 %v132
  %v635 = vunpack.c.l.b16 %v133
  %v636 = vunpack.c.l.b16 %v134
  %v637 = vunpack.c.l.b16 %v135
  %v638 = vunpack.c.l.b16 %v136
  %v639 = vunpack.c.l.b16 %v137
  %v640 = vunpack.c.l.b16 %v138
  %v641 = vunpack.c.l.b16 %v139
  %v642 = vunpack.c.l.b16 %v140
  %v643 = vunpack.c.l.b16 %v141
  %v644 = vunpack.c.l.b16 %v142
  %v645 = vunpack.c.l.b16 %v143
  %v646 = vunpack.c.l.b16 %v144
  %v647 = vunpack.c.l.b16 %v145
  %v648 = vunpack.c.l.b16 %v146
  %v649 = vunpack.c.l.b16 %v147
  %v650 = vunpack.c.l.b16 %v148
  %v651 = vunpack.c.l.b16 %v149
  %v652 = vunpack.c.l.b16 %v150
  %v653 = vunpack.c.l.b16 %v151
  %v654 = vunpack.c.l.b16 %v152
  %v655 = vunpack.c.l.b16 %v153
  %v656 = vunpack.c.l.b16 %v154
  %v657 = vunpack.c.l.b16 %v155
  %v658 = vunpack.c.l.b16 %v156
  %v659 = vunpack.c.l.b16 %v157
  %v660 = vunpack.c.l.b16 %v158
  %v661 = vunpack.c.l.b16 %v159
  %v662 = vunpack.c.l.b16 %v160
  %v663 = vunpack.c.l.b16 %v161
  %v664 = vunpack.c.l.b16 %v162
  %v665 = vunpack.c.l.b16 %v163
  %v666 = vunpack.c.l.b16 %v164
  %v667 = vunpack.c.l.b16 %v165
  %v668 = vunpack.c.l.b16 %v166
  %v669 = vunpack.c.l.b16 %v167
  %v670 = vpack.c.b16 %v635, %v634
  %v671 = vpack.c.b16 %v637, %v636
  %v672 = vpack.c.b16 %v639, %v638
  %v673 = vpack.c.b16 %v641, %v640
  %v674 = vpack.c.b16 %v643, %v642
  %v675 = vpack.c.b16 %v645, %v644
  %v676 = vpack.c.b16 %v647, %v646
  %v677 = vpack.c.b16 %v649, %v648
  %v678 = vpack.c.b16 %v651, %v650
  %v679 = vpack.c.b16 %v653, %v652
  %v680 = vpack.c.b16 %v655, %v654
  %v681 = vpack.c.b16 %v657, %v656
  %v682 = vpack.c.b16 %v659, %v658
  %v683 = vpack.c.b16 %v661, %v660
  %v684 = vpack.c.b16 %v663, %v662
  %v685 = vpack.c.b16 %v665, %v664
  %v686 = vpack.c.b16 %v667, %v666
  %v687 = vpack.c.b16 %v669, %v668
  %vm706 = vcmask 261120
  %v708 = vsel %vm706, %v455, 0
  %v711 = vsel %vm706, %v458, 0
  %v714 = vsel %vm706, %v461, 0
  %v717 = vsel %vm706, %v464, 0
  %v720 = vsel %vm706, %v467, 0
  %v723 = vsel %vm706, %v470, 0
  %v726 = vsel %vm706, %v473, 0
  %v729 = vsel %vm706, %v476, 0
  %v732 = vsel %vm706, %v479, 0
  %v735 = vsel %vm706, %v482, 0
  %v738 = vsel %vm706, %v485, 0
  %v741 = vsel %vm706, %v488, 0
  %v744 = vsel %vm706, %v491, 0
  %v747 = vsel %vm706, %v494, 0
  %v750 = vsel %vm706, %v497, 0
  %v753 = vsel %vm706, %v500, 0
  %v756 = vsel %vm706, %v503, 0
  %v759 = vsel %vm706, %v506, 0
  %v762 = vsel %vm706, %v509, 0
  %v765 = vsel %vm706, %v512, 0
  %v768 = vsel %vm706, %v515, 0
  %v771 = vsel %vm706, %v518, 0
  %v774 = vsel %vm706, %v521, 0
  %v777 = vsel %vm706, %v524, 0
  %v780 = vsel %vm706, %v527, 0
  %v783 = vsel %vm706, %v530, 0
  %v786 = vsel %vm706, %v533, 0
  %v789 = vsel %vm706, %v536, 0
  %v792 = vsel %vm706, %v539, 0
  %794 = vmatprep.subr.bf16.mxu0 0
  %795 = vmatpush1.bf16.msra.mxu0 %v670
  %796 = vmatprep.subr.bf16.mxu0 0
  %797 = vmatpush1.bf16.msra.mxu0 %v671
  %798 = vmatprep.subr.bf16.mxu0 0
  %799 = vmatpush1.bf16.msra.mxu0 %v672
  %800 = vmatprep.subr.bf16.mxu0 0
  %801 = vmatpush1.bf16.msra.mxu0 %v673
  %802 = vmatprep.subr.bf16.mxu0 0
  %803 = vmatpush1.bf16.msra.mxu0 %v674
  %804 = vmatprep.subr.bf16.mxu0 0
  %805 = vmatpush1.bf16.msra.mxu0 %v675
  %806 = vmatprep.subr.bf16.mxu0 0
  %807 = vmatpush1.bf16.msra.mxu0 %v676
  %808 = vmatprep.subr.bf16.mxu0 0
  %809 = vmatpush1.bf16.msra.mxu0 %v677
  %810 = vmatprep.subr.bf16.mxu0 0
  %811 = vmatpush1.bf16.msra.mxu0 %v678
  %812 = vmatprep.subr.bf16.mxu0 0
  %813 = vmatpush1.bf16.msra.mxu0 %v679
  %814 = vmatprep.subr.bf16.mxu0 0
  %815 = vmatpush1.bf16.msra.mxu0 %v680
  %816 = vmatprep.subr.bf16.mxu0 0
  %817 = vmatpush1.bf16.msra.mxu0 %v681
  %818 = vmatprep.subr.bf16.mxu0 0
  %819 = vmatpush1.bf16.msra.mxu0 %v682
  %820 = vmatprep.subr.bf16.mxu0 0
  %821 = vmatpush1.bf16.msra.mxu0 %v683
  %822 = vmatprep.subr.bf16.mxu0 0
  %823 = vmatpush1.bf16.msra.mxu0 %v684
  %824 = vmatprep.subr.bf16.mxu0 0
  %825 = vmatpush1.bf16.msra.mxu0 %v685
  %826 = vmatprep.mubr.bf16.mxu0 %v454
  %827 = vmatmul.mubr.bf16.gmra.mrb[0].mxu0 %v453
  %v828 = vpop.f32.mrb[0].mxu0
  %v829 = vadd.f32 0.0, %v828
  %v830 = vpop.f32.mrb[0].mxu0
  %v831 = vpop.f32.mrb[0].mxu0
  %v832 = vadd.f32 0.0, %v831
  %v833 = vpop.f32.mrb[0].mxu0
  %834 = vmatprep.mubr.bf16.mxu0 %v457
  %835 = vmatmul.mubr.bf16.gmra.mrb[0].mxu0 %v456
  %v836 = vpop.f32.mrb[0].mxu0
  %v837 = vadd.f32 0.0, %v836
  %v838 = vpop.f32.mrb[0].mxu0
  %v839 = vpop.f32.mrb[0].mxu0
  %v840 = vadd.f32 0.0, %v839
  %v841 = vpop.f32.mrb[0].mxu0
  %842 = vmatprep.mubr.bf16.mxu0 %v460
  %843 = vmatmul.mubr.bf16.gmra.mrb[0].mxu0 %v459
  %v844 = vpop.f32.mrb[0].mxu0
  %v845 = vadd.f32 0.0, %v844
  %v846 = vpop.f32.mrb[0].mxu0
  %v847 = vpop.f32.mrb[0].mxu0
  %v848 = vadd.f32 0.0, %v847
  %v849 = vpop.f32.mrb[0].mxu0
  %850 = vmatprep.mubr.bf16.mxu0 %v463
  %851 = vmatmul.mubr.bf16.gmra.mrb[0].mxu0 %v462
  %v852 = vpop.f32.mrb[0].mxu0
  %v853 = vadd.f32 0.0, %v852
  %v854 = vpop.f32.mrb[0].mxu0
  %v855 = vpop.f32.mrb[0].mxu0
  %v856 = vadd.f32 0.0, %v855
  %v857 = vpop.f32.mrb[0].mxu0
  %858 = vmatprep.mubr.bf16.mxu0 %v466
  %859 = vmatmul.mubr.bf16.gmra.mrb[0].mxu0 %v465
  %v860 = vpop.f32.mrb[0].mxu0
  %v861 = vadd.f32 0.0, %v860
  %v862 = vpop.f32.mrb[0].mxu0
  %v863 = vpop.f32.mrb[0].mxu0
  %v864 = vadd.f32 0.0, %v863
  %v865 = vpop.f32.mrb[0].mxu0
  %866 = vmatprep.mubr.bf16.mxu0 %v469
  %867 = vmatmul.mubr.bf16.gmra.mrb[0].mxu0 %v468
  %v868 = vpop.f32.mrb[0].mxu0
  %v869 = vadd.f32 0.0, %v868
  %v870 = vpop.f32.mrb[0].mxu0
  %v871 = vpop.f32.mrb[0].mxu0
  %v872 = vadd.f32 0.0, %v871
  %v873 = vpop.f32.mrb[0].mxu0
  %874 = vmatprep.mubr.bf16.mxu0 %v472
  %875 = vmatmul.mubr.bf16.gmra.mrb[0].mxu0 %v471
  %v876 = vpop.f32.mrb[0].mxu0
  %v877 = vadd.f32 0.0, %v876
  %v878 = vpop.f32.mrb[0].mxu0
  %v879 = vpop.f32.mrb[0].mxu0
  %v880 = vadd.f32 0.0, %v879
  %v881 = vpop.f32.mrb[0].mxu0
  %882 = vmatprep.mubr.bf16.mxu0 %v475
  %883 = vmatmul.mubr.bf16.gmra.mrb[0].mxu0 %v474
  %v884 = vpop.f32.mrb[0].mxu0
  %v885 = vadd.f32 0.0, %v884
  %v886 = vpop.f32.mrb[0].mxu0
  %v887 = vpop.f32.mrb[0].mxu0
  %v888 = vadd.f32 0.0, %v887
  %v889 = vpop.f32.mrb[0].mxu0
  %890 = vmatprep.mubr.bf16.mxu0 %v478
  %891 = vmatmul.mubr.bf16.gmra.mrb[0].mxu0 %v477
  %v892 = vpop.f32.mrb[0].mxu0
  %v893 = vadd.f32 0.0, %v892
  %v894 = vpop.f32.mrb[0].mxu0
  %v895 = vpop.f32.mrb[0].mxu0
  %v896 = vadd.f32 0.0, %v895
  %v897 = vpop.f32.mrb[0].mxu0
  %898 = vmatprep.mubr.bf16.mxu0 %v481
  %899 = vmatmul.mubr.bf16.gmra.mrb[0].mxu0 %v480
  %v900 = vpop.f32.mrb[0].mxu0
  %v901 = vadd.f32 0.0, %v900
  %v902 = vpop.f32.mrb[0].mxu0
  %v903 = vpop.f32.mrb[0].mxu0
  %v904 = vadd.f32 0.0, %v903
  %v905 = vpop.f32.mrb[0].mxu0
  %906 = vmatprep.mubr.bf16.mxu0 %v484
  %907 = vmatmul.mubr.bf16.gmra.mrb[0].mxu0 %v483
  %v908 = vpop.f32.mrb[0].mxu0
  %v909 = vadd.f32 0.0, %v908
  %v910 = vpop.f32.mrb[0].mxu0
  %v911 = vpop.f32.mrb[0].mxu0
  %v912 = vadd.f32 0.0, %v911
  %v913 = vpop.f32.mrb[0].mxu0
  %914 = vmatprep.mubr.bf16.mxu0 %v487
  %915 = vmatmul.mubr.bf16.gmra.mrb[0].mxu0 %v486
  %v916 = vpop.f32.mrb[0].mxu0
  %v917 = vadd.f32 0.0, %v916
  %v918 = vpop.f32.mrb[0].mxu0
  %v919 = vpop.f32.mrb[0].mxu0
  %v920 = vadd.f32 0.0, %v919
  %v921 = vpop.f32.mrb[0].mxu0
  %922 = vmatprep.mubr.bf16.mxu0 %v490
  %923 = vmatmul.mubr.bf16.gmra.mrb[0].mxu0 %v489
  %v924 = vpop.f32.mrb[0].mxu0
  %v925 = vadd.f32 0.0, %v924
  %v926 = vpop.f32.mrb[0].mxu0
  %v927 = vpop.f32.mrb[0].mxu0
  %v928 = vadd.f32 0.0, %v927
  %v929 = vpop.f32.mrb[0].mxu0
  %930 = vmatprep.mubr.bf16.mxu0 %v493
  %931 = vmatmul.mubr.bf16.gmra.mrb[0].mxu0 %v492
  %v932 = vpop.f32.mrb[0].mxu0
  %v933 = vadd.f32 0.0, %v932
  %v934 = vpop.f32.mrb[0].mxu0
  %v935 = vpop.f32.mrb[0].mxu0
  %v936 = vadd.f32 0.0, %v935
  %v937 = vpop.f32.mrb[0].mxu0
  %938 = vmatprep.mubr.bf16.mxu0 %v496
  %939 = vmatmul.mubr.bf16.gmra.mrb[0].mxu0 %v495
  %v940 = vpop.f32.mrb[0].mxu0
  %v941 = vadd.f32 0.0, %v940
  %v942 = vpop.f32.mrb[0].mxu0
  %v943 = vpop.f32.mrb[0].mxu0
  %v944 = vadd.f32 0.0, %v943
  %v945 = vpop.f32.mrb[0].mxu0
  %946 = vmatprep.mubr.bf16.mxu0 %v499
  %947 = vmatmul.mubr.bf16.gmra.mrb[0].mxu0 %v498
  %v948 = vpop.f32.mrb[0].mxu0
  %v949 = vadd.f32 0.0, %v948
  %v950 = vpop.f32.mrb[0].mxu0
  %v951 = vpop.f32.mrb[0].mxu0
  %v952 = vadd.f32 0.0, %v951
  %v953 = vpop.f32.mrb[0].mxu0
  %954 = vmatprep.mubr.bf16.mxu0 %v502
  %955 = vmatmul.mubr.bf16.gmra.mrb[0].mxu0 %v501
  %v956 = vpop.f32.mrb[0].mxu0
  %v957 = vadd.f32 0.0, %v956
  %v958 = vpop.f32.mrb[0].mxu0
  %v959 = vpop.f32.mrb[0].mxu0
  %v960 = vadd.f32 0.0, %v959
  %v961 = vpop.f32.mrb[0].mxu0
  %962 = vmatprep.mubr.bf16.mxu0 %v505
  %963 = vmatmul.mubr.bf16.gmra.mrb[0].mxu0 %v504
  %v964 = vpop.f32.mrb[0].mxu0
  %v965 = vadd.f32 0.0, %v964
  %v966 = vpop.f32.mrb[0].mxu0
  %v967 = vpop.f32.mrb[0].mxu0
  %v968 = vadd.f32 0.0, %v967
  %v969 = vpop.f32.mrb[0].mxu0
  %970 = vmatprep.mubr.bf16.mxu0 %v508
  %971 = vmatmul.mubr.bf16.gmra.mrb[0].mxu0 %v507
  %v972 = vpop.f32.mrb[0].mxu0
  %v973 = vadd.f32 0.0, %v972
  %v974 = vpop.f32.mrb[0].mxu0
  %v975 = vpop.f32.mrb[0].mxu0
  %v976 = vadd.f32 0.0, %v975
  %v977 = vpop.f32.mrb[0].mxu0
  %978 = vmatprep.mubr.bf16.mxu0 %v511
  %979 = vmatmul.mubr.bf16.gmra.mrb[0].mxu0 %v510
  %v980 = vpop.f32.mrb[0].mxu0
  %v981 = vadd.f32 0.0, %v980
  %v982 = vpop.f32.mrb[0].mxu0
  %v983 = vpop.f32.mrb[0].mxu0
  %v984 = vadd.f32 0.0, %v983
  %v985 = vpop.f32.mrb[0].mxu0
  %986 = vmatprep.mubr.bf16.mxu0 %v514
  %987 = vmatmul.mubr.bf16.gmra.mrb[0].mxu0 %v513
  %v988 = vpop.f32.mrb[0].mxu0
  %v989 = vadd.f32 0.0, %v988
  %v990 = vpop.f32.mrb[0].mxu0
  %v991 = vpop.f32.mrb[0].mxu0
  %v992 = vadd.f32 0.0, %v991
  %v993 = vpop.f32.mrb[0].mxu0
  %994 = vmatprep.mubr.bf16.mxu0 %v517
  %995 = vmatmul.mubr.bf16.gmra.mrb[0].mxu0 %v516
  %v996 = vpop.f32.mrb[0].mxu0
  %v997 = vadd.f32 0.0, %v996
  %v998 = vpop.f32.mrb[0].mxu0
  %v999 = vpop.f32.mrb[0].mxu0
  %v1000 = vadd.f32 0.0, %v999
  %v1001 = vpop.f32.mrb[0].mxu0
  %1002 = vmatprep.mubr.bf16.mxu0 %v520
  %1003 = vmatmul.mubr.bf16.gmra.mrb[0].mxu0 %v519
  %v1004 = vpop.f32.mrb[0].mxu0
  %v1005 = vadd.f32 0.0, %v1004
  %v1006 = vpop.f32.mrb[0].mxu0
  %v1007 = vpop.f32.mrb[0].mxu0
  %v1008 = vadd.f32 0.0, %v1007
  %v1009 = vpop.f32.mrb[0].mxu0
  %1010 = vmatprep.mubr.bf16.mxu0 %v523
  %1011 = vmatmul.mubr.bf16.gmra.mrb[0].mxu0 %v522
  %v1012 = vpop.f32.mrb[0].mxu0
  %v1013 = vadd.f32 0.0, %v1012
  %v1014 = vpop.f32.mrb[0].mxu0
  %v1015 = vpop.f32.mrb[0].mxu0
  %v1016 = vadd.f32 0.0, %v1015
  %v1017 = vpop.f32.mrb[0].mxu0
  %1018 = vmatprep.mubr.bf16.mxu0 %v526
  %1019 = vmatmul.mubr.bf16.gmra.mrb[0].mxu0 %v525
  %v1020 = vpop.f32.mrb[0].mxu0
  %v1021 = vadd.f32 0.0, %v1020
  %v1022 = vpop.f32.mrb[0].mxu0
  %v1023 = vpop.f32.mrb[0].mxu0
  %v1024 = vadd.f32 0.0, %v1023
  %v1025 = vpop.f32.mrb[0].mxu0
  %1026 = vmatprep.mubr.bf16.mxu0 %v529
  %1027 = vmatmul.mubr.bf16.gmra.mrb[0].mxu0 %v528
  %v1028 = vpop.f32.mrb[0].mxu0
  %v1029 = vadd.f32 0.0, %v1028
  %v1030 = vpop.f32.mrb[0].mxu0
  %v1031 = vpop.f32.mrb[0].mxu0
  %v1032 = vadd.f32 0.0, %v1031
  %v1033 = vpop.f32.mrb[0].mxu0
  %1034 = vmatprep.mubr.bf16.mxu0 %v532
  %1035 = vmatmul.mubr.bf16.gmra.mrb[0].mxu0 %v531
  %v1036 = vpop.f32.mrb[0].mxu0
  %v1037 = vadd.f32 0.0, %v1036
  %v1038 = vpop.f32.mrb[0].mxu0
  %v1039 = vpop.f32.mrb[0].mxu0
  %v1040 = vadd.f32 0.0, %v1039
  %v1041 = vpop.f32.mrb[0].mxu0
  %1042 = vmatprep.mubr.bf16.mxu0 %v535
  %1043 = vmatmul.mubr.bf16.gmra.mrb[0].mxu0 %v534
  %v1044 = vpop.f32.mrb[0].mxu0
  %v1045 = vadd.f32 0.0, %v1044
  %v1046 = vpop.f32.mrb[0].mxu0
  %v1047 = vpop.f32.mrb[0].mxu0
  %v1048 = vadd.f32 0.0, %v1047
  %v1049 = vpop.f32.mrb[0].mxu0
  %1050 = vmatprep.mubr.bf16.mxu0 %v538
  %1051 = vmatmul.mubr.bf16.gmra.mrb[0].mxu0 %v537
  %v1052 = vpop.f32.mrb[0].mxu0
  %v1053 = vadd.f32 0.0, %v1052
  %v1054 = vpop.f32.mrb[0].mxu0
  %v1055 = vpop.f32.mrb[0].mxu0
  %v1056 = vpop.f32.mrb[0].mxu0
  %1057 = vdwg.mxu0
  %1058 = vmatprep.subr.bf16.mxu0 0
  %1059 = vmatpush1.bf16.msra.mxu0 %v686
  %1060 = vmatprep.subr.bf16.mxu0 0
  %1061 = vmatpush1.bf16.msra.mxu0 %v687
  %1062 = vmatprep.subr.bf16.mxu0 0
  %1063 = vmatpush1.bf16.msra.mxu0 0
  %1064 = vmatprep.subr.bf16.mxu0 0
  %1065 = vmatpush1.bf16.msra.mxu0 0
  %1066 = vmatprep.subr.bf16.mxu0 0
  %1067 = vmatpush1.bf16.msra.mxu0 0
  %1068 = vmatprep.subr.bf16.mxu0 0
  %1069 = vmatpush1.bf16.msra.mxu0 0
  %1070 = vmatprep.subr.bf16.mxu0 0
  %1071 = vmatpush1.bf16.msra.mxu0 0
  %1072 = vmatprep.subr.bf16.mxu0 0
  %1073 = vmatpush1.bf16.msra.mxu0 0
  %1074 = vmatprep.subr.bf16.mxu0 0
  %1075 = vmatpush1.bf16.msra.mxu0 0
  %1076 = vmatprep.subr.bf16.mxu0 0
  %1077 = vmatpush1.bf16.msra.mxu0 0
  %1078 = vmatprep.subr.bf16.mxu0 0
  %1079 = vmatpush1.bf16.msra.mxu0 0
  %1080 = vmatprep.subr.bf16.mxu0 0
  %1081 = vmatpush1.bf16.msra.mxu0 0
  %1082 = vmatprep.subr.bf16.mxu0 0
  %1083 = vmatpush1.bf16.msra.mxu0 0
  %1084 = vmatprep.subr.bf16.mxu0 0
  %1085 = vmatpush1.bf16.msra.mxu0 0
  %1086 = vmatprep.subr.bf16.mxu0 0
  %1087 = vmatpush1.bf16.msra.mxu0 0
  %1088 = vmatprep.subr.bf16.mxu0 0
  %1089 = vmatpush1.bf16.msra.mxu0 0
  %1090 = vmatprep.mubr.bf16.mxu0 0
  %1091 = vmatmul.mubr.bf16.gmra.mrb[0].mxu0 %v708
  %v1092 = vpop.f32.mrb[0].mxu0
  %v1093 = vadd.f32 %v829, %v1092
  %v1094 = vpop.f32.mrb[0].mxu0
  %v1095 = vpop.f32.mrb[0].mxu0
  %v1096 = vadd.f32 %v832, %v1095
  %v1097 = vpop.f32.mrb[0].mxu0
  %1098 = vmatprep.mubr.bf16.mxu0 0
  %1099 = vmatmul.mubr.bf16.gmra.mrb[0].mxu0 %v711
  %v1100 = vpop.f32.mrb[0].mxu0
  %v1101 = vadd.f32 %v837, %v1100
  %v1102 = vpop.f32.mrb[0].mxu0
  %v1103 = vpop.f32.mrb[0].mxu0
  %v1104 = vadd.f32 %v840, %v1103
  %v1105 = vpop.f32.mrb[0].mxu0
  %1106 = vmatprep.mubr.bf16.mxu0 0
  %1107 = vmatmul.mubr.bf16.gmra.mrb[0].mxu0 %v714
  %v1108 = vpop.f32.mrb[0].mxu0
  %v1109 = vadd.f32 %v845, %v1108
  %v1110 = vpop.f32.mrb[0].mxu0
  %v1111 = vpop.f32.mrb[0].mxu0
  %v1112 = vadd.f32 %v848, %v1111
  %v1113 = vpop.f32.mrb[0].mxu0
  %1114 = vmatprep.mubr.bf16.mxu0 0
  %1115 = vmatmul.mubr.bf16.gmra.mrb[0].mxu0 %v717
  %v1116 = vpop.f32.mrb[0].mxu0
  %v1117 = vadd.f32 %v853, %v1116
  %v1118 = vpop.f32.mrb[0].mxu0
  %v1119 = vpop.f32.mrb[0].mxu0
  %v1120 = vadd.f32 %v856, %v1119
  %v1121 = vpop.f32.mrb[0].mxu0
  %1122 = vmatprep.mubr.bf16.mxu0 0
  %1123 = vmatmul.mubr.bf16.gmra.mrb[0].mxu0 %v720
  %v1124 = vpop.f32.mrb[0].mxu0
  %v1125 = vadd.f32 %v861, %v1124
  %v1126 = vpop.f32.mrb[0].mxu0
  %v1127 = vpop.f32.mrb[0].mxu0
  %v1128 = vadd.f32 %v864, %v1127
  %v1129 = vpop.f32.mrb[0].mxu0
  %1130 = vmatprep.mubr.bf16.mxu0 0
  %1131 = vmatmul.mubr.bf16.gmra.mrb[0].mxu0 %v723
  %v1132 = vpop.f32.mrb[0].mxu0
  %v1133 = vadd.f32 %v869, %v1132
  %v1134 = vpop.f32.mrb[0].mxu0
  %v1135 = vpop.f32.mrb[0].mxu0
  %v1136 = vadd.f32 %v872, %v1135
  %v1137 = vpop.f32.mrb[0].mxu0
  %1138 = vmatprep.mubr.bf16.mxu0 0
  %1139 = vmatmul.mubr.bf16.gmra.mrb[0].mxu0 %v726
  %v1140 = vpop.f32.mrb[0].mxu0
  %v1141 = vadd.f32 %v877, %v1140
  %v1142 = vpop.f32.mrb[0].mxu0
  %v1143 = vpop.f32.mrb[0].mxu0
  %v1144 = vadd.f32 %v880, %v1143
  %v1145 = vpop.f32.mrb[0].mxu0
  %1146 = vmatprep.mubr.bf16.mxu0 0
  %1147 = vmatmul.mubr.bf16.gmra.mrb[0].mxu0 %v729
  %v1148 = vpop.f32.mrb[0].mxu0
  %v1149 = vadd.f32 %v885, %v1148
  %v1150 = vpop.f32.mrb[0].mxu0
  %v1151 = vpop.f32.mrb[0].mxu0
  %v1152 = vadd.f32 %v888, %v1151
  %v1153 = vpop.f32.mrb[0].mxu0
  %1154 = vmatprep.mubr.bf16.mxu0 0
  %1155 = vmatmul.mubr.bf16.gmra.mrb[0].mxu0 %v732
  %v1156 = vpop.f32.mrb[0].mxu0
  %v1157 = vadd.f32 %v893, %v1156
  %v1158 = vpop.f32.mrb[0].mxu0
  %v1159 = vpop.f32.mrb[0].mxu0
  %v1160 = vadd.f32 %v896, %v1159
  %v1161 = vpop.f32.mrb[0].mxu0
  %1162 = vmatprep.mubr.bf16.mxu0 0
  %1163 = vmatmul.mubr.bf16.gmra.mrb[0].mxu0 %v735
  %v1164 = vpop.f32.mrb[0].mxu0
  %v1165 = vadd.f32 %v901, %v1164
  %v1166 = vpop.f32.mrb[0].mxu0
  %v1167 = vpop.f32.mrb[0].mxu0
  %v1168 = vadd.f32 %v904, %v1167
  %v1169 = vpop.f32.mrb[0].mxu0
  %1170 = vmatprep.mubr.bf16.mxu0 0
  %1171 = vmatmul.mubr.bf16.gmra.mrb[0].mxu0 %v738
  %v1172 = vpop.f32.mrb[0].mxu0
  %v1173 = vadd.f32 %v909, %v1172
  %v1174 = vpop.f32.mrb[0].mxu0
  %v1175 = vpop.f32.mrb[0].mxu0
  %v1176 = vadd.f32 %v912, %v1175
  %v1177 = vpop.f32.mrb[0].mxu0
  %1178 = vmatprep.mubr.bf16.mxu0 0
  %1179 = vmatmul.mubr.bf16.gmra.mrb[0].mxu0 %v741
  %v1180 = vpop.f32.mrb[0].mxu0
  %v1181 = vadd.f32 %v917, %v1180
  %v1182 = vpop.f32.mrb[0].mxu0
  %v1183 = vpop.f32.mrb[0].mxu0
  %v1184 = vadd.f32 %v920, %v1183
  %v1185 = vpop.f32.mrb[0].mxu0
  %1186 = vmatprep.mubr.bf16.mxu0 0
  %1187 = vmatmul.mubr.bf16.gmra.mrb[0].mxu0 %v744
  %v1188 = vpop.f32.mrb[0].mxu0
  %v1189 = vadd.f32 %v925, %v1188
  %v1190 = vpop.f32.mrb[0].mxu0
  %v1191 = vpop.f32.mrb[0].mxu0
  %v1192 = vadd.f32 %v928, %v1191
  %v1193 = vpop.f32.mrb[0].mxu0
  %1194 = vmatprep.mubr.bf16.mxu0 0
  %1195 = vmatmul.mubr.bf16.gmra.mrb[0].mxu0 %v747
  %v1196 = vpop.f32.mrb[0].mxu0
  %v1197 = vadd.f32 %v933, %v1196
  %v1198 = vpop.f32.mrb[0].mxu0
  %v1199 = vpop.f32.mrb[0].mxu0
  %v1200 = vadd.f32 %v936, %v1199
  %v1201 = vpop.f32.mrb[0].mxu0
  %1202 = vmatprep.mubr.bf16.mxu0 0
  %1203 = vmatmul.mubr.bf16.gmra.mrb[0].mxu0 %v750
  %v1204 = vpop.f32.mrb[0].mxu0
  %v1205 = vadd.f32 %v941, %v1204
  %v1206 = vpop.f32.mrb[0].mxu0
  %v1207 = vpop.f32.mrb[0].mxu0
  %v1208 = vadd.f32 %v944, %v1207
  %v1209 = vpop.f32.mrb[0].mxu0
  %1210 = vmatprep.mubr.bf16.mxu0 0
  %1211 = vmatmul.mubr.bf16.gmra.mrb[0].mxu0 %v753
  %v1212 = vpop.f32.mrb[0].mxu0
  %v1213 = vadd.f32 %v949, %v1212
  %v1214 = vpop.f32.mrb[0].mxu0
  %v1215 = vpop.f32.mrb[0].mxu0
  %v1216 = vadd.f32 %v952, %v1215
  %v1217 = vpop.f32.mrb[0].mxu0
  %1218 = vmatprep.mubr.bf16.mxu0 0
  %1219 = vmatmul.mubr.bf16.gmra.mrb[0].mxu0 %v756
  %v1220 = vpop.f32.mrb[0].mxu0
  %v1221 = vadd.f32 %v957, %v1220
  %v1222 = vpop.f32.mrb[0].mxu0
  %v1223 = vpop.f32.mrb[0].mxu0
  %v1224 = vadd.f32 %v960, %v1223
  %v1225 = vpop.f32.mrb[0].mxu0
  %1226 = vmatprep.mubr.bf16.mxu0 0
  %1227 = vmatmul.mubr.bf16.gmra.mrb[0].mxu0 %v759
  %v1228 = vpop.f32.mrb[0].mxu0
  %v1229 = vadd.f32 %v965, %v1228
  %v1230 = vpop.f32.mrb[0].mxu0
  %v1231 = vpop.f32.mrb[0].mxu0
  %v1232 = vadd.f32 %v968, %v1231
  %v1233 = vpop.f32.mrb[0].mxu0
  %1234 = vmatprep.mubr.bf16.mxu0 0
  %1235 = vmatmul.mubr.bf16.gmra.mrb[0].mxu0 %v762
  %v1236 = vpop.f32.mrb[0].mxu0
  %v1237 = vadd.f32 %v973, %v1236
  %v1238 = vpop.f32.mrb[0].mxu0
  %v1239 = vpop.f32.mrb[0].mxu0
  %v1240 = vadd.f32 %v976, %v1239
  %v1241 = vpop.f32.mrb[0].mxu0
  %1242 = vmatprep.mubr.bf16.mxu0 0
  %1243 = vmatmul.mubr.bf16.gmra.mrb[0].mxu0 %v765
  %v1244 = vpop.f32.mrb[0].mxu0
  %v1245 = vadd.f32 %v981, %v1244
  %v1246 = vpop.f32.mrb[0].mxu0
  %v1247 = vpop.f32.mrb[0].mxu0
  %v1248 = vadd.f32 %v984, %v1247
  %v1249 = vpop.f32.mrb[0].mxu0
  %1250 = vmatprep.mubr.bf16.mxu0 0
  %1251 = vmatmul.mubr.bf16.gmra.mrb[0].mxu0 %v768
  %v1252 = vpop.f32.mrb[0].mxu0
  %v1253 = vadd.f32 %v989, %v1252
  %v1254 = vpop.f32.mrb[0].mxu0
  %v1255 = vpop.f32.mrb[0].mxu0
  %v1256 = vadd.f32 %v992, %v1255
  %v1257 = vpop.f32.mrb[0].mxu0
  %1258 = vmatprep.mubr.bf16.mxu0 0
  %1259 = vmatmul.mubr.bf16.gmra.mrb[0].mxu0 %v771
  %v1260 = vpop.f32.mrb[0].mxu0
  %v1261 = vadd.f32 %v997, %v1260
  %v1262 = vpop.f32.mrb[0].mxu0
  %v1263 = vpop.f32.mrb[0].mxu0
  %v1264 = vadd.f32 %v1000, %v1263
  %v1265 = vpop.f32.mrb[0].mxu0
  %1266 = vmatprep.mubr.bf16.mxu0 0
  %1267 = vmatmul.mubr.bf16.gmra.mrb[0].mxu0 %v774
  %v1268 = vpop.f32.mrb[0].mxu0
  %v1269 = vadd.f32 %v1005, %v1268
  %v1270 = vpop.f32.mrb[0].mxu0
  %v1271 = vpop.f32.mrb[0].mxu0
  %v1272 = vadd.f32 %v1008, %v1271
  %v1273 = vpop.f32.mrb[0].mxu0
  %1274 = vmatprep.mubr.bf16.mxu0 0
  %1275 = vmatmul.mubr.bf16.gmra.mrb[0].mxu0 %v777
  %v1276 = vpop.f32.mrb[0].mxu0
  %v1277 = vadd.f32 %v1013, %v1276
  %v1278 = vpop.f32.mrb[0].mxu0
  %v1279 = vpop.f32.mrb[0].mxu0
  %v1280 = vadd.f32 %v1016, %v1279
  %v1281 = vpop.f32.mrb[0].mxu0
  %1282 = vmatprep.mubr.bf16.mxu0 0
  %1283 = vmatmul.mubr.bf16.gmra.mrb[0].mxu0 %v780
  %v1284 = vpop.f32.mrb[0].mxu0
  %v1285 = vadd.f32 %v1021, %v1284
  %v1286 = vpop.f32.mrb[0].mxu0
  %v1287 = vpop.f32.mrb[0].mxu0
  %v1288 = vadd.f32 %v1024, %v1287
  %v1289 = vpop.f32.mrb[0].mxu0
  %1290 = vmatprep.mubr.bf16.mxu0 0
  %1291 = vmatmul.mubr.bf16.gmra.mrb[0].mxu0 %v783
  %v1292 = vpop.f32.mrb[0].mxu0
  %v1293 = vadd.f32 %v1029, %v1292
  %v1294 = vpop.f32.mrb[0].mxu0
  %v1295 = vpop.f32.mrb[0].mxu0
  %v1296 = vadd.f32 %v1032, %v1295
  %v1297 = vpop.f32.mrb[0].mxu0
  %1298 = vmatprep.mubr.bf16.mxu0 0
  %1299 = vmatmul.mubr.bf16.gmra.mrb[0].mxu0 %v786
  %v1300 = vpop.f32.mrb[0].mxu0
  %v1301 = vadd.f32 %v1037, %v1300
  %v1302 = vpop.f32.mrb[0].mxu0
  %v1303 = vpop.f32.mrb[0].mxu0
  %v1304 = vadd.f32 %v1040, %v1303
  %v1305 = vpop.f32.mrb[0].mxu0
  %1306 = vmatprep.mubr.bf16.mxu0 0
  %1307 = vmatmul.mubr.bf16.gmra.mrb[0].mxu0 %v789
  %v1308 = vpop.f32.mrb[0].mxu0
  %v1309 = vadd.f32 %v1045, %v1308
  %v1310 = vpop.f32.mrb[0].mxu0
  %v1311 = vpop.f32.mrb[0].mxu0
  %v1312 = vadd.f32 %v1048, %v1311
  %v1313 = vpop.f32.mrb[0].mxu0
  %1314 = vmatprep.mubr.bf16.mxu0 0
  %1315 = vmatmul.mubr.bf16.gmra.mrb[0].mxu0 %v792
  %v1316 = vpop.f32.mrb[0].mxu0
  %v1317 = vadd.f32 %v1053, %v1316
  %v1318 = vpop.f32.mrb[0].mxu0
  %v1319 = vpop.f32.mrb[0].mxu0
  %v1320 = vpop.f32.mrb[0].mxu0
  %1321 = vdwg.mxu0
  %v1322 = vld [vmem:[%s2] sm:$0x1]
  %v1324 = vlaneseq
  %v1325 = vshrl.u32 %v1324, 7
  %v1326 = vsub.s32 0, %v1325
  %v1327 = vrot.slane %v1322, %v1326
  %v1329 = vmul.f32 %v1093, %v1327
  %v1330 = vmul.f32 %v1096, %v1327
  %v1331 = vmul.f32 %v1101, %v1327
  %v1332 = vmul.f32 %v1104, %v1327
  %v1333 = vmul.f32 %v1109, %v1327
  %v1334 = vmul.f32 %v1112, %v1327
  %v1335 = vmul.f32 %v1117, %v1327
  %v1336 = vmul.f32 %v1120, %v1327
  %v1337 = vmul.f32 %v1125, %v1327
  %v1338 = vmul.f32 %v1128, %v1327
  %v1339 = vmul.f32 %v1133, %v1327
  %v1340 = vmul.f32 %v1136, %v1327
  %v1341 = vmul.f32 %v1141, %v1327
  %v1342 = vmul.f32 %v1144, %v1327
  %v1343 = vmul.f32 %v1149, %v1327
  %v1344 = vmul.f32 %v1152, %v1327
  %v1345 = vmul.f32 %v1157, %v1327
  %v1346 = vmul.f32 %v1160, %v1327
  %v1347 = vmul.f32 %v1165, %v1327
  %v1348 = vmul.f32 %v1168, %v1327
  %v1349 = vmul.f32 %v1173, %v1327
  %v1350 = vmul.f32 %v1176, %v1327
  %v1351 = vmul.f32 %v1181, %v1327
  %v1352 = vmul.f32 %v1184, %v1327
  %v1353 = vmul.f32 %v1189, %v1327
  %v1354 = vmul.f32 %v1192, %v1327
  %v1355 = vmul.f32 %v1197, %v1327
  %v1356 = vmul.f32 %v1200, %v1327
  %v1357 = vmul.f32 %v1205, %v1327
  %v1358 = vmul.f32 %v1208, %v1327
  %v1359 = vmul.f32 %v1213, %v1327
  %v1360 = vmul.f32 %v1216, %v1327
  %v1361 = vmul.f32 %v1221, %v1327
  %v1362 = vmul.f32 %v1224, %v1327
  %v1363 = vmul.f32 %v1229, %v1327
  %v1364 = vmul.f32 %v1232, %v1327
  %v1365 = vmul.f32 %v1237, %v1327
  %v1366 = vmul.f32 %v1240, %v1327
  %v1367 = vmul.f32 %v1245, %v1327
  %v1368 = vmul.f32 %v1248, %v1327
  %v1369 = vmul.f32 %v1253, %v1327
  %v1370 = vmul.f32 %v1256, %v1327
  %v1371 = vmul.f32 %v1261, %v1327
  %v1372 = vmul.f32 %v1264, %v1327
  %v1373 = vmul.f32 %v1269, %v1327
  %v1374 = vmul.f32 %v1272, %v1327
  %v1375 = vmul.f32 %v1277, %v1327
  %v1376 = vmul.f32 %v1280, %v1327
  %v1377 = vmul.f32 %v1285, %v1327
  %v1378 = vmul.f32 %v1288, %v1327
  %v1379 = vmul.f32 %v1293, %v1327
  %v1380 = vmul.f32 %v1296, %v1327
  %v1381 = vmul.f32 %v1301, %v1327
  %v1382 = vmul.f32 %v1304, %v1327
  %v1383 = vmul.f32 %v1309, %v1327
  %v1384 = vmul.f32 %v1312, %v1327
  %v1385 = vmul.f32 %v1317, %v1327
  %v1386 = vld [vmem:[%s3] sm:$0x1]
  %v1388 = vlaneseq
  %v1389 = vshrl.u32 %v1388, 7
  %v1390 = vsub.s32 0, %v1389
  %v1391 = vrot.slane %v1386, %v1390
  %v1393 = vadd.f32 %v1329, %v1391
  %v1394 = vadd.f32 %v1330, %v1391
  %v1395 = vadd.f32 %v1331, %v1391
  %v1396 = vadd.f32 %v1332, %v1391
  %v1397 = vadd.f32 %v1333, %v1391
  %v1398 = vadd.f32 %v1334, %v1391
  %v1399 = vadd.f32 %v1335, %v1391
  %v1400 = vadd.f32 %v1336, %v1391
  %v1401 = vadd.f32 %v1337, %v1391
  %v1402 = vadd.f32 %v1338, %v1391
  %v1403 = vadd.f32 %v1339, %v1391
  %v1404 = vadd.f32 %v1340, %v1391
  %v1405 = vadd.f32 %v1341, %v1391
  %v1406 = vadd.f32 %v1342, %v1391
  %v1407 = vadd.f32 %v1343, %v1391
  %v1408 = vadd.f32 %v1344, %v1391
  %v1409 = vadd.f32 %v1345, %v1391
  %v1410 = vadd.f32 %v1346, %v1391
  %v1411 = vadd.f32 %v1347, %v1391
  %v1412 = vadd.f32 %v1348, %v1391
  %v1413 = vadd.f32 %v1349, %v1391
  %v1414 = vadd.f32 %v1350, %v1391
  %v1415 = vadd.f32 %v1351, %v1391
  %v1416 = vadd.f32 %v1352, %v1391
  %v1417 = vadd.f32 %v1353, %v1391
  %v1418 = vadd.f32 %v1354, %v1391
  %v1419 = vadd.f32 %v1355, %v1391
  %v1420 = vadd.f32 %v1356, %v1391
  %v1421 = vadd.f32 %v1357, %v1391
  %v1422 = vadd.f32 %v1358, %v1391
  %v1423 = vadd.f32 %v1359, %v1391
  %v1424 = vadd.f32 %v1360, %v1391
  %v1425 = vadd.f32 %v1361, %v1391
  %v1426 = vadd.f32 %v1362, %v1391
  %v1427 = vadd.f32 %v1363, %v1391
  %v1428 = vadd.f32 %v1364, %v1391
  %v1429 = vadd.f32 %v1365, %v1391
  %v1430 = vadd.f32 %v1366, %v1391
  %v1431 = vadd.f32 %v1367, %v1391
  %v1432 = vadd.f32 %v1368, %v1391
  %v1433 = vadd.f32 %v1369, %v1391
  %v1434 = vadd.f32 %v1370, %v1391
  %v1435 = vadd.f32 %v1371, %v1391
  %v1436 = vadd.f32 %v1372, %v1391
  %v1437 = vadd.f32 %v1373, %v1391
  %v1438 = vadd.f32 %v1374, %v1391
  %v1439 = vadd.f32 %v1375, %v1391
  %v1440 = vadd.f32 %v1376, %v1391
  %v1441 = vadd.f32 %v1377, %v1391
  %v1442 = vadd.f32 %v1378, %v1391
  %v1443 = vadd.f32 %v1379, %v1391
  %v1444 = vadd.f32 %v1380, %v1391
  %v1445 = vadd.f32 %v1381, %v1391
  %v1446 = vadd.f32 %v1382, %v1391
  %v1447 = vadd.f32 %v1383, %v1391
  %v1448 = vadd.f32 %v1384, %v1391
  %v1449 = vadd.f32 %v1385, %v1391
  %v1450 = vmax.f32 %v1393, 0.0
  %v1451 = vmax.f32 %v1394, 0.0
  %v1452 = vmax.f32 %v1395, 0.0
  %v1453 = vmax.f32 %v1396, 0.0
  %v1454 = vmax.f32 %v1397, 0.0
  %v1455 = vmax.f32 %v1398, 0.0
  %v1456 = vmax.f32 %v1399, 0.0
  %v1457 = vmax.f32 %v1400, 0.0
  %v1458 = vmax.f32 %v1401, 0.0
  %v1459 = vmax.f32 %v1402, 0.0
  %v1460 = vmax.f32 %v1403, 0.0
  %v1461 = vmax.f32 %v1404, 0.0
  %v1462 = vmax.f32 %v1405, 0.0
  %v1463 = vmax.f32 %v1406, 0.0
  %v1464 = vmax.f32 %v1407, 0.0
  %v1465 = vmax.f32 %v1408, 0.0
  %v1466 = vmax.f32 %v1409, 0.0
  %v1467 = vmax.f32 %v1410, 0.0
  %v1468 = vmax.f32 %v1411, 0.0
  %v1469 = vmax.f32 %v1412, 0.0
  %v1470 = vmax.f32 %v1413, 0.0
  %v1471 = vmax.f32 %v1414, 0.0
  %v1472 = vmax.f32 %v1415, 0.0
  %v1473 = vmax.f32 %v1416, 0.0
  %v1474 = vmax.f32 %v1417, 0.0
  %v1475 = vmax.f32 %v1418, 0.0
  %v1476 = vmax.f32 %v1419, 0.0
  %v1477 = vmax.f32 %v1420, 0.0
  %v1478 = vmax.f32 %v1421, 0.0
  %v1479 = vmax.f32 %v1422, 0.0
  %v1480 = vmax.f32 %v1423, 0.0
  %v1481 = vmax.f32 %v1424, 0.0
  %v1482 = vmax.f32 %v1425, 0.0
  %v1483 = vmax.f32 %v1426, 0.0
  %v1484 = vmax.f32 %v1427, 0.0
  %v1485 = vmax.f32 %v1428, 0.0
  %v1486 = vmax.f32 %v1429, 0.0
  %v1487 = vmax.f32 %v1430, 0.0
  %v1488 = vmax.f32 %v1431, 0.0
  %v1489 = vmax.f32 %v1432, 0.0
  %v1490 = vmax.f32 %v1433, 0.0
  %v1491 = vmax.f32 %v1434, 0.0
  %v1492 = vmax.f32 %v1435, 0.0
  %v1493 = vmax.f32 %v1436, 0.0
  %v1494 = vmax.f32 %v1437, 0.0
  %v1495 = vmax.f32 %v1438, 0.0
  %v1496 = vmax.f32 %v1439, 0.0
  %v1497 = vmax.f32 %v1440, 0.0
  %v1498 = vmax.f32 %v1441, 0.0
  %v1499 = vmax.f32 %v1442, 0.0
  %v1500 = vmax.f32 %v1443, 0.0
  %v1501 = vmax.f32 %v1444, 0.0
  %v1502 = vmax.f32 %v1445, 0.0
  %v1503 = vmax.f32 %v1446, 0.0
  %v1504 = vmax.f32 %v1447, 0.0
  %v1505 = vmax.f32 %v1448, 0.0
  %v1506 = vmax.f32 %v1449, 0.0
  %v1507 = vpack.c.bf16 %v1451, %v1450
  %v1508 = vpack.c.bf16 %v1453, %v1452
  %v1509 = vpack.c.bf16 %v1455, %v1454
  %v1510 = vpack.c.bf16 %v1457, %v1456
  %v1511 = vpack.c.bf16 %v1459, %v1458
  %v1512 = vpack.c.bf16 %v1461, %v1460
  %v1513 = vpack.c.bf16 %v1463, %v1462
  %v1514 = vpack.c.bf16 %v1465, %v1464
  %v1515 = vpack.c.bf16 %v1467, %v1466
  %v1516 = vpack.c.bf16 %v1469, %v1468
  %v1517 = vpack.c.bf16 %v1471, %v1470
  %v1518 = vpack.c.bf16 %v1473, %v1472
  %v1519 = vpack.c.bf16 %v1475, %v1474
  %v1520 = vpack.c.bf16 %v1477, %v1476
  %v1521 = vpack.c.bf16 %v1479, %v1478
  %v1522 = vpack.c.bf16 %v1481, %v1480
  %v1523 = vpack.c.bf16 %v1483, %v1482
  %v1524 = vpack.c.bf16 %v1485, %v1484
  %v1525 = vpack.c.bf16 %v1487, %v1486
  %v1526 = vpack.c.bf16 %v1489, %v1488
  %v1527 = vpack.c.bf16 %v1491, %v1490
  %v1528 = vpack.c.bf16 %v1493, %v1492
  %v1529 = vpack.c.bf16 %v1495, %v1494
  %v1530 = vpack.c.bf16 %v1497, %v1496
  %v1531 = vpack.c.bf16 %v1499, %v1498
  %v1532 = vpack.c.bf16 %v1501, %v1500
  %v1533 = vpack.c.bf16 %v1503, %v1502
  %v1534 = vpack.c.bf16 %v1505, %v1504
  %v1535 = vpack.c.bf16 %v1506, %v1506
  %v1565 = vunpack.c.l.b16 %v1507
  %v1566 = vunpack.c.h.b16 %v1507
  %v1567 = vunpack.c.l.b16 %v1508
  %v1568 = vunpack.c.h.b16 %v1508
  %v1569 = vunpack.c.l.b16 %v1509
  %v1570 = vunpack.c.h.b16 %v1509
  %v1571 = vunpack.c.l.b16 %v1510
  %v1572 = vunpack.c.h.b16 %v1510
  %v1573 = vunpack.c.l.b16 %v1511
  %v1574 = vunpack.c.h.b16 %v1511
  %v1575 = vunpack.c.l.b16 %v1512
  %v1576 = vunpack.c.h.b16 %v1512
  %v1577 = vunpack.c.l.b16 %v1513
  %v1578 = vunpack.c.h.b16 %v1513
  %v1579 = vunpack.c.l.b16 %v1514
  %v1580 = vunpack.c.h.b16 %v1514
  %v1581 = vunpack.c.l.b16 %v1515
  %v1582 = vunpack.c.h.b16 %v1515
  %v1583 = vunpack.c.l.b16 %v1516
  %v1584 = vunpack.c.h.b16 %v1516
  %v1585 = vunpack.c.l.b16 %v1517
  %v1586 = vunpack.c.h.b16 %v1517
  %v1587 = vunpack.c.l.b16 %v1518
  %v1588 = vunpack.c.h.b16 %v1518
  %v1589 = vunpack.c.l.b16 %v1519
  %v1590 = vunpack.c.h.b16 %v1519
  %v1591 = vunpack.c.l.b16 %v1520
  %v1592 = vunpack.c.h.b16 %v1520
  %v1593 = vunpack.c.l.b16 %v1521
  %v1594 = vunpack.c.h.b16 %v1521
  %v1595 = vunpack.c.l.b16 %v1522
  %v1596 = vunpack.c.h.b16 %v1522
  %v1597 = vunpack.c.l.b16 %v1523
  %v1598 = vunpack.c.h.b16 %v1523
  %v1599 = vunpack.c.l.b16 %v1524
  %v1600 = vunpack.c.h.b16 %v1524
  %v1601 = vunpack.c.l.b16 %v1525
  %v1602 = vunpack.c.h.b16 %v1525
  %v1603 = vunpack.c.l.b16 %v1526
  %v1604 = vunpack.c.h.b16 %v1526
  %v1605 = vunpack.c.l.b16 %v1527
  %v1606 = vunpack.c.h.b16 %v1527
  %v1607 = vunpack.c.l.b16 %v1528
  %v1608 = vunpack.c.h.b16 %v1528
  %v1609 = vunpack.c.l.b16 %v1529
  %v1610 = vunpack.c.h.b16 %v1529
  %v1611 = vunpack.c.l.b16 %v1530
  %v1612 = vunpack.c.h.b16 %v1530
  %v1613 = vunpack.c.l.b16 %v1531
  %v1614 = vunpack.c.h.b16 %v1531
  %v1615 = vunpack.c.l.b16 %v1532
  %v1616 = vunpack.c.h.b16 %v1532
  %v1617 = vunpack.c.l.b16 %v1533
  %v1618 = vunpack.c.h.b16 %v1533
  %v1619 = vunpack.c.l.b16 %v1534
  %v1620 = vunpack.c.h.b16 %v1534
  %v1621 = vunpack.c.l.b16 %v1535
  %v1622 = vpack.c.b16 %v1565, %v1565
  %v1623 = vpack.c.b16 %v1566, %v1566
  %v1624 = vpack.c.b16 %v1567, %v1567
  %v1625 = vpack.c.b16 %v1568, %v1568
  %v1626 = vpack.c.b16 %v1569, %v1569
  %v1627 = vpack.c.b16 %v1570, %v1570
  %v1628 = vpack.c.b16 %v1571, %v1571
  %v1629 = vpack.c.b16 %v1572, %v1572
  %v1630 = vpack.c.b16 %v1573, %v1573
  %v1631 = vpack.c.b16 %v1574, %v1574
  %v1632 = vpack.c.b16 %v1575, %v1575
  %v1633 = vpack.c.b16 %v1576, %v1576
  %v1634 = vpack.c.b16 %v1577, %v1577
  %v1635 = vpack.c.b16 %v1578, %v1578
  %v1636 = vpack.c.b16 %v1579, %v1579
  %v1637 = vpack.c.b16 %v1580, %v1580
  %v1638 = vpack.c.b16 %v1581, %v1581
  %v1639 = vpack.c.b16 %v1582, %v1582
  %v1640 = vpack.c.b16 %v1583, %v1583
  %v1641 = vpack.c.b16 %v1584, %v1584
  %v1642 = vpack.c.b16 %v1585, %v1585
  %v1643 = vpack.c.b16 %v1586, %v1586
  %v1644 = vpack.c.b16 %v1587, %v1587
  %v1645 = vpack.c.b16 %v1588, %v1588
  %v1646 = vpack.c.b16 %v1589, %v1589
  %v1647 = vpack.c.b16 %v1590, %v1590
  %v1648 = vpack.c.b16 %v1591, %v1591
  %v1649 = vpack.c.b16 %v1592, %v1592
  %v1650 = vpack.c.b16 %v1593, %v1593
  %v1651 = vpack.c.b16 %v1594, %v1594
  %v1652 = vpack.c.b16 %v1595, %v1595
  %v1653 = vpack.c.b16 %v1596, %v1596
  %v1654 = vpack.c.b16 %v1597, %v1597
  %v1655 = vpack.c.b16 %v1598, %v1598
  %v1656 = vpack.c.b16 %v1599, %v1599
  %v1657 = vpack.c.b16 %v1600, %v1600
  %v1658 = vpack.c.b16 %v1601, %v1601
  %v1659 = vpack.c.b16 %v1602, %v1602
  %v1660 = vpack.c.b16 %v1603, %v1603
  %v1661 = vpack.c.b16 %v1604, %v1604
  %v1662 = vpack.c.b16 %v1605, %v1605
  %v1663 = vpack.c.b16 %v1606, %v1606
  %v1664 = vpack.c.b16 %v1607, %v1607
  %v1665 = vpack.c.b16 %v1608, %v1608
  %v1666 = vpack.c.b16 %v1609, %v1609
  %v1667 = vpack.c.b16 %v1610, %v1610
  %v1668 = vpack.c.b16 %v1611, %v1611
  %v1669 = vpack.c.b16 %v1612, %v1612
  %v1670 = vpack.c.b16 %v1613, %v1613
  %v1671 = vpack.c.b16 %v1614, %v1614
  %v1672 = vpack.c.b16 %v1615, %v1615
  %v1673 = vpack.c.b16 %v1616, %v1616
  %v1674 = vpack.c.b16 %v1617, %v1617
  %v1675 = vpack.c.b16 %v1618, %v1618
  %v1676 = vpack.c.b16 %v1619, %v1619
  %v1677 = vpack.c.b16 %v1620, %v1620
  %v1678 = vpack.c.b16 %v1621, %v1621
  %vm1736 = vcmask 519168
  %1737 = vst.msk [vmem:[%s4] sm:$0xf] %vm1736, %v1622
  %1738 = vst.msk [vmem:[%s4 + $0x4] sm:$0xf] %vm1736, %v1623
  %1739 = vst.msk [vmem:[%s4 + $0x8] sm:$0xf] %vm1736, %v1624
  %1740 = vst.msk [vmem:[%s4 + $0xc] sm:$0xf] %vm1736, %v1625
  %1741 = vst.msk [vmem:[%s4 + $0x10] sm:$0xf] %vm1736, %v1626
  %1742 = vst.msk [vmem:[%s4 + $0x14] sm:$0xf] %vm1736, %v1627
  %1743 = vst.msk [vmem:[%s4 + $0x18] sm:$0xf] %vm1736, %v1628
  %1744 = vst.msk [vmem:[%s4 + $0x1c] sm:$0xf] %vm1736, %v1629
  %1745 = vst.msk [vmem:[%s4 + $0x20] sm:$0xf] %vm1736, %v1630
  %1746 = vst.msk [vmem:[%s4 + $0x24] sm:$0xf] %vm1736, %v1631
  %1747 = vst.msk [vmem:[%s4 + $0x28] sm:$0xf] %vm1736, %v1632
  %1748 = vst.msk [vmem:[%s4 + $0x2c] sm:$0xf] %vm1736, %v1633
  %1749 = vst.msk [vmem:[%s4 + $0x30] sm:$0xf] %vm1736, %v1634
  %1750 = vst.msk [vmem:[%s4 + $0x34] sm:$0xf] %vm1736, %v1635
  %1751 = vst.msk [vmem:[%s4 + $0x38] sm:$0xf] %vm1736, %v1636
  %1752 = vst.msk [vmem:[%s4 + $0x3c] sm:$0xf] %vm1736, %v1637
  %1753 = vst.msk [vmem:[%s4 + $0x40] sm:$0xf] %vm1736, %v1638
  %1754 = vst.msk [vmem:[%s4 + $0x44] sm:$0xf] %vm1736, %v1639
  %1755 = vst.msk [vmem:[%s4 + $0x48] sm:$0xf] %vm1736, %v1640
  %1756 = vst.msk [vmem:[%s4 + $0x4c] sm:$0xf] %vm1736, %v1641
  %1757 = vst.msk [vmem:[%s4 + $0x50] sm:$0xf] %vm1736, %v1642
  %1758 = vst.msk [vmem:[%s4 + $0x54] sm:$0xf] %vm1736, %v1643
  %1759 = vst.msk [vmem:[%s4 + $0x58] sm:$0xf] %vm1736, %v1644
  %1760 = vst.msk [vmem:[%s4 + $0x5c] sm:$0xf] %vm1736, %v1645
  %1761 = vst.msk [vmem:[%s4 + $0x60] sm:$0xf] %vm1736, %v1646
  %1762 = vst.msk [vmem:[%s4 + $0x64] sm:$0xf] %vm1736, %v1647
  %1763 = vst.msk [vmem:[%s4 + $0x68] sm:$0xf] %vm1736, %v1648
  %1764 = vst.msk [vmem:[%s4 + $0x6c] sm:$0xf] %vm1736, %v1649
  %1765 = vst.msk [vmem:[%s4 + $0x70] sm:$0xf] %vm1736, %v1650
  %1766 = vst.msk [vmem:[%s4 + $0x74] sm:$0xf] %vm1736, %v1651
  %1767 = vst.msk [vmem:[%s4 + $0x78] sm:$0xf] %vm1736, %v1652
  %1768 = vst.msk [vmem:[%s4 + $0x7c] sm:$0xf] %vm1736, %v1653
  %1769 = vst.msk [vmem:[%s4 + $0x80] sm:$0xf] %vm1736, %v1654
  %1770 = vst.msk [vmem:[%s4 + $0x84] sm:$0xf] %vm1736, %v1655
  %1771 = vst.msk [vmem:[%s4 + $0x88] sm:$0xf] %vm1736, %v1656
  %1772 = vst.msk [vmem:[%s4 + $0x8c] sm:$0xf] %vm1736, %v1657
  %1773 = vst.msk [vmem:[%s4 + $0x90] sm:$0xf] %vm1736, %v1658
  %1774 = vst.msk [vmem:[%s4 + $0x94] sm:$0xf] %vm1736, %v1659
  %1775 = vst.msk [vmem:[%s4 + $0x98] sm:$0xf] %vm1736, %v1660
  %1776 = vst.msk [vmem:[%s4 + $0x9c] sm:$0xf] %vm1736, %v1661
  %1777 = vst.msk [vmem:[%s4 + $0xa0] sm:$0xf] %vm1736, %v1662
  %1778 = vst.msk [vmem:[%s4 + $0xa4] sm:$0xf] %vm1736, %v1663
  %1779 = vst.msk [vmem:[%s4 + $0xa8] sm:$0xf] %vm1736, %v1664
  %1780 = vst.msk [vmem:[%s4 + $0xac] sm:$0xf] %vm1736, %v1665
  %1781 = vst.msk [vmem:[%s4 + $0xb0] sm:$0xf] %vm1736, %v1666
  %1782 = vst.msk [vmem:[%s4 + $0xb4] sm:$0xf] %vm1736, %v1667
  %1783 = vst.msk [vmem:[%s4 + $0xb8] sm:$0xf] %vm1736, %v1668
  %1784 = vst.msk [vmem:[%s4 + $0xbc] sm:$0xf] %vm1736, %v1669
  %1785 = vst.msk [vmem:[%s4 + $0xc0] sm:$0xf] %vm1736, %v1670
  %1786 = vst.msk [vmem:[%s4 + $0xc4] sm:$0xf] %vm1736, %v1671
  %1787 = vst.msk [vmem:[%s4 + $0xc8] sm:$0xf] %vm1736, %v1672
  %1788 = vst.msk [vmem:[%s4 + $0xcc] sm:$0xf] %vm1736, %v1673
  %1789 = vst.msk [vmem:[%s4 + $0xd0] sm:$0xf] %vm1736, %v1674
  %1790 = vst.msk [vmem:[%s4 + $0xd4] sm:$0xf] %vm1736, %v1675
  %1791 = vst.msk [vmem:[%s4 + $0xd8] sm:$0xf] %vm1736, %v1676
  %1792 = vst.msk [vmem:[%s4 + $0xdc] sm:$0xf] %vm1736, %v1677
  %vm1793 = vcmask 516096
  %1794 = vst.msk [vmem:[%s4 + $0xe0] sm:$0x1] %vm1793, %v1678
  // Predicated region
  $region18: #{incept_init_block.11} parent=0 // pred_check
    _
  $region19: #{incept_init_block.11} parent=0 // pred_check_branch
    %1796 = sbr.rel (0) target = $region21
  $region20: #{incept_init_block.11} parent=0 // pred_region
    _
  $region21: #{incept_init_block.11} parent=0 // pred_fallthru
    _
  // Predicated region
  $region22: #{incept_init_block.11} parent=0 // pred_check
    _
  $region23: #{incept_init_block.11} parent=0 // pred_check_branch
    %1798 = sbr.rel (0) target = $region25
  $region24: #{incept_init_block.11} parent=0 // pred_region
    _
  $region25: #{incept_init_block.11} parent=0 // pred_fallthru
    _

// kernel: incept_init_block.13
$region0: #{incept_init_block.13}
  #allocation0 [shape = 'u32[]', space=smem, size = 0x4, offset = 0x4, fixed_abs, tag = 'smem constant byte address 0x4 - core index']
  #allocation1 [shape = 'u32[144,128]{1,0:T(1,128)}', space=vmem, size = 0x12000, scoped, tag = 'internal scratch']
  %s0 = inlined_call_operand.vmem [shape: bf16[98,160], index: 0, kind: input, shape index: {}]
  %s1 = inlined_call_operand.vmem [shape: bf16[160,128], index: 1, kind: input, shape index: {}]
  %s2 = inlined_call_operand.vmem [shape: f32[1,128], index: 2, kind: input, shape index: {}]
  %s3 = inlined_call_operand.vmem [shape: f32[1,128], index: 3, kind: input, shape index: {}]
  %s4 = inlined_call_operand.vmem [shape: bf16[98,128], index: 4, kind: output, shape index: {}]
  %s5 = sld [smem:[#allocation0]]
  $region26: #{incept_init_block.13} parent=0
    _
  %s7 = ssub.s32 1, %s5
  %s8 = scalar_select 0, %s7, %s5
  // Predicated region
  $region2: #{incept_init_block.13} parent=0 // pred_check
    _
  $region3: #{incept_init_block.13} parent=0 // pred_check_branch
    %10 = sbr.rel (0) target = $region5
  $region4: #{incept_init_block.13} parent=0 // pred_region
    _
  $region5: #{incept_init_block.13} parent=0 // pred_fallthru
    _
  // Predicated region
  $region6: #{incept_init_block.13} parent=0 // pred_check
    _
  $region7: #{incept_init_block.13} parent=0 // pred_check_branch
    %12 = sbr.rel (0) target = $region9
  $region8: #{incept_init_block.13} parent=0 // pred_region
    _
  $region9: #{incept_init_block.13} parent=0 // pred_fallthru
    _
  // Predicated region
  $region10: #{incept_init_block.13} parent=0 // pred_check
    _
  $region11: #{incept_init_block.13} parent=0 // pred_check_branch
    %14 = sbr.rel (0) target = $region13
  $region12: #{incept_init_block.13} parent=0 // pred_region
    _
  $region13: #{incept_init_block.13} parent=0 // pred_fallthru
    _
  // Predicated region
  $region14: #{incept_init_block.13} parent=0 // pred_check
    _
  $region15: #{incept_init_block.13} parent=0 // pred_check_branch
    %16 = sbr.rel (0) target = $region17
  $region16: #{incept_init_block.13} parent=0 // pred_region
    _
  $region17: #{incept_init_block.13} parent=0 // pred_fallthru
    _
  %v18 = vld [vmem:[%s0] sm:$0xff]
  %v19 = vld [vmem:[%s0 + $0x8] sm:$0xff]
  %v20 = vld [vmem:[%s0 + $0x10] sm:$0xff]
  %v21 = vld [vmem:[%s0 + $0x18] sm:$0xff]
  %v22 = vld [vmem:[%s0 + $0x20] sm:$0xff]
  %v23 = vld [vmem:[%s0 + $0x28] sm:$0xff]
  %v24 = vld [vmem:[%s0 + $0x30] sm:$0xff]
  %v25 = vld [vmem:[%s0 + $0x38] sm:$0xff]
  %v26 = vld [vmem:[%s0 + $0x40] sm:$0xff]
  %v27 = vld [vmem:[%s0 + $0x48] sm:$0xff]
  %v28 = vld [vmem:[%s0 + $0x50] sm:$0xff]
  %v29 = vld [vmem:[%s0 + $0x58] sm:$0xff]
  %v30 = vld [vmem:[%s0 + $0x60] sm:$0x11]
  %v31 = vld [vmem:[%s1] sm:$0xf]
  %v32 = vld [vmem:[%s1 + $0x4] sm:$0xf]
  %v33 = vld [vmem:[%s1 + $0x8] sm:$0xf]
  %v34 = vld [vmem:[%s1 + $0xc] sm:$0xf]
  %v35 = vld [vmem:[%s1 + $0x10] sm:$0xf]
  %v36 = vld [vmem:[%s1 + $0x14] sm:$0xf]
  %v37 = vld [vmem:[%s1 + $0x18] sm:$0xf]
  %v38 = vld [vmem:[%s1 + $0x1c] sm:$0xf]
  %v39 = vld [vmem:[%s1 + $0x20] sm:$0xf]
  %v40 = vld [vmem:[%s1 + $0x24] sm:$0xf]
  %v41 = vld [vmem:[%s1 + $0x28] sm:$0xf]
  %v42 = vld [vmem:[%s1 + $0x2c] sm:$0xf]
  %v43 = vld [vmem:[%s1 + $0x30] sm:$0xf]
  %v44 = vld [vmem:[%s1 + $0x34] sm:$0xf]
  %v45 = vld [vmem:[%s1 + $0x38] sm:$0xf]
  %v46 = vld [vmem:[%s1 + $0x3c] sm:$0xf]
  %v47 = vld [vmem:[%s1 + $0x40] sm:$0xf]
  %v48 = vld [vmem:[%s1 + $0x44] sm:$0xf]
  %v49 = vld [vmem:[%s1 + $0x48] sm:$0xf]
  %v50 = vld [vmem:[%s1 + $0x4c] sm:$0xf]
  %v64 = vunpack.c.l.b16 %v18
  %v65 = vunpack.c.h.b16 %v18
  %v66 = vunpack.c.l.b16 %v19
  %v67 = vunpack.c.h.b16 %v19
  %v68 = vunpack.c.l.b16 %v20
  %v69 = vunpack.c.h.b16 %v20
  %v70 = vunpack.c.l.b16 %v21
  %v71 = vunpack.c.h.b16 %v21
  %v72 = vunpack.c.l.b16 %v22
  %v73 = vunpack.c.h.b16 %v22
  %v74 = vunpack.c.l.b16 %v23
  %v75 = vunpack.c.h.b16 %v23
  %v76 = vunpack.c.l.b16 %v24
  %v77 = vunpack.c.h.b16 %v24
  %v78 = vunpack.c.l.b16 %v25
  %v79 = vunpack.c.h.b16 %v25
  %v80 = vunpack.c.l.b16 %v26
  %v81 = vunpack.c.h.b16 %v26
  %v82 = vunpack.c.l.b16 %v27
  %v83 = vunpack.c.h.b16 %v27
  %v84 = vunpack.c.l.b16 %v28
  %v85 = vunpack.c.h.b16 %v28
  %v86 = vunpack.c.l.b16 %v29
  %v87 = vunpack.c.h.b16 %v29
  %v88 = vunpack.c.l.b16 %v30
  %v89 = vunpack.c.h.b16 %v30
  %v90 = vpack.c.b16 %v66, %v64
  %v91 = vpack.c.b16 %v67, %v65
  %v92 = vpack.c.b16 %v70, %v68
  %v93 = vpack.c.b16 %v71, %v69
  %v94 = vpack.c.b16 %v74, %v72
  %v95 = vpack.c.b16 %v75, %v73
  %v96 = vpack.c.b16 %v78, %v76
  %v97 = vpack.c.b16 %v79, %v77
  %v98 = vpack.c.b16 %v82, %v80
  %v99 = vpack.c.b16 %v83, %v81
  %v100 = vpack.c.b16 %v86, %v84
  %v101 = vpack.c.b16 %v87, %v85
  %v102 = vpack.c.b16 %v88, %v88
  %v103 = vpack.c.b16 %v89, %v89
  %v131 = vunpack.c.l.b16 %v31
  %v132 = vunpack.c.l.b16 %v32
  %v133 = vunpack.c.l.b16 %v33
  %v134 = vunpack.c.l.b16 %v34
  %v135 = vunpack.c.l.b16 %v35
  %v136 = vunpack.c.l.b16 %v36
  %v137 = vunpack.c.l.b16 %v37
  %v138 = vunpack.c.l.b16 %v38
  %v139 = vunpack.c.l.b16 %v39
  %v140 = vunpack.c.l.b16 %v40
  %v141 = vunpack.c.l.b16 %v41
  %v142 = vunpack.c.l.b16 %v42
  %v143 = vunpack.c.l.b16 %v43
  %v144 = vunpack.c.l.b16 %v44
  %v145 = vunpack.c.l.b16 %v45
  %v146 = vunpack.c.l.b16 %v46
  %v147 = vunpack.c.l.b16 %v47
  %v148 = vunpack.c.l.b16 %v48
  %v149 = vunpack.c.l.b16 %v49
  %v150 = vunpack.c.l.b16 %v50
  %v151 = vpack.c.b16 %v132, %v131
  %v152 = vpack.c.b16 %v134, %v133
  %v153 = vpack.c.b16 %v136, %v135
  %v154 = vpack.c.b16 %v138, %v137
  %v155 = vpack.c.b16 %v140, %v139
  %v156 = vpack.c.b16 %v142, %v141
  %v157 = vpack.c.b16 %v144, %v143
  %v158 = vpack.c.b16 %v146, %v145
  %v159 = vpack.c.b16 %v148, %v147
  %v160 = vpack.c.b16 %v150, %v149
  %vm171 = vcmask 261120
  %v173 = vsel %vm171, %v91, 0
  %v176 = vsel %vm171, %v93, 0
  %v179 = vsel %vm171, %v95, 0
  %v182 = vsel %vm171, %v97, 0
  %v185 = vsel %vm171, %v99, 0
  %v188 = vsel %vm171, %v101, 0
  %v191 = vsel %vm171, %v103, 0
  %193 = vmatprep.subr.bf16.mxu0 0
  %194 = vmatpush1.bf16.msra.mxu0 %v151
  %195 = vmatprep.subr.bf16.mxu0 0
  %196 = vmatpush1.bf16.msra.mxu0 %v152
  %197 = vmatprep.subr.bf16.mxu0 0
  %198 = vmatpush1.bf16.msra.mxu0 %v153
  %199 = vmatprep.subr.bf16.mxu0 0
  %200 = vmatpush1.bf16.msra.mxu0 %v154
  %201 = vmatprep.subr.bf16.mxu0 0
  %202 = vmatpush1.bf16.msra.mxu0 %v155
  %203 = vmatprep.subr.bf16.mxu0 0
  %204 = vmatpush1.bf16.msra.mxu0 %v156
  %205 = vmatprep.subr.bf16.mxu0 0
  %206 = vmatpush1.bf16.msra.mxu0 %v157
  %207 = vmatprep.subr.bf16.mxu0 0
  %208 = vmatpush1.bf16.msra.mxu0 %v158
  %209 = vmatprep.subr.bf16.mxu0 0
  %210 = vmatpush1.bf16.msra.mxu0 %v159
  %211 = vmatprep.subr.bf16.mxu0 0
  %212 = vmatpush1.bf16.msra.mxu0 %v160
  %213 = vmatprep.subr.bf16.mxu0 0
  %214 = vmatpush1.bf16.msra.mxu0 0
  %215 = vmatprep.subr.bf16.mxu0 0
  %216 = vmatpush1.bf16.msra.mxu0 0
  %217 = vmatprep.subr.bf16.mxu0 0
  %218 = vmatpush1.bf16.msra.mxu0 0
  %219 = vmatprep.subr.bf16.mxu0 0
  %220 = vmatpush1.bf16.msra.mxu0 0
  %221 = vmatprep.subr.bf16.mxu0 0
  %222 = vmatpush1.bf16.msra.mxu0 0
  %223 = vmatprep.subr.bf16.mxu0 0
  %224 = vmatpush1.bf16.msra.mxu0 0
  %225 = vmatprep.mubr.bf16.mxu0 %v173
  %226 = vmatmul.mubr.bf16.gmra.mrb[0].mxu0 %v90
  %v227 = vpop.f32.mrb[0].mxu0
  %v228 = vadd.f32 0.0, %v227
  %v229 = vpop.f32.mrb[0].mxu0
  %v230 = vpop.f32.mrb[0].mxu0
  %v231 = vadd.f32 0.0, %v230
  %v232 = vpop.f32.mrb[0].mxu0
  %233 = vmatprep.mubr.bf16.mxu0 %v176
  %234 = vmatmul.mubr.bf16.gmra.mrb[0].mxu0 %v92
  %v235 = vpop.f32.mrb[0].mxu0
  %v236 = vadd.f32 0.0, %v235
  %v237 = vpop.f32.mrb[0].mxu0
  %v238 = vpop.f32.mrb[0].mxu0
  %v239 = vadd.f32 0.0, %v238
  %v240 = vpop.f32.mrb[0].mxu0
  %241 = vmatprep.mubr.bf16.mxu0 %v179
  %242 = vmatmul.mubr.bf16.gmra.mrb[0].mxu0 %v94
  %v243 = vpop.f32.mrb[0].mxu0
  %v244 = vadd.f32 0.0, %v243
  %v245 = vpop.f32.mrb[0].mxu0
  %v246 = vpop.f32.mrb[0].mxu0
  %v247 = vadd.f32 0.0, %v246
  %v248 = vpop.f32.mrb[0].mxu0
  %249 = vmatprep.mubr.bf16.mxu0 %v182
  %250 = vmatmul.mubr.bf16.gmra.mrb[0].mxu0 %v96
  %v251 = vpop.f32.mrb[0].mxu0
  %v252 = vadd.f32 0.0, %v251
  %v253 = vpop.f32.mrb[0].mxu0
  %v254 = vpop.f32.mrb[0].mxu0
  %v255 = vadd.f32 0.0, %v254
  %v256 = vpop.f32.mrb[0].mxu0
  %257 = vmatprep.mubr.bf16.mxu0 %v185
  %258 = vmatmul.mubr.bf16.gmra.mrb[0].mxu0 %v98
  %v259 = vpop.f32.mrb[0].mxu0
  %v260 = vadd.f32 0.0, %v259
  %v261 = vpop.f32.mrb[0].mxu0
  %v262 = vpop.f32.mrb[0].mxu0
  %v263 = vadd.f32 0.0, %v262
  %v264 = vpop.f32.mrb[0].mxu0
  %265 = vmatprep.mubr.bf16.mxu0 %v188
  %266 = vmatmul.mubr.bf16.gmra.mrb[0].mxu0 %v100
  %v267 = vpop.f32.mrb[0].mxu0
  %v268 = vadd.f32 0.0, %v267
  %v269 = vpop.f32.mrb[0].mxu0
  %v270 = vpop.f32.mrb[0].mxu0
  %v271 = vadd.f32 0.0, %v270
  %v272 = vpop.f32.mrb[0].mxu0
  %273 = vmatprep.mubr.bf16.mxu0 %v191
  %274 = vmatmul.mubr.bf16.gmra.mrb[0].mxu0 %v102
  %v275 = vpop.f32.mrb[0].mxu0
  %v276 = vadd.f32 0.0, %v275
  %v277 = vpop.f32.mrb[0].mxu0
  %v278 = vpop.f32.mrb[0].mxu0
  %v279 = vpop.f32.mrb[0].mxu0
  %280 = vdwg.mxu0
  %v281 = vld [vmem:[%s2] sm:$0x1]
  %v283 = vlaneseq
  %v284 = vshrl.u32 %v283, 7
  %v285 = vsub.s32 0, %v284
  %v286 = vrot.slane %v281, %v285
  %v288 = vmul.f32 %v228, %v286
  %v289 = vmul.f32 %v231, %v286
  %v290 = vmul.f32 %v236, %v286
  %v291 = vmul.f32 %v239, %v286
  %v292 = vmul.f32 %v244, %v286
  %v293 = vmul.f32 %v247, %v286
  %v294 = vmul.f32 %v252, %v286
  %v295 = vmul.f32 %v255, %v286
  %v296 = vmul.f32 %v260, %v286
  %v297 = vmul.f32 %v263, %v286
  %v298 = vmul.f32 %v268, %v286
  %v299 = vmul.f32 %v271, %v286
  %v300 = vmul.f32 %v276, %v286
  %v301 = vld [vmem:[%s3] sm:$0x1]
  %v303 = vlaneseq
  %v304 = vshrl.u32 %v303, 7
  %v305 = vsub.s32 0, %v304
  %v306 = vrot.slane %v301, %v305
  %v308 = vadd.f32 %v288, %v306
  %v309 = vadd.f32 %v289, %v306
  %v310 = vadd.f32 %v290, %v306
  %v311 = vadd.f32 %v291, %v306
  %v312 = vadd.f32 %v292, %v306
  %v313 = vadd.f32 %v293, %v306
  %v314 = vadd.f32 %v294, %v306
  %v315 = vadd.f32 %v295, %v306
  %v316 = vadd.f32 %v296, %v306
  %v317 = vadd.f32 %v297, %v306
  %v318 = vadd.f32 %v298, %v306
  %v319 = vadd.f32 %v299, %v306
  %v320 = vadd.f32 %v300, %v306
  %v321 = vmax.f32 %v308, 0.0
  %v322 = vmax.f32 %v309, 0.0
  %v323 = vmax.f32 %v310, 0.0
  %v324 = vmax.f32 %v311, 0.0
  %v325 = vmax.f32 %v312, 0.0
  %v326 = vmax.f32 %v313, 0.0
  %v327 = vmax.f32 %v314, 0.0
  %v328 = vmax.f32 %v315, 0.0
  %v329 = vmax.f32 %v316, 0.0
  %v330 = vmax.f32 %v317, 0.0
  %v331 = vmax.f32 %v318, 0.0
  %v332 = vmax.f32 %v319, 0.0
  %v333 = vmax.f32 %v320, 0.0
  %v334 = vpack.c.bf16 %v322, %v321
  %v335 = vpack.c.bf16 %v324, %v323
  %v336 = vpack.c.bf16 %v326, %v325
  %v337 = vpack.c.bf16 %v328, %v327
  %v338 = vpack.c.bf16 %v330, %v329
  %v339 = vpack.c.bf16 %v332, %v331
  %v340 = vpack.c.bf16 %v333, %v333
  %v348 = vunpack.c.l.b16 %v334
  %v349 = vunpack.c.h.b16 %v334
  %v350 = vunpack.c.l.b16 %v335
  %v351 = vunpack.c.h.b16 %v335
  %v352 = vunpack.c.l.b16 %v336
  %v353 = vunpack.c.h.b16 %v336
  %v354 = vunpack.c.l.b16 %v337
  %v355 = vunpack.c.h.b16 %v337
  %v356 = vunpack.c.l.b16 %v338
  %v357 = vunpack.c.h.b16 %v338
  %v358 = vunpack.c.l.b16 %v339
  %v359 = vunpack.c.h.b16 %v339
  %v360 = vunpack.c.l.b16 %v340
  %v361 = vpack.c.b16 %v348, %v348
  %v362 = vpack.c.b16 %v349, %v349
  %v363 = vpack.c.b16 %v350, %v350
  %v364 = vpack.c.b16 %v351, %v351
  %v365 = vpack.c.b16 %v352, %v352
  %v366 = vpack.c.b16 %v353, %v353
  %v367 = vpack.c.b16 %v354, %v354
  %v368 = vpack.c.b16 %v355, %v355
  %v369 = vpack.c.b16 %v356, %v356
  %v370 = vpack.c.b16 %v357, %v357
  %v371 = vpack.c.b16 %v358, %v358
  %v372 = vpack.c.b16 %v359, %v359
  %v373 = vpack.c.b16 %v360, %v360
  %387 = vst [vmem:[%s4] sm:$0xf] %v361
  %388 = vst [vmem:[%s4 + $0x4] sm:$0xf] %v362
  %389 = vst [vmem:[%s4 + $0x8] sm:$0xf] %v363
  %390 = vst [vmem:[%s4 + $0xc] sm:$0xf] %v364
  %391 = vst [vmem:[%s4 + $0x10] sm:$0xf] %v365
  %392 = vst [vmem:[%s4 + $0x14] sm:$0xf] %v366
  %393 = vst [vmem:[%s4 + $0x18] sm:$0xf] %v367
  %394 = vst [vmem:[%s4 + $0x1c] sm:$0xf] %v368
  %395 = vst [vmem:[%s4 + $0x20] sm:$0xf] %v369
  %396 = vst [vmem:[%s4 + $0x24] sm:$0xf] %v370
  %397 = vst [vmem:[%s4 + $0x28] sm:$0xf] %v371
  %398 = vst [vmem:[%s4 + $0x2c] sm:$0xf] %v372
  %399 = vst [vmem:[%s4 + $0x30] sm:$0x1] %v373
  // Predicated region
  $region18: #{incept_init_block.13} parent=0 // pred_check
    _
  $region19: #{incept_init_block.13} parent=0 // pred_check_branch
    %401 = sbr.rel (0) target = $region21
  $region20: #{incept_init_block.13} parent=0 // pred_region
    _
  $region21: #{incept_init_block.13} parent=0 // pred_fallthru
    _
  // Predicated region
  $region22: #{incept_init_block.13} parent=0 // pred_check
    _
  $region23: #{incept_init_block.13} parent=0 // pred_check_branch
    %403 = sbr.rel (0) target = $region25
  $region24: #{incept_init_block.13} parent=0 // pred_region
    _
  $region25: #{incept_init_block.13} parent=0 // pred_fallthru
    _

// kernel: incept_init_block.12
$region0: #{incept_init_block.12}
  #allocation0 [shape = 'u32[]', space=smem, size = 0x4, offset = 0x4, fixed_abs, tag = 'smem constant byte address 0x4 - core index']
  #allocation1 [shape = 'u32[144,128]{1,0:T(1,128)}', space=vmem, size = 0x12000, scoped, tag = 'internal scratch']
  %s0 = inlined_call_operand.vmem [shape: bf16[98,576], index: 0, kind: input, shape index: {}]
  %s1 = inlined_call_operand.vmem [shape: bf16[576,96], index: 1, kind: input, shape index: {}]
  %s2 = inlined_call_operand.vmem [shape: f32[1,96], index: 2, kind: input, shape index: {}]
  %s3 = inlined_call_operand.vmem [shape: f32[1,96], index: 3, kind: input, shape index: {}]
  %s4 = inlined_call_operand.vmem [shape: bf16[9,98,64], index: 4, kind: input, shape index: {}]
  %s5 = inlined_call_operand.vmem [shape: bf16[98,96], index: 5, kind: output, shape index: {0}]
  %s6 = inlined_call_operand.vmem [shape: bf16[98,64], index: 6, kind: output, shape index: {1}]
  %7 = xla_tuple %s5, %s6
  %s8 = sld [smem:[#allocation0]]
  $region38: #{incept_init_block.12} parent=0
    _
  %s10 = ssub.s32 1, %s8
  %s11 = scalar_select 0, %s10, %s8
  // Predicated region
  $region2: #{incept_init_block.12} parent=0 // pred_check
    _
  $region3: #{incept_init_block.12} parent=0 // pred_check_branch
    %13 = sbr.rel (0) target = $region5
  $region4: #{incept_init_block.12} parent=0 // pred_region
    _
  $region5: #{incept_init_block.12} parent=0 // pred_fallthru
    _
  // Predicated region
  $region6: #{incept_init_block.12} parent=0 // pred_check
    _
  $region7: #{incept_init_block.12} parent=0 // pred_check_branch
    %15 = sbr.rel (0) target = $region9
  $region8: #{incept_init_block.12} parent=0 // pred_region
    _
  $region9: #{incept_init_block.12} parent=0 // pred_fallthru
    _
  // Predicated region
  $region10: #{incept_init_block.12} parent=0 // pred_check
    _
  $region11: #{incept_init_block.12} parent=0 // pred_check_branch
    %17 = sbr.rel (0) target = $region13
  $region12: #{incept_init_block.12} parent=0 // pred_region
    _
  $region13: #{incept_init_block.12} parent=0 // pred_fallthru
    _
  // Predicated region
  $region14: #{incept_init_block.12} parent=0 // pred_check
    _
  $region15: #{incept_init_block.12} parent=0 // pred_check_branch
    %19 = sbr.rel (0) target = $region17
  $region16: #{incept_init_block.12} parent=0 // pred_region
    _
  $region17: #{incept_init_block.12} parent=0 // pred_fallthru
    _
  // Predicated region
  $region18: #{incept_init_block.12} parent=0 // pred_check
    _
  $region19: #{incept_init_block.12} parent=0 // pred_check_branch
    %21 = sbr.rel (0) target = $region21
  $region20: #{incept_init_block.12} parent=0 // pred_region
    _
  $region21: #{incept_init_block.12} parent=0 // pred_fallthru
    _
  %v23 = vld [vmem:[%s0] sm:$0xff]
  %v24 = vld [vmem:[%s0 + $0x8] sm:$0xff]
  %v25 = vld [vmem:[%s0 + $0x10] sm:$0xf]
  %v26 = vld [vmem:[%s0 + $0x14] sm:$0xff]
  %v27 = vld [vmem:[%s0 + $0x1c] sm:$0xff]
  %v28 = vld [vmem:[%s0 + $0x24] sm:$0xf]
  %v29 = vld [vmem:[%s0 + $0x28] sm:$0xff]
  %v30 = vld [vmem:[%s0 + $0x30] sm:$0xff]
  %v31 = vld [vmem:[%s0 + $0x38] sm:$0xf]
  %v32 = vld [vmem:[%s0 + $0x3c] sm:$0xff]
  %v33 = vld [vmem:[%s0 + $0x44] sm:$0xff]
  %v34 = vld [vmem:[%s0 + $0x4c] sm:$0xf]
  %v35 = vld [vmem:[%s0 + $0x50] sm:$0xff]
  %v36 = vld [vmem:[%s0 + $0x58] sm:$0xff]
  %v37 = vld [vmem:[%s0 + $0x60] sm:$0xf]
  %v38 = vld [vmem:[%s0 + $0x64] sm:$0xff]
  %v39 = vld [vmem:[%s0 + $0x6c] sm:$0xff]
  %v40 = vld [vmem:[%s0 + $0x74] sm:$0xf]
  %v41 = vld [vmem:[%s0 + $0x78] sm:$0xff]
  %v42 = vld [vmem:[%s0 + $0x80] sm:$0xff]
  %v43 = vld [vmem:[%s0 + $0x88] sm:$0xf]
  %v44 = vld [vmem:[%s0 + $0x8c] sm:$0xff]
  %v45 = vld [vmem:[%s0 + $0x94] sm:$0xff]
  %v46 = vld [vmem:[%s0 + $0x9c] sm:$0xf]
  %v47 = vld [vmem:[%s0 + $0xa0] sm:$0xff]
  %v48 = vld [vmem:[%s0 + $0xa8] sm:$0xff]
  %v49 = vld [vmem:[%s0 + $0xb0] sm:$0xf]
  %v50 = vld [vmem:[%s0 + $0xb4] sm:$0xff]
  %v51 = vld [vmem:[%s0 + $0xbc] sm:$0xff]
  %v52 = vld [vmem:[%s0 + $0xc4] sm:$0xf]
  %v53 = vld [vmem:[%s0 + $0xc8] sm:$0xff]
  %v54 = vld [vmem:[%s0 + $0xd0] sm:$0xff]
  %v55 = vld [vmem:[%s0 + $0xd8] sm:$0xf]
  %v56 = vld [vmem:[%s0 + $0xdc] sm:$0xff]
  %v57 = vld [vmem:[%s0 + $0xe4] sm:$0xff]
  %v58 = vld [vmem:[%s0 + $0xec] sm:$0xf]
  %v59 = vld [vmem:[%s0 + $0xf0] sm:$0x11]
  %v60 = vld [vmem:[%s0 + $0xf8] sm:$0x11]
  %v61 = vld [vmem:[%s0 + $0x100] sm:$0x1]
  %v62 = vld [vmem:[%s1] sm:$0xf]
  %v63 = vld [vmem:[%s1 + $0x4] sm:$0xf]
  %v64 = vld [vmem:[%s1 + $0x8] sm:$0xf]
  %v65 = vld [vmem:[%s1 + $0xc] sm:$0xf]
  %v66 = vld [vmem:[%s1 + $0x10] sm:$0xf]
  %v67 = vld [vmem:[%s1 + $0x14] sm:$0xf]
  %v68 = vld [vmem:[%s1 + $0x18] sm:$0xf]
  %v69 = vld [vmem:[%s1 + $0x1c] sm:$0xf]
  %v70 = vld [vmem:[%s1 + $0x20] sm:$0xf]
  %v71 = vld [vmem:[%s1 + $0x24] sm:$0xf]
  %v72 = vld [vmem:[%s1 + $0x28] sm:$0xf]
  %v73 = vld [vmem:[%s1 + $0x2c] sm:$0xf]
  %v74 = vld [vmem:[%s1 + $0x30] sm:$0xf]
  %v75 = vld [vmem:[%s1 + $0x34] sm:$0xf]
  %v76 = vld [vmem:[%s1 + $0x38] sm:$0xf]
  %v77 = vld [vmem:[%s1 + $0x3c] sm:$0xf]
  %v78 = vld [vmem:[%s1 + $0x40] sm:$0xf]
  %v79 = vld [vmem:[%s1 + $0x44] sm:$0xf]
  %v80 = vld [vmem:[%s1 + $0x48] sm:$0xf]
  %v81 = vld [vmem:[%s1 + $0x4c] sm:$0xf]
  %v82 = vld [vmem:[%s1 + $0x50] sm:$0xf]
  %v83 = vld [vmem:[%s1 + $0x54] sm:$0xf]
  %v84 = vld [vmem:[%s1 + $0x58] sm:$0xf]
  %v85 = vld [vmem:[%s1 + $0x5c] sm:$0xf]
  %v86 = vld [vmem:[%s1 + $0x60] sm:$0xf]
  %v87 = vld [vmem:[%s1 + $0x64] sm:$0xf]
  %v88 = vld [vmem:[%s1 + $0x68] sm:$0xf]
  %v89 = vld [vmem:[%s1 + $0x6c] sm:$0xf]
  %v90 = vld [vmem:[%s1 + $0x70] sm:$0xf]
  %v91 = vld [vmem:[%s1 + $0x74] sm:$0xf]
  %v92 = vld [vmem:[%s1 + $0x78] sm:$0xf]
  %v93 = vld [vmem:[%s1 + $0x7c] sm:$0xf]
  %v94 = vld [vmem:[%s1 + $0x80] sm:$0xf]
  %v95 = vld [vmem:[%s1 + $0x84] sm:$0xf]
  %v96 = vld [vmem:[%s1 + $0x88] sm:$0xf]
  %v97 = vld [vmem:[%s1 + $0x8c] sm:$0xf]
  %v98 = vld [vmem:[%s1 + $0x90] sm:$0xf]
  %v99 = vld [vmem:[%s1 + $0x94] sm:$0xf]
  %v100 = vld [vmem:[%s1 + $0x98] sm:$0xf]
  %v101 = vld [vmem:[%s1 + $0x9c] sm:$0xf]
  %v102 = vld [vmem:[%s1 + $0xa0] sm:$0xf]
  %v103 = vld [vmem:[%s1 + $0xa4] sm:$0xf]
  %v104 = vld [vmem:[%s1 + $0xa8] sm:$0xf]
  %v105 = vld [vmem:[%s1 + $0xac] sm:$0xf]
  %v106 = vld [vmem:[%s1 + $0xb0] sm:$0xf]
  %v107 = vld [vmem:[%s1 + $0xb4] sm:$0xf]
  %v108 = vld [vmem:[%s1 + $0xb8] sm:$0xf]
  %v109 = vld [vmem:[%s1 + $0xbc] sm:$0xf]
  %v110 = vld [vmem:[%s1 + $0xc0] sm:$0xf]
  %v111 = vld [vmem:[%s1 + $0xc4] sm:$0xf]
  %v112 = vld [vmem:[%s1 + $0xc8] sm:$0xf]
  %v113 = vld [vmem:[%s1 + $0xcc] sm:$0xf]
  %v114 = vld [vmem:[%s1 + $0xd0] sm:$0xf]
  %v115 = vld [vmem:[%s1 + $0xd4] sm:$0xf]
  %v116 = vld [vmem:[%s1 + $0xd8] sm:$0xf]
  %v117 = vld [vmem:[%s1 + $0xdc] sm:$0xf]
  %v118 = vld [vmem:[%s1 + $0xe0] sm:$0xf]
  %v119 = vld [vmem:[%s1 + $0xe4] sm:$0xf]
  %v120 = vld [vmem:[%s1 + $0xe8] sm:$0xf]
  %v121 = vld [vmem:[%s1 + $0xec] sm:$0xf]
  %v122 = vld [vmem:[%s1 + $0xf0] sm:$0xf]
  %v123 = vld [vmem:[%s1 + $0xf4] sm:$0xf]
  %v124 = vld [vmem:[%s1 + $0xf8] sm:$0xf]
  %v125 = vld [vmem:[%s1 + $0xfc] sm:$0xf]
  %v126 = vld [vmem:[%s1 + $0x100] sm:$0xf]
  %v127 = vld [vmem:[%s1 + $0x104] sm:$0xf]
  %v128 = vld [vmem:[%s1 + $0x108] sm:$0xf]
  %v129 = vld [vmem:[%s1 + $0x10c] sm:$0xf]
  %v130 = vld [vmem:[%s1 + $0x110] sm:$0xf]
  %v131 = vld [vmem:[%s1 + $0x114] sm:$0xf]
  %v132 = vld [vmem:[%s1 + $0x118] sm:$0xf]
  %v133 = vld [vmem:[%s1 + $0x11c] sm:$0xf]
  %v173 = vunpack.c.l.b16 %v23
  %v174 = vunpack.c.h.b16 %v23
  %v175 = vunpack.c.l.b16 %v24
  %v176 = vunpack.c.h.b16 %v24
  %v177 = vunpack.c.l.b16 %v25
  %v178 = vunpack.c.l.b16 %v26
  %v179 = vunpack.c.h.b16 %v26
  %v180 = vunpack.c.l.b16 %v27
  %v181 = vunpack.c.h.b16 %v27
  %v182 = vunpack.c.l.b16 %v28
  %v183 = vunpack.c.l.b16 %v29
  %v184 = vunpack.c.h.b16 %v29
  %v185 = vunpack.c.l.b16 %v30
  %v186 = vunpack.c.h.b16 %v30
  %v187 = vunpack.c.l.b16 %v31
  %v188 = vunpack.c.l.b16 %v32
  %v189 = vunpack.c.h.b16 %v32
  %v190 = vunpack.c.l.b16 %v33
  %v191 = vunpack.c.h.b16 %v33
  %v192 = vunpack.c.l.b16 %v34
  %v193 = vunpack.c.l.b16 %v35
  %v194 = vunpack.c.h.b16 %v35
  %v195 = vunpack.c.l.b16 %v36
  %v196 = vunpack.c.h.b16 %v36
  %v197 = vunpack.c.l.b16 %v37
  %v198 = vunpack.c.l.b16 %v38
  %v199 = vunpack.c.h.b16 %v38
  %v200 = vunpack.c.l.b16 %v39
  %v201 = vunpack.c.h.b16 %v39
  %v202 = vunpack.c.l.b16 %v40
  %v203 = vunpack.c.l.b16 %v41
  %v204 = vunpack.c.h.b16 %v41
  %v205 = vunpack.c.l.b16 %v42
  %v206 = vunpack.c.h.b16 %v42
  %v207 = vunpack.c.l.b16 %v43
  %v208 = vunpack.c.l.b16 %v44
  %v209 = vunpack.c.h.b16 %v44
  %v210 = vunpack.c.l.b16 %v45
  %v211 = vunpack.c.h.b16 %v45
  %v212 = vunpack.c.l.b16 %v46
  %v213 = vunpack.c.l.b16 %v47
  %v214 = vunpack.c.h.b16 %v47
  %v215 = vunpack.c.l.b16 %v48
  %v216 = vunpack.c.h.b16 %v48
  %v217 = vunpack.c.l.b16 %v49
  %v218 = vunpack.c.l.b16 %v50
  %v219 = vunpack.c.h.b16 %v50
  %v220 = vunpack.c.l.b16 %v51
  %v221 = vunpack.c.h.b16 %v51
  %v222 = vunpack.c.l.b16 %v52
  %v223 = vunpack.c.l.b16 %v53
  %v224 = vunpack.c.h.b16 %v53
  %v225 = vunpack.c.l.b16 %v54
  %v226 = vunpack.c.h.b16 %v54
  %v227 = vunpack.c.l.b16 %v55
  %v228 = vunpack.c.l.b16 %v56
  %v229 = vunpack.c.h.b16 %v56
  %v230 = vunpack.c.l.b16 %v57
  %v231 = vunpack.c.h.b16 %v57
  %v232 = vunpack.c.l.b16 %v58
  %v233 = vunpack.c.l.b16 %v59
  %v234 = vunpack.c.h.b16 %v59
  %v235 = vunpack.c.l.b16 %v60
  %v236 = vunpack.c.h.b16 %v60
  %v237 = vunpack.c.l.b16 %v61
  %v238 = vpack.c.b16 %v178, %v173
  %v239 = vpack.c.b16 %v179, %v174
  %v240 = vpack.c.b16 %v180, %v175
  %v241 = vpack.c.b16 %v181, %v176
  %v242 = vpack.c.b16 %v182, %v177
  %v243 = vpack.c.b16 %v188, %v183
  %v244 = vpack.c.b16 %v189, %v184
  %v245 = vpack.c.b16 %v190, %v185
  %v246 = vpack.c.b16 %v191, %v186
  %v247 = vpack.c.b16 %v192, %v187
  %v248 = vpack.c.b16 %v198, %v193
  %v249 = vpack.c.b16 %v199, %v194
  %v250 = vpack.c.b16 %v200, %v195
  %v251 = vpack.c.b16 %v201, %v196
  %v252 = vpack.c.b16 %v202, %v197
  %v253 = vpack.c.b16 %v208, %v203
  %v254 = vpack.c.b16 %v209, %v204
  %v255 = vpack.c.b16 %v210, %v205
  %v256 = vpack.c.b16 %v211, %v206
  %v257 = vpack.c.b16 %v212, %v207
  %v258 = vpack.c.b16 %v218, %v213
  %v259 = vpack.c.b16 %v219, %v214
  %v260 = vpack.c.b16 %v220, %v215
  %v261 = vpack.c.b16 %v221, %v216
  %v262 = vpack.c.b16 %v222, %v217
  %v263 = vpack.c.b16 %v228, %v223
  %v264 = vpack.c.b16 %v229, %v224
  %v265 = vpack.c.b16 %v230, %v225
  %v266 = vpack.c.b16 %v231, %v226
  %v267 = vpack.c.b16 %v232, %v227
  %v268 = vpack.c.b16 %v233, %v233
  %v269 = vpack.c.b16 %v234, %v234
  %v270 = vpack.c.b16 %v235, %v235
  %v271 = vpack.c.b16 %v236, %v236
  %v272 = vpack.c.b16 %v237, %v237
  %v373 = vunpack.c.l.b16 %v62
  %v374 = vunpack.c.l.b16 %v63
  %v375 = vunpack.c.l.b16 %v64
  %v376 = vunpack.c.l.b16 %v65
  %v377 = vunpack.c.l.b16 %v66
  %v378 = vunpack.c.l.b16 %v67
  %v379 = vunpack.c.l.b16 %v68
  %v380 = vunpack.c.l.b16 %v69
  %v381 = vunpack.c.l.b16 %v70
  %v382 = vunpack.c.l.b16 %v71
  %v383 = vunpack.c.l.b16 %v72
  %v384 = vunpack.c.l.b16 %v73
  %v385 = vunpack.c.l.b16 %v74
  %v386 = vunpack.c.l.b16 %v75
  %v387 = vunpack.c.l.b16 %v76
  %v388 = vunpack.c.l.b16 %v77
  %v389 = vunpack.c.l.b16 %v78
  %v390 = vunpack.c.l.b16 %v79
  %v391 = vunpack.c.l.b16 %v80
  %v392 = vunpack.c.l.b16 %v81
  %v393 = vunpack.c.l.b16 %v82
  %v394 = vunpack.c.l.b16 %v83
  %v395 = vunpack.c.l.b16 %v84
  %v396 = vunpack.c.l.b16 %v85
  %v397 = vunpack.c.l.b16 %v86
  %v398 = vunpack.c.l.b16 %v87
  %v399 = vunpack.c.l.b16 %v88
  %v400 = vunpack.c.l.b16 %v89
  %v401 = vunpack.c.l.b16 %v90
  %v402 = vunpack.c.l.b16 %v91
  %v403 = vunpack.c.l.b16 %v92
  %v404 = vunpack.c.l.b16 %v93
  %v405 = vunpack.c.l.b16 %v94
  %v406 = vunpack.c.l.b16 %v95
  %v407 = vunpack.c.l.b16 %v96
  %v408 = vunpack.c.l.b16 %v97
  %v409 = vunpack.c.l.b16 %v98
  %v410 = vunpack.c.l.b16 %v99
  %v411 = vunpack.c.l.b16 %v100
  %v412 = vunpack.c.l.b16 %v101
  %v413 = vunpack.c.l.b16 %v102
  %v414 = vunpack.c.l.b16 %v103
  %v415 = vunpack.c.l.b16 %v104
  %v416 = vunpack.c.l.b16 %v105
  %v417 = vunpack.c.l.b16 %v106
  %v418 = vunpack.c.l.b16 %v107
  %v419 = vunpack.c.l.b16 %v108
  %v420 = vunpack.c.l.b16 %v109
  %v421 = vunpack.c.l.b16 %v110
  %v422 = vunpack.c.l.b16 %v111
  %v423 = vunpack.c.l.b16 %v112
  %v424 = vunpack.c.l.b16 %v113
  %v425 = vunpack.c.l.b16 %v114
  %v426 = vunpack.c.l.b16 %v115
  %v427 = vunpack.c.l.b16 %v116
  %v428 = vunpack.c.l.b16 %v117
  %v429 = vunpack.c.l.b16 %v118
  %v430 = vunpack.c.l.b16 %v119
  %v431 = vunpack.c.l.b16 %v120
  %v432 = vunpack.c.l.b16 %v121
  %v433 = vunpack.c.l.b16 %v122
  %v434 = vunpack.c.l.b16 %v123
  %v435 = vunpack.c.l.b16 %v124
  %v436 = vunpack.c.l.b16 %v125
  %v437 = vunpack.c.l.b16 %v126
  %v438 = vunpack.c.l.b16 %v127
  %v439 = vunpack.c.l.b16 %v128
  %v440 = vunpack.c.l.b16 %v129
  %v441 = vunpack.c.l.b16 %v130
  %v442 = vunpack.c.l.b16 %v131
  %v443 = vunpack.c.l.b16 %v132
  %v444 = vunpack.c.l.b16 %v133
  %v445 = vpack.c.b16 %v374, %v373
  %v446 = vpack.c.b16 %v376, %v375
  %v447 = vpack.c.b16 %v378, %v377
  %v448 = vpack.c.b16 %v380, %v379
  %v449 = vpack.c.b16 %v382, %v381
  %v450 = vpack.c.b16 %v384, %v383
  %v451 = vpack.c.b16 %v386, %v385
  %v452 = vpack.c.b16 %v388, %v387
  %v453 = vpack.c.b16 %v390, %v389
  %v454 = vpack.c.b16 %v392, %v391
  %v455 = vpack.c.b16 %v394, %v393
  %v456 = vpack.c.b16 %v396, %v395
  %v457 = vpack.c.b16 %v398, %v397
  %v458 = vpack.c.b16 %v400, %v399
  %v459 = vpack.c.b16 %v402, %v401
  %v460 = vpack.c.b16 %v404, %v403
  %v461 = vpack.c.b16 %v406, %v405
  %v462 = vpack.c.b16 %v408, %v407
  %v463 = vpack.c.b16 %v410, %v409
  %v464 = vpack.c.b16 %v412, %v411
  %v465 = vpack.c.b16 %v414, %v413
  %v466 = vpack.c.b16 %v416, %v415
  %v467 = vpack.c.b16 %v418, %v417
  %v468 = vpack.c.b16 %v420, %v419
  %v469 = vpack.c.b16 %v422, %v421
  %v470 = vpack.c.b16 %v424, %v423
  %v471 = vpack.c.b16 %v426, %v425
  %v472 = vpack.c.b16 %v428, %v427
  %v473 = vpack.c.b16 %v430, %v429
  %v474 = vpack.c.b16 %v432, %v431
  %v475 = vpack.c.b16 %v434, %v433
  %v476 = vpack.c.b16 %v436, %v435
  %v477 = vpack.c.b16 %v438, %v437
  %v478 = vpack.c.b16 %v440, %v439
  %v479 = vpack.c.b16 %v442, %v441
  %v480 = vpack.c.b16 %v444, %v443
  %vm517 = vcmask 523264
  %v519 = vsel %vm517, %v242, 0
  %v522 = vsel %vm517, %v247, 0
  %v525 = vsel %vm517, %v252, 0
  %v528 = vsel %vm517, %v257, 0
  %v531 = vsel %vm517, %v262, 0
  %v534 = vsel %vm517, %v267, 0
  %v537 = vsel %vm517, %v272, 0
  %539 = vmatprep.subr.bf16.mxu0 0
  %540 = vmatpush1.bf16.msra.mxu0 %v445
  %541 = vmatprep.subr.bf16.mxu0 0
  %542 = vmatpush1.bf16.msra.mxu0 %v446
  %543 = vmatprep.subr.bf16.mxu0 0
  %544 = vmatpush1.bf16.msra.mxu0 %v447
  %545 = vmatprep.subr.bf16.mxu0 0
  %546 = vmatpush1.bf16.msra.mxu0 %v448
  %547 = vmatprep.subr.bf16.mxu0 0
  %548 = vmatpush1.bf16.msra.mxu0 %v449
  %549 = vmatprep.subr.bf16.mxu0 0
  %550 = vmatpush1.bf16.msra.mxu0 %v450
  %551 = vmatprep.subr.bf16.mxu0 0
  %552 = vmatpush1.bf16.msra.mxu0 %v451
  %553 = vmatprep.subr.bf16.mxu0 0
  %554 = vmatpush1.bf16.msra.mxu0 %v452
  %555 = vmatprep.subr.bf16.mxu0 0
  %556 = vmatpush1.bf16.msra.mxu0 %v453
  %557 = vmatprep.subr.bf16.mxu0 0
  %558 = vmatpush1.bf16.msra.mxu0 %v454
  %559 = vmatprep.subr.bf16.mxu0 0
  %560 = vmatpush1.bf16.msra.mxu0 %v455
  %561 = vmatprep.subr.bf16.mxu0 0
  %562 = vmatpush1.bf16.msra.mxu0 %v456
  %563 = vmatprep.subr.bf16.mxu0 0
  %564 = vmatpush1.bf16.msra.mxu0 %v457
  %565 = vmatprep.subr.bf16.mxu0 0
  %566 = vmatpush1.bf16.msra.mxu0 %v458
  %567 = vmatprep.subr.bf16.mxu0 0
  %568 = vmatpush1.bf16.msra.mxu0 %v459
  %569 = vmatprep.subr.bf16.mxu0 0
  %570 = vmatpush1.bf16.msra.mxu0 %v460
  %571 = vmatprep.mubr.bf16.mxu0 %v239
  %572 = vmatmul.mubr.bf16.gmra.mrb[0].mxu0 %v238
  %v573 = vpop.f32.mrb[0].mxu0
  %v574 = vadd.f32 0.0, %v573
  %v575 = vpop.f32.mrb[0].mxu0
  %v576 = vpop.f32.mrb[0].mxu0
  %v577 = vadd.f32 0.0, %v576
  %v578 = vpop.f32.mrb[0].mxu0
  %579 = vmatprep.mubr.bf16.mxu0 %v244
  %580 = vmatmul.mubr.bf16.gmra.mrb[0].mxu0 %v243
  %v581 = vpop.f32.mrb[0].mxu0
  %v582 = vadd.f32 0.0, %v581
  %v583 = vpop.f32.mrb[0].mxu0
  %v584 = vpop.f32.mrb[0].mxu0
  %v585 = vadd.f32 0.0, %v584
  %v586 = vpop.f32.mrb[0].mxu0
  %587 = vmatprep.mubr.bf16.mxu0 %v249
  %588 = vmatmul.mubr.bf16.gmra.mrb[0].mxu0 %v248
  %v589 = vpop.f32.mrb[0].mxu0
  %v590 = vadd.f32 0.0, %v589
  %v591 = vpop.f32.mrb[0].mxu0
  %v592 = vpop.f32.mrb[0].mxu0
  %v593 = vadd.f32 0.0, %v592
  %v594 = vpop.f32.mrb[0].mxu0
  %595 = vmatprep.mubr.bf16.mxu0 %v254
  %596 = vmatmul.mubr.bf16.gmra.mrb[0].mxu0 %v253
  %v597 = vpop.f32.mrb[0].mxu0
  %v598 = vadd.f32 0.0, %v597
  %v599 = vpop.f32.mrb[0].mxu0
  %v600 = vpop.f32.mrb[0].mxu0
  %v601 = vadd.f32 0.0, %v600
  %v602 = vpop.f32.mrb[0].mxu0
  %603 = vmatprep.mubr.bf16.mxu0 %v259
  %604 = vmatmul.mubr.bf16.gmra.mrb[0].mxu0 %v258
  %v605 = vpop.f32.mrb[0].mxu0
  %v606 = vadd.f32 0.0, %v605
  %v607 = vpop.f32.mrb[0].mxu0
  %v608 = vpop.f32.mrb[0].mxu0
  %v609 = vadd.f32 0.0, %v608
  %v610 = vpop.f32.mrb[0].mxu0
  %611 = vmatprep.mubr.bf16.mxu0 %v264
  %612 = vmatmul.mubr.bf16.gmra.mrb[0].mxu0 %v263
  %v613 = vpop.f32.mrb[0].mxu0
  %v614 = vadd.f32 0.0, %v613
  %v615 = vpop.f32.mrb[0].mxu0
  %v616 = vpop.f32.mrb[0].mxu0
  %v617 = vadd.f32 0.0, %v616
  %v618 = vpop.f32.mrb[0].mxu0
  %619 = vmatprep.mubr.bf16.mxu0 %v269
  %620 = vmatmul.mubr.bf16.gmra.mrb[0].mxu0 %v268
  %v621 = vpop.f32.mrb[0].mxu0
  %v622 = vadd.f32 0.0, %v621
  %v623 = vpop.f32.mrb[0].mxu0
  %v624 = vpop.f32.mrb[0].mxu0
  %v625 = vpop.f32.mrb[0].mxu0
  %626 = vdwg.mxu0
  %627 = vmatprep.subr.bf16.mxu0 0
  %628 = vmatpush1.bf16.msra.mxu0 %v461
  %629 = vmatprep.subr.bf16.mxu0 0
  %630 = vmatpush1.bf16.msra.mxu0 %v462
  %631 = vmatprep.subr.bf16.mxu0 0
  %632 = vmatpush1.bf16.msra.mxu0 %v463
  %633 = vmatprep.subr.bf16.mxu0 0
  %634 = vmatpush1.bf16.msra.mxu0 %v464
  %635 = vmatprep.subr.bf16.mxu0 0
  %636 = vmatpush1.bf16.msra.mxu0 %v465
  %637 = vmatprep.subr.bf16.mxu0 0
  %638 = vmatpush1.bf16.msra.mxu0 %v466
  %639 = vmatprep.subr.bf16.mxu0 0
  %640 = vmatpush1.bf16.msra.mxu0 %v467
  %641 = vmatprep.subr.bf16.mxu0 0
  %642 = vmatpush1.bf16.msra.mxu0 %v468
  %643 = vmatprep.subr.bf16.mxu0 0
  %644 = vmatpush1.bf16.msra.mxu0 %v469
  %645 = vmatprep.subr.bf16.mxu0 0
  %646 = vmatpush1.bf16.msra.mxu0 %v470
  %647 = vmatprep.subr.bf16.mxu0 0
  %648 = vmatpush1.bf16.msra.mxu0 %v471
  %649 = vmatprep.subr.bf16.mxu0 0
  %650 = vmatpush1.bf16.msra.mxu0 %v472
  %651 = vmatprep.subr.bf16.mxu0 0
  %652 = vmatpush1.bf16.msra.mxu0 %v473
  %653 = vmatprep.subr.bf16.mxu0 0
  %654 = vmatpush1.bf16.msra.mxu0 %v474
  %655 = vmatprep.subr.bf16.mxu0 0
  %656 = vmatpush1.bf16.msra.mxu0 %v475
  %657 = vmatprep.subr.bf16.mxu0 0
  %658 = vmatpush1.bf16.msra.mxu0 %v476
  %659 = vmatprep.mubr.bf16.mxu0 %v241
  %660 = vmatmul.mubr.bf16.gmra.mrb[0].mxu0 %v240
  %v661 = vpop.f32.mrb[0].mxu0
  %v662 = vadd.f32 %v574, %v661
  %v663 = vpop.f32.mrb[0].mxu0
  %v664 = vpop.f32.mrb[0].mxu0
  %v665 = vadd.f32 %v577, %v664
  %v666 = vpop.f32.mrb[0].mxu0
  %667 = vmatprep.mubr.bf16.mxu0 %v246
  %668 = vmatmul.mubr.bf16.gmra.mrb[0].mxu0 %v245
  %v669 = vpop.f32.mrb[0].mxu0
  %v670 = vadd.f32 %v582, %v669
  %v671 = vpop.f32.mrb[0].mxu0
  %v672 = vpop.f32.mrb[0].mxu0
  %v673 = vadd.f32 %v585, %v672
  %v674 = vpop.f32.mrb[0].mxu0
  %675 = vmatprep.mubr.bf16.mxu0 %v251
  %676 = vmatmul.mubr.bf16.gmra.mrb[0].mxu0 %v250
  %v677 = vpop.f32.mrb[0].mxu0
  %v678 = vadd.f32 %v590, %v677
  %v679 = vpop.f32.mrb[0].mxu0
  %v680 = vpop.f32.mrb[0].mxu0
  %v681 = vadd.f32 %v593, %v680
  %v682 = vpop.f32.mrb[0].mxu0
  %683 = vmatprep.mubr.bf16.mxu0 %v256
  %684 = vmatmul.mubr.bf16.gmra.mrb[0].mxu0 %v255
  %v685 = vpop.f32.mrb[0].mxu0
  %v686 = vadd.f32 %v598, %v685
  %v687 = vpop.f32.mrb[0].mxu0
  %v688 = vpop.f32.mrb[0].mxu0
  %v689 = vadd.f32 %v601, %v688
  %v690 = vpop.f32.mrb[0].mxu0
  %691 = vmatprep.mubr.bf16.mxu0 %v261
  %692 = vmatmul.mubr.bf16.gmra.mrb[0].mxu0 %v260
  %v693 = vpop.f32.mrb[0].mxu0
  %v694 = vadd.f32 %v606, %v693
  %v695 = vpop.f32.mrb[0].mxu0
  %v696 = vpop.f32.mrb[0].mxu0
  %v697 = vadd.f32 %v609, %v696
  %v698 = vpop.f32.mrb[0].mxu0
  %699 = vmatprep.mubr.bf16.mxu0 %v266
  %700 = vmatmul.mubr.bf16.gmra.mrb[0].mxu0 %v265
  %v701 = vpop.f32.mrb[0].mxu0
  %v702 = vadd.f32 %v614, %v701
  %v703 = vpop.f32.mrb[0].mxu0
  %v704 = vpop.f32.mrb[0].mxu0
  %v705 = vadd.f32 %v617, %v704
  %v706 = vpop.f32.mrb[0].mxu0
  %707 = vmatprep.mubr.bf16.mxu0 %v271
  %708 = vmatmul.mubr.bf16.gmra.mrb[0].mxu0 %v270
  %v709 = vpop.f32.mrb[0].mxu0
  %v710 = vadd.f32 %v622, %v709
  %v711 = vpop.f32.mrb[0].mxu0
  %v712 = vpop.f32.mrb[0].mxu0
  %v713 = vpop.f32.mrb[0].mxu0
  %714 = vdwg.mxu0
  %715 = vmatprep.subr.bf16.mxu0 0
  %716 = vmatpush1.bf16.msra.mxu0 %v477
  %717 = vmatprep.subr.bf16.mxu0 0
  %718 = vmatpush1.bf16.msra.mxu0 %v478
  %719 = vmatprep.subr.bf16.mxu0 0
  %720 = vmatpush1.bf16.msra.mxu0 %v479
  %721 = vmatprep.subr.bf16.mxu0 0
  %722 = vmatpush1.bf16.msra.mxu0 %v480
  %723 = vmatprep.subr.bf16.mxu0 0
  %724 = vmatpush1.bf16.msra.mxu0 0
  %725 = vmatprep.subr.bf16.mxu0 0
  %726 = vmatpush1.bf16.msra.mxu0 0
  %727 = vmatprep.subr.bf16.mxu0 0
  %728 = vmatpush1.bf16.msra.mxu0 0
  %729 = vmatprep.subr.bf16.mxu0 0
  %730 = vmatpush1.bf16.msra.mxu0 0
  %731 = vmatprep.subr.bf16.mxu0 0
  %732 = vmatpush1.bf16.msra.mxu0 0
  %733 = vmatprep.subr.bf16.mxu0 0
  %734 = vmatpush1.bf16.msra.mxu0 0
  %735 = vmatprep.subr.bf16.mxu0 0
  %736 = vmatpush1.bf16.msra.mxu0 0
  %737 = vmatprep.subr.bf16.mxu0 0
  %738 = vmatpush1.bf16.msra.mxu0 0
  %739 = vmatprep.subr.bf16.mxu0 0
  %740 = vmatpush1.bf16.msra.mxu0 0
  %741 = vmatprep.subr.bf16.mxu0 0
  %742 = vmatpush1.bf16.msra.mxu0 0
  %743 = vmatprep.subr.bf16.mxu0 0
  %744 = vmatpush1.bf16.msra.mxu0 0
  %745 = vmatprep.subr.bf16.mxu0 0
  %746 = vmatpush1.bf16.msra.mxu0 0
  %747 = vmatprep.mubr.bf16.mxu0 0
  %748 = vmatmul.mubr.bf16.gmra.mrb[0].mxu0 %v519
  %v749 = vpop.f32.mrb[0].mxu0
  %v750 = vadd.f32 %v662, %v749
  %v751 = vpop.f32.mrb[0].mxu0
  %v752 = vpop.f32.mrb[0].mxu0
  %v753 = vadd.f32 %v665, %v752
  %v754 = vpop.f32.mrb[0].mxu0
  %755 = vmatprep.mubr.bf16.mxu0 0
  %756 = vmatmul.mubr.bf16.gmra.mrb[0].mxu0 %v522
  %v757 = vpop.f32.mrb[0].mxu0
  %v758 = vadd.f32 %v670, %v757
  %v759 = vpop.f32.mrb[0].mxu0
  %v760 = vpop.f32.mrb[0].mxu0
  %v761 = vadd.f32 %v673, %v760
  %v762 = vpop.f32.mrb[0].mxu0
  %763 = vmatprep.mubr.bf16.mxu0 0
  %764 = vmatmul.mubr.bf16.gmra.mrb[0].mxu0 %v525
  %v765 = vpop.f32.mrb[0].mxu0
  %v766 = vadd.f32 %v678, %v765
  %v767 = vpop.f32.mrb[0].mxu0
  %v768 = vpop.f32.mrb[0].mxu0
  %v769 = vadd.f32 %v681, %v768
  %v770 = vpop.f32.mrb[0].mxu0
  %771 = vmatprep.mubr.bf16.mxu0 0
  %772 = vmatmul.mubr.bf16.gmra.mrb[0].mxu0 %v528
  %v773 = vpop.f32.mrb[0].mxu0
  %v774 = vadd.f32 %v686, %v773
  %v775 = vpop.f32.mrb[0].mxu0
  %v776 = vpop.f32.mrb[0].mxu0
  %v777 = vadd.f32 %v689, %v776
  %v778 = vpop.f32.mrb[0].mxu0
  %779 = vmatprep.mubr.bf16.mxu0 0
  %780 = vmatmul.mubr.bf16.gmra.mrb[0].mxu0 %v531
  %v781 = vpop.f32.mrb[0].mxu0
  %v782 = vadd.f32 %v694, %v781
  %v783 = vpop.f32.mrb[0].mxu0
  %v784 = vpop.f32.mrb[0].mxu0
  %v785 = vadd.f32 %v697, %v784
  %v786 = vpop.f32.mrb[0].mxu0
  %787 = vmatprep.mubr.bf16.mxu0 0
  %788 = vmatmul.mubr.bf16.gmra.mrb[0].mxu0 %v534
  %v789 = vpop.f32.mrb[0].mxu0
  %v790 = vadd.f32 %v702, %v789
  %v791 = vpop.f32.mrb[0].mxu0
  %v792 = vpop.f32.mrb[0].mxu0
  %v793 = vadd.f32 %v705, %v792
  %v794 = vpop.f32.mrb[0].mxu0
  %795 = vmatprep.mubr.bf16.mxu0 0
  %796 = vmatmul.mubr.bf16.gmra.mrb[0].mxu0 %v537
  %v797 = vpop.f32.mrb[0].mxu0
  %v798 = vadd.f32 %v710, %v797
  %v799 = vpop.f32.mrb[0].mxu0
  %v800 = vpop.f32.mrb[0].mxu0
  %v801 = vpop.f32.mrb[0].mxu0
  %802 = vdwg.mxu0
  %v803 = vld [vmem:[%s2] sm:$0x1]
  %v805 = vlaneseq
  %v806 = vshrl.u32 %v805, 7
  %v807 = vsub.s32 0, %v806
  %v808 = vrot.slane %v803, %v807
  %v810 = vmul.f32 %v750, %v808
  %v811 = vmul.f32 %v753, %v808
  %v812 = vmul.f32 %v758, %v808
  %v813 = vmul.f32 %v761, %v808
  %v814 = vmul.f32 %v766, %v808
  %v815 = vmul.f32 %v769, %v808
  %v816 = vmul.f32 %v774, %v808
  %v817 = vmul.f32 %v777, %v808
  %v818 = vmul.f32 %v782, %v808
  %v819 = vmul.f32 %v785, %v808
  %v820 = vmul.f32 %v790, %v808
  %v821 = vmul.f32 %v793, %v808
  %v822 = vmul.f32 %v798, %v808
  %v823 = vld [vmem:[%s3] sm:$0x1]
  %v825 = vlaneseq
  %v826 = vshrl.u32 %v825, 7
  %v827 = vsub.s32 0, %v826
  %v828 = vrot.slane %v823, %v827
  %v830 = vadd.f32 %v810, %v828
  %v831 = vadd.f32 %v811, %v828
  %v832 = vadd.f32 %v812, %v828
  %v833 = vadd.f32 %v813, %v828
  %v834 = vadd.f32 %v814, %v828
  %v835 = vadd.f32 %v815, %v828
  %v836 = vadd.f32 %v816, %v828
  %v837 = vadd.f32 %v817, %v828
  %v838 = vadd.f32 %v818, %v828
  %v839 = vadd.f32 %v819, %v828
  %v840 = vadd.f32 %v820, %v828
  %v841 = vadd.f32 %v821, %v828
  %v842 = vadd.f32 %v822, %v828
  %v843 = vmax.f32 %v830, 0.0
  %v844 = vmax.f32 %v831, 0.0
  %v845 = vmax.f32 %v832, 0.0
  %v846 = vmax.f32 %v833, 0.0
  %v847 = vmax.f32 %v834, 0.0
  %v848 = vmax.f32 %v835, 0.0
  %v849 = vmax.f32 %v836, 0.0
  %v850 = vmax.f32 %v837, 0.0
  %v851 = vmax.f32 %v838, 0.0
  %v852 = vmax.f32 %v839, 0.0
  %v853 = vmax.f32 %v840, 0.0
  %v854 = vmax.f32 %v841, 0.0
  %v855 = vmax.f32 %v842, 0.0
  %v856 = vpack.c.bf16 %v844, %v843
  %v857 = vpack.c.bf16 %v846, %v845
  %v858 = vpack.c.bf16 %v848, %v847
  %v859 = vpack.c.bf16 %v850, %v849
  %v860 = vpack.c.bf16 %v852, %v851
  %v861 = vpack.c.bf16 %v854, %v853
  %v862 = vpack.c.bf16 %v855, %v855
  %v870 = vunpack.c.l.b16 %v856
  %v871 = vunpack.c.h.b16 %v856
  %v872 = vunpack.c.l.b16 %v857
  %v873 = vunpack.c.h.b16 %v857
  %v874 = vunpack.c.l.b16 %v858
  %v875 = vunpack.c.h.b16 %v858
  %v876 = vunpack.c.l.b16 %v859
  %v877 = vunpack.c.h.b16 %v859
  %v878 = vunpack.c.l.b16 %v860
  %v879 = vunpack.c.h.b16 %v860
  %v880 = vunpack.c.l.b16 %v861
  %v881 = vunpack.c.h.b16 %v861
  %v882 = vunpack.c.l.b16 %v862
  %v883 = vpack.c.b16 %v870, %v870
  %v884 = vpack.c.b16 %v871, %v871
  %v885 = vpack.c.b16 %v872, %v872
  %v886 = vpack.c.b16 %v873, %v873
  %v887 = vpack.c.b16 %v874, %v874
  %v888 = vpack.c.b16 %v875, %v875
  %v889 = vpack.c.b16 %v876, %v876
  %v890 = vpack.c.b16 %v877, %v877
  %v891 = vpack.c.b16 %v878, %v878
  %v892 = vpack.c.b16 %v879, %v879
  %v893 = vpack.c.b16 %v880, %v880
  %v894 = vpack.c.b16 %v881, %v881
  %v895 = vpack.c.b16 %v882, %v882
  %vm909 = vcmask 781312
  %910 = vst.msk [vmem:[%s5] sm:$0xf] %vm909, %v883
  %911 = vst.msk [vmem:[%s5 + $0x4] sm:$0xf] %vm909, %v884
  %912 = vst.msk [vmem:[%s5 + $0x8] sm:$0xf] %vm909, %v885
  %913 = vst.msk [vmem:[%s5 + $0xc] sm:$0xf] %vm909, %v886
  %914 = vst.msk [vmem:[%s5 + $0x10] sm:$0xf] %vm909, %v887
  %915 = vst.msk [vmem:[%s5 + $0x14] sm:$0xf] %vm909, %v888
  %916 = vst.msk [vmem:[%s5 + $0x18] sm:$0xf] %vm909, %v889
  %917 = vst.msk [vmem:[%s5 + $0x1c] sm:$0xf] %vm909, %v890
  %918 = vst.msk [vmem:[%s5 + $0x20] sm:$0xf] %vm909, %v891
  %919 = vst.msk [vmem:[%s5 + $0x24] sm:$0xf] %vm909, %v892
  %920 = vst.msk [vmem:[%s5 + $0x28] sm:$0xf] %vm909, %v893
  %921 = vst.msk [vmem:[%s5 + $0x2c] sm:$0xf] %vm909, %v894
  %vm922 = vcmask 778240
  %923 = vst.msk [vmem:[%s5 + $0x30] sm:$0x1] %vm922, %v895
  %v924 = vld [vmem:[%s4] sm:$0xf]
  %v925 = vld [vmem:[%s4 + $0x4] sm:$0xf]
  %v926 = vld [vmem:[%s4 + $0x8] sm:$0xf]
  %v927 = vld [vmem:[%s4 + $0xc] sm:$0xf]
  %v928 = vld [vmem:[%s4 + $0x10] sm:$0xf]
  %v929 = vld [vmem:[%s4 + $0x14] sm:$0xf]
  %v930 = vld [vmem:[%s4 + $0x18] sm:$0xf]
  %v931 = vld [vmem:[%s4 + $0x1c] sm:$0xf]
  %v932 = vld [vmem:[%s4 + $0x20] sm:$0xf]
  %v933 = vld [vmem:[%s4 + $0x24] sm:$0xf]
  %v934 = vld [vmem:[%s4 + $0x28] sm:$0xf]
  %v935 = vld [vmem:[%s4 + $0x2c] sm:$0xf]
  %v936 = vld [vmem:[%s4 + $0x30] sm:$0x1]
  %v937 = vld [vmem:[%s4 + $0x34] sm:$0xf]
  %v938 = vld [vmem:[%s4 + $0x38] sm:$0xf]
  %v939 = vld [vmem:[%s4 + $0x3c] sm:$0xf]
  %v940 = vld [vmem:[%s4 + $0x40] sm:$0xf]
  %v941 = vld [vmem:[%s4 + $0x44] sm:$0xf]
  %v942 = vld [vmem:[%s4 + $0x48] sm:$0xf]
  %v943 = vld [vmem:[%s4 + $0x4c] sm:$0xf]
  %v944 = vld [vmem:[%s4 + $0x50] sm:$0xf]
  %v945 = vld [vmem:[%s4 + $0x54] sm:$0xf]
  %v946 = vld [vmem:[%s4 + $0x58] sm:$0xf]
  %v947 = vld [vmem:[%s4 + $0x5c] sm:$0xf]
  %v948 = vld [vmem:[%s4 + $0x60] sm:$0xf]
  %v949 = vld [vmem:[%s4 + $0x64] sm:$0x1]
  %v950 = vld [vmem:[%s4 + $0x68] sm:$0xf]
  %v951 = vld [vmem:[%s4 + $0x6c] sm:$0xf]
  %v952 = vld [vmem:[%s4 + $0x70] sm:$0xf]
  %v953 = vld [vmem:[%s4 + $0x74] sm:$0xf]
  %v954 = vld [vmem:[%s4 + $0x78] sm:$0xf]
  %v955 = vld [vmem:[%s4 + $0x7c] sm:$0xf]
  %v956 = vld [vmem:[%s4 + $0x80] sm:$0xf]
  %v957 = vld [vmem:[%s4 + $0x84] sm:$0xf]
  %v958 = vld [vmem:[%s4 + $0x88] sm:$0xf]
  %v959 = vld [vmem:[%s4 + $0x8c] sm:$0xf]
  %v960 = vld [vmem:[%s4 + $0x90] sm:$0xf]
  %v961 = vld [vmem:[%s4 + $0x94] sm:$0xf]
  %v962 = vld [vmem:[%s4 + $0x98] sm:$0x1]
  %v963 = vld [vmem:[%s4 + $0x9c] sm:$0xf]
  %v964 = vld [vmem:[%s4 + $0xa0] sm:$0xf]
  %v965 = vld [vmem:[%s4 + $0xa4] sm:$0xf]
  %v966 = vld [vmem:[%s4 + $0xa8] sm:$0xf]
  %v967 = vld [vmem:[%s4 + $0xac] sm:$0xf]
  %v968 = vld [vmem:[%s4 + $0xb0] sm:$0xf]
  %v969 = vld [vmem:[%s4 + $0xb4] sm:$0xf]
  %v970 = vld [vmem:[%s4 + $0xb8] sm:$0xf]
  %v971 = vld [vmem:[%s4 + $0xbc] sm:$0xf]
  %v972 = vld [vmem:[%s4 + $0xc0] sm:$0xf]
  %v973 = vld [vmem:[%s4 + $0xc4] sm:$0xf]
  %v974 = vld [vmem:[%s4 + $0xc8] sm:$0xf]
  %v975 = vld [vmem:[%s4 + $0xcc] sm:$0x1]
  %v976 = vld [vmem:[%s4 + $0xd0] sm:$0xf]
  %v977 = vld [vmem:[%s4 + $0xd4] sm:$0xf]
  %v978 = vld [vmem:[%s4 + $0xd8] sm:$0xf]
  %v979 = vld [vmem:[%s4 + $0xdc] sm:$0xf]
  %v980 = vld [vmem:[%s4 + $0xe0] sm:$0xf]
  %v981 = vld [vmem:[%s4 + $0xe4] sm:$0xf]
  %v982 = vld [vmem:[%s4 + $0xe8] sm:$0xf]
  %v983 = vld [vmem:[%s4 + $0xec] sm:$0xf]
  %v984 = vld [vmem:[%s4 + $0xf0] sm:$0xf]
  %v985 = vld [vmem:[%s4 + $0xf4] sm:$0xf]
  %v986 = vld [vmem:[%s4 + $0xf8] sm:$0xf]
  %v987 = vld [vmem:[%s4 + $0xfc] sm:$0xf]
  %v988 = vld [vmem:[%s4 + $0x100] sm:$0x1]
  %v989 = vld [vmem:[%s4 + $0x104] sm:$0xf]
  %v990 = vld [vmem:[%s4 + $0x108] sm:$0xf]
  %v991 = vld [vmem:[%s4 + $0x10c] sm:$0xf]
  %v992 = vld [vmem:[%s4 + $0x110] sm:$0xf]
  %v993 = vld [vmem:[%s4 + $0x114] sm:$0xf]
  %v994 = vld [vmem:[%s4 + $0x118] sm:$0xf]
  %v995 = vld [vmem:[%s4 + $0x11c] sm:$0xf]
  %v996 = vld [vmem:[%s4 + $0x120] sm:$0xf]
  %v997 = vld [vmem:[%s4 + $0x124] sm:$0xf]
  %v998 = vld [vmem:[%s4 + $0x128] sm:$0xf]
  %v999 = vld [vmem:[%s4 + $0x12c] sm:$0xf]
  %v1000 = vld [vmem:[%s4 + $0x130] sm:$0xf]
  %v1001 = vld [vmem:[%s4 + $0x134] sm:$0x1]
  %v1002 = vld [vmem:[%s4 + $0x138] sm:$0xf]
  %v1003 = vld [vmem:[%s4 + $0x13c] sm:$0xf]
  %v1004 = vld [vmem:[%s4 + $0x140] sm:$0xf]
  %v1005 = vld [vmem:[%s4 + $0x144] sm:$0xf]
  %v1006 = vld [vmem:[%s4 + $0x148] sm:$0xf]
  %v1007 = vld [vmem:[%s4 + $0x14c] sm:$0xf]
  %v1008 = vld [vmem:[%s4 + $0x150] sm:$0xf]
  %v1009 = vld [vmem:[%s4 + $0x154] sm:$0xf]
  %v1010 = vld [vmem:[%s4 + $0x158] sm:$0xf]
  %v1011 = vld [vmem:[%s4 + $0x15c] sm:$0xf]
  %v1012 = vld [vmem:[%s4 + $0x160] sm:$0xf]
  %v1013 = vld [vmem:[%s4 + $0x164] sm:$0xf]
  %v1014 = vld [vmem:[%s4 + $0x168] sm:$0x1]
  %v1015 = vld [vmem:[%s4 + $0x16c] sm:$0xf]
  %v1016 = vld [vmem:[%s4 + $0x170] sm:$0xf]
  %v1017 = vld [vmem:[%s4 + $0x174] sm:$0xf]
  %v1018 = vld [vmem:[%s4 + $0x178] sm:$0xf]
  %v1019 = vld [vmem:[%s4 + $0x17c] sm:$0xf]
  %v1020 = vld [vmem:[%s4 + $0x180] sm:$0xf]
  %v1021 = vld [vmem:[%s4 + $0x184] sm:$0xf]
  %v1022 = vld [vmem:[%s4 + $0x188] sm:$0xf]
  %v1023 = vld [vmem:[%s4 + $0x18c] sm:$0xf]
  %v1024 = vld [vmem:[%s4 + $0x190] sm:$0xf]
  %v1025 = vld [vmem:[%s4 + $0x194] sm:$0xf]
  %v1026 = vld [vmem:[%s4 + $0x198] sm:$0xf]
  %v1027 = vld [vmem:[%s4 + $0x19c] sm:$0x1]
  %v1028 = vld [vmem:[%s4 + $0x1a0] sm:$0xf]
  %v1029 = vld [vmem:[%s4 + $0x1a4] sm:$0xf]
  %v1030 = vld [vmem:[%s4 + $0x1a8] sm:$0xf]
  %v1031 = vld [vmem:[%s4 + $0x1ac] sm:$0xf]
  %v1032 = vld [vmem:[%s4 + $0x1b0] sm:$0xf]
  %v1033 = vld [vmem:[%s4 + $0x1b4] sm:$0xf]
  %v1034 = vld [vmem:[%s4 + $0x1b8] sm:$0xf]
  %v1035 = vld [vmem:[%s4 + $0x1bc] sm:$0xf]
  %v1036 = vld [vmem:[%s4 + $0x1c0] sm:$0xf]
  %v1037 = vld [vmem:[%s4 + $0x1c4] sm:$0xf]
  %v1038 = vld [vmem:[%s4 + $0x1c8] sm:$0xf]
  %v1039 = vld [vmem:[%s4 + $0x1cc] sm:$0xf]
  %v1040 = vld [vmem:[%s4 + $0x1d0] sm:$0x1]
  %v1041 = vunpack.c.l.bf16 %v924
  %v1042 = vunpack.c.l.bf16 %v925
  %v1043 = vunpack.c.l.bf16 %v926
  %v1044 = vunpack.c.l.bf16 %v927
  %v1045 = vunpack.c.l.bf16 %v928
  %v1046 = vunpack.c.l.bf16 %v929
  %v1047 = vunpack.c.l.bf16 %v930
  %v1048 = vunpack.c.l.bf16 %v931
  %v1049 = vunpack.c.l.bf16 %v932
  %v1050 = vunpack.c.l.bf16 %v933
  %v1051 = vunpack.c.l.bf16 %v934
  %v1052 = vunpack.c.l.bf16 %v935
  %v1053 = vunpack.c.l.bf16 %v936
  %v1054 = vunpack.c.l.bf16 %v937
  %v1055 = vunpack.c.l.bf16 %v938
  %v1056 = vunpack.c.l.bf16 %v939
  %v1057 = vunpack.c.l.bf16 %v940
  %v1058 = vunpack.c.l.bf16 %v941
  %v1059 = vunpack.c.l.bf16 %v942
  %v1060 = vunpack.c.l.bf16 %v943
  %v1061 = vunpack.c.l.bf16 %v944
  %v1062 = vunpack.c.l.bf16 %v945
  %v1063 = vunpack.c.l.bf16 %v946
  %v1064 = vunpack.c.l.bf16 %v947
  %v1065 = vunpack.c.l.bf16 %v948
  %v1066 = vunpack.c.l.bf16 %v949
  %v1067 = vunpack.c.l.bf16 %v950
  %v1068 = vunpack.c.l.bf16 %v951
  %v1069 = vunpack.c.l.bf16 %v952
  %v1070 = vunpack.c.l.bf16 %v953
  %v1071 = vunpack.c.l.bf16 %v954
  %v1072 = vunpack.c.l.bf16 %v955
  %v1073 = vunpack.c.l.bf16 %v956
  %v1074 = vunpack.c.l.bf16 %v957
  %v1075 = vunpack.c.l.bf16 %v958
  %v1076 = vunpack.c.l.bf16 %v959
  %v1077 = vunpack.c.l.bf16 %v960
  %v1078 = vunpack.c.l.bf16 %v961
  %v1079 = vunpack.c.l.bf16 %v962
  %v1080 = vunpack.c.l.bf16 %v963
  %v1081 = vunpack.c.l.bf16 %v964
  %v1082 = vunpack.c.l.bf16 %v965
  %v1083 = vunpack.c.l.bf16 %v966
  %v1084 = vunpack.c.l.bf16 %v967
  %v1085 = vunpack.c.l.bf16 %v968
  %v1086 = vunpack.c.l.bf16 %v969
  %v1087 = vunpack.c.l.bf16 %v970
  %v1088 = vunpack.c.l.bf16 %v971
  %v1089 = vunpack.c.l.bf16 %v972
  %v1090 = vunpack.c.l.bf16 %v973
  %v1091 = vunpack.c.l.bf16 %v974
  %v1092 = vunpack.c.l.bf16 %v975
  %v1093 = vunpack.c.l.bf16 %v976
  %v1094 = vunpack.c.l.bf16 %v977
  %v1095 = vunpack.c.l.bf16 %v978
  %v1096 = vunpack.c.l.bf16 %v979
  %v1097 = vunpack.c.l.bf16 %v980
  %v1098 = vunpack.c.l.bf16 %v981
  %v1099 = vunpack.c.l.bf16 %v982
  %v1100 = vunpack.c.l.bf16 %v983
  %v1101 = vunpack.c.l.bf16 %v984
  %v1102 = vunpack.c.l.bf16 %v985
  %v1103 = vunpack.c.l.bf16 %v986
  %v1104 = vunpack.c.l.bf16 %v987
  %v1105 = vunpack.c.l.bf16 %v988
  %v1106 = vunpack.c.l.bf16 %v989
  %v1107 = vunpack.c.l.bf16 %v990
  %v1108 = vunpack.c.l.bf16 %v991
  %v1109 = vunpack.c.l.bf16 %v992
  %v1110 = vunpack.c.l.bf16 %v993
  %v1111 = vunpack.c.l.bf16 %v994
  %v1112 = vunpack.c.l.bf16 %v995
  %v1113 = vunpack.c.l.bf16 %v996
  %v1114 = vunpack.c.l.bf16 %v997
  %v1115 = vunpack.c.l.bf16 %v998
  %v1116 = vunpack.c.l.bf16 %v999
  %v1117 = vunpack.c.l.bf16 %v1000
  %v1118 = vunpack.c.l.bf16 %v1001
  %v1119 = vunpack.c.l.bf16 %v1002
  %v1120 = vunpack.c.l.bf16 %v1003
  %v1121 = vunpack.c.l.bf16 %v1004
  %v1122 = vunpack.c.l.bf16 %v1005
  %v1123 = vunpack.c.l.bf16 %v1006
  %v1124 = vunpack.c.l.bf16 %v1007
  %v1125 = vunpack.c.l.bf16 %v1008
  %v1126 = vunpack.c.l.bf16 %v1009
  %v1127 = vunpack.c.l.bf16 %v1010
  %v1128 = vunpack.c.l.bf16 %v1011
  %v1129 = vunpack.c.l.bf16 %v1012
  %v1130 = vunpack.c.l.bf16 %v1013
  %v1131 = vunpack.c.l.bf16 %v1014
  %v1132 = vunpack.c.l.bf16 %v1015
  %v1133 = vunpack.c.l.bf16 %v1016
  %v1134 = vunpack.c.l.bf16 %v1017
  %v1135 = vunpack.c.l.bf16 %v1018
  %v1136 = vunpack.c.l.bf16 %v1019
  %v1137 = vunpack.c.l.bf16 %v1020
  %v1138 = vunpack.c.l.bf16 %v1021
  %v1139 = vunpack.c.l.bf16 %v1022
  %v1140 = vunpack.c.l.bf16 %v1023
  %v1141 = vunpack.c.l.bf16 %v1024
  %v1142 = vunpack.c.l.bf16 %v1025
  %v1143 = vunpack.c.l.bf16 %v1026
  %v1144 = vunpack.c.l.bf16 %v1027
  %v1145 = vunpack.c.l.bf16 %v1028
  %v1146 = vunpack.c.l.bf16 %v1029
  %v1147 = vunpack.c.l.bf16 %v1030
  %v1148 = vunpack.c.l.bf16 %v1031
  %v1149 = vunpack.c.l.bf16 %v1032
  %v1150 = vunpack.c.l.bf16 %v1033
  %v1151 = vunpack.c.l.bf16 %v1034
  %v1152 = vunpack.c.l.bf16 %v1035
  %v1153 = vunpack.c.l.bf16 %v1036
  %v1154 = vunpack.c.l.bf16 %v1037
  %v1155 = vunpack.c.l.bf16 %v1038
  %v1156 = vunpack.c.l.bf16 %v1039
  %v1157 = vunpack.c.l.bf16 %v1040
  %v1158 = vsel %vm517, %v1041, -inf
  %v1159 = vsel %vm517, %v1054, -inf
  %v1160 = vmax.f32 %v1158, %v1159
  %v1161 = vsel %vm517, %v1067, -inf
  %v1162 = vmax.f32 %v1160, %v1161
  %v1163 = vsel %vm517, %v1080, -inf
  %v1164 = vmax.f32 %v1162, %v1163
  %v1165 = vsel %vm517, %v1093, -inf
  %v1166 = vmax.f32 %v1164, %v1165
  %v1167 = vsel %vm517, %v1106, -inf
  %v1168 = vmax.f32 %v1166, %v1167
  %v1169 = vsel %vm517, %v1119, -inf
  %v1170 = vmax.f32 %v1168, %v1169
  %v1171 = vsel %vm517, %v1132, -inf
  %v1172 = vmax.f32 %v1170, %v1171
  %v1173 = vsel %vm517, %v1145, -inf
  %v1174 = vmax.f32 %v1172, %v1173
  %v1175 = vsel %vm517, %v1042, -inf
  %v1176 = vsel %vm517, %v1055, -inf
  %v1177 = vmax.f32 %v1175, %v1176
  %v1178 = vsel %vm517, %v1068, -inf
  %v1179 = vmax.f32 %v1177, %v1178
  %v1180 = vsel %vm517, %v1081, -inf
  %v1181 = vmax.f32 %v1179, %v1180
  %v1182 = vsel %vm517, %v1094, -inf
  %v1183 = vmax.f32 %v1181, %v1182
  %v1184 = vsel %vm517, %v1107, -inf
  %v1185 = vmax.f32 %v1183, %v1184
  %v1186 = vsel %vm517, %v1120, -inf
  %v1187 = vmax.f32 %v1185, %v1186
  %v1188 = vsel %vm517, %v1133, -inf
  %v1189 = vmax.f32 %v1187, %v1188
  %v1190 = vsel %vm517, %v1146, -inf
  %v1191 = vmax.f32 %v1189, %v1190
  %v1192 = vsel %vm517, %v1043, -inf
  %v1193 = vsel %vm517, %v1056, -inf
  %v1194 = vmax.f32 %v1192, %v1193
  %v1195 = vsel %vm517, %v1069, -inf
  %v1196 = vmax.f32 %v1194, %v1195
  %v1197 = vsel %vm517, %v1082, -inf
  %v1198 = vmax.f32 %v1196, %v1197
  %v1199 = vsel %vm517, %v1095, -inf
  %v1200 = vmax.f32 %v1198, %v1199
  %v1201 = vsel %vm517, %v1108, -inf
  %v1202 = vmax.f32 %v1200, %v1201
  %v1203 = vsel %vm517, %v1121, -inf
  %v1204 = vmax.f32 %v1202, %v1203
  %v1205 = vsel %vm517, %v1134, -inf
  %v1206 = vmax.f32 %v1204, %v1205
  %v1207 = vsel %vm517, %v1147, -inf
  %v1208 = vmax.f32 %v1206, %v1207
  %v1209 = vsel %vm517, %v1044, -inf
  %v1210 = vsel %vm517, %v1057, -inf
  %v1211 = vmax.f32 %v1209, %v1210
  %v1212 = vsel %vm517, %v1070, -inf
  %v1213 = vmax.f32 %v1211, %v1212
  %v1214 = vsel %vm517, %v1083, -inf
  %v1215 = vmax.f32 %v1213, %v1214
  %v1216 = vsel %vm517, %v1096, -inf
  %v1217 = vmax.f32 %v1215, %v1216
  %v1218 = vsel %vm517, %v1109, -inf
  %v1219 = vmax.f32 %v1217, %v1218
  %v1220 = vsel %vm517, %v1122, -inf
  %v1221 = vmax.f32 %v1219, %v1220
  %v1222 = vsel %vm517, %v1135, -inf
  %v1223 = vmax.f32 %v1221, %v1222
  %v1224 = vsel %vm517, %v1148, -inf
  %v1225 = vmax.f32 %v1223, %v1224
  %v1226 = vsel %vm517, %v1045, -inf
  %v1227 = vsel %vm517, %v1058, -inf
  %v1228 = vmax.f32 %v1226, %v1227
  %v1229 = vsel %vm517, %v1071, -inf
  %v1230 = vmax.f32 %v1228, %v1229
  %v1231 = vsel %vm517, %v1084, -inf
  %v1232 = vmax.f32 %v1230, %v1231
  %v1233 = vsel %vm517, %v1097, -inf
  %v1234 = vmax.f32 %v1232, %v1233
  %v1235 = vsel %vm517, %v1110, -inf
  %v1236 = vmax.f32 %v1234, %v1235
  %v1237 = vsel %vm517, %v1123, -inf
  %v1238 = vmax.f32 %v1236, %v1237
  %v1239 = vsel %vm517, %v1136, -inf
  %v1240 = vmax.f32 %v1238, %v1239
  %v1241 = vsel %vm517, %v1149, -inf
  %v1242 = vmax.f32 %v1240, %v1241
  %v1243 = vsel %vm517, %v1046, -inf
  %v1244 = vsel %vm517, %v1059, -inf
  %v1245 = vmax.f32 %v1243, %v1244
  %v1246 = vsel %vm517, %v1072, -inf
  %v1247 = vmax.f32 %v1245, %v1246
  %v1248 = vsel %vm517, %v1085, -inf
  %v1249 = vmax.f32 %v1247, %v1248
  %v1250 = vsel %vm517, %v1098, -inf
  %v1251 = vmax.f32 %v1249, %v1250
  %v1252 = vsel %vm517, %v1111, -inf
  %v1253 = vmax.f32 %v1251, %v1252
  %v1254 = vsel %vm517, %v1124, -inf
  %v1255 = vmax.f32 %v1253, %v1254
  %v1256 = vsel %vm517, %v1137, -inf
  %v1257 = vmax.f32 %v1255, %v1256
  %v1258 = vsel %vm517, %v1150, -inf
  %v1259 = vmax.f32 %v1257, %v1258
  %v1260 = vsel %vm517, %v1047, -inf
  %v1261 = vsel %vm517, %v1060, -inf
  %v1262 = vmax.f32 %v1260, %v1261
  %v1263 = vsel %vm517, %v1073, -inf
  %v1264 = vmax.f32 %v1262, %v1263
  %v1265 = vsel %vm517, %v1086, -inf
  %v1266 = vmax.f32 %v1264, %v1265
  %v1267 = vsel %vm517, %v1099, -inf
  %v1268 = vmax.f32 %v1266, %v1267
  %v1269 = vsel %vm517, %v1112, -inf
  %v1270 = vmax.f32 %v1268, %v1269
  %v1271 = vsel %vm517, %v1125, -inf
  %v1272 = vmax.f32 %v1270, %v1271
  %v1273 = vsel %vm517, %v1138, -inf
  %v1274 = vmax.f32 %v1272, %v1273
  %v1275 = vsel %vm517, %v1151, -inf
  %v1276 = vmax.f32 %v1274, %v1275
  %v1277 = vsel %vm517, %v1048, -inf
  %v1278 = vsel %vm517, %v1061, -inf
  %v1279 = vmax.f32 %v1277, %v1278
  %v1280 = vsel %vm517, %v1074, -inf
  %v1281 = vmax.f32 %v1279, %v1280
  %v1282 = vsel %vm517, %v1087, -inf
  %v1283 = vmax.f32 %v1281, %v1282
  %v1284 = vsel %vm517, %v1100, -inf
  %v1285 = vmax.f32 %v1283, %v1284
  %v1286 = vsel %vm517, %v1113, -inf
  %v1287 = vmax.f32 %v1285, %v1286
  %v1288 = vsel %vm517, %v1126, -inf
  %v1289 = vmax.f32 %v1287, %v1288
  %v1290 = vsel %vm517, %v1139, -inf
  %v1291 = vmax.f32 %v1289, %v1290
  %v1292 = vsel %vm517, %v1152, -inf
  %v1293 = vmax.f32 %v1291, %v1292
  %v1294 = vsel %vm517, %v1049, -inf
  %v1295 = vsel %vm517, %v1062, -inf
  %v1296 = vmax.f32 %v1294, %v1295
  %v1297 = vsel %vm517, %v1075, -inf
  %v1298 = vmax.f32 %v1296, %v1297
  %v1299 = vsel %vm517, %v1088, -inf
  %v1300 = vmax.f32 %v1298, %v1299
  %v1301 = vsel %vm517, %v1101, -inf
  %v1302 = vmax.f32 %v1300, %v1301
  %v1303 = vsel %vm517, %v1114, -inf
  %v1304 = vmax.f32 %v1302, %v1303
  %v1305 = vsel %vm517, %v1127, -inf
  %v1306 = vmax.f32 %v1304, %v1305
  %v1307 = vsel %vm517, %v1140, -inf
  %v1308 = vmax.f32 %v1306, %v1307
  %v1309 = vsel %vm517, %v1153, -inf
  %v1310 = vmax.f32 %v1308, %v1309
  %v1311 = vsel %vm517, %v1050, -inf
  %v1312 = vsel %vm517, %v1063, -inf
  %v1313 = vmax.f32 %v1311, %v1312
  %v1314 = vsel %vm517, %v1076, -inf
  %v1315 = vmax.f32 %v1313, %v1314
  %v1316 = vsel %vm517, %v1089, -inf
  %v1317 = vmax.f32 %v1315, %v1316
  %v1318 = vsel %vm517, %v1102, -inf
  %v1319 = vmax.f32 %v1317, %v1318
  %v1320 = vsel %vm517, %v1115, -inf
  %v1321 = vmax.f32 %v1319, %v1320
  %v1322 = vsel %vm517, %v1128, -inf
  %v1323 = vmax.f32 %v1321, %v1322
  %v1324 = vsel %vm517, %v1141, -inf
  %v1325 = vmax.f32 %v1323, %v1324
  %v1326 = vsel %vm517, %v1154, -inf
  %v1327 = vmax.f32 %v1325, %v1326
  %v1328 = vsel %vm517, %v1051, -inf
  %v1329 = vsel %vm517, %v1064, -inf
  %v1330 = vmax.f32 %v1328, %v1329
  %v1331 = vsel %vm517, %v1077, -inf
  %v1332 = vmax.f32 %v1330, %v1331
  %v1333 = vsel %vm517, %v1090, -inf
  %v1334 = vmax.f32 %v1332, %v1333
  %v1335 = vsel %vm517, %v1103, -inf
  %v1336 = vmax.f32 %v1334, %v1335
  %v1337 = vsel %vm517, %v1116, -inf
  %v1338 = vmax.f32 %v1336, %v1337
  %v1339 = vsel %vm517, %v1129, -inf
  %v1340 = vmax.f32 %v1338, %v1339
  %v1341 = vsel %vm517, %v1142, -inf
  %v1342 = vmax.f32 %v1340, %v1341
  %v1343 = vsel %vm517, %v1155, -inf
  %v1344 = vmax.f32 %v1342, %v1343
  %v1345 = vsel %vm517, %v1052, -inf
  %v1346 = vsel %vm517, %v1065, -inf
  %v1347 = vmax.f32 %v1345, %v1346
  %v1348 = vsel %vm517, %v1078, -inf
  %v1349 = vmax.f32 %v1347, %v1348
  %v1350 = vsel %vm517, %v1091, -inf
  %v1351 = vmax.f32 %v1349, %v1350
  %v1352 = vsel %vm517, %v1104, -inf
  %v1353 = vmax.f32 %v1351, %v1352
  %v1354 = vsel %vm517, %v1117, -inf
  %v1355 = vmax.f32 %v1353, %v1354
  %v1356 = vsel %vm517, %v1130, -inf
  %v1357 = vmax.f32 %v1355, %v1356
  %v1358 = vsel %vm517, %v1143, -inf
  %v1359 = vmax.f32 %v1357, %v1358
  %v1360 = vsel %vm517, %v1156, -inf
  %v1361 = vmax.f32 %v1359, %v1360
  %vm1362 = vcmask 517120
  %v1363 = vsel %vm1362, %v1053, -inf
  %v1364 = vsel %vm1362, %v1066, -inf
  %v1365 = vmax.f32 %v1363, %v1364
  %v1366 = vsel %vm1362, %v1079, -inf
  %v1367 = vmax.f32 %v1365, %v1366
  %v1368 = vsel %vm1362, %v1092, -inf
  %v1369 = vmax.f32 %v1367, %v1368
  %v1370 = vsel %vm1362, %v1105, -inf
  %v1371 = vmax.f32 %v1369, %v1370
  %v1372 = vsel %vm1362, %v1118, -inf
  %v1373 = vmax.f32 %v1371, %v1372
  %v1374 = vsel %vm1362, %v1131, -inf
  %v1375 = vmax.f32 %v1373, %v1374
  %v1376 = vsel %vm1362, %v1144, -inf
  %v1377 = vmax.f32 %v1375, %v1376
  %v1378 = vsel %vm1362, %v1157, -inf
  %v1379 = vmax.f32 %v1377, %v1378
  %v1380 = vpack.c.bf16 %v1191, %v1174
  %v1381 = vpack.c.bf16 %v1225, %v1208
  %v1382 = vpack.c.bf16 %v1259, %v1242
  %v1383 = vpack.c.bf16 %v1293, %v1276
  %v1384 = vpack.c.bf16 %v1327, %v1310
  %v1385 = vpack.c.bf16 %v1361, %v1344
  %v1386 = vpack.c.bf16 %v1379, %v1379
  %v1394 = vunpack.c.l.b16 %v1380
  %v1395 = vunpack.c.h.b16 %v1380
  %v1396 = vunpack.c.l.b16 %v1381
  %v1397 = vunpack.c.h.b16 %v1381
  %v1398 = vunpack.c.l.b16 %v1382
  %v1399 = vunpack.c.h.b16 %v1382
  %v1400 = vunpack.c.l.b16 %v1383
  %v1401 = vunpack.c.h.b16 %v1383
  %v1402 = vunpack.c.l.b16 %v1384
  %v1403 = vunpack.c.h.b16 %v1384
  %v1404 = vunpack.c.l.b16 %v1385
  %v1405 = vunpack.c.h.b16 %v1385
  %v1406 = vunpack.c.l.b16 %v1386
  %v1407 = vpack.c.b16 %v1394, %v1394
  %v1408 = vpack.c.b16 %v1395, %v1395
  %v1409 = vpack.c.b16 %v1396, %v1396
  %v1410 = vpack.c.b16 %v1397, %v1397
  %v1411 = vpack.c.b16 %v1398, %v1398
  %v1412 = vpack.c.b16 %v1399, %v1399
  %v1413 = vpack.c.b16 %v1400, %v1400
  %v1414 = vpack.c.b16 %v1401, %v1401
  %v1415 = vpack.c.b16 %v1402, %v1402
  %v1416 = vpack.c.b16 %v1403, %v1403
  %v1417 = vpack.c.b16 %v1404, %v1404
  %v1418 = vpack.c.b16 %v1405, %v1405
  %v1419 = vpack.c.b16 %v1406, %v1406
  %vm1433 = vcmask 519168
  %1434 = vst.msk [vmem:[%s6] sm:$0xf] %vm1433, %v1407
  %1435 = vst.msk [vmem:[%s6 + $0x4] sm:$0xf] %vm1433, %v1408
  %1436 = vst.msk [vmem:[%s6 + $0x8] sm:$0xf] %vm1433, %v1409
  %1437 = vst.msk [vmem:[%s6 + $0xc] sm:$0xf] %vm1433, %v1410
  %1438 = vst.msk [vmem:[%s6 + $0x10] sm:$0xf] %vm1433, %v1411
  %1439 = vst.msk [vmem:[%s6 + $0x14] sm:$0xf] %vm1433, %v1412
  %1440 = vst.msk [vmem:[%s6 + $0x18] sm:$0xf] %vm1433, %v1413
  %1441 = vst.msk [vmem:[%s6 + $0x1c] sm:$0xf] %vm1433, %v1414
  %1442 = vst.msk [vmem:[%s6 + $0x20] sm:$0xf] %vm1433, %v1415
  %1443 = vst.msk [vmem:[%s6 + $0x24] sm:$0xf] %vm1433, %v1416
  %1444 = vst.msk [vmem:[%s6 + $0x28] sm:$0xf] %vm1433, %v1417
  %1445 = vst.msk [vmem:[%s6 + $0x2c] sm:$0xf] %vm1433, %v1418
  %vm1446 = vcmask 516096
  %1447 = vst.msk [vmem:[%s6 + $0x30] sm:$0x1] %vm1446, %v1419
  // Predicated region
  $region22: #{incept_init_block.12} parent=0 // pred_check
    _
  $region23: #{incept_init_block.12} parent=0 // pred_check_branch
    %1449 = sbr.rel (0) target = $region25
  $region24: #{incept_init_block.12} parent=0 // pred_region
    _
  $region25: #{incept_init_block.12} parent=0 // pred_fallthru
    _
  // Predicated region
  $region26: #{incept_init_block.12} parent=0 // pred_check
    _
  $region27: #{incept_init_block.12} parent=0 // pred_check_branch
    %1451 = sbr.rel (0) target = $region29
  $region28: #{incept_init_block.12} parent=0 // pred_region
    _
  $region29: #{incept_init_block.12} parent=0 // pred_fallthru
    _
  // Predicated region
  $region30: #{incept_init_block.12} parent=0 // pred_check
    _
  $region31: #{incept_init_block.12} parent=0 // pred_check_branch
    %1453 = sbr.rel (0) target = $region33
  $region32: #{incept_init_block.12} parent=0 // pred_region
    _
  $region33: #{incept_init_block.12} parent=0 // pred_fallthru
    _
  // Predicated region
  $region34: #{incept_init_block.12} parent=0 // pred_check
    _
  $region35: #{incept_init_block.12} parent=0 // pred_check_branch
    %1455 = sbr.rel (0) target = $region37
  $region36: #{incept_init_block.12} parent=0 // pred_region
    _
  $region37: #{incept_init_block.12} parent=0 // pred_fallthru
    _

// kernel: incept_init_block.14
$region0: #{incept_init_block.14}
  #allocation0 [shape = 'u32[]', space=smem, size = 0x4, offset = 0x4, fixed_abs, tag = 'smem constant byte address 0x4 - core index']
  #allocation1 [shape = 'u32[144,128]{1,0:T(1,128)}', space=vmem, size = 0x12000, scoped, tag = 'internal scratch']
  %s0 = inlined_call_operand.vmem [shape: bf16[50,576], index: 0, kind: input, shape index: {}]
  %s1 = inlined_call_operand.vmem [shape: bf16[576,96], index: 1, kind: input, shape index: {}]
  %s2 = inlined_call_operand.vmem [shape: f32[1,96], index: 2, kind: input, shape index: {}]
  %s3 = inlined_call_operand.vmem [shape: f32[1,96], index: 3, kind: input, shape index: {}]
  %s4 = inlined_call_operand.vmem [shape: bf16[98,448], index: 4, kind: input, shape index: {}]
  %s5 = inlined_call_operand.vmem [shape: bf16[448,64], index: 5, kind: input, shape index: {}]
  %s6 = inlined_call_operand.vmem [shape: f32[1,64], index: 6, kind: input, shape index: {}]
  %s7 = inlined_call_operand.vmem [shape: f32[1,64], index: 7, kind: input, shape index: {}]
  %s8 = inlined_call_operand.vmem [shape: bf16[50,96], index: 8, kind: output, shape index: {0}]
  %s9 = inlined_call_operand.vmem [shape: bf16[98,64], index: 9, kind: output, shape index: {1}]
  %10 = xla_tuple %s8, %s9
  %s11 = sld [smem:[#allocation0]]
  $region50: #{incept_init_block.14} parent=0
    _
  %s13 = ssub.s32 1, %s11
  %s14 = scalar_select 0, %s13, %s11
  // Predicated region
  $region2: #{incept_init_block.14} parent=0 // pred_check
    _
  $region3: #{incept_init_block.14} parent=0 // pred_check_branch
    %16 = sbr.rel (0) target = $region5
  $region4: #{incept_init_block.14} parent=0 // pred_region
    _
  $region5: #{incept_init_block.14} parent=0 // pred_fallthru
    _
  // Predicated region
  $region6: #{incept_init_block.14} parent=0 // pred_check
    _
  $region7: #{incept_init_block.14} parent=0 // pred_check_branch
    %18 = sbr.rel (0) target = $region9
  $region8: #{incept_init_block.14} parent=0 // pred_region
    _
  $region9: #{incept_init_block.14} parent=0 // pred_fallthru
    _
  // Predicated region
  $region10: #{incept_init_block.14} parent=0 // pred_check
    _
  $region11: #{incept_init_block.14} parent=0 // pred_check_branch
    %20 = sbr.rel (0) target = $region13
  $region12: #{incept_init_block.14} parent=0 // pred_region
    _
  $region13: #{incept_init_block.14} parent=0 // pred_fallthru
    _
  // Predicated region
  $region14: #{incept_init_block.14} parent=0 // pred_check
    _
  $region15: #{incept_init_block.14} parent=0 // pred_check_branch
    %22 = sbr.rel (0) target = $region17
  $region16: #{incept_init_block.14} parent=0 // pred_region
    _
  $region17: #{incept_init_block.14} parent=0 // pred_fallthru
    _
  // Predicated region
  $region18: #{incept_init_block.14} parent=0 // pred_check
    _
  $region19: #{incept_init_block.14} parent=0 // pred_check_branch
    %24 = sbr.rel (0) target = $region21
  $region20: #{incept_init_block.14} parent=0 // pred_region
    _
  $region21: #{incept_init_block.14} parent=0 // pred_fallthru
    _
  // Predicated region
  $region22: #{incept_init_block.14} parent=0 // pred_check
    _
  $region23: #{incept_init_block.14} parent=0 // pred_check_branch
    %26 = sbr.rel (0) target = $region25
  $region24: #{incept_init_block.14} parent=0 // pred_region
    _
  $region25: #{incept_init_block.14} parent=0 // pred_fallthru
    _
  // Predicated region
  $region26: #{incept_init_block.14} parent=0 // pred_check
    _
  $region27: #{incept_init_block.14} parent=0 // pred_check_branch
    %28 = sbr.rel (0) target = $region29
  $region28: #{incept_init_block.14} parent=0 // pred_region
    _
  $region29: #{incept_init_block.14} parent=0 // pred_fallthru
    _
  // Predicated region
  $region30: #{incept_init_block.14} parent=0 // pred_check
    _
  $region31: #{incept_init_block.14} parent=0 // pred_check_branch
    %30 = sbr.rel (0) target = $region33
  $region32: #{incept_init_block.14} parent=0 // pred_region
    _
  $region33: #{incept_init_block.14} parent=0 // pred_fallthru
    _
  %v32 = vld [vmem:[%s0] sm:$0xff]
  %v33 = vld [vmem:[%s0 + $0x8] sm:$0xff]
  %v34 = vld [vmem:[%s0 + $0x10] sm:$0xf]
  %v35 = vld [vmem:[%s0 + $0x14] sm:$0xff]
  %v36 = vld [vmem:[%s0 + $0x1c] sm:$0xff]
  %v37 = vld [vmem:[%s0 + $0x24] sm:$0xf]
  %v38 = vld [vmem:[%s0 + $0x28] sm:$0xff]
  %v39 = vld [vmem:[%s0 + $0x30] sm:$0xff]
  %v40 = vld [vmem:[%s0 + $0x38] sm:$0xf]
  %v41 = vld [vmem:[%s0 + $0x3c] sm:$0xff]
  %v42 = vld [vmem:[%s0 + $0x44] sm:$0xff]
  %v43 = vld [vmem:[%s0 + $0x4c] sm:$0xf]
  %v44 = vld [vmem:[%s0 + $0x50] sm:$0xff]
  %v45 = vld [vmem:[%s0 + $0x58] sm:$0xff]
  %v46 = vld [vmem:[%s0 + $0x60] sm:$0xf]
  %v47 = vld [vmem:[%s0 + $0x64] sm:$0xff]
  %v48 = vld [vmem:[%s0 + $0x6c] sm:$0xff]
  %v49 = vld [vmem:[%s0 + $0x74] sm:$0xf]
  %v50 = vld [vmem:[%s0 + $0x78] sm:$0x11]
  %v51 = vld [vmem:[%s0 + $0x80] sm:$0x11]
  %v52 = vld [vmem:[%s0 + $0x88] sm:$0x1]
  %v53 = vld [vmem:[%s1] sm:$0xf]
  %v54 = vld [vmem:[%s1 + $0x4] sm:$0xf]
  %v55 = vld [vmem:[%s1 + $0x8] sm:$0xf]
  %v56 = vld [vmem:[%s1 + $0xc] sm:$0xf]
  %v57 = vld [vmem:[%s1 + $0x10] sm:$0xf]
  %v58 = vld [vmem:[%s1 + $0x14] sm:$0xf]
  %v59 = vld [vmem:[%s1 + $0x18] sm:$0xf]
  %v60 = vld [vmem:[%s1 + $0x1c] sm:$0xf]
  %v61 = vld [vmem:[%s1 + $0x20] sm:$0xf]
  %v62 = vld [vmem:[%s1 + $0x24] sm:$0xf]
  %v63 = vld [vmem:[%s1 + $0x28] sm:$0xf]
  %v64 = vld [vmem:[%s1 + $0x2c] sm:$0xf]
  %v65 = vld [vmem:[%s1 + $0x30] sm:$0xf]
  %v66 = vld [vmem:[%s1 + $0x34] sm:$0xf]
  %v67 = vld [vmem:[%s1 + $0x38] sm:$0xf]
  %v68 = vld [vmem:[%s1 + $0x3c] sm:$0xf]
  %v69 = vld [vmem:[%s1 + $0x40] sm:$0xf]
  %v70 = vld [vmem:[%s1 + $0x44] sm:$0xf]
  %v71 = vld [vmem:[%s1 + $0x48] sm:$0xf]
  %v72 = vld [vmem:[%s1 + $0x4c] sm:$0xf]
  %v73 = vld [vmem:[%s1 + $0x50] sm:$0xf]
  %v74 = vld [vmem:[%s1 + $0x54] sm:$0xf]
  %v75 = vld [vmem:[%s1 + $0x58] sm:$0xf]
  %v76 = vld [vmem:[%s1 + $0x5c] sm:$0xf]
  %v77 = vld [vmem:[%s1 + $0x60] sm:$0xf]
  %v78 = vld [vmem:[%s1 + $0x64] sm:$0xf]
  %v79 = vld [vmem:[%s1 + $0x68] sm:$0xf]
  %v80 = vld [vmem:[%s1 + $0x6c] sm:$0xf]
  %v81 = vld [vmem:[%s1 + $0x70] sm:$0xf]
  %v82 = vld [vmem:[%s1 + $0x74] sm:$0xf]
  %v83 = vld [vmem:[%s1 + $0x78] sm:$0xf]
  %v84 = vld [vmem:[%s1 + $0x7c] sm:$0xf]
  %v85 = vld [vmem:[%s1 + $0x80] sm:$0xf]
  %v86 = vld [vmem:[%s1 + $0x84] sm:$0xf]
  %v87 = vld [vmem:[%s1 + $0x88] sm:$0xf]
  %v88 = vld [vmem:[%s1 + $0x8c] sm:$0xf]
  %v89 = vld [vmem:[%s1 + $0x90] sm:$0xf]
  %v90 = vld [vmem:[%s1 + $0x94] sm:$0xf]
  %v91 = vld [vmem:[%s1 + $0x98] sm:$0xf]
  %v92 = vld [vmem:[%s1 + $0x9c] sm:$0xf]
  %v93 = vld [vmem:[%s1 + $0xa0] sm:$0xf]
  %v94 = vld [vmem:[%s1 + $0xa4] sm:$0xf]
  %v95 = vld [vmem:[%s1 + $0xa8] sm:$0xf]
  %v96 = vld [vmem:[%s1 + $0xac] sm:$0xf]
  %v97 = vld [vmem:[%s1 + $0xb0] sm:$0xf]
  %v98 = vld [vmem:[%s1 + $0xb4] sm:$0xf]
  %v99 = vld [vmem:[%s1 + $0xb8] sm:$0xf]
  %v100 = vld [vmem:[%s1 + $0xbc] sm:$0xf]
  %v101 = vld [vmem:[%s1 + $0xc0] sm:$0xf]
  %v102 = vld [vmem:[%s1 + $0xc4] sm:$0xf]
  %v103 = vld [vmem:[%s1 + $0xc8] sm:$0xf]
  %v104 = vld [vmem:[%s1 + $0xcc] sm:$0xf]
  %v105 = vld [vmem:[%s1 + $0xd0] sm:$0xf]
  %v106 = vld [vmem:[%s1 + $0xd4] sm:$0xf]
  %v107 = vld [vmem:[%s1 + $0xd8] sm:$0xf]
  %v108 = vld [vmem:[%s1 + $0xdc] sm:$0xf]
  %v109 = vld [vmem:[%s1 + $0xe0] sm:$0xf]
  %v110 = vld [vmem:[%s1 + $0xe4] sm:$0xf]
  %v111 = vld [vmem:[%s1 + $0xe8] sm:$0xf]
  %v112 = vld [vmem:[%s1 + $0xec] sm:$0xf]
  %v113 = vld [vmem:[%s1 + $0xf0] sm:$0xf]
  %v114 = vld [vmem:[%s1 + $0xf4] sm:$0xf]
  %v115 = vld [vmem:[%s1 + $0xf8] sm:$0xf]
  %v116 = vld [vmem:[%s1 + $0xfc] sm:$0xf]
  %v117 = vld [vmem:[%s1 + $0x100] sm:$0xf]
  %v118 = vld [vmem:[%s1 + $0x104] sm:$0xf]
  %v119 = vld [vmem:[%s1 + $0x108] sm:$0xf]
  %v120 = vld [vmem:[%s1 + $0x10c] sm:$0xf]
  %v121 = vld [vmem:[%s1 + $0x110] sm:$0xf]
  %v122 = vld [vmem:[%s1 + $0x114] sm:$0xf]
  %v123 = vld [vmem:[%s1 + $0x118] sm:$0xf]
  %v124 = vld [vmem:[%s1 + $0x11c] sm:$0xf]
  %v146 = vunpack.c.l.b16 %v32
  %v147 = vunpack.c.h.b16 %v32
  %v148 = vunpack.c.l.b16 %v33
  %v149 = vunpack.c.h.b16 %v33
  %v150 = vunpack.c.l.b16 %v34
  %v151 = vunpack.c.l.b16 %v35
  %v152 = vunpack.c.h.b16 %v35
  %v153 = vunpack.c.l.b16 %v36
  %v154 = vunpack.c.h.b16 %v36
  %v155 = vunpack.c.l.b16 %v37
  %v156 = vunpack.c.l.b16 %v38
  %v157 = vunpack.c.h.b16 %v38
  %v158 = vunpack.c.l.b16 %v39
  %v159 = vunpack.c.h.b16 %v39
  %v160 = vunpack.c.l.b16 %v40
  %v161 = vunpack.c.l.b16 %v41
  %v162 = vunpack.c.h.b16 %v41
  %v163 = vunpack.c.l.b16 %v42
  %v164 = vunpack.c.h.b16 %v42
  %v165 = vunpack.c.l.b16 %v43
  %v166 = vunpack.c.l.b16 %v44
  %v167 = vunpack.c.h.b16 %v44
  %v168 = vunpack.c.l.b16 %v45
  %v169 = vunpack.c.h.b16 %v45
  %v170 = vunpack.c.l.b16 %v46
  %v171 = vunpack.c.l.b16 %v47
  %v172 = vunpack.c.h.b16 %v47
  %v173 = vunpack.c.l.b16 %v48
  %v174 = vunpack.c.h.b16 %v48
  %v175 = vunpack.c.l.b16 %v49
  %v176 = vunpack.c.l.b16 %v50
  %v177 = vunpack.c.h.b16 %v50
  %v178 = vunpack.c.l.b16 %v51
  %v179 = vunpack.c.h.b16 %v51
  %v180 = vunpack.c.l.b16 %v52
  %v181 = vpack.c.b16 %v151, %v146
  %v182 = vpack.c.b16 %v152, %v147
  %v183 = vpack.c.b16 %v153, %v148
  %v184 = vpack.c.b16 %v154, %v149
  %v185 = vpack.c.b16 %v155, %v150
  %v186 = vpack.c.b16 %v161, %v156
  %v187 = vpack.c.b16 %v162, %v157
  %v188 = vpack.c.b16 %v163, %v158
  %v189 = vpack.c.b16 %v164, %v159
  %v190 = vpack.c.b16 %v165, %v160
  %v191 = vpack.c.b16 %v171, %v166
  %v192 = vpack.c.b16 %v172, %v167
  %v193 = vpack.c.b16 %v173, %v168
  %v194 = vpack.c.b16 %v174, %v169
  %v195 = vpack.c.b16 %v175, %v170
  %v196 = vpack.c.b16 %v176, %v176
  %v197 = vpack.c.b16 %v177, %v177
  %v198 = vpack.c.b16 %v178, %v178
  %v199 = vpack.c.b16 %v179, %v179
  %v200 = vpack.c.b16 %v180, %v180
  %v289 = vunpack.c.l.b16 %v53
  %v290 = vunpack.c.l.b16 %v54
  %v291 = vunpack.c.l.b16 %v55
  %v292 = vunpack.c.l.b16 %v56
  %v293 = vunpack.c.l.b16 %v57
  %v294 = vunpack.c.l.b16 %v58
  %v295 = vunpack.c.l.b16 %v59
  %v296 = vunpack.c.l.b16 %v60
  %v297 = vunpack.c.l.b16 %v61
  %v298 = vunpack.c.l.b16 %v62
  %v299 = vunpack.c.l.b16 %v63
  %v300 = vunpack.c.l.b16 %v64
  %v301 = vunpack.c.l.b16 %v65
  %v302 = vunpack.c.l.b16 %v66
  %v303 = vunpack.c.l.b16 %v67
  %v304 = vunpack.c.l.b16 %v68
  %v305 = vunpack.c.l.b16 %v69
  %v306 = vunpack.c.l.b16 %v70
  %v307 = vunpack.c.l.b16 %v71
  %v308 = vunpack.c.l.b16 %v72
  %v309 = vunpack.c.l.b16 %v73
  %v310 = vunpack.c.l.b16 %v74
  %v311 = vunpack.c.l.b16 %v75
  %v312 = vunpack.c.l.b16 %v76
  %v313 = vunpack.c.l.b16 %v77
  %v314 = vunpack.c.l.b16 %v78
  %v315 = vunpack.c.l.b16 %v79
  %v316 = vunpack.c.l.b16 %v80
  %v317 = vunpack.c.l.b16 %v81
  %v318 = vunpack.c.l.b16 %v82
  %v319 = vunpack.c.l.b16 %v83
  %v320 = vunpack.c.l.b16 %v84
  %v321 = vunpack.c.l.b16 %v85
  %v322 = vunpack.c.l.b16 %v86
  %v323 = vunpack.c.l.b16 %v87
  %v324 = vunpack.c.l.b16 %v88
  %v325 = vunpack.c.l.b16 %v89
  %v326 = vunpack.c.l.b16 %v90
  %v327 = vunpack.c.l.b16 %v91
  %v328 = vunpack.c.l.b16 %v92
  %v329 = vunpack.c.l.b16 %v93
  %v330 = vunpack.c.l.b16 %v94
  %v331 = vunpack.c.l.b16 %v95
  %v332 = vunpack.c.l.b16 %v96
  %v333 = vunpack.c.l.b16 %v97
  %v334 = vunpack.c.l.b16 %v98
  %v335 = vunpack.c.l.b16 %v99
  %v336 = vunpack.c.l.b16 %v100
  %v337 = vunpack.c.l.b16 %v101
  %v338 = vunpack.c.l.b16 %v102
  %v339 = vunpack.c.l.b16 %v103
  %v340 = vunpack.c.l.b16 %v104
  %v341 = vunpack.c.l.b16 %v105
  %v342 = vunpack.c.l.b16 %v106
  %v343 = vunpack.c.l.b16 %v107
  %v344 = vunpack.c.l.b16 %v108
  %v345 = vunpack.c.l.b16 %v109
  %v346 = vunpack.c.l.b16 %v110
  %v347 = vunpack.c.l.b16 %v111
  %v348 = vunpack.c.l.b16 %v112
  %v349 = vunpack.c.l.b16 %v113
  %v350 = vunpack.c.l.b16 %v114
  %v351 = vunpack.c.l.b16 %v115
  %v352 = vunpack.c.l.b16 %v116
  %v353 = vunpack.c.l.b16 %v117
  %v354 = vunpack.c.l.b16 %v118
  %v355 = vunpack.c.l.b16 %v119
  %v356 = vunpack.c.l.b16 %v120
  %v357 = vunpack.c.l.b16 %v121
  %v358 = vunpack.c.l.b16 %v122
  %v359 = vunpack.c.l.b16 %v123
  %v360 = vunpack.c.l.b16 %v124
  %v361 = vpack.c.b16 %v290, %v289
  %v362 = vpack.c.b16 %v292, %v291
  %v363 = vpack.c.b16 %v294, %v293
  %v364 = vpack.c.b16 %v296, %v295
  %v365 = vpack.c.b16 %v298, %v297
  %v366 = vpack.c.b16 %v300, %v299
  %v367 = vpack.c.b16 %v302, %v301
  %v368 = vpack.c.b16 %v304, %v303
  %v369 = vpack.c.b16 %v306, %v305
  %v370 = vpack.c.b16 %v308, %v307
  %v371 = vpack.c.b16 %v310, %v309
  %v372 = vpack.c.b16 %v312, %v311
  %v373 = vpack.c.b16 %v314, %v313
  %v374 = vpack.c.b16 %v316, %v315
  %v375 = vpack.c.b16 %v318, %v317
  %v376 = vpack.c.b16 %v320, %v319
  %v377 = vpack.c.b16 %v322, %v321
  %v378 = vpack.c.b16 %v324, %v323
  %v379 = vpack.c.b16 %v326, %v325
  %v380 = vpack.c.b16 %v328, %v327
  %v381 = vpack.c.b16 %v330, %v329
  %v382 = vpack.c.b16 %v332, %v331
  %v383 = vpack.c.b16 %v334, %v333
  %v384 = vpack.c.b16 %v336, %v335
  %v385 = vpack.c.b16 %v338, %v337
  %v386 = vpack.c.b16 %v340, %v339
  %v387 = vpack.c.b16 %v342, %v341
  %v388 = vpack.c.b16 %v344, %v343
  %v389 = vpack.c.b16 %v346, %v345
  %v390 = vpack.c.b16 %v348, %v347
  %v391 = vpack.c.b16 %v350, %v349
  %v392 = vpack.c.b16 %v352, %v351
  %v393 = vpack.c.b16 %v354, %v353
  %v394 = vpack.c.b16 %v356, %v355
  %v395 = vpack.c.b16 %v358, %v357
  %v396 = vpack.c.b16 %v360, %v359
  %vm433 = vcmask 523264
  %v435 = vsel %vm433, %v185, 0
  %v438 = vsel %vm433, %v190, 0
  %v441 = vsel %vm433, %v195, 0
  %v444 = vsel %vm433, %v200, 0
  %446 = vmatprep.subr.bf16.mxu0 0
  %447 = vmatpush1.bf16.msra.mxu0 %v361
  %448 = vmatprep.subr.bf16.mxu0 0
  %449 = vmatpush1.bf16.msra.mxu0 %v362
  %450 = vmatprep.subr.bf16.mxu0 0
  %451 = vmatpush1.bf16.msra.mxu0 %v363
  %452 = vmatprep.subr.bf16.mxu0 0
  %453 = vmatpush1.bf16.msra.mxu0 %v364
  %454 = vmatprep.subr.bf16.mxu0 0
  %455 = vmatpush1.bf16.msra.mxu0 %v365
  %456 = vmatprep.subr.bf16.mxu0 0
  %457 = vmatpush1.bf16.msra.mxu0 %v366
  %458 = vmatprep.subr.bf16.mxu0 0
  %459 = vmatpush1.bf16.msra.mxu0 %v367
  %460 = vmatprep.subr.bf16.mxu0 0
  %461 = vmatpush1.bf16.msra.mxu0 %v368
  %462 = vmatprep.subr.bf16.mxu0 0
  %463 = vmatpush1.bf16.msra.mxu0 %v369
  %464 = vmatprep.subr.bf16.mxu0 0
  %465 = vmatpush1.bf16.msra.mxu0 %v370
  %466 = vmatprep.subr.bf16.mxu0 0
  %467 = vmatpush1.bf16.msra.mxu0 %v371
  %468 = vmatprep.subr.bf16.mxu0 0
  %469 = vmatpush1.bf16.msra.mxu0 %v372
  %470 = vmatprep.subr.bf16.mxu0 0
  %471 = vmatpush1.bf16.msra.mxu0 %v373
  %472 = vmatprep.subr.bf16.mxu0 0
  %473 = vmatpush1.bf16.msra.mxu0 %v374
  %474 = vmatprep.subr.bf16.mxu0 0
  %475 = vmatpush1.bf16.msra.mxu0 %v375
  %476 = vmatprep.subr.bf16.mxu0 0
  %477 = vmatpush1.bf16.msra.mxu0 %v376
  %478 = vmatprep.mubr.bf16.mxu0 %v182
  %479 = vmatmul.mubr.bf16.gmra.mrb[0].mxu0 %v181
  %v480 = vpop.f32.mrb[0].mxu0
  %v481 = vadd.f32 0.0, %v480
  %v482 = vpop.f32.mrb[0].mxu0
  %v483 = vpop.f32.mrb[0].mxu0
  %v484 = vadd.f32 0.0, %v483
  %v485 = vpop.f32.mrb[0].mxu0
  %486 = vmatprep.mubr.bf16.mxu0 %v187
  %487 = vmatmul.mubr.bf16.gmra.mrb[0].mxu0 %v186
  %v488 = vpop.f32.mrb[0].mxu0
  %v489 = vadd.f32 0.0, %v488
  %v490 = vpop.f32.mrb[0].mxu0
  %v491 = vpop.f32.mrb[0].mxu0
  %v492 = vadd.f32 0.0, %v491
  %v493 = vpop.f32.mrb[0].mxu0
  %494 = vmatprep.mubr.bf16.mxu0 %v192
  %495 = vmatmul.mubr.bf16.gmra.mrb[0].mxu0 %v191
  %v496 = vpop.f32.mrb[0].mxu0
  %v497 = vadd.f32 0.0, %v496
  %v498 = vpop.f32.mrb[0].mxu0
  %v499 = vpop.f32.mrb[0].mxu0
  %v500 = vadd.f32 0.0, %v499
  %v501 = vpop.f32.mrb[0].mxu0
  %502 = vmatprep.mubr.bf16.mxu0 %v197
  %503 = vmatmul.mubr.bf16.gmra.mrb[0].mxu0 %v196
  %v504 = vpop.f32.mrb[0].mxu0
  %v505 = vadd.f32 0.0, %v504
  %v506 = vpop.f32.mrb[0].mxu0
  %v507 = vpop.f32.mrb[0].mxu0
  %v508 = vpop.f32.mrb[0].mxu0
  %509 = vdwg.mxu0
  %510 = vmatprep.subr.bf16.mxu0 0
  %511 = vmatpush1.bf16.msra.mxu0 %v377
  %512 = vmatprep.subr.bf16.mxu0 0
  %513 = vmatpush1.bf16.msra.mxu0 %v378
  %514 = vmatprep.subr.bf16.mxu0 0
  %515 = vmatpush1.bf16.msra.mxu0 %v379
  %516 = vmatprep.subr.bf16.mxu0 0
  %517 = vmatpush1.bf16.msra.mxu0 %v380
  %518 = vmatprep.subr.bf16.mxu0 0
  %519 = vmatpush1.bf16.msra.mxu0 %v381
  %520 = vmatprep.subr.bf16.mxu0 0
  %521 = vmatpush1.bf16.msra.mxu0 %v382
  %522 = vmatprep.subr.bf16.mxu0 0
  %523 = vmatpush1.bf16.msra.mxu0 %v383
  %524 = vmatprep.subr.bf16.mxu0 0
  %525 = vmatpush1.bf16.msra.mxu0 %v384
  %526 = vmatprep.subr.bf16.mxu0 0
  %527 = vmatpush1.bf16.msra.mxu0 %v385
  %528 = vmatprep.subr.bf16.mxu0 0
  %529 = vmatpush1.bf16.msra.mxu0 %v386
  %530 = vmatprep.subr.bf16.mxu0 0
  %531 = vmatpush1.bf16.msra.mxu0 %v387
  %532 = vmatprep.subr.bf16.mxu0 0
  %533 = vmatpush1.bf16.msra.mxu0 %v388
  %534 = vmatprep.subr.bf16.mxu0 0
  %535 = vmatpush1.bf16.msra.mxu0 %v389
  %536 = vmatprep.subr.bf16.mxu0 0
  %537 = vmatpush1.bf16.msra.mxu0 %v390
  %538 = vmatprep.subr.bf16.mxu0 0
  %539 = vmatpush1.bf16.msra.mxu0 %v391
  %540 = vmatprep.subr.bf16.mxu0 0
  %541 = vmatpush1.bf16.msra.mxu0 %v392
  %542 = vmatprep.mubr.bf16.mxu0 %v184
  %543 = vmatmul.mubr.bf16.gmra.mrb[0].mxu0 %v183
  %v544 = vpop.f32.mrb[0].mxu0
  %v545 = vadd.f32 %v481, %v544
  %v546 = vpop.f32.mrb[0].mxu0
  %v547 = vpop.f32.mrb[0].mxu0
  %v548 = vadd.f32 %v484, %v547
  %v549 = vpop.f32.mrb[0].mxu0
  %550 = vmatprep.mubr.bf16.mxu0 %v189
  %551 = vmatmul.mubr.bf16.gmra.mrb[0].mxu0 %v188
  %v552 = vpop.f32.mrb[0].mxu0
  %v553 = vadd.f32 %v489, %v552
  %v554 = vpop.f32.mrb[0].mxu0
  %v555 = vpop.f32.mrb[0].mxu0
  %v556 = vadd.f32 %v492, %v555
  %v557 = vpop.f32.mrb[0].mxu0
  %558 = vmatprep.mubr.bf16.mxu0 %v194
  %559 = vmatmul.mubr.bf16.gmra.mrb[0].mxu0 %v193
  %v560 = vpop.f32.mrb[0].mxu0
  %v561 = vadd.f32 %v497, %v560
  %v562 = vpop.f32.mrb[0].mxu0
  %v563 = vpop.f32.mrb[0].mxu0
  %v564 = vadd.f32 %v500, %v563
  %v565 = vpop.f32.mrb[0].mxu0
  %566 = vmatprep.mubr.bf16.mxu0 %v199
  %567 = vmatmul.mubr.bf16.gmra.mrb[0].mxu0 %v198
  %v568 = vpop.f32.mrb[0].mxu0
  %v569 = vadd.f32 %v505, %v568
  %v570 = vpop.f32.mrb[0].mxu0
  %v571 = vpop.f32.mrb[0].mxu0
  %v572 = vpop.f32.mrb[0].mxu0
  %573 = vdwg.mxu0
  %574 = vmatprep.subr.bf16.mxu0 0
  %575 = vmatpush1.bf16.msra.mxu0 %v393
  %576 = vmatprep.subr.bf16.mxu0 0
  %577 = vmatpush1.bf16.msra.mxu0 %v394
  %578 = vmatprep.subr.bf16.mxu0 0
  %579 = vmatpush1.bf16.msra.mxu0 %v395
  %580 = vmatprep.subr.bf16.mxu0 0
  %581 = vmatpush1.bf16.msra.mxu0 %v396
  %582 = vmatprep.subr.bf16.mxu0 0
  %583 = vmatpush1.bf16.msra.mxu0 0
  %584 = vmatprep.subr.bf16.mxu0 0
  %585 = vmatpush1.bf16.msra.mxu0 0
  %586 = vmatprep.subr.bf16.mxu0 0
  %587 = vmatpush1.bf16.msra.mxu0 0
  %588 = vmatprep.subr.bf16.mxu0 0
  %589 = vmatpush1.bf16.msra.mxu0 0
  %590 = vmatprep.subr.bf16.mxu0 0
  %591 = vmatpush1.bf16.msra.mxu0 0
  %592 = vmatprep.subr.bf16.mxu0 0
  %593 = vmatpush1.bf16.msra.mxu0 0
  %594 = vmatprep.subr.bf16.mxu0 0
  %595 = vmatpush1.bf16.msra.mxu0 0
  %596 = vmatprep.subr.bf16.mxu0 0
  %597 = vmatpush1.bf16.msra.mxu0 0
  %598 = vmatprep.subr.bf16.mxu0 0
  %599 = vmatpush1.bf16.msra.mxu0 0
  %600 = vmatprep.subr.bf16.mxu0 0
  %601 = vmatpush1.bf16.msra.mxu0 0
  %602 = vmatprep.subr.bf16.mxu0 0
  %603 = vmatpush1.bf16.msra.mxu0 0
  %604 = vmatprep.subr.bf16.mxu0 0
  %605 = vmatpush1.bf16.msra.mxu0 0
  %606 = vmatprep.mubr.bf16.mxu0 0
  %607 = vmatmul.mubr.bf16.gmra.mrb[0].mxu0 %v435
  %v608 = vpop.f32.mrb[0].mxu0
  %v609 = vadd.f32 %v545, %v608
  %v610 = vpop.f32.mrb[0].mxu0
  %v611 = vpop.f32.mrb[0].mxu0
  %v612 = vadd.f32 %v548, %v611
  %v613 = vpop.f32.mrb[0].mxu0
  %614 = vmatprep.mubr.bf16.mxu0 0
  %615 = vmatmul.mubr.bf16.gmra.mrb[0].mxu0 %v438
  %v616 = vpop.f32.mrb[0].mxu0
  %v617 = vadd.f32 %v553, %v616
  %v618 = vpop.f32.mrb[0].mxu0
  %v619 = vpop.f32.mrb[0].mxu0
  %v620 = vadd.f32 %v556, %v619
  %v621 = vpop.f32.mrb[0].mxu0
  %622 = vmatprep.mubr.bf16.mxu0 0
  %623 = vmatmul.mubr.bf16.gmra.mrb[0].mxu0 %v441
  %v624 = vpop.f32.mrb[0].mxu0
  %v625 = vadd.f32 %v561, %v624
  %v626 = vpop.f32.mrb[0].mxu0
  %v627 = vpop.f32.mrb[0].mxu0
  %v628 = vadd.f32 %v564, %v627
  %v629 = vpop.f32.mrb[0].mxu0
  %630 = vmatprep.mubr.bf16.mxu0 0
  %631 = vmatmul.mubr.bf16.gmra.mrb[0].mxu0 %v444
  %v632 = vpop.f32.mrb[0].mxu0
  %v633 = vadd.f32 %v569, %v632
  %v634 = vpop.f32.mrb[0].mxu0
  %v635 = vpop.f32.mrb[0].mxu0
  %v636 = vpop.f32.mrb[0].mxu0
  %637 = vdwg.mxu0
  %v638 = vld [vmem:[%s2] sm:$0x1]
  %v640 = vlaneseq
  %v641 = vshrl.u32 %v640, 7
  %v642 = vsub.s32 0, %v641
  %v643 = vrot.slane %v638, %v642
  %v645 = vmul.f32 %v609, %v643
  %v646 = vmul.f32 %v612, %v643
  %v647 = vmul.f32 %v617, %v643
  %v648 = vmul.f32 %v620, %v643
  %v649 = vmul.f32 %v625, %v643
  %v650 = vmul.f32 %v628, %v643
  %v651 = vmul.f32 %v633, %v643
  %v652 = vld [vmem:[%s3] sm:$0x1]
  %v654 = vlaneseq
  %v655 = vshrl.u32 %v654, 7
  %v656 = vsub.s32 0, %v655
  %v657 = vrot.slane %v652, %v656
  %v659 = vadd.f32 %v645, %v657
  %v660 = vadd.f32 %v646, %v657
  %v661 = vadd.f32 %v647, %v657
  %v662 = vadd.f32 %v648, %v657
  %v663 = vadd.f32 %v649, %v657
  %v664 = vadd.f32 %v650, %v657
  %v665 = vadd.f32 %v651, %v657
  %v666 = vmax.f32 %v659, 0.0
  %v667 = vmax.f32 %v660, 0.0
  %v668 = vmax.f32 %v661, 0.0
  %v669 = vmax.f32 %v662, 0.0
  %v670 = vmax.f32 %v663, 0.0
  %v671 = vmax.f32 %v664, 0.0
  %v672 = vmax.f32 %v665, 0.0
  %v673 = vpack.c.bf16 %v667, %v666
  %v674 = vpack.c.bf16 %v669, %v668
  %v675 = vpack.c.bf16 %v671, %v670
  %v676 = vpack.c.bf16 %v672, %v672
  %v681 = vunpack.c.l.b16 %v673
  %v682 = vunpack.c.h.b16 %v673
  %v683 = vunpack.c.l.b16 %v674
  %v684 = vunpack.c.h.b16 %v674
  %v685 = vunpack.c.l.b16 %v675
  %v686 = vunpack.c.h.b16 %v675
  %v687 = vunpack.c.l.b16 %v676
  %v688 = vpack.c.b16 %v681, %v681
  %v689 = vpack.c.b16 %v682, %v682
  %v690 = vpack.c.b16 %v683, %v683
  %v691 = vpack.c.b16 %v684, %v684
  %v692 = vpack.c.b16 %v685, %v685
  %v693 = vpack.c.b16 %v686, %v686
  %v694 = vpack.c.b16 %v687, %v687
  %vm702 = vcmask 781312
  %703 = vst.msk [vmem:[%s8] sm:$0xf] %vm702, %v688
  %704 = vst.msk [vmem:[%s8 + $0x4] sm:$0xf] %vm702, %v689
  %705 = vst.msk [vmem:[%s8 + $0x8] sm:$0xf] %vm702, %v690
  %706 = vst.msk [vmem:[%s8 + $0xc] sm:$0xf] %vm702, %v691
  %707 = vst.msk [vmem:[%s8 + $0x10] sm:$0xf] %vm702, %v692
  %708 = vst.msk [vmem:[%s8 + $0x14] sm:$0xf] %vm702, %v693
  %vm709 = vcmask 778240
  %710 = vst.msk [vmem:[%s8 + $0x18] sm:$0x1] %vm709, %v694
  %v711 = vld [vmem:[%s4] sm:$0xff]
  %v712 = vld [vmem:[%s4 + $0x8] sm:$0xff]
  %v713 = vld [vmem:[%s4 + $0x10] sm:$0xff]
  %v714 = vld [vmem:[%s4 + $0x18] sm:$0xff]
  %v715 = vld [vmem:[%s4 + $0x20] sm:$0xff]
  %v716 = vld [vmem:[%s4 + $0x28] sm:$0xff]
  %v717 = vld [vmem:[%s4 + $0x30] sm:$0xff]
  %v718 = vld [vmem:[%s4 + $0x38] sm:$0xff]
  %v719 = vld [vmem:[%s4 + $0x40] sm:$0xff]
  %v720 = vld [vmem:[%s4 + $0x48] sm:$0xff]
  %v721 = vld [vmem:[%s4 + $0x50] sm:$0xff]
  %v722 = vld [vmem:[%s4 + $0x58] sm:$0xff]
  %v723 = vld [vmem:[%s4 + $0x60] sm:$0xff]
  %v724 = vld [vmem:[%s4 + $0x68] sm:$0xff]
  %v725 = vld [vmem:[%s4 + $0x70] sm:$0xff]
  %v726 = vld [vmem:[%s4 + $0x78] sm:$0xff]
  %v727 = vld [vmem:[%s4 + $0x80] sm:$0xff]
  %v728 = vld [vmem:[%s4 + $0x88] sm:$0xff]
  %v729 = vld [vmem:[%s4 + $0x90] sm:$0xff]
  %v730 = vld [vmem:[%s4 + $0x98] sm:$0xff]
  %v731 = vld [vmem:[%s4 + $0xa0] sm:$0xff]
  %v732 = vld [vmem:[%s4 + $0xa8] sm:$0xff]
  %v733 = vld [vmem:[%s4 + $0xb0] sm:$0xff]
  %v734 = vld [vmem:[%s4 + $0xb8] sm:$0xff]
  %v735 = vld [vmem:[%s4 + $0xc0] sm:$0x11]
  %v736 = vld [vmem:[%s4 + $0xc8] sm:$0x11]
  %v737 = vld [vmem:[%s5] sm:$0xf]
  %v738 = vld [vmem:[%s5 + $0x4] sm:$0xf]
  %v739 = vld [vmem:[%s5 + $0x8] sm:$0xf]
  %v740 = vld [vmem:[%s5 + $0xc] sm:$0xf]
  %v741 = vld [vmem:[%s5 + $0x10] sm:$0xf]
  %v742 = vld [vmem:[%s5 + $0x14] sm:$0xf]
  %v743 = vld [vmem:[%s5 + $0x18] sm:$0xf]
  %v744 = vld [vmem:[%s5 + $0x1c] sm:$0xf]
  %v745 = vld [vmem:[%s5 + $0x20] sm:$0xf]
  %v746 = vld [vmem:[%s5 + $0x24] sm:$0xf]
  %v747 = vld [vmem:[%s5 + $0x28] sm:$0xf]
  %v748 = vld [vmem:[%s5 + $0x2c] sm:$0xf]
  %v749 = vld [vmem:[%s5 + $0x30] sm:$0xf]
  %v750 = vld [vmem:[%s5 + $0x34] sm:$0xf]
  %v751 = vld [vmem:[%s5 + $0x38] sm:$0xf]
  %v752 = vld [vmem:[%s5 + $0x3c] sm:$0xf]
  %v753 = vld [vmem:[%s5 + $0x40] sm:$0xf]
  %v754 = vld [vmem:[%s5 + $0x44] sm:$0xf]
  %v755 = vld [vmem:[%s5 + $0x48] sm:$0xf]
  %v756 = vld [vmem:[%s5 + $0x4c] sm:$0xf]
  %v757 = vld [vmem:[%s5 + $0x50] sm:$0xf]
  %v758 = vld [vmem:[%s5 + $0x54] sm:$0xf]
  %v759 = vld [vmem:[%s5 + $0x58] sm:$0xf]
  %v760 = vld [vmem:[%s5 + $0x5c] sm:$0xf]
  %v761 = vld [vmem:[%s5 + $0x60] sm:$0xf]
  %v762 = vld [vmem:[%s5 + $0x64] sm:$0xf]
  %v763 = vld [vmem:[%s5 + $0x68] sm:$0xf]
  %v764 = vld [vmem:[%s5 + $0x6c] sm:$0xf]
  %v765 = vld [vmem:[%s5 + $0x70] sm:$0xf]
  %v766 = vld [vmem:[%s5 + $0x74] sm:$0xf]
  %v767 = vld [vmem:[%s5 + $0x78] sm:$0xf]
  %v768 = vld [vmem:[%s5 + $0x7c] sm:$0xf]
  %v769 = vld [vmem:[%s5 + $0x80] sm:$0xf]
  %v770 = vld [vmem:[%s5 + $0x84] sm:$0xf]
  %v771 = vld [vmem:[%s5 + $0x88] sm:$0xf]
  %v772 = vld [vmem:[%s5 + $0x8c] sm:$0xf]
  %v773 = vld [vmem:[%s5 + $0x90] sm:$0xf]
  %v774 = vld [vmem:[%s5 + $0x94] sm:$0xf]
  %v775 = vld [vmem:[%s5 + $0x98] sm:$0xf]
  %v776 = vld [vmem:[%s5 + $0x9c] sm:$0xf]
  %v777 = vld [vmem:[%s5 + $0xa0] sm:$0xf]
  %v778 = vld [vmem:[%s5 + $0xa4] sm:$0xf]
  %v779 = vld [vmem:[%s5 + $0xa8] sm:$0xf]
  %v780 = vld [vmem:[%s5 + $0xac] sm:$0xf]
  %v781 = vld [vmem:[%s5 + $0xb0] sm:$0xf]
  %v782 = vld [vmem:[%s5 + $0xb4] sm:$0xf]
  %v783 = vld [vmem:[%s5 + $0xb8] sm:$0xf]
  %v784 = vld [vmem:[%s5 + $0xbc] sm:$0xf]
  %v785 = vld [vmem:[%s5 + $0xc0] sm:$0xf]
  %v786 = vld [vmem:[%s5 + $0xc4] sm:$0xf]
  %v787 = vld [vmem:[%s5 + $0xc8] sm:$0xf]
  %v788 = vld [vmem:[%s5 + $0xcc] sm:$0xf]
  %v789 = vld [vmem:[%s5 + $0xd0] sm:$0xf]
  %v790 = vld [vmem:[%s5 + $0xd4] sm:$0xf]
  %v791 = vld [vmem:[%s5 + $0xd8] sm:$0xf]
  %v792 = vld [vmem:[%s5 + $0xdc] sm:$0xf]
  %v819 = vunpack.c.l.b16 %v711
  %v820 = vunpack.c.h.b16 %v711
  %v821 = vunpack.c.l.b16 %v712
  %v822 = vunpack.c.h.b16 %v712
  %v823 = vunpack.c.l.b16 %v713
  %v824 = vunpack.c.h.b16 %v713
  %v825 = vunpack.c.l.b16 %v714
  %v826 = vunpack.c.h.b16 %v714
  %v827 = vunpack.c.l.b16 %v715
  %v828 = vunpack.c.h.b16 %v715
  %v829 = vunpack.c.l.b16 %v716
  %v830 = vunpack.c.h.b16 %v716
  %v831 = vunpack.c.l.b16 %v717
  %v832 = vunpack.c.h.b16 %v717
  %v833 = vunpack.c.l.b16 %v718
  %v834 = vunpack.c.h.b16 %v718
  %v835 = vunpack.c.l.b16 %v719
  %v836 = vunpack.c.h.b16 %v719
  %v837 = vunpack.c.l.b16 %v720
  %v838 = vunpack.c.h.b16 %v720
  %v839 = vunpack.c.l.b16 %v721
  %v840 = vunpack.c.h.b16 %v721
  %v841 = vunpack.c.l.b16 %v722
  %v842 = vunpack.c.h.b16 %v722
  %v843 = vunpack.c.l.b16 %v723
  %v844 = vunpack.c.h.b16 %v723
  %v845 = vunpack.c.l.b16 %v724
  %v846 = vunpack.c.h.b16 %v724
  %v847 = vunpack.c.l.b16 %v725
  %v848 = vunpack.c.h.b16 %v725
  %v849 = vunpack.c.l.b16 %v726
  %v850 = vunpack.c.h.b16 %v726
  %v851 = vunpack.c.l.b16 %v727
  %v852 = vunpack.c.h.b16 %v727
  %v853 = vunpack.c.l.b16 %v728
  %v854 = vunpack.c.h.b16 %v728
  %v855 = vunpack.c.l.b16 %v729
  %v856 = vunpack.c.h.b16 %v729
  %v857 = vunpack.c.l.b16 %v730
  %v858 = vunpack.c.h.b16 %v730
  %v859 = vunpack.c.l.b16 %v731
  %v860 = vunpack.c.h.b16 %v731
  %v861 = vunpack.c.l.b16 %v732
  %v862 = vunpack.c.h.b16 %v732
  %v863 = vunpack.c.l.b16 %v733
  %v864 = vunpack.c.h.b16 %v733
  %v865 = vunpack.c.l.b16 %v734
  %v866 = vunpack.c.h.b16 %v734
  %v867 = vunpack.c.l.b16 %v735
  %v868 = vunpack.c.h.b16 %v735
  %v869 = vunpack.c.l.b16 %v736
  %v870 = vunpack.c.h.b16 %v736
  %v871 = vpack.c.b16 %v823, %v819
  %v872 = vpack.c.b16 %v824, %v820
  %v873 = vpack.c.b16 %v825, %v821
  %v874 = vpack.c.b16 %v826, %v822
  %v875 = vpack.c.b16 %v831, %v827
  %v876 = vpack.c.b16 %v832, %v828
  %v877 = vpack.c.b16 %v833, %v829
  %v878 = vpack.c.b16 %v834, %v830
  %v879 = vpack.c.b16 %v839, %v835
  %v880 = vpack.c.b16 %v840, %v836
  %v881 = vpack.c.b16 %v841, %v837
  %v882 = vpack.c.b16 %v842, %v838
  %v883 = vpack.c.b16 %v847, %v843
  %v884 = vpack.c.b16 %v848, %v844
  %v885 = vpack.c.b16 %v849, %v845
  %v886 = vpack.c.b16 %v850, %v846
  %v887 = vpack.c.b16 %v855, %v851
  %v888 = vpack.c.b16 %v856, %v852
  %v889 = vpack.c.b16 %v857, %v853
  %v890 = vpack.c.b16 %v858, %v854
  %v891 = vpack.c.b16 %v863, %v859
  %v892 = vpack.c.b16 %v864, %v860
  %v893 = vpack.c.b16 %v865, %v861
  %v894 = vpack.c.b16 %v866, %v862
  %v895 = vpack.c.b16 %v867, %v867
  %v896 = vpack.c.b16 %v868, %v868
  %v897 = vpack.c.b16 %v869, %v869
  %v898 = vpack.c.b16 %v870, %v870
  %v976 = vunpack.c.l.b16 %v737
  %v977 = vunpack.c.l.b16 %v738
  %v978 = vunpack.c.l.b16 %v739
  %v979 = vunpack.c.l.b16 %v740
  %v980 = vunpack.c.l.b16 %v741
  %v981 = vunpack.c.l.b16 %v742
  %v982 = vunpack.c.l.b16 %v743
  %v983 = vunpack.c.l.b16 %v744
  %v984 = vunpack.c.l.b16 %v745
  %v985 = vunpack.c.l.b16 %v746
  %v986 = vunpack.c.l.b16 %v747
  %v987 = vunpack.c.l.b16 %v748
  %v988 = vunpack.c.l.b16 %v749
  %v989 = vunpack.c.l.b16 %v750
  %v990 = vunpack.c.l.b16 %v751
  %v991 = vunpack.c.l.b16 %v752
  %v992 = vunpack.c.l.b16 %v753
  %v993 = vunpack.c.l.b16 %v754
  %v994 = vunpack.c.l.b16 %v755
  %v995 = vunpack.c.l.b16 %v756
  %v996 = vunpack.c.l.b16 %v757
  %v997 = vunpack.c.l.b16 %v758
  %v998 = vunpack.c.l.b16 %v759
  %v999 = vunpack.c.l.b16 %v760
  %v1000 = vunpack.c.l.b16 %v761
  %v1001 = vunpack.c.l.b16 %v762
  %v1002 = vunpack.c.l.b16 %v763
  %v1003 = vunpack.c.l.b16 %v764
  %v1004 = vunpack.c.l.b16 %v765
  %v1005 = vunpack.c.l.b16 %v766
  %v1006 = vunpack.c.l.b16 %v767
  %v1007 = vunpack.c.l.b16 %v768
  %v1008 = vunpack.c.l.b16 %v769
  %v1009 = vunpack.c.l.b16 %v770
  %v1010 = vunpack.c.l.b16 %v771
  %v1011 = vunpack.c.l.b16 %v772
  %v1012 = vunpack.c.l.b16 %v773
  %v1013 = vunpack.c.l.b16 %v774
  %v1014 = vunpack.c.l.b16 %v775
  %v1015 = vunpack.c.l.b16 %v776
  %v1016 = vunpack.c.l.b16 %v777
  %v1017 = vunpack.c.l.b16 %v778
  %v1018 = vunpack.c.l.b16 %v779
  %v1019 = vunpack.c.l.b16 %v780
  %v1020 = vunpack.c.l.b16 %v781
  %v1021 = vunpack.c.l.b16 %v782
  %v1022 = vunpack.c.l.b16 %v783
  %v1023 = vunpack.c.l.b16 %v784
  %v1024 = vunpack.c.l.b16 %v785
  %v1025 = vunpack.c.l.b16 %v786
  %v1026 = vunpack.c.l.b16 %v787
  %v1027 = vunpack.c.l.b16 %v788
  %v1028 = vunpack.c.l.b16 %v789
  %v1029 = vunpack.c.l.b16 %v790
  %v1030 = vunpack.c.l.b16 %v791
  %v1031 = vunpack.c.l.b16 %v792
  %v1032 = vpack.c.b16 %v977, %v976
  %v1033 = vpack.c.b16 %v979, %v978
  %v1034 = vpack.c.b16 %v981, %v980
  %v1035 = vpack.c.b16 %v983, %v982
  %v1036 = vpack.c.b16 %v985, %v984
  %v1037 = vpack.c.b16 %v987, %v986
  %v1038 = vpack.c.b16 %v989, %v988
  %v1039 = vpack.c.b16 %v991, %v990
  %v1040 = vpack.c.b16 %v993, %v992
  %v1041 = vpack.c.b16 %v995, %v994
  %v1042 = vpack.c.b16 %v997, %v996
  %v1043 = vpack.c.b16 %v999, %v998
  %v1044 = vpack.c.b16 %v1001, %v1000
  %v1045 = vpack.c.b16 %v1003, %v1002
  %v1046 = vpack.c.b16 %v1005, %v1004
  %v1047 = vpack.c.b16 %v1007, %v1006
  %v1048 = vpack.c.b16 %v1009, %v1008
  %v1049 = vpack.c.b16 %v1011, %v1010
  %v1050 = vpack.c.b16 %v1013, %v1012
  %v1051 = vpack.c.b16 %v1015, %v1014
  %v1052 = vpack.c.b16 %v1017, %v1016
  %v1053 = vpack.c.b16 %v1019, %v1018
  %v1054 = vpack.c.b16 %v1021, %v1020
  %v1055 = vpack.c.b16 %v1023, %v1022
  %v1056 = vpack.c.b16 %v1025, %v1024
  %v1057 = vpack.c.b16 %v1027, %v1026
  %v1058 = vpack.c.b16 %v1029, %v1028
  %v1059 = vpack.c.b16 %v1031, %v1030
  %v1089 = vsel %vm433, %v874, 0
  %v1092 = vsel %vm433, %v878, 0
  %v1095 = vsel %vm433, %v882, 0
  %v1098 = vsel %vm433, %v886, 0
  %v1101 = vsel %vm433, %v890, 0
  %v1104 = vsel %vm433, %v894, 0
  %v1107 = vsel %vm433, %v898, 0
  %1109 = vmatprep.subr.bf16.mxu0 0
  %1110 = vmatpush1.bf16.msra.mxu0 %v1032
  %1111 = vmatprep.subr.bf16.mxu0 0
  %1112 = vmatpush1.bf16.msra.mxu0 %v1033
  %1113 = vmatprep.subr.bf16.mxu0 0
  %1114 = vmatpush1.bf16.msra.mxu0 %v1034
  %1115 = vmatprep.subr.bf16.mxu0 0
  %1116 = vmatpush1.bf16.msra.mxu0 %v1035
  %1117 = vmatprep.subr.bf16.mxu0 0
  %1118 = vmatpush1.bf16.msra.mxu0 %v1036
  %1119 = vmatprep.subr.bf16.mxu0 0
  %1120 = vmatpush1.bf16.msra.mxu0 %v1037
  %1121 = vmatprep.subr.bf16.mxu0 0
  %1122 = vmatpush1.bf16.msra.mxu0 %v1038
  %1123 = vmatprep.subr.bf16.mxu0 0
  %1124 = vmatpush1.bf16.msra.mxu0 %v1039
  %1125 = vmatprep.subr.bf16.mxu0 0
  %1126 = vmatpush1.bf16.msra.mxu0 %v1040
  %1127 = vmatprep.subr.bf16.mxu0 0
  %1128 = vmatpush1.bf16.msra.mxu0 %v1041
  %1129 = vmatprep.subr.bf16.mxu0 0
  %1130 = vmatpush1.bf16.msra.mxu0 %v1042
  %1131 = vmatprep.subr.bf16.mxu0 0
  %1132 = vmatpush1.bf16.msra.mxu0 %v1043
  %1133 = vmatprep.subr.bf16.mxu0 0
  %1134 = vmatpush1.bf16.msra.mxu0 %v1044
  %1135 = vmatprep.subr.bf16.mxu0 0
  %1136 = vmatpush1.bf16.msra.mxu0 %v1045
  %1137 = vmatprep.subr.bf16.mxu0 0
  %1138 = vmatpush1.bf16.msra.mxu0 %v1046
  %1139 = vmatprep.subr.bf16.mxu0 0
  %1140 = vmatpush1.bf16.msra.mxu0 %v1047
  %1141 = vmatprep.mubr.bf16.mxu0 %v872
  %1142 = vmatmul.mubr.bf16.gmra.mrb[0].mxu0 %v871
  %v1143 = vpop.f32.mrb[0].mxu0
  %v1144 = vadd.f32 0.0, %v1143
  %v1145 = vpop.f32.mrb[0].mxu0
  %v1146 = vpop.f32.mrb[0].mxu0
  %v1147 = vadd.f32 0.0, %v1146
  %v1148 = vpop.f32.mrb[0].mxu0
  %1149 = vmatprep.mubr.bf16.mxu0 %v876
  %1150 = vmatmul.mubr.bf16.gmra.mrb[0].mxu0 %v875
  %v1151 = vpop.f32.mrb[0].mxu0
  %v1152 = vadd.f32 0.0, %v1151
  %v1153 = vpop.f32.mrb[0].mxu0
  %v1154 = vpop.f32.mrb[0].mxu0
  %v1155 = vadd.f32 0.0, %v1154
  %v1156 = vpop.f32.mrb[0].mxu0
  %1157 = vmatprep.mubr.bf16.mxu0 %v880
  %1158 = vmatmul.mubr.bf16.gmra.mrb[0].mxu0 %v879
  %v1159 = vpop.f32.mrb[0].mxu0
  %v1160 = vadd.f32 0.0, %v1159
  %v1161 = vpop.f32.mrb[0].mxu0
  %v1162 = vpop.f32.mrb[0].mxu0
  %v1163 = vadd.f32 0.0, %v1162
  %v1164 = vpop.f32.mrb[0].mxu0
  %1165 = vmatprep.mubr.bf16.mxu0 %v884
  %1166 = vmatmul.mubr.bf16.gmra.mrb[0].mxu0 %v883
  %v1167 = vpop.f32.mrb[0].mxu0
  %v1168 = vadd.f32 0.0, %v1167
  %v1169 = vpop.f32.mrb[0].mxu0
  %v1170 = vpop.f32.mrb[0].mxu0
  %v1171 = vadd.f32 0.0, %v1170
  %v1172 = vpop.f32.mrb[0].mxu0
  %1173 = vmatprep.mubr.bf16.mxu0 %v888
  %1174 = vmatmul.mubr.bf16.gmra.mrb[0].mxu0 %v887
  %v1175 = vpop.f32.mrb[0].mxu0
  %v1176 = vadd.f32 0.0, %v1175
  %v1177 = vpop.f32.mrb[0].mxu0
  %v1178 = vpop.f32.mrb[0].mxu0
  %v1179 = vadd.f32 0.0, %v1178
  %v1180 = vpop.f32.mrb[0].mxu0
  %1181 = vmatprep.mubr.bf16.mxu0 %v892
  %1182 = vmatmul.mubr.bf16.gmra.mrb[0].mxu0 %v891
  %v1183 = vpop.f32.mrb[0].mxu0
  %v1184 = vadd.f32 0.0, %v1183
  %v1185 = vpop.f32.mrb[0].mxu0
  %v1186 = vpop.f32.mrb[0].mxu0
  %v1187 = vadd.f32 0.0, %v1186
  %v1188 = vpop.f32.mrb[0].mxu0
  %1189 = vmatprep.mubr.bf16.mxu0 %v896
  %1190 = vmatmul.mubr.bf16.gmra.mrb[0].mxu0 %v895
  %v1191 = vpop.f32.mrb[0].mxu0
  %v1192 = vadd.f32 0.0, %v1191
  %v1193 = vpop.f32.mrb[0].mxu0
  %v1194 = vpop.f32.mrb[0].mxu0
  %v1195 = vpop.f32.mrb[0].mxu0
  %1196 = vdwg.mxu0
  %1197 = vmatprep.subr.bf16.mxu0 0
  %1198 = vmatpush1.bf16.msra.mxu0 %v1048
  %1199 = vmatprep.subr.bf16.mxu0 0
  %1200 = vmatpush1.bf16.msra.mxu0 %v1049
  %1201 = vmatprep.subr.bf16.mxu0 0
  %1202 = vmatpush1.bf16.msra.mxu0 %v1050
  %1203 = vmatprep.subr.bf16.mxu0 0
  %1204 = vmatpush1.bf16.msra.mxu0 %v1051
  %1205 = vmatprep.subr.bf16.mxu0 0
  %1206 = vmatpush1.bf16.msra.mxu0 %v1052
  %1207 = vmatprep.subr.bf16.mxu0 0
  %1208 = vmatpush1.bf16.msra.mxu0 %v1053
  %1209 = vmatprep.subr.bf16.mxu0 0
  %1210 = vmatpush1.bf16.msra.mxu0 %v1054
  %1211 = vmatprep.subr.bf16.mxu0 0
  %1212 = vmatpush1.bf16.msra.mxu0 %v1055
  %1213 = vmatprep.subr.bf16.mxu0 0
  %1214 = vmatpush1.bf16.msra.mxu0 %v1056
  %1215 = vmatprep.subr.bf16.mxu0 0
  %1216 = vmatpush1.bf16.msra.mxu0 %v1057
  %1217 = vmatprep.subr.bf16.mxu0 0
  %1218 = vmatpush1.bf16.msra.mxu0 %v1058
  %1219 = vmatprep.subr.bf16.mxu0 0
  %1220 = vmatpush1.bf16.msra.mxu0 %v1059
  %1221 = vmatprep.subr.bf16.mxu0 0
  %1222 = vmatpush1.bf16.msra.mxu0 0
  %1223 = vmatprep.subr.bf16.mxu0 0
  %1224 = vmatpush1.bf16.msra.mxu0 0
  %1225 = vmatprep.subr.bf16.mxu0 0
  %1226 = vmatpush1.bf16.msra.mxu0 0
  %1227 = vmatprep.subr.bf16.mxu0 0
  %1228 = vmatpush1.bf16.msra.mxu0 0
  %1229 = vmatprep.mubr.bf16.mxu0 %v1089
  %1230 = vmatmul.mubr.bf16.gmra.mrb[0].mxu0 %v873
  %v1231 = vpop.f32.mrb[0].mxu0
  %v1232 = vadd.f32 %v1144, %v1231
  %v1233 = vpop.f32.mrb[0].mxu0
  %v1234 = vpop.f32.mrb[0].mxu0
  %v1235 = vadd.f32 %v1147, %v1234
  %v1236 = vpop.f32.mrb[0].mxu0
  %1237 = vmatprep.mubr.bf16.mxu0 %v1092
  %1238 = vmatmul.mubr.bf16.gmra.mrb[0].mxu0 %v877
  %v1239 = vpop.f32.mrb[0].mxu0
  %v1240 = vadd.f32 %v1152, %v1239
  %v1241 = vpop.f32.mrb[0].mxu0
  %v1242 = vpop.f32.mrb[0].mxu0
  %v1243 = vadd.f32 %v1155, %v1242
  %v1244 = vpop.f32.mrb[0].mxu0
  %1245 = vmatprep.mubr.bf16.mxu0 %v1095
  %1246 = vmatmul.mubr.bf16.gmra.mrb[0].mxu0 %v881
  %v1247 = vpop.f32.mrb[0].mxu0
  %v1248 = vadd.f32 %v1160, %v1247
  %v1249 = vpop.f32.mrb[0].mxu0
  %v1250 = vpop.f32.mrb[0].mxu0
  %v1251 = vadd.f32 %v1163, %v1250
  %v1252 = vpop.f32.mrb[0].mxu0
  %1253 = vmatprep.mubr.bf16.mxu0 %v1098
  %1254 = vmatmul.mubr.bf16.gmra.mrb[0].mxu0 %v885
  %v1255 = vpop.f32.mrb[0].mxu0
  %v1256 = vadd.f32 %v1168, %v1255
  %v1257 = vpop.f32.mrb[0].mxu0
  %v1258 = vpop.f32.mrb[0].mxu0
  %v1259 = vadd.f32 %v1171, %v1258
  %v1260 = vpop.f32.mrb[0].mxu0
  %1261 = vmatprep.mubr.bf16.mxu0 %v1101
  %1262 = vmatmul.mubr.bf16.gmra.mrb[0].mxu0 %v889
  %v1263 = vpop.f32.mrb[0].mxu0
  %v1264 = vadd.f32 %v1176, %v1263
  %v1265 = vpop.f32.mrb[0].mxu0
  %v1266 = vpop.f32.mrb[0].mxu0
  %v1267 = vadd.f32 %v1179, %v1266
  %v1268 = vpop.f32.mrb[0].mxu0
  %1269 = vmatprep.mubr.bf16.mxu0 %v1104
  %1270 = vmatmul.mubr.bf16.gmra.mrb[0].mxu0 %v893
  %v1271 = vpop.f32.mrb[0].mxu0
  %v1272 = vadd.f32 %v1184, %v1271
  %v1273 = vpop.f32.mrb[0].mxu0
  %v1274 = vpop.f32.mrb[0].mxu0
  %v1275 = vadd.f32 %v1187, %v1274
  %v1276 = vpop.f32.mrb[0].mxu0
  %1277 = vmatprep.mubr.bf16.mxu0 %v1107
  %1278 = vmatmul.mubr.bf16.gmra.mrb[0].mxu0 %v897
  %v1279 = vpop.f32.mrb[0].mxu0
  %v1280 = vadd.f32 %v1192, %v1279
  %v1281 = vpop.f32.mrb[0].mxu0
  %v1282 = vpop.f32.mrb[0].mxu0
  %v1283 = vpop.f32.mrb[0].mxu0
  %1284 = vdwg.mxu0
  %v1285 = vld [vmem:[%s6] sm:$0x1]
  %v1287 = vlaneseq
  %v1288 = vshrl.u32 %v1287, 7
  %v1289 = vsub.s32 0, %v1288
  %v1290 = vrot.slane %v1285, %v1289
  %v1292 = vmul.f32 %v1232, %v1290
  %v1293 = vmul.f32 %v1235, %v1290
  %v1294 = vmul.f32 %v1240, %v1290
  %v1295 = vmul.f32 %v1243, %v1290
  %v1296 = vmul.f32 %v1248, %v1290
  %v1297 = vmul.f32 %v1251, %v1290
  %v1298 = vmul.f32 %v1256, %v1290
  %v1299 = vmul.f32 %v1259, %v1290
  %v1300 = vmul.f32 %v1264, %v1290
  %v1301 = vmul.f32 %v1267, %v1290
  %v1302 = vmul.f32 %v1272, %v1290
  %v1303 = vmul.f32 %v1275, %v1290
  %v1304 = vmul.f32 %v1280, %v1290
  %v1305 = vld [vmem:[%s7] sm:$0x1]
  %v1307 = vlaneseq
  %v1308 = vshrl.u32 %v1307, 7
  %v1309 = vsub.s32 0, %v1308
  %v1310 = vrot.slane %v1305, %v1309
  %v1312 = vadd.f32 %v1292, %v1310
  %v1313 = vadd.f32 %v1293, %v1310
  %v1314 = vadd.f32 %v1294, %v1310
  %v1315 = vadd.f32 %v1295, %v1310
  %v1316 = vadd.f32 %v1296, %v1310
  %v1317 = vadd.f32 %v1297, %v1310
  %v1318 = vadd.f32 %v1298, %v1310
  %v1319 = vadd.f32 %v1299, %v1310
  %v1320 = vadd.f32 %v1300, %v1310
  %v1321 = vadd.f32 %v1301, %v1310
  %v1322 = vadd.f32 %v1302, %v1310
  %v1323 = vadd.f32 %v1303, %v1310
  %v1324 = vadd.f32 %v1304, %v1310
  %v1325 = vmax.f32 %v1312, 0.0
  %v1326 = vmax.f32 %v1313, 0.0
  %v1327 = vmax.f32 %v1314, 0.0
  %v1328 = vmax.f32 %v1315, 0.0
  %v1329 = vmax.f32 %v1316, 0.0
  %v1330 = vmax.f32 %v1317, 0.0
  %v1331 = vmax.f32 %v1318, 0.0
  %v1332 = vmax.f32 %v1319, 0.0
  %v1333 = vmax.f32 %v1320, 0.0
  %v1334 = vmax.f32 %v1321, 0.0
  %v1335 = vmax.f32 %v1322, 0.0
  %v1336 = vmax.f32 %v1323, 0.0
  %v1337 = vmax.f32 %v1324, 0.0
  %v1338 = vpack.c.bf16 %v1326, %v1325
  %v1339 = vpack.c.bf16 %v1328, %v1327
  %v1340 = vpack.c.bf16 %v1330, %v1329
  %v1341 = vpack.c.bf16 %v1332, %v1331
  %v1342 = vpack.c.bf16 %v1334, %v1333
  %v1343 = vpack.c.bf16 %v1336, %v1335
  %v1344 = vpack.c.bf16 %v1337, %v1337
  %v1352 = vunpack.c.l.b16 %v1338
  %v1353 = vunpack.c.h.b16 %v1338
  %v1354 = vunpack.c.l.b16 %v1339
  %v1355 = vunpack.c.h.b16 %v1339
  %v1356 = vunpack.c.l.b16 %v1340
  %v1357 = vunpack.c.h.b16 %v1340
  %v1358 = vunpack.c.l.b16 %v1341
  %v1359 = vunpack.c.h.b16 %v1341
  %v1360 = vunpack.c.l.b16 %v1342
  %v1361 = vunpack.c.h.b16 %v1342
  %v1362 = vunpack.c.l.b16 %v1343
  %v1363 = vunpack.c.h.b16 %v1343
  %v1364 = vunpack.c.l.b16 %v1344
  %v1365 = vpack.c.b16 %v1352, %v1352
  %v1366 = vpack.c.b16 %v1353, %v1353
  %v1367 = vpack.c.b16 %v1354, %v1354
  %v1368 = vpack.c.b16 %v1355, %v1355
  %v1369 = vpack.c.b16 %v1356, %v1356
  %v1370 = vpack.c.b16 %v1357, %v1357
  %v1371 = vpack.c.b16 %v1358, %v1358
  %v1372 = vpack.c.b16 %v1359, %v1359
  %v1373 = vpack.c.b16 %v1360, %v1360
  %v1374 = vpack.c.b16 %v1361, %v1361
  %v1375 = vpack.c.b16 %v1362, %v1362
  %v1376 = vpack.c.b16 %v1363, %v1363
  %v1377 = vpack.c.b16 %v1364, %v1364
  %vm1391 = vcmask 519168
  %1392 = vst.msk [vmem:[%s9] sm:$0xf] %vm1391, %v1365
  %1393 = vst.msk [vmem:[%s9 + $0x4] sm:$0xf] %vm1391, %v1366
  %1394 = vst.msk [vmem:[%s9 + $0x8] sm:$0xf] %vm1391, %v1367
  %1395 = vst.msk [vmem:[%s9 + $0xc] sm:$0xf] %vm1391, %v1368
  %1396 = vst.msk [vmem:[%s9 + $0x10] sm:$0xf] %vm1391, %v1369
  %1397 = vst.msk [vmem:[%s9 + $0x14] sm:$0xf] %vm1391, %v1370
  %1398 = vst.msk [vmem:[%s9 + $0x18] sm:$0xf] %vm1391, %v1371
  %1399 = vst.msk [vmem:[%s9 + $0x1c] sm:$0xf] %vm1391, %v1372
  %1400 = vst.msk [vmem:[%s9 + $0x20] sm:$0xf] %vm1391, %v1373
  %1401 = vst.msk [vmem:[%s9 + $0x24] sm:$0xf] %vm1391, %v1374
  %1402 = vst.msk [vmem:[%s9 + $0x28] sm:$0xf] %vm1391, %v1375
  %1403 = vst.msk [vmem:[%s9 + $0x2c] sm:$0xf] %vm1391, %v1376
  %vm1404 = vcmask 516096
  %1405 = vst.msk [vmem:[%s9 + $0x30] sm:$0x1] %vm1404, %v1377
  // Predicated region
  $region34: #{incept_init_block.14} parent=0 // pred_check
    _
  $region35: #{incept_init_block.14} parent=0 // pred_check_branch
    %1407 = sbr.rel (0) target = $region37
  $region36: #{incept_init_block.14} parent=0 // pred_region
    _
  $region37: #{incept_init_block.14} parent=0 // pred_fallthru
    _
  // Predicated region
  $region38: #{incept_init_block.14} parent=0 // pred_check
    _
  $region39: #{incept_init_block.14} parent=0 // pred_check_branch
    %1409 = sbr.rel (0) target = $region41
  $region40: #{incept_init_block.14} parent=0 // pred_region
    _
  $region41: #{incept_init_block.14} parent=0 // pred_fallthru
    _
  // Predicated region
  $region42: #{incept_init_block.14} parent=0 // pred_check
    _
  $region43: #{incept_init_block.14} parent=0 // pred_check_branch
    %1411 = sbr.rel (0) target = $region45
  $region44: #{incept_init_block.14} parent=0 // pred_region
    _
  $region45: #{incept_init_block.14} parent=0 // pred_fallthru
    _
  // Predicated region
  $region46: #{incept_init_block.14} parent=0 // pred_check
    _
  $region47: #{incept_init_block.14} parent=0 // pred_check_branch
    %1413 = sbr.rel (0) target = $region49
  $region48: #{incept_init_block.14} parent=0 // pred_region
    _
  $region49: #{incept_init_block.14} parent=0 // pred_fallthru
    _

// kernel: incept_init_block.15
$region0: #{incept_init_block.15}
  #allocation0 [shape = 'u32[]', space=smem, size = 0x4, offset = 0x4, fixed_abs, tag = 'smem constant byte address 0x4 - core index']
  #allocation1 [shape = 'u32[144,128]{1,0:T(1,128)}', space=vmem, size = 0x12000, scoped, tag = 'internal scratch']
  %s0 = inlined_call_operand.vmem [shape: bf16[98,448], index: 0, kind: input, shape index: {}]
  %s1 = inlined_call_operand.vmem [shape: bf16[448,64], index: 1, kind: input, shape index: {}]
  %s2 = inlined_call_operand.vmem [shape: f32[1,64], index: 2, kind: input, shape index: {}]
  %s3 = inlined_call_operand.vmem [shape: f32[1,64], index: 3, kind: input, shape index: {}]
  %s4 = inlined_call_operand.vmem [shape: bf16[98,64], index: 4, kind: output, shape index: {}]
  %s5 = sld [smem:[#allocation0]]
  $region26: #{incept_init_block.15} parent=0
    _
  %s7 = ssub.s32 1, %s5
  %s8 = scalar_select 0, %s7, %s5
  // Predicated region
  $region2: #{incept_init_block.15} parent=0 // pred_check
    _
  $region3: #{incept_init_block.15} parent=0 // pred_check_branch
    %10 = sbr.rel (0) target = $region5
  $region4: #{incept_init_block.15} parent=0 // pred_region
    _
  $region5: #{incept_init_block.15} parent=0 // pred_fallthru
    _
  // Predicated region
  $region6: #{incept_init_block.15} parent=0 // pred_check
    _
  $region7: #{incept_init_block.15} parent=0 // pred_check_branch
    %12 = sbr.rel (0) target = $region9
  $region8: #{incept_init_block.15} parent=0 // pred_region
    _
  $region9: #{incept_init_block.15} parent=0 // pred_fallthru
    _
  // Predicated region
  $region10: #{incept_init_block.15} parent=0 // pred_check
    _
  $region11: #{incept_init_block.15} parent=0 // pred_check_branch
    %14 = sbr.rel (0) target = $region13
  $region12: #{incept_init_block.15} parent=0 // pred_region
    _
  $region13: #{incept_init_block.15} parent=0 // pred_fallthru
    _
  // Predicated region
  $region14: #{incept_init_block.15} parent=0 // pred_check
    _
  $region15: #{incept_init_block.15} parent=0 // pred_check_branch
    %16 = sbr.rel (0) target = $region17
  $region16: #{incept_init_block.15} parent=0 // pred_region
    _
  $region17: #{incept_init_block.15} parent=0 // pred_fallthru
    _
  %v18 = vld [vmem:[%s0] sm:$0xff]
  %v19 = vld [vmem:[%s0 + $0x8] sm:$0xff]
  %v20 = vld [vmem:[%s0 + $0x10] sm:$0xff]
  %v21 = vld [vmem:[%s0 + $0x18] sm:$0xff]
  %v22 = vld [vmem:[%s0 + $0x20] sm:$0xff]
  %v23 = vld [vmem:[%s0 + $0x28] sm:$0xff]
  %v24 = vld [vmem:[%s0 + $0x30] sm:$0xff]
  %v25 = vld [vmem:[%s0 + $0x38] sm:$0xff]
  %v26 = vld [vmem:[%s0 + $0x40] sm:$0xff]
  %v27 = vld [vmem:[%s0 + $0x48] sm:$0xff]
  %v28 = vld [vmem:[%s0 + $0x50] sm:$0xff]
  %v29 = vld [vmem:[%s0 + $0x58] sm:$0xff]
  %v30 = vld [vmem:[%s0 + $0x60] sm:$0xff]
  %v31 = vld [vmem:[%s0 + $0x68] sm:$0xff]
  %v32 = vld [vmem:[%s0 + $0x70] sm:$0xff]
  %v33 = vld [vmem:[%s0 + $0x78] sm:$0xff]
  %v34 = vld [vmem:[%s0 + $0x80] sm:$0xff]
  %v35 = vld [vmem:[%s0 + $0x88] sm:$0xff]
  %v36 = vld [vmem:[%s0 + $0x90] sm:$0xff]
  %v37 = vld [vmem:[%s0 + $0x98] sm:$0xff]
  %v38 = vld [vmem:[%s0 + $0xa0] sm:$0xff]
  %v39 = vld [vmem:[%s0 + $0xa8] sm:$0xff]
  %v40 = vld [vmem:[%s0 + $0xb0] sm:$0xff]
  %v41 = vld [vmem:[%s0 + $0xb8] sm:$0xff]
  %v42 = vld [vmem:[%s0 + $0xc0] sm:$0x11]
  %v43 = vld [vmem:[%s0 + $0xc8] sm:$0x11]
  %v44 = vld [vmem:[%s1] sm:$0xf]
  %v45 = vld [vmem:[%s1 + $0x4] sm:$0xf]
  %v46 = vld [vmem:[%s1 + $0x8] sm:$0xf]
  %v47 = vld [vmem:[%s1 + $0xc] sm:$0xf]
  %v48 = vld [vmem:[%s1 + $0x10] sm:$0xf]
  %v49 = vld [vmem:[%s1 + $0x14] sm:$0xf]
  %v50 = vld [vmem:[%s1 + $0x18] sm:$0xf]
  %v51 = vld [vmem:[%s1 + $0x1c] sm:$0xf]
  %v52 = vld [vmem:[%s1 + $0x20] sm:$0xf]
  %v53 = vld [vmem:[%s1 + $0x24] sm:$0xf]
  %v54 = vld [vmem:[%s1 + $0x28] sm:$0xf]
  %v55 = vld [vmem:[%s1 + $0x2c] sm:$0xf]
  %v56 = vld [vmem:[%s1 + $0x30] sm:$0xf]
  %v57 = vld [vmem:[%s1 + $0x34] sm:$0xf]
  %v58 = vld [vmem:[%s1 + $0x38] sm:$0xf]
  %v59 = vld [vmem:[%s1 + $0x3c] sm:$0xf]
  %v60 = vld [vmem:[%s1 + $0x40] sm:$0xf]
  %v61 = vld [vmem:[%s1 + $0x44] sm:$0xf]
  %v62 = vld [vmem:[%s1 + $0x48] sm:$0xf]
  %v63 = vld [vmem:[%s1 + $0x4c] sm:$0xf]
  %v64 = vld [vmem:[%s1 + $0x50] sm:$0xf]
  %v65 = vld [vmem:[%s1 + $0x54] sm:$0xf]
  %v66 = vld [vmem:[%s1 + $0x58] sm:$0xf]
  %v67 = vld [vmem:[%s1 + $0x5c] sm:$0xf]
  %v68 = vld [vmem:[%s1 + $0x60] sm:$0xf]
  %v69 = vld [vmem:[%s1 + $0x64] sm:$0xf]
  %v70 = vld [vmem:[%s1 + $0x68] sm:$0xf]
  %v71 = vld [vmem:[%s1 + $0x6c] sm:$0xf]
  %v72 = vld [vmem:[%s1 + $0x70] sm:$0xf]
  %v73 = vld [vmem:[%s1 + $0x74] sm:$0xf]
  %v74 = vld [vmem:[%s1 + $0x78] sm:$0xf]
  %v75 = vld [vmem:[%s1 + $0x7c] sm:$0xf]
  %v76 = vld [vmem:[%s1 + $0x80] sm:$0xf]
  %v77 = vld [vmem:[%s1 + $0x84] sm:$0xf]
  %v78 = vld [vmem:[%s1 + $0x88] sm:$0xf]
  %v79 = vld [vmem:[%s1 + $0x8c] sm:$0xf]
  %v80 = vld [vmem:[%s1 + $0x90] sm:$0xf]
  %v81 = vld [vmem:[%s1 + $0x94] sm:$0xf]
  %v82 = vld [vmem:[%s1 + $0x98] sm:$0xf]
  %v83 = vld [vmem:[%s1 + $0x9c] sm:$0xf]
  %v84 = vld [vmem:[%s1 + $0xa0] sm:$0xf]
  %v85 = vld [vmem:[%s1 + $0xa4] sm:$0xf]
  %v86 = vld [vmem:[%s1 + $0xa8] sm:$0xf]
  %v87 = vld [vmem:[%s1 + $0xac] sm:$0xf]
  %v88 = vld [vmem:[%s1 + $0xb0] sm:$0xf]
  %v89 = vld [vmem:[%s1 + $0xb4] sm:$0xf]
  %v90 = vld [vmem:[%s1 + $0xb8] sm:$0xf]
  %v91 = vld [vmem:[%s1 + $0xbc] sm:$0xf]
  %v92 = vld [vmem:[%s1 + $0xc0] sm:$0xf]
  %v93 = vld [vmem:[%s1 + $0xc4] sm:$0xf]
  %v94 = vld [vmem:[%s1 + $0xc8] sm:$0xf]
  %v95 = vld [vmem:[%s1 + $0xcc] sm:$0xf]
  %v96 = vld [vmem:[%s1 + $0xd0] sm:$0xf]
  %v97 = vld [vmem:[%s1 + $0xd4] sm:$0xf]
  %v98 = vld [vmem:[%s1 + $0xd8] sm:$0xf]
  %v99 = vld [vmem:[%s1 + $0xdc] sm:$0xf]
  %v126 = vunpack.c.l.b16 %v18
  %v127 = vunpack.c.h.b16 %v18
  %v128 = vunpack.c.l.b16 %v19
  %v129 = vunpack.c.h.b16 %v19
  %v130 = vunpack.c.l.b16 %v20
  %v131 = vunpack.c.h.b16 %v20
  %v132 = vunpack.c.l.b16 %v21
  %v133 = vunpack.c.h.b16 %v21
  %v134 = vunpack.c.l.b16 %v22
  %v135 = vunpack.c.h.b16 %v22
  %v136 = vunpack.c.l.b16 %v23
  %v137 = vunpack.c.h.b16 %v23
  %v138 = vunpack.c.l.b16 %v24
  %v139 = vunpack.c.h.b16 %v24
  %v140 = vunpack.c.l.b16 %v25
  %v141 = vunpack.c.h.b16 %v25
  %v142 = vunpack.c.l.b16 %v26
  %v143 = vunpack.c.h.b16 %v26
  %v144 = vunpack.c.l.b16 %v27
  %v145 = vunpack.c.h.b16 %v27
  %v146 = vunpack.c.l.b16 %v28
  %v147 = vunpack.c.h.b16 %v28
  %v148 = vunpack.c.l.b16 %v29
  %v149 = vunpack.c.h.b16 %v29
  %v150 = vunpack.c.l.b16 %v30
  %v151 = vunpack.c.h.b16 %v30
  %v152 = vunpack.c.l.b16 %v31
  %v153 = vunpack.c.h.b16 %v31
  %v154 = vunpack.c.l.b16 %v32
  %v155 = vunpack.c.h.b16 %v32
  %v156 = vunpack.c.l.b16 %v33
  %v157 = vunpack.c.h.b16 %v33
  %v158 = vunpack.c.l.b16 %v34
  %v159 = vunpack.c.h.b16 %v34
  %v160 = vunpack.c.l.b16 %v35
  %v161 = vunpack.c.h.b16 %v35
  %v162 = vunpack.c.l.b16 %v36
  %v163 = vunpack.c.h.b16 %v36
  %v164 = vunpack.c.l.b16 %v37
  %v165 = vunpack.c.h.b16 %v37
  %v166 = vunpack.c.l.b16 %v38
  %v167 = vunpack.c.h.b16 %v38
  %v168 = vunpack.c.l.b16 %v39
  %v169 = vunpack.c.h.b16 %v39
  %v170 = vunpack.c.l.b16 %v40
  %v171 = vunpack.c.h.b16 %v40
  %v172 = vunpack.c.l.b16 %v41
  %v173 = vunpack.c.h.b16 %v41
  %v174 = vunpack.c.l.b16 %v42
  %v175 = vunpack.c.h.b16 %v42
  %v176 = vunpack.c.l.b16 %v43
  %v177 = vunpack.c.h.b16 %v43
  %v178 = vpack.c.b16 %v130, %v126
  %v179 = vpack.c.b16 %v131, %v127
  %v180 = vpack.c.b16 %v132, %v128
  %v181 = vpack.c.b16 %v133, %v129
  %v182 = vpack.c.b16 %v138, %v134
  %v183 = vpack.c.b16 %v139, %v135
  %v184 = vpack.c.b16 %v140, %v136
  %v185 = vpack.c.b16 %v141, %v137
  %v186 = vpack.c.b16 %v146, %v142
  %v187 = vpack.c.b16 %v147, %v143
  %v188 = vpack.c.b16 %v148, %v144
  %v189 = vpack.c.b16 %v149, %v145
  %v190 = vpack.c.b16 %v154, %v150
  %v191 = vpack.c.b16 %v155, %v151
  %v192 = vpack.c.b16 %v156, %v152
  %v193 = vpack.c.b16 %v157, %v153
  %v194 = vpack.c.b16 %v162, %v158
  %v195 = vpack.c.b16 %v163, %v159
  %v196 = vpack.c.b16 %v164, %v160
  %v197 = vpack.c.b16 %v165, %v161
  %v198 = vpack.c.b16 %v170, %v166
  %v199 = vpack.c.b16 %v171, %v167
  %v200 = vpack.c.b16 %v172, %v168
  %v201 = vpack.c.b16 %v173, %v169
  %v202 = vpack.c.b16 %v174, %v174
  %v203 = vpack.c.b16 %v175, %v175
  %v204 = vpack.c.b16 %v176, %v176
  %v205 = vpack.c.b16 %v177, %v177
  %v283 = vunpack.c.l.b16 %v44
  %v284 = vunpack.c.l.b16 %v45
  %v285 = vunpack.c.l.b16 %v46
  %v286 = vunpack.c.l.b16 %v47
  %v287 = vunpack.c.l.b16 %v48
  %v288 = vunpack.c.l.b16 %v49
  %v289 = vunpack.c.l.b16 %v50
  %v290 = vunpack.c.l.b16 %v51
  %v291 = vunpack.c.l.b16 %v52
  %v292 = vunpack.c.l.b16 %v53
  %v293 = vunpack.c.l.b16 %v54
  %v294 = vunpack.c.l.b16 %v55
  %v295 = vunpack.c.l.b16 %v56
  %v296 = vunpack.c.l.b16 %v57
  %v297 = vunpack.c.l.b16 %v58
  %v298 = vunpack.c.l.b16 %v59
  %v299 = vunpack.c.l.b16 %v60
  %v300 = vunpack.c.l.b16 %v61
  %v301 = vunpack.c.l.b16 %v62
  %v302 = vunpack.c.l.b16 %v63
  %v303 = vunpack.c.l.b16 %v64
  %v304 = vunpack.c.l.b16 %v65
  %v305 = vunpack.c.l.b16 %v66
  %v306 = vunpack.c.l.b16 %v67
  %v307 = vunpack.c.l.b16 %v68
  %v308 = vunpack.c.l.b16 %v69
  %v309 = vunpack.c.l.b16 %v70
  %v310 = vunpack.c.l.b16 %v71
  %v311 = vunpack.c.l.b16 %v72
  %v312 = vunpack.c.l.b16 %v73
  %v313 = vunpack.c.l.b16 %v74
  %v314 = vunpack.c.l.b16 %v75
  %v315 = vunpack.c.l.b16 %v76
  %v316 = vunpack.c.l.b16 %v77
  %v317 = vunpack.c.l.b16 %v78
  %v318 = vunpack.c.l.b16 %v79
  %v319 = vunpack.c.l.b16 %v80
  %v320 = vunpack.c.l.b16 %v81
  %v321 = vunpack.c.l.b16 %v82
  %v322 = vunpack.c.l.b16 %v83
  %v323 = vunpack.c.l.b16 %v84
  %v324 = vunpack.c.l.b16 %v85
  %v325 = vunpack.c.l.b16 %v86
  %v326 = vunpack.c.l.b16 %v87
  %v327 = vunpack.c.l.b16 %v88
  %v328 = vunpack.c.l.b16 %v89
  %v329 = vunpack.c.l.b16 %v90
  %v330 = vunpack.c.l.b16 %v91
  %v331 = vunpack.c.l.b16 %v92
  %v332 = vunpack.c.l.b16 %v93
  %v333 = vunpack.c.l.b16 %v94
  %v334 = vunpack.c.l.b16 %v95
  %v335 = vunpack.c.l.b16 %v96
  %v336 = vunpack.c.l.b16 %v97
  %v337 = vunpack.c.l.b16 %v98
  %v338 = vunpack.c.l.b16 %v99
  %v339 = vpack.c.b16 %v284, %v283
  %v340 = vpack.c.b16 %v286, %v285
  %v341 = vpack.c.b16 %v288, %v287
  %v342 = vpack.c.b16 %v290, %v289
  %v343 = vpack.c.b16 %v292, %v291
  %v344 = vpack.c.b16 %v294, %v293
  %v345 = vpack.c.b16 %v296, %v295
  %v346 = vpack.c.b16 %v298, %v297
  %v347 = vpack.c.b16 %v300, %v299
  %v348 = vpack.c.b16 %v302, %v301
  %v349 = vpack.c.b16 %v304, %v303
  %v350 = vpack.c.b16 %v306, %v305
  %v351 = vpack.c.b16 %v308, %v307
  %v352 = vpack.c.b16 %v310, %v309
  %v353 = vpack.c.b16 %v312, %v311
  %v354 = vpack.c.b16 %v314, %v313
  %v355 = vpack.c.b16 %v316, %v315
  %v356 = vpack.c.b16 %v318, %v317
  %v357 = vpack.c.b16 %v320, %v319
  %v358 = vpack.c.b16 %v322, %v321
  %v359 = vpack.c.b16 %v324, %v323
  %v360 = vpack.c.b16 %v326, %v325
  %v361 = vpack.c.b16 %v328, %v327
  %v362 = vpack.c.b16 %v330, %v329
  %v363 = vpack.c.b16 %v332, %v331
  %v364 = vpack.c.b16 %v334, %v333
  %v365 = vpack.c.b16 %v336, %v335
  %v366 = vpack.c.b16 %v338, %v337
  %vm395 = vcmask 523264
  %v397 = vsel %vm395, %v181, 0
  %v400 = vsel %vm395, %v185, 0
  %v403 = vsel %vm395, %v189, 0
  %v406 = vsel %vm395, %v193, 0
  %v409 = vsel %vm395, %v197, 0
  %v412 = vsel %vm395, %v201, 0
  %v415 = vsel %vm395, %v205, 0
  %417 = vmatprep.subr.bf16.mxu0 0
  %418 = vmatpush1.bf16.msra.mxu0 %v339
  %419 = vmatprep.subr.bf16.mxu0 0
  %420 = vmatpush1.bf16.msra.mxu0 %v340
  %421 = vmatprep.subr.bf16.mxu0 0
  %422 = vmatpush1.bf16.msra.mxu0 %v341
  %423 = vmatprep.subr.bf16.mxu0 0
  %424 = vmatpush1.bf16.msra.mxu0 %v342
  %425 = vmatprep.subr.bf16.mxu0 0
  %426 = vmatpush1.bf16.msra.mxu0 %v343
  %427 = vmatprep.subr.bf16.mxu0 0
  %428 = vmatpush1.bf16.msra.mxu0 %v344
  %429 = vmatprep.subr.bf16.mxu0 0
  %430 = vmatpush1.bf16.msra.mxu0 %v345
  %431 = vmatprep.subr.bf16.mxu0 0
  %432 = vmatpush1.bf16.msra.mxu0 %v346
  %433 = vmatprep.subr.bf16.mxu0 0
  %434 = vmatpush1.bf16.msra.mxu0 %v347
  %435 = vmatprep.subr.bf16.mxu0 0
  %436 = vmatpush1.bf16.msra.mxu0 %v348
  %437 = vmatprep.subr.bf16.mxu0 0
  %438 = vmatpush1.bf16.msra.mxu0 %v349
  %439 = vmatprep.subr.bf16.mxu0 0
  %440 = vmatpush1.bf16.msra.mxu0 %v350
  %441 = vmatprep.subr.bf16.mxu0 0
  %442 = vmatpush1.bf16.msra.mxu0 %v351
  %443 = vmatprep.subr.bf16.mxu0 0
  %444 = vmatpush1.bf16.msra.mxu0 %v352
  %445 = vmatprep.subr.bf16.mxu0 0
  %446 = vmatpush1.bf16.msra.mxu0 %v353
  %447 = vmatprep.subr.bf16.mxu0 0
  %448 = vmatpush1.bf16.msra.mxu0 %v354
  %449 = vmatprep.mubr.bf16.mxu0 %v179
  %450 = vmatmul.mubr.bf16.gmra.mrb[0].mxu0 %v178
  %v451 = vpop.f32.mrb[0].mxu0
  %v452 = vadd.f32 0.0, %v451
  %v453 = vpop.f32.mrb[0].mxu0
  %v454 = vpop.f32.mrb[0].mxu0
  %v455 = vadd.f32 0.0, %v454
  %v456 = vpop.f32.mrb[0].mxu0
  %457 = vmatprep.mubr.bf16.mxu0 %v183
  %458 = vmatmul.mubr.bf16.gmra.mrb[0].mxu0 %v182
  %v459 = vpop.f32.mrb[0].mxu0
  %v460 = vadd.f32 0.0, %v459
  %v461 = vpop.f32.mrb[0].mxu0
  %v462 = vpop.f32.mrb[0].mxu0
  %v463 = vadd.f32 0.0, %v462
  %v464 = vpop.f32.mrb[0].mxu0
  %465 = vmatprep.mubr.bf16.mxu0 %v187
  %466 = vmatmul.mubr.bf16.gmra.mrb[0].mxu0 %v186
  %v467 = vpop.f32.mrb[0].mxu0
  %v468 = vadd.f32 0.0, %v467
  %v469 = vpop.f32.mrb[0].mxu0
  %v470 = vpop.f32.mrb[0].mxu0
  %v471 = vadd.f32 0.0, %v470
  %v472 = vpop.f32.mrb[0].mxu0
  %473 = vmatprep.mubr.bf16.mxu0 %v191
  %474 = vmatmul.mubr.bf16.gmra.mrb[0].mxu0 %v190
  %v475 = vpop.f32.mrb[0].mxu0
  %v476 = vadd.f32 0.0, %v475
  %v477 = vpop.f32.mrb[0].mxu0
  %v478 = vpop.f32.mrb[0].mxu0
  %v479 = vadd.f32 0.0, %v478
  %v480 = vpop.f32.mrb[0].mxu0
  %481 = vmatprep.mubr.bf16.mxu0 %v195
  %482 = vmatmul.mubr.bf16.gmra.mrb[0].mxu0 %v194
  %v483 = vpop.f32.mrb[0].mxu0
  %v484 = vadd.f32 0.0, %v483
  %v485 = vpop.f32.mrb[0].mxu0
  %v486 = vpop.f32.mrb[0].mxu0
  %v487 = vadd.f32 0.0, %v486
  %v488 = vpop.f32.mrb[0].mxu0
  %489 = vmatprep.mubr.bf16.mxu0 %v199
  %490 = vmatmul.mubr.bf16.gmra.mrb[0].mxu0 %v198
  %v491 = vpop.f32.mrb[0].mxu0
  %v492 = vadd.f32 0.0, %v491
  %v493 = vpop.f32.mrb[0].mxu0
  %v494 = vpop.f32.mrb[0].mxu0
  %v495 = vadd.f32 0.0, %v494
  %v496 = vpop.f32.mrb[0].mxu0
  %497 = vmatprep.mubr.bf16.mxu0 %v203
  %498 = vmatmul.mubr.bf16.gmra.mrb[0].mxu0 %v202
  %v499 = vpop.f32.mrb[0].mxu0
  %v500 = vadd.f32 0.0, %v499
  %v501 = vpop.f32.mrb[0].mxu0
  %v502 = vpop.f32.mrb[0].mxu0
  %v503 = vpop.f32.mrb[0].mxu0
  %504 = vdwg.mxu0
  %505 = vmatprep.subr.bf16.mxu0 0
  %506 = vmatpush1.bf16.msra.mxu0 %v355
  %507 = vmatprep.subr.bf16.mxu0 0
  %508 = vmatpush1.bf16.msra.mxu0 %v356
  %509 = vmatprep.subr.bf16.mxu0 0
  %510 = vmatpush1.bf16.msra.mxu0 %v357
  %511 = vmatprep.subr.bf16.mxu0 0
  %512 = vmatpush1.bf16.msra.mxu0 %v358
  %513 = vmatprep.subr.bf16.mxu0 0
  %514 = vmatpush1.bf16.msra.mxu0 %v359
  %515 = vmatprep.subr.bf16.mxu0 0
  %516 = vmatpush1.bf16.msra.mxu0 %v360
  %517 = vmatprep.subr.bf16.mxu0 0
  %518 = vmatpush1.bf16.msra.mxu0 %v361
  %519 = vmatprep.subr.bf16.mxu0 0
  %520 = vmatpush1.bf16.msra.mxu0 %v362
  %521 = vmatprep.subr.bf16.mxu0 0
  %522 = vmatpush1.bf16.msra.mxu0 %v363
  %523 = vmatprep.subr.bf16.mxu0 0
  %524 = vmatpush1.bf16.msra.mxu0 %v364
  %525 = vmatprep.subr.bf16.mxu0 0
  %526 = vmatpush1.bf16.msra.mxu0 %v365
  %527 = vmatprep.subr.bf16.mxu0 0
  %528 = vmatpush1.bf16.msra.mxu0 %v366
  %529 = vmatprep.subr.bf16.mxu0 0
  %530 = vmatpush1.bf16.msra.mxu0 0
  %531 = vmatprep.subr.bf16.mxu0 0
  %532 = vmatpush1.bf16.msra.mxu0 0
  %533 = vmatprep.subr.bf16.mxu0 0
  %534 = vmatpush1.bf16.msra.mxu0 0
  %535 = vmatprep.subr.bf16.mxu0 0
  %536 = vmatpush1.bf16.msra.mxu0 0
  %537 = vmatprep.mubr.bf16.mxu0 %v397
  %538 = vmatmul.mubr.bf16.gmra.mrb[0].mxu0 %v180
  %v539 = vpop.f32.mrb[0].mxu0
  %v540 = vadd.f32 %v452, %v539
  %v541 = vpop.f32.mrb[0].mxu0
  %v542 = vpop.f32.mrb[0].mxu0
  %v543 = vadd.f32 %v455, %v542
  %v544 = vpop.f32.mrb[0].mxu0
  %545 = vmatprep.mubr.bf16.mxu0 %v400
  %546 = vmatmul.mubr.bf16.gmra.mrb[0].mxu0 %v184
  %v547 = vpop.f32.mrb[0].mxu0
  %v548 = vadd.f32 %v460, %v547
  %v549 = vpop.f32.mrb[0].mxu0
  %v550 = vpop.f32.mrb[0].mxu0
  %v551 = vadd.f32 %v463, %v550
  %v552 = vpop.f32.mrb[0].mxu0
  %553 = vmatprep.mubr.bf16.mxu0 %v403
  %554 = vmatmul.mubr.bf16.gmra.mrb[0].mxu0 %v188
  %v555 = vpop.f32.mrb[0].mxu0
  %v556 = vadd.f32 %v468, %v555
  %v557 = vpop.f32.mrb[0].mxu0
  %v558 = vpop.f32.mrb[0].mxu0
  %v559 = vadd.f32 %v471, %v558
  %v560 = vpop.f32.mrb[0].mxu0
  %561 = vmatprep.mubr.bf16.mxu0 %v406
  %562 = vmatmul.mubr.bf16.gmra.mrb[0].mxu0 %v192
  %v563 = vpop.f32.mrb[0].mxu0
  %v564 = vadd.f32 %v476, %v563
  %v565 = vpop.f32.mrb[0].mxu0
  %v566 = vpop.f32.mrb[0].mxu0
  %v567 = vadd.f32 %v479, %v566
  %v568 = vpop.f32.mrb[0].mxu0
  %569 = vmatprep.mubr.bf16.mxu0 %v409
  %570 = vmatmul.mubr.bf16.gmra.mrb[0].mxu0 %v196
  %v571 = vpop.f32.mrb[0].mxu0
  %v572 = vadd.f32 %v484, %v571
  %v573 = vpop.f32.mrb[0].mxu0
  %v574 = vpop.f32.mrb[0].mxu0
  %v575 = vadd.f32 %v487, %v574
  %v576 = vpop.f32.mrb[0].mxu0
  %577 = vmatprep.mubr.bf16.mxu0 %v412
  %578 = vmatmul.mubr.bf16.gmra.mrb[0].mxu0 %v200
  %v579 = vpop.f32.mrb[0].mxu0
  %v580 = vadd.f32 %v492, %v579
  %v581 = vpop.f32.mrb[0].mxu0
  %v582 = vpop.f32.mrb[0].mxu0
  %v583 = vadd.f32 %v495, %v582
  %v584 = vpop.f32.mrb[0].mxu0
  %585 = vmatprep.mubr.bf16.mxu0 %v415
  %586 = vmatmul.mubr.bf16.gmra.mrb[0].mxu0 %v204
  %v587 = vpop.f32.mrb[0].mxu0
  %v588 = vadd.f32 %v500, %v587
  %v589 = vpop.f32.mrb[0].mxu0
  %v590 = vpop.f32.mrb[0].mxu0
  %v591 = vpop.f32.mrb[0].mxu0
  %592 = vdwg.mxu0
  %v593 = vld [vmem:[%s2] sm:$0x1]
  %v595 = vlaneseq
  %v596 = vshrl.u32 %v595, 7
  %v597 = vsub.s32 0, %v596
  %v598 = vrot.slane %v593, %v597
  %v600 = vmul.f32 %v540, %v598
  %v601 = vmul.f32 %v543, %v598
  %v602 = vmul.f32 %v548, %v598
  %v603 = vmul.f32 %v551, %v598
  %v604 = vmul.f32 %v556, %v598
  %v605 = vmul.f32 %v559, %v598
  %v606 = vmul.f32 %v564, %v598
  %v607 = vmul.f32 %v567, %v598
  %v608 = vmul.f32 %v572, %v598
  %v609 = vmul.f32 %v575, %v598
  %v610 = vmul.f32 %v580, %v598
  %v611 = vmul.f32 %v583, %v598
  %v612 = vmul.f32 %v588, %v598
  %v613 = vld [vmem:[%s3] sm:$0x1]
  %v615 = vlaneseq
  %v616 = vshrl.u32 %v615, 7
  %v617 = vsub.s32 0, %v616
  %v618 = vrot.slane %v613, %v617
  %v620 = vadd.f32 %v600, %v618
  %v621 = vadd.f32 %v601, %v618
  %v622 = vadd.f32 %v602, %v618
  %v623 = vadd.f32 %v603, %v618
  %v624 = vadd.f32 %v604, %v618
  %v625 = vadd.f32 %v605, %v618
  %v626 = vadd.f32 %v606, %v618
  %v627 = vadd.f32 %v607, %v618
  %v628 = vadd.f32 %v608, %v618
  %v629 = vadd.f32 %v609, %v618
  %v630 = vadd.f32 %v610, %v618
  %v631 = vadd.f32 %v611, %v618
  %v632 = vadd.f32 %v612, %v618
  %v633 = vmax.f32 %v620, 0.0
  %v634 = vmax.f32 %v621, 0.0
  %v635 = vmax.f32 %v622, 0.0
  %v636 = vmax.f32 %v623, 0.0
  %v637 = vmax.f32 %v624, 0.0
  %v638 = vmax.f32 %v625, 0.0
  %v639 = vmax.f32 %v626, 0.0
  %v640 = vmax.f32 %v627, 0.0
  %v641 = vmax.f32 %v628, 0.0
  %v642 = vmax.f32 %v629, 0.0
  %v643 = vmax.f32 %v630, 0.0
  %v644 = vmax.f32 %v631, 0.0
  %v645 = vmax.f32 %v632, 0.0
  %v646 = vpack.c.bf16 %v634, %v633
  %v647 = vpack.c.bf16 %v636, %v635
  %v648 = vpack.c.bf16 %v638, %v637
  %v649 = vpack.c.bf16 %v640, %v639
  %v650 = vpack.c.bf16 %v642, %v641
  %v651 = vpack.c.bf16 %v644, %v643
  %v652 = vpack.c.bf16 %v645, %v645
  %v660 = vunpack.c.l.b16 %v646
  %v661 = vunpack.c.h.b16 %v646
  %v662 = vunpack.c.l.b16 %v647
  %v663 = vunpack.c.h.b16 %v647
  %v664 = vunpack.c.l.b16 %v648
  %v665 = vunpack.c.h.b16 %v648
  %v666 = vunpack.c.l.b16 %v649
  %v667 = vunpack.c.h.b16 %v649
  %v668 = vunpack.c.l.b16 %v650
  %v669 = vunpack.c.h.b16 %v650
  %v670 = vunpack.c.l.b16 %v651
  %v671 = vunpack.c.h.b16 %v651
  %v672 = vunpack.c.l.b16 %v652
  %v673 = vpack.c.b16 %v660, %v660
  %v674 = vpack.c.b16 %v661, %v661
  %v675 = vpack.c.b16 %v662, %v662
  %v676 = vpack.c.b16 %v663, %v663
  %v677 = vpack.c.b16 %v664, %v664
  %v678 = vpack.c.b16 %v665, %v665
  %v679 = vpack.c.b16 %v666, %v666
  %v680 = vpack.c.b16 %v667, %v667
  %v681 = vpack.c.b16 %v668, %v668
  %v682 = vpack.c.b16 %v669, %v669
  %v683 = vpack.c.b16 %v670, %v670
  %v684 = vpack.c.b16 %v671, %v671
  %v685 = vpack.c.b16 %v672, %v672
  %vm699 = vcmask 519168
  %700 = vst.msk [vmem:[%s4] sm:$0xf] %vm699, %v673
  %701 = vst.msk [vmem:[%s4 + $0x4] sm:$0xf] %vm699, %v674
  %702 = vst.msk [vmem:[%s4 + $0x8] sm:$0xf] %vm699, %v675
  %703 = vst.msk [vmem:[%s4 + $0xc] sm:$0xf] %vm699, %v676
  %704 = vst.msk [vmem:[%s4 + $0x10] sm:$0xf] %vm699, %v677
  %705 = vst.msk [vmem:[%s4 + $0x14] sm:$0xf] %vm699, %v678
  %706 = vst.msk [vmem:[%s4 + $0x18] sm:$0xf] %vm699, %v679
  %707 = vst.msk [vmem:[%s4 + $0x1c] sm:$0xf] %vm699, %v680
  %708 = vst.msk [vmem:[%s4 + $0x20] sm:$0xf] %vm699, %v681
  %709 = vst.msk [vmem:[%s4 + $0x24] sm:$0xf] %vm699, %v682
  %710 = vst.msk [vmem:[%s4 + $0x28] sm:$0xf] %vm699, %v683
  %711 = vst.msk [vmem:[%s4 + $0x2c] sm:$0xf] %vm699, %v684
  %vm712 = vcmask 516096
  %713 = vst.msk [vmem:[%s4 + $0x30] sm:$0x1] %vm712, %v685
  // Predicated region
  $region18: #{incept_init_block.15} parent=0 // pred_check
    _
  $region19: #{incept_init_block.15} parent=0 // pred_check_branch
    %715 = sbr.rel (0) target = $region21
  $region20: #{incept_init_block.15} parent=0 // pred_region
    _
  $region21: #{incept_init_block.15} parent=0 // pred_fallthru
    _
  // Predicated region
  $region22: #{incept_init_block.15} parent=0 // pred_check
    _
  $region23: #{incept_init_block.15} parent=0 // pred_check_branch
    %717 = sbr.rel (0) target = $region25
  $region24: #{incept_init_block.15} parent=0 // pred_region
    _
  $region25: #{incept_init_block.15} parent=0 // pred_fallthru
    _

// kernel: incept_init_block.16
$region0: #{incept_init_block.16}
  #allocation0 [shape = 'u32[]', space=smem, size = 0x4, offset = 0x4, fixed_abs, tag = 'smem constant byte address 0x4 - core index']
  #allocation1 [shape = 'u32[144,128]{1,0:T(1,128)}', space=vmem, size = 0x12000, scoped, tag = 'internal scratch']
  %s0 = inlined_call_operand.vmem [shape: bf16[50,576], index: 0, kind: input, shape index: {}]
  %s1 = inlined_call_operand.vmem [shape: bf16[576,96], index: 1, kind: input, shape index: {}]
  %s2 = inlined_call_operand.vmem [shape: f32[1,96], index: 2, kind: input, shape index: {}]
  %s3 = inlined_call_operand.vmem [shape: f32[1,96], index: 3, kind: input, shape index: {}]
  %s4 = inlined_call_operand.vmem [shape: bf16[50,96], index: 4, kind: output, shape index: {}]
  %s5 = sld [smem:[#allocation0]]
  $region26: #{incept_init_block.16} parent=0
    _
  %s7 = ssub.s32 1, %s5
  %s8 = scalar_select 0, %s7, %s5
  // Predicated region
  $region2: #{incept_init_block.16} parent=0 // pred_check
    _
  $region3: #{incept_init_block.16} parent=0 // pred_check_branch
    %10 = sbr.rel (0) target = $region5
  $region4: #{incept_init_block.16} parent=0 // pred_region
    _
  $region5: #{incept_init_block.16} parent=0 // pred_fallthru
    _
  // Predicated region
  $region6: #{incept_init_block.16} parent=0 // pred_check
    _
  $region7: #{incept_init_block.16} parent=0 // pred_check_branch
    %12 = sbr.rel (0) target = $region9
  $region8: #{incept_init_block.16} parent=0 // pred_region
    _
  $region9: #{incept_init_block.16} parent=0 // pred_fallthru
    _
  // Predicated region
  $region10: #{incept_init_block.16} parent=0 // pred_check
    _
  $region11: #{incept_init_block.16} parent=0 // pred_check_branch
    %14 = sbr.rel (0) target = $region13
  $region12: #{incept_init_block.16} parent=0 // pred_region
    _
  $region13: #{incept_init_block.16} parent=0 // pred_fallthru
    _
  // Predicated region
  $region14: #{incept_init_block.16} parent=0 // pred_check
    _
  $region15: #{incept_init_block.16} parent=0 // pred_check_branch
    %16 = sbr.rel (0) target = $region17
  $region16: #{incept_init_block.16} parent=0 // pred_region
    _
  $region17: #{incept_init_block.16} parent=0 // pred_fallthru
    _
  %v18 = vld [vmem:[%s0] sm:$0xff]
  %v19 = vld [vmem:[%s0 + $0x8] sm:$0xff]
  %v20 = vld [vmem:[%s0 + $0x10] sm:$0xf]
  %v21 = vld [vmem:[%s0 + $0x14] sm:$0xff]
  %v22 = vld [vmem:[%s0 + $0x1c] sm:$0xff]
  %v23 = vld [vmem:[%s0 + $0x24] sm:$0xf]
  %v24 = vld [vmem:[%s0 + $0x28] sm:$0xff]
  %v25 = vld [vmem:[%s0 + $0x30] sm:$0xff]
  %v26 = vld [vmem:[%s0 + $0x38] sm:$0xf]
  %v27 = vld [vmem:[%s0 + $0x3c] sm:$0xff]
  %v28 = vld [vmem:[%s0 + $0x44] sm:$0xff]
  %v29 = vld [vmem:[%s0 + $0x4c] sm:$0xf]
  %v30 = vld [vmem:[%s0 + $0x50] sm:$0xff]
  %v31 = vld [vmem:[%s0 + $0x58] sm:$0xff]
  %v32 = vld [vmem:[%s0 + $0x60] sm:$0xf]
  %v33 = vld [vmem:[%s0 + $0x64] sm:$0xff]
  %v34 = vld [vmem:[%s0 + $0x6c] sm:$0xff]
  %v35 = vld [vmem:[%s0 + $0x74] sm:$0xf]
  %v36 = vld [vmem:[%s0 + $0x78] sm:$0x11]
  %v37 = vld [vmem:[%s0 + $0x80] sm:$0x11]
  %v38 = vld [vmem:[%s0 + $0x88] sm:$0x1]
  %v39 = vld [vmem:[%s1] sm:$0xf]
  %v40 = vld [vmem:[%s1 + $0x4] sm:$0xf]
  %v41 = vld [vmem:[%s1 + $0x8] sm:$0xf]
  %v42 = vld [vmem:[%s1 + $0xc] sm:$0xf]
  %v43 = vld [vmem:[%s1 + $0x10] sm:$0xf]
  %v44 = vld [vmem:[%s1 + $0x14] sm:$0xf]
  %v45 = vld [vmem:[%s1 + $0x18] sm:$0xf]
  %v46 = vld [vmem:[%s1 + $0x1c] sm:$0xf]
  %v47 = vld [vmem:[%s1 + $0x20] sm:$0xf]
  %v48 = vld [vmem:[%s1 + $0x24] sm:$0xf]
  %v49 = vld [vmem:[%s1 + $0x28] sm:$0xf]
  %v50 = vld [vmem:[%s1 + $0x2c] sm:$0xf]
  %v51 = vld [vmem:[%s1 + $0x30] sm:$0xf]
  %v52 = vld [vmem:[%s1 + $0x34] sm:$0xf]
  %v53 = vld [vmem:[%s1 + $0x38] sm:$0xf]
  %v54 = vld [vmem:[%s1 + $0x3c] sm:$0xf]
  %v55 = vld [vmem:[%s1 + $0x40] sm:$0xf]
  %v56 = vld [vmem:[%s1 + $0x44] sm:$0xf]
  %v57 = vld [vmem:[%s1 + $0x48] sm:$0xf]
  %v58 = vld [vmem:[%s1 + $0x4c] sm:$0xf]
  %v59 = vld [vmem:[%s1 + $0x50] sm:$0xf]
  %v60 = vld [vmem:[%s1 + $0x54] sm:$0xf]
  %v61 = vld [vmem:[%s1 + $0x58] sm:$0xf]
  %v62 = vld [vmem:[%s1 + $0x5c] sm:$0xf]
  %v63 = vld [vmem:[%s1 + $0x60] sm:$0xf]
  %v64 = vld [vmem:[%s1 + $0x64] sm:$0xf]
  %v65 = vld [vmem:[%s1 + $0x68] sm:$0xf]
  %v66 = vld [vmem:[%s1 + $0x6c] sm:$0xf]
  %v67 = vld [vmem:[%s1 + $0x70] sm:$0xf]
  %v68 = vld [vmem:[%s1 + $0x74] sm:$0xf]
  %v69 = vld [vmem:[%s1 + $0x78] sm:$0xf]
  %v70 = vld [vmem:[%s1 + $0x7c] sm:$0xf]
  %v71 = vld [vmem:[%s1 + $0x80] sm:$0xf]
  %v72 = vld [vmem:[%s1 + $0x84] sm:$0xf]
  %v73 = vld [vmem:[%s1 + $0x88] sm:$0xf]
  %v74 = vld [vmem:[%s1 + $0x8c] sm:$0xf]
  %v75 = vld [vmem:[%s1 + $0x90] sm:$0xf]
  %v76 = vld [vmem:[%s1 + $0x94] sm:$0xf]
  %v77 = vld [vmem:[%s1 + $0x98] sm:$0xf]
  %v78 = vld [vmem:[%s1 + $0x9c] sm:$0xf]
  %v79 = vld [vmem:[%s1 + $0xa0] sm:$0xf]
  %v80 = vld [vmem:[%s1 + $0xa4] sm:$0xf]
  %v81 = vld [vmem:[%s1 + $0xa8] sm:$0xf]
  %v82 = vld [vmem:[%s1 + $0xac] sm:$0xf]
  %v83 = vld [vmem:[%s1 + $0xb0] sm:$0xf]
  %v84 = vld [vmem:[%s1 + $0xb4] sm:$0xf]
  %v85 = vld [vmem:[%s1 + $0xb8] sm:$0xf]
  %v86 = vld [vmem:[%s1 + $0xbc] sm:$0xf]
  %v87 = vld [vmem:[%s1 + $0xc0] sm:$0xf]
  %v88 = vld [vmem:[%s1 + $0xc4] sm:$0xf]
  %v89 = vld [vmem:[%s1 + $0xc8] sm:$0xf]
  %v90 = vld [vmem:[%s1 + $0xcc] sm:$0xf]
  %v91 = vld [vmem:[%s1 + $0xd0] sm:$0xf]
  %v92 = vld [vmem:[%s1 + $0xd4] sm:$0xf]
  %v93 = vld [vmem:[%s1 + $0xd8] sm:$0xf]
  %v94 = vld [vmem:[%s1 + $0xdc] sm:$0xf]
  %v95 = vld [vmem:[%s1 + $0xe0] sm:$0xf]
  %v96 = vld [vmem:[%s1 + $0xe4] sm:$0xf]
  %v97 = vld [vmem:[%s1 + $0xe8] sm:$0xf]
  %v98 = vld [vmem:[%s1 + $0xec] sm:$0xf]
  %v99 = vld [vmem:[%s1 + $0xf0] sm:$0xf]
  %v100 = vld [vmem:[%s1 + $0xf4] sm:$0xf]
  %v101 = vld [vmem:[%s1 + $0xf8] sm:$0xf]
  %v102 = vld [vmem:[%s1 + $0xfc] sm:$0xf]
  %v103 = vld [vmem:[%s1 + $0x100] sm:$0xf]
  %v104 = vld [vmem:[%s1 + $0x104] sm:$0xf]
  %v105 = vld [vmem:[%s1 + $0x108] sm:$0xf]
  %v106 = vld [vmem:[%s1 + $0x10c] sm:$0xf]
  %v107 = vld [vmem:[%s1 + $0x110] sm:$0xf]
  %v108 = vld [vmem:[%s1 + $0x114] sm:$0xf]
  %v109 = vld [vmem:[%s1 + $0x118] sm:$0xf]
  %v110 = vld [vmem:[%s1 + $0x11c] sm:$0xf]
  %v132 = vunpack.c.l.b16 %v18
  %v133 = vunpack.c.h.b16 %v18
  %v134 = vunpack.c.l.b16 %v19
  %v135 = vunpack.c.h.b16 %v19
  %v136 = vunpack.c.l.b16 %v20
  %v137 = vunpack.c.l.b16 %v21
  %v138 = vunpack.c.h.b16 %v21
  %v139 = vunpack.c.l.b16 %v22
  %v140 = vunpack.c.h.b16 %v22
  %v141 = vunpack.c.l.b16 %v23
  %v142 = vunpack.c.l.b16 %v24
  %v143 = vunpack.c.h.b16 %v24
  %v144 = vunpack.c.l.b16 %v25
  %v145 = vunpack.c.h.b16 %v25
  %v146 = vunpack.c.l.b16 %v26
  %v147 = vunpack.c.l.b16 %v27
  %v148 = vunpack.c.h.b16 %v27
  %v149 = vunpack.c.l.b16 %v28
  %v150 = vunpack.c.h.b16 %v28
  %v151 = vunpack.c.l.b16 %v29
  %v152 = vunpack.c.l.b16 %v30
  %v153 = vunpack.c.h.b16 %v30
  %v154 = vunpack.c.l.b16 %v31
  %v155 = vunpack.c.h.b16 %v31
  %v156 = vunpack.c.l.b16 %v32
  %v157 = vunpack.c.l.b16 %v33
  %v158 = vunpack.c.h.b16 %v33
  %v159 = vunpack.c.l.b16 %v34
  %v160 = vunpack.c.h.b16 %v34
  %v161 = vunpack.c.l.b16 %v35
  %v162 = vunpack.c.l.b16 %v36
  %v163 = vunpack.c.h.b16 %v36
  %v164 = vunpack.c.l.b16 %v37
  %v165 = vunpack.c.h.b16 %v37
  %v166 = vunpack.c.l.b16 %v38
  %v167 = vpack.c.b16 %v137, %v132
  %v168 = vpack.c.b16 %v138, %v133
  %v169 = vpack.c.b16 %v139, %v134
  %v170 = vpack.c.b16 %v140, %v135
  %v171 = vpack.c.b16 %v141, %v136
  %v172 = vpack.c.b16 %v147, %v142
  %v173 = vpack.c.b16 %v148, %v143
  %v174 = vpack.c.b16 %v149, %v144
  %v175 = vpack.c.b16 %v150, %v145
  %v176 = vpack.c.b16 %v151, %v146
  %v177 = vpack.c.b16 %v157, %v152
  %v178 = vpack.c.b16 %v158, %v153
  %v179 = vpack.c.b16 %v159, %v154
  %v180 = vpack.c.b16 %v160, %v155
  %v181 = vpack.c.b16 %v161, %v156
  %v182 = vpack.c.b16 %v162, %v162
  %v183 = vpack.c.b16 %v163, %v163
  %v184 = vpack.c.b16 %v164, %v164
  %v185 = vpack.c.b16 %v165, %v165
  %v186 = vpack.c.b16 %v166, %v166
  %v275 = vunpack.c.l.b16 %v39
  %v276 = vunpack.c.l.b16 %v40
  %v277 = vunpack.c.l.b16 %v41
  %v278 = vunpack.c.l.b16 %v42
  %v279 = vunpack.c.l.b16 %v43
  %v280 = vunpack.c.l.b16 %v44
  %v281 = vunpack.c.l.b16 %v45
  %v282 = vunpack.c.l.b16 %v46
  %v283 = vunpack.c.l.b16 %v47
  %v284 = vunpack.c.l.b16 %v48
  %v285 = vunpack.c.l.b16 %v49
  %v286 = vunpack.c.l.b16 %v50
  %v287 = vunpack.c.l.b16 %v51
  %v288 = vunpack.c.l.b16 %v52
  %v289 = vunpack.c.l.b16 %v53
  %v290 = vunpack.c.l.b16 %v54
  %v291 = vunpack.c.l.b16 %v55
  %v292 = vunpack.c.l.b16 %v56
  %v293 = vunpack.c.l.b16 %v57
  %v294 = vunpack.c.l.b16 %v58
  %v295 = vunpack.c.l.b16 %v59
  %v296 = vunpack.c.l.b16 %v60
  %v297 = vunpack.c.l.b16 %v61
  %v298 = vunpack.c.l.b16 %v62
  %v299 = vunpack.c.l.b16 %v63
  %v300 = vunpack.c.l.b16 %v64
  %v301 = vunpack.c.l.b16 %v65
  %v302 = vunpack.c.l.b16 %v66
  %v303 = vunpack.c.l.b16 %v67
  %v304 = vunpack.c.l.b16 %v68
  %v305 = vunpack.c.l.b16 %v69
  %v306 = vunpack.c.l.b16 %v70
  %v307 = vunpack.c.l.b16 %v71
  %v308 = vunpack.c.l.b16 %v72
  %v309 = vunpack.c.l.b16 %v73
  %v310 = vunpack.c.l.b16 %v74
  %v311 = vunpack.c.l.b16 %v75
  %v312 = vunpack.c.l.b16 %v76
  %v313 = vunpack.c.l.b16 %v77
  %v314 = vunpack.c.l.b16 %v78
  %v315 = vunpack.c.l.b16 %v79
  %v316 = vunpack.c.l.b16 %v80
  %v317 = vunpack.c.l.b16 %v81
  %v318 = vunpack.c.l.b16 %v82
  %v319 = vunpack.c.l.b16 %v83
  %v320 = vunpack.c.l.b16 %v84
  %v321 = vunpack.c.l.b16 %v85
  %v322 = vunpack.c.l.b16 %v86
  %v323 = vunpack.c.l.b16 %v87
  %v324 = vunpack.c.l.b16 %v88
  %v325 = vunpack.c.l.b16 %v89
  %v326 = vunpack.c.l.b16 %v90
  %v327 = vunpack.c.l.b16 %v91
  %v328 = vunpack.c.l.b16 %v92
  %v329 = vunpack.c.l.b16 %v93
  %v330 = vunpack.c.l.b16 %v94
  %v331 = vunpack.c.l.b16 %v95
  %v332 = vunpack.c.l.b16 %v96
  %v333 = vunpack.c.l.b16 %v97
  %v334 = vunpack.c.l.b16 %v98
  %v335 = vunpack.c.l.b16 %v99
  %v336 = vunpack.c.l.b16 %v100
  %v337 = vunpack.c.l.b16 %v101
  %v338 = vunpack.c.l.b16 %v102
  %v339 = vunpack.c.l.b16 %v103
  %v340 = vunpack.c.l.b16 %v104
  %v341 = vunpack.c.l.b16 %v105
  %v342 = vunpack.c.l.b16 %v106
  %v343 = vunpack.c.l.b16 %v107
  %v344 = vunpack.c.l.b16 %v108
  %v345 = vunpack.c.l.b16 %v109
  %v346 = vunpack.c.l.b16 %v110
  %v347 = vpack.c.b16 %v276, %v275
  %v348 = vpack.c.b16 %v278, %v277
  %v349 = vpack.c.b16 %v280, %v279
  %v350 = vpack.c.b16 %v282, %v281
  %v351 = vpack.c.b16 %v284, %v283
  %v352 = vpack.c.b16 %v286, %v285
  %v353 = vpack.c.b16 %v288, %v287
  %v354 = vpack.c.b16 %v290, %v289
  %v355 = vpack.c.b16 %v292, %v291
  %v356 = vpack.c.b16 %v294, %v293
  %v357 = vpack.c.b16 %v296, %v295
  %v358 = vpack.c.b16 %v298, %v297
  %v359 = vpack.c.b16 %v300, %v299
  %v360 = vpack.c.b16 %v302, %v301
  %v361 = vpack.c.b16 %v304, %v303
  %v362 = vpack.c.b16 %v306, %v305
  %v363 = vpack.c.b16 %v308, %v307
  %v364 = vpack.c.b16 %v310, %v309
  %v365 = vpack.c.b16 %v312, %v311
  %v366 = vpack.c.b16 %v314, %v313
  %v367 = vpack.c.b16 %v316, %v315
  %v368 = vpack.c.b16 %v318, %v317
  %v369 = vpack.c.b16 %v320, %v319
  %v370 = vpack.c.b16 %v322, %v321
  %v371 = vpack.c.b16 %v324, %v323
  %v372 = vpack.c.b16 %v326, %v325
  %v373 = vpack.c.b16 %v328, %v327
  %v374 = vpack.c.b16 %v330, %v329
  %v375 = vpack.c.b16 %v332, %v331
  %v376 = vpack.c.b16 %v334, %v333
  %v377 = vpack.c.b16 %v336, %v335
  %v378 = vpack.c.b16 %v338, %v337
  %v379 = vpack.c.b16 %v340, %v339
  %v380 = vpack.c.b16 %v342, %v341
  %v381 = vpack.c.b16 %v344, %v343
  %v382 = vpack.c.b16 %v346, %v345
  %vm419 = vcmask 523264
  %v421 = vsel %vm419, %v171, 0
  %v424 = vsel %vm419, %v176, 0
  %v427 = vsel %vm419, %v181, 0
  %v430 = vsel %vm419, %v186, 0
  %432 = vmatprep.subr.bf16.mxu0 0
  %433 = vmatpush1.bf16.msra.mxu0 %v347
  %434 = vmatprep.subr.bf16.mxu0 0
  %435 = vmatpush1.bf16.msra.mxu0 %v348
  %436 = vmatprep.subr.bf16.mxu0 0
  %437 = vmatpush1.bf16.msra.mxu0 %v349
  %438 = vmatprep.subr.bf16.mxu0 0
  %439 = vmatpush1.bf16.msra.mxu0 %v350
  %440 = vmatprep.subr.bf16.mxu0 0
  %441 = vmatpush1.bf16.msra.mxu0 %v351
  %442 = vmatprep.subr.bf16.mxu0 0
  %443 = vmatpush1.bf16.msra.mxu0 %v352
  %444 = vmatprep.subr.bf16.mxu0 0
  %445 = vmatpush1.bf16.msra.mxu0 %v353
  %446 = vmatprep.subr.bf16.mxu0 0
  %447 = vmatpush1.bf16.msra.mxu0 %v354
  %448 = vmatprep.subr.bf16.mxu0 0
  %449 = vmatpush1.bf16.msra.mxu0 %v355
  %450 = vmatprep.subr.bf16.mxu0 0
  %451 = vmatpush1.bf16.msra.mxu0 %v356
  %452 = vmatprep.subr.bf16.mxu0 0
  %453 = vmatpush1.bf16.msra.mxu0 %v357
  %454 = vmatprep.subr.bf16.mxu0 0
  %455 = vmatpush1.bf16.msra.mxu0 %v358
  %456 = vmatprep.subr.bf16.mxu0 0
  %457 = vmatpush1.bf16.msra.mxu0 %v359
  %458 = vmatprep.subr.bf16.mxu0 0
  %459 = vmatpush1.bf16.msra.mxu0 %v360
  %460 = vmatprep.subr.bf16.mxu0 0
  %461 = vmatpush1.bf16.msra.mxu0 %v361
  %462 = vmatprep.subr.bf16.mxu0 0
  %463 = vmatpush1.bf16.msra.mxu0 %v362
  %464 = vmatprep.mubr.bf16.mxu0 %v168
  %465 = vmatmul.mubr.bf16.gmra.mrb[0].mxu0 %v167
  %v466 = vpop.f32.mrb[0].mxu0
  %v467 = vadd.f32 0.0, %v466
  %v468 = vpop.f32.mrb[0].mxu0
  %v469 = vpop.f32.mrb[0].mxu0
  %v470 = vadd.f32 0.0, %v469
  %v471 = vpop.f32.mrb[0].mxu0
  %472 = vmatprep.mubr.bf16.mxu0 %v173
  %473 = vmatmul.mubr.bf16.gmra.mrb[0].mxu0 %v172
  %v474 = vpop.f32.mrb[0].mxu0
  %v475 = vadd.f32 0.0, %v474
  %v476 = vpop.f32.mrb[0].mxu0
  %v477 = vpop.f32.mrb[0].mxu0
  %v478 = vadd.f32 0.0, %v477
  %v479 = vpop.f32.mrb[0].mxu0
  %480 = vmatprep.mubr.bf16.mxu0 %v178
  %481 = vmatmul.mubr.bf16.gmra.mrb[0].mxu0 %v177
  %v482 = vpop.f32.mrb[0].mxu0
  %v483 = vadd.f32 0.0, %v482
  %v484 = vpop.f32.mrb[0].mxu0
  %v485 = vpop.f32.mrb[0].mxu0
  %v486 = vadd.f32 0.0, %v485
  %v487 = vpop.f32.mrb[0].mxu0
  %488 = vmatprep.mubr.bf16.mxu0 %v183
  %489 = vmatmul.mubr.bf16.gmra.mrb[0].mxu0 %v182
  %v490 = vpop.f32.mrb[0].mxu0
  %v491 = vadd.f32 0.0, %v490
  %v492 = vpop.f32.mrb[0].mxu0
  %v493 = vpop.f32.mrb[0].mxu0
  %v494 = vpop.f32.mrb[0].mxu0
  %495 = vdwg.mxu0
  %496 = vmatprep.subr.bf16.mxu0 0
  %497 = vmatpush1.bf16.msra.mxu0 %v363
  %498 = vmatprep.subr.bf16.mxu0 0
  %499 = vmatpush1.bf16.msra.mxu0 %v364
  %500 = vmatprep.subr.bf16.mxu0 0
  %501 = vmatpush1.bf16.msra.mxu0 %v365
  %502 = vmatprep.subr.bf16.mxu0 0
  %503 = vmatpush1.bf16.msra.mxu0 %v366
  %504 = vmatprep.subr.bf16.mxu0 0
  %505 = vmatpush1.bf16.msra.mxu0 %v367
  %506 = vmatprep.subr.bf16.mxu0 0
  %507 = vmatpush1.bf16.msra.mxu0 %v368
  %508 = vmatprep.subr.bf16.mxu0 0
  %509 = vmatpush1.bf16.msra.mxu0 %v369
  %510 = vmatprep.subr.bf16.mxu0 0
  %511 = vmatpush1.bf16.msra.mxu0 %v370
  %512 = vmatprep.subr.bf16.mxu0 0
  %513 = vmatpush1.bf16.msra.mxu0 %v371
  %514 = vmatprep.subr.bf16.mxu0 0
  %515 = vmatpush1.bf16.msra.mxu0 %v372
  %516 = vmatprep.subr.bf16.mxu0 0
  %517 = vmatpush1.bf16.msra.mxu0 %v373
  %518 = vmatprep.subr.bf16.mxu0 0
  %519 = vmatpush1.bf16.msra.mxu0 %v374
  %520 = vmatprep.subr.bf16.mxu0 0
  %521 = vmatpush1.bf16.msra.mxu0 %v375
  %522 = vmatprep.subr.bf16.mxu0 0
  %523 = vmatpush1.bf16.msra.mxu0 %v376
  %524 = vmatprep.subr.bf16.mxu0 0
  %525 = vmatpush1.bf16.msra.mxu0 %v377
  %526 = vmatprep.subr.bf16.mxu0 0
  %527 = vmatpush1.bf16.msra.mxu0 %v378
  %528 = vmatprep.mubr.bf16.mxu0 %v170
  %529 = vmatmul.mubr.bf16.gmra.mrb[0].mxu0 %v169
  %v530 = vpop.f32.mrb[0].mxu0
  %v531 = vadd.f32 %v467, %v530
  %v532 = vpop.f32.mrb[0].mxu0
  %v533 = vpop.f32.mrb[0].mxu0
  %v534 = vadd.f32 %v470, %v533
  %v535 = vpop.f32.mrb[0].mxu0
  %536 = vmatprep.mubr.bf16.mxu0 %v175
  %537 = vmatmul.mubr.bf16.gmra.mrb[0].mxu0 %v174
  %v538 = vpop.f32.mrb[0].mxu0
  %v539 = vadd.f32 %v475, %v538
  %v540 = vpop.f32.mrb[0].mxu0
  %v541 = vpop.f32.mrb[0].mxu0
  %v542 = vadd.f32 %v478, %v541
  %v543 = vpop.f32.mrb[0].mxu0
  %544 = vmatprep.mubr.bf16.mxu0 %v180
  %545 = vmatmul.mubr.bf16.gmra.mrb[0].mxu0 %v179
  %v546 = vpop.f32.mrb[0].mxu0
  %v547 = vadd.f32 %v483, %v546
  %v548 = vpop.f32.mrb[0].mxu0
  %v549 = vpop.f32.mrb[0].mxu0
  %v550 = vadd.f32 %v486, %v549
  %v551 = vpop.f32.mrb[0].mxu0
  %552 = vmatprep.mubr.bf16.mxu0 %v185
  %553 = vmatmul.mubr.bf16.gmra.mrb[0].mxu0 %v184
  %v554 = vpop.f32.mrb[0].mxu0
  %v555 = vadd.f32 %v491, %v554
  %v556 = vpop.f32.mrb[0].mxu0
  %v557 = vpop.f32.mrb[0].mxu0
  %v558 = vpop.f32.mrb[0].mxu0
  %559 = vdwg.mxu0
  %560 = vmatprep.subr.bf16.mxu0 0
  %561 = vmatpush1.bf16.msra.mxu0 %v379
  %562 = vmatprep.subr.bf16.mxu0 0
  %563 = vmatpush1.bf16.msra.mxu0 %v380
  %564 = vmatprep.subr.bf16.mxu0 0
  %565 = vmatpush1.bf16.msra.mxu0 %v381
  %566 = vmatprep.subr.bf16.mxu0 0
  %567 = vmatpush1.bf16.msra.mxu0 %v382
  %568 = vmatprep.subr.bf16.mxu0 0
  %569 = vmatpush1.bf16.msra.mxu0 0
  %570 = vmatprep.subr.bf16.mxu0 0
  %571 = vmatpush1.bf16.msra.mxu0 0
  %572 = vmatprep.subr.bf16.mxu0 0
  %573 = vmatpush1.bf16.msra.mxu0 0
  %574 = vmatprep.subr.bf16.mxu0 0
  %575 = vmatpush1.bf16.msra.mxu0 0
  %576 = vmatprep.subr.bf16.mxu0 0
  %577 = vmatpush1.bf16.msra.mxu0 0
  %578 = vmatprep.subr.bf16.mxu0 0
  %579 = vmatpush1.bf16.msra.mxu0 0
  %580 = vmatprep.subr.bf16.mxu0 0
  %581 = vmatpush1.bf16.msra.mxu0 0
  %582 = vmatprep.subr.bf16.mxu0 0
  %583 = vmatpush1.bf16.msra.mxu0 0
  %584 = vmatprep.subr.bf16.mxu0 0
  %585 = vmatpush1.bf16.msra.mxu0 0
  %586 = vmatprep.subr.bf16.mxu0 0
  %587 = vmatpush1.bf16.msra.mxu0 0
  %588 = vmatprep.subr.bf16.mxu0 0
  %589 = vmatpush1.bf16.msra.mxu0 0
  %590 = vmatprep.subr.bf16.mxu0 0
  %591 = vmatpush1.bf16.msra.mxu0 0
  %592 = vmatprep.mubr.bf16.mxu0 0
  %593 = vmatmul.mubr.bf16.gmra.mrb[0].mxu0 %v421
  %v594 = vpop.f32.mrb[0].mxu0
  %v595 = vadd.f32 %v531, %v594
  %v596 = vpop.f32.mrb[0].mxu0
  %v597 = vpop.f32.mrb[0].mxu0
  %v598 = vadd.f32 %v534, %v597
  %v599 = vpop.f32.mrb[0].mxu0
  %600 = vmatprep.mubr.bf16.mxu0 0
  %601 = vmatmul.mubr.bf16.gmra.mrb[0].mxu0 %v424
  %v602 = vpop.f32.mrb[0].mxu0
  %v603 = vadd.f32 %v539, %v602
  %v604 = vpop.f32.mrb[0].mxu0
  %v605 = vpop.f32.mrb[0].mxu0
  %v606 = vadd.f32 %v542, %v605
  %v607 = vpop.f32.mrb[0].mxu0
  %608 = vmatprep.mubr.bf16.mxu0 0
  %609 = vmatmul.mubr.bf16.gmra.mrb[0].mxu0 %v427
  %v610 = vpop.f32.mrb[0].mxu0
  %v611 = vadd.f32 %v547, %v610
  %v612 = vpop.f32.mrb[0].mxu0
  %v613 = vpop.f32.mrb[0].mxu0
  %v614 = vadd.f32 %v550, %v613
  %v615 = vpop.f32.mrb[0].mxu0
  %616 = vmatprep.mubr.bf16.mxu0 0
  %617 = vmatmul.mubr.bf16.gmra.mrb[0].mxu0 %v430
  %v618 = vpop.f32.mrb[0].mxu0
  %v619 = vadd.f32 %v555, %v618
  %v620 = vpop.f32.mrb[0].mxu0
  %v621 = vpop.f32.mrb[0].mxu0
  %v622 = vpop.f32.mrb[0].mxu0
  %623 = vdwg.mxu0
  %v624 = vld [vmem:[%s2] sm:$0x1]
  %v626 = vlaneseq
  %v627 = vshrl.u32 %v626, 7
  %v628 = vsub.s32 0, %v627
  %v629 = vrot.slane %v624, %v628
  %v631 = vmul.f32 %v595, %v629
  %v632 = vmul.f32 %v598, %v629
  %v633 = vmul.f32 %v603, %v629
  %v634 = vmul.f32 %v606, %v629
  %v635 = vmul.f32 %v611, %v629
  %v636 = vmul.f32 %v614, %v629
  %v637 = vmul.f32 %v619, %v629
  %v638 = vld [vmem:[%s3] sm:$0x1]
  %v640 = vlaneseq
  %v641 = vshrl.u32 %v640, 7
  %v642 = vsub.s32 0, %v641
  %v643 = vrot.slane %v638, %v642
  %v645 = vadd.f32 %v631, %v643
  %v646 = vadd.f32 %v632, %v643
  %v647 = vadd.f32 %v633, %v643
  %v648 = vadd.f32 %v634, %v643
  %v649 = vadd.f32 %v635, %v643
  %v650 = vadd.f32 %v636, %v643
  %v651 = vadd.f32 %v637, %v643
  %v652 = vmax.f32 %v645, 0.0
  %v653 = vmax.f32 %v646, 0.0
  %v654 = vmax.f32 %v647, 0.0
  %v655 = vmax.f32 %v648, 0.0
  %v656 = vmax.f32 %v649, 0.0
  %v657 = vmax.f32 %v650, 0.0
  %v658 = vmax.f32 %v651, 0.0
  %v659 = vpack.c.bf16 %v653, %v652
  %v660 = vpack.c.bf16 %v655, %v654
  %v661 = vpack.c.bf16 %v657, %v656
  %v662 = vpack.c.bf16 %v658, %v658
  %v667 = vunpack.c.l.b16 %v659
  %v668 = vunpack.c.h.b16 %v659
  %v669 = vunpack.c.l.b16 %v660
  %v670 = vunpack.c.h.b16 %v660
  %v671 = vunpack.c.l.b16 %v661
  %v672 = vunpack.c.h.b16 %v661
  %v673 = vunpack.c.l.b16 %v662
  %v674 = vpack.c.b16 %v667, %v667
  %v675 = vpack.c.b16 %v668, %v668
  %v676 = vpack.c.b16 %v669, %v669
  %v677 = vpack.c.b16 %v670, %v670
  %v678 = vpack.c.b16 %v671, %v671
  %v679 = vpack.c.b16 %v672, %v672
  %v680 = vpack.c.b16 %v673, %v673
  %vm688 = vcmask 781312
  %689 = vst.msk [vmem:[%s4] sm:$0xf] %vm688, %v674
  %690 = vst.msk [vmem:[%s4 + $0x4] sm:$0xf] %vm688, %v675
  %691 = vst.msk [vmem:[%s4 + $0x8] sm:$0xf] %vm688, %v676
  %692 = vst.msk [vmem:[%s4 + $0xc] sm:$0xf] %vm688, %v677
  %693 = vst.msk [vmem:[%s4 + $0x10] sm:$0xf] %vm688, %v678
  %694 = vst.msk [vmem:[%s4 + $0x14] sm:$0xf] %vm688, %v679
  %vm695 = vcmask 778240
  %696 = vst.msk [vmem:[%s4 + $0x18] sm:$0x1] %vm695, %v680
  // Predicated region
  $region18: #{incept_init_block.16} parent=0 // pred_check
    _
  $region19: #{incept_init_block.16} parent=0 // pred_check_branch
    %698 = sbr.rel (0) target = $region21
  $region20: #{incept_init_block.16} parent=0 // pred_region
    _
  $region21: #{incept_init_block.16} parent=0 // pred_fallthru
    _
  // Predicated region
  $region22: #{incept_init_block.16} parent=0 // pred_check
    _
  $region23: #{incept_init_block.16} parent=0 // pred_check_branch
    %700 = sbr.rel (0) target = $region25
  $region24: #{incept_init_block.16} parent=0 // pred_region
    _
  $region25: #{incept_init_block.16} parent=0 // pred_fallthru
    _

// kernel: incept_init_block.17
$region0: #{incept_init_block.17}
  #allocation0 [shape = 'u32[]', space=smem, size = 0x4, offset = 0x4, fixed_abs, tag = 'smem constant byte address 0x4 - core index']
  #allocation1 [shape = 'u32[144,128]{1,0:T(1,128)}', space=vmem, size = 0x12000, scoped, tag = 'internal scratch']
  %s0 = inlined_call_operand.vmem [shape: bf16[8,1728], index: 0, kind: input, shape index: {}]
  %s1 = inlined_call_operand.vmem [shape: bf16[1728,192], index: 1, kind: input, shape index: {}]
  %s2 = inlined_call_operand.vmem [shape: f32[1,192], index: 2, kind: input, shape index: {}]
  %s3 = inlined_call_operand.vmem [shape: f32[1,192], index: 3, kind: input, shape index: {}]
  %s4 = inlined_call_operand.vmem [shape: bf16[9,8,192], index: 4, kind: input, shape index: {}]
  %s5 = inlined_call_operand.vmem [shape: bf16[8,192], index: 5, kind: output, shape index: {0}]
  %s6 = inlined_call_operand.vmem [shape: bf16[8,192], index: 6, kind: output, shape index: {1}]
  %7 = xla_tuple %s5, %s6
  %s8 = sld [smem:[#allocation0]]
  $region38: #{incept_init_block.17} parent=0
    _
  %s10 = ssub.s32 1, %s8
  %s11 = scalar_select 0, %s10, %s8
  // Predicated region
  $region2: #{incept_init_block.17} parent=0 // pred_check
    _
  $region3: #{incept_init_block.17} parent=0 // pred_check_branch
    %13 = sbr.rel (0) target = $region5
  $region4: #{incept_init_block.17} parent=0 // pred_region
    _
  $region5: #{incept_init_block.17} parent=0 // pred_fallthru
    _
  // Predicated region
  $region6: #{incept_init_block.17} parent=0 // pred_check
    _
  $region7: #{incept_init_block.17} parent=0 // pred_check_branch
    %15 = sbr.rel (0) target = $region9
  $region8: #{incept_init_block.17} parent=0 // pred_region
    _
  $region9: #{incept_init_block.17} parent=0 // pred_fallthru
    _
  // Predicated region
  $region10: #{incept_init_block.17} parent=0 // pred_check
    _
  $region11: #{incept_init_block.17} parent=0 // pred_check_branch
    %17 = sbr.rel (0) target = $region13
  $region12: #{incept_init_block.17} parent=0 // pred_region
    _
  $region13: #{incept_init_block.17} parent=0 // pred_fallthru
    _
  // Predicated region
  $region14: #{incept_init_block.17} parent=0 // pred_check
    _
  $region15: #{incept_init_block.17} parent=0 // pred_check_branch
    %19 = sbr.rel (0) target = $region17
  $region16: #{incept_init_block.17} parent=0 // pred_region
    _
  $region17: #{incept_init_block.17} parent=0 // pred_fallthru
    _
  // Predicated region
  $region18: #{incept_init_block.17} parent=0 // pred_check
    _
  $region19: #{incept_init_block.17} parent=0 // pred_check_branch
    %21 = sbr.rel (0) target = $region21
  $region20: #{incept_init_block.17} parent=0 // pred_region
    _
  $region21: #{incept_init_block.17} parent=0 // pred_fallthru
    _
  %v23 = vld [vmem:[%s0] sm:$0xff]
  %v24 = vld [vmem:[%s0 + $0x8] sm:$0xff]
  %v25 = vld [vmem:[%s0 + $0x10] sm:$0xff]
  %v26 = vld [vmem:[%s0 + $0x18] sm:$0xff]
  %v27 = vld [vmem:[%s0 + $0x20] sm:$0xff]
  %v28 = vld [vmem:[%s0 + $0x28] sm:$0xff]
  %v29 = vld [vmem:[%s0 + $0x30] sm:$0xff]
  %v30 = vld [vmem:[%s1] sm:$0xff]
  %v31 = vld [vmem:[%s1 + $0x8] sm:$0xff]
  %v32 = vld [vmem:[%s1 + $0x10] sm:$0xff]
  %v33 = vld [vmem:[%s1 + $0x18] sm:$0xff]
  %v34 = vld [vmem:[%s1 + $0x20] sm:$0xff]
  %v35 = vld [vmem:[%s1 + $0x28] sm:$0xff]
  %v36 = vld [vmem:[%s1 + $0x30] sm:$0xff]
  %v37 = vld [vmem:[%s1 + $0x38] sm:$0xff]
  %v38 = vld [vmem:[%s1 + $0x40] sm:$0xff]
  %v39 = vld [vmem:[%s1 + $0x48] sm:$0xff]
  %v40 = vld [vmem:[%s1 + $0x50] sm:$0xff]
  %v41 = vld [vmem:[%s1 + $0x58] sm:$0xff]
  %v42 = vld [vmem:[%s1 + $0x60] sm:$0xff]
  %v43 = vld [vmem:[%s1 + $0x68] sm:$0xff]
  %v44 = vld [vmem:[%s1 + $0x70] sm:$0xff]
  %v45 = vld [vmem:[%s1 + $0x78] sm:$0xff]
  %v46 = vld [vmem:[%s1 + $0x80] sm:$0xff]
  %v47 = vld [vmem:[%s1 + $0x88] sm:$0xff]
  %v48 = vld [vmem:[%s1 + $0x90] sm:$0xff]
  %v49 = vld [vmem:[%s1 + $0x98] sm:$0xff]
  %v50 = vld [vmem:[%s1 + $0xa0] sm:$0xff]
  %v51 = vld [vmem:[%s1 + $0xa8] sm:$0xff]
  %v52 = vld [vmem:[%s1 + $0xb0] sm:$0xff]
  %v53 = vld [vmem:[%s1 + $0xb8] sm:$0xff]
  %v54 = vld [vmem:[%s1 + $0xc0] sm:$0xff]
  %v55 = vld [vmem:[%s1 + $0xc8] sm:$0xff]
  %v56 = vld [vmem:[%s1 + $0xd0] sm:$0xff]
  %v57 = vld [vmem:[%s1 + $0xd8] sm:$0xff]
  %v58 = vld [vmem:[%s1 + $0xe0] sm:$0xff]
  %v59 = vld [vmem:[%s1 + $0xe8] sm:$0xff]
  %v60 = vld [vmem:[%s1 + $0xf0] sm:$0xff]
  %v61 = vld [vmem:[%s1 + $0xf8] sm:$0xff]
  %v62 = vld [vmem:[%s1 + $0x100] sm:$0xff]
  %v63 = vld [vmem:[%s1 + $0x108] sm:$0xff]
  %v64 = vld [vmem:[%s1 + $0x110] sm:$0xff]
  %v65 = vld [vmem:[%s1 + $0x118] sm:$0xff]
  %v66 = vld [vmem:[%s1 + $0x120] sm:$0xff]
  %v67 = vld [vmem:[%s1 + $0x128] sm:$0xff]
  %v68 = vld [vmem:[%s1 + $0x130] sm:$0xff]
  %v69 = vld [vmem:[%s1 + $0x138] sm:$0xff]
  %v70 = vld [vmem:[%s1 + $0x140] sm:$0xff]
  %v71 = vld [vmem:[%s1 + $0x148] sm:$0xff]
  %v72 = vld [vmem:[%s1 + $0x150] sm:$0xff]
  %v73 = vld [vmem:[%s1 + $0x158] sm:$0xff]
  %v74 = vld [vmem:[%s1 + $0x160] sm:$0xff]
  %v75 = vld [vmem:[%s1 + $0x168] sm:$0xff]
  %v76 = vld [vmem:[%s1 + $0x170] sm:$0xff]
  %v77 = vld [vmem:[%s1 + $0x178] sm:$0xff]
  %v78 = vld [vmem:[%s1 + $0x180] sm:$0xff]
  %v79 = vld [vmem:[%s1 + $0x188] sm:$0xff]
  %v80 = vld [vmem:[%s1 + $0x190] sm:$0xff]
  %v81 = vld [vmem:[%s1 + $0x198] sm:$0xff]
  %v82 = vld [vmem:[%s1 + $0x1a0] sm:$0xff]
  %v83 = vld [vmem:[%s1 + $0x1a8] sm:$0xff]
  %v84 = vld [vmem:[%s1 + $0x1b0] sm:$0xff]
  %v85 = vld [vmem:[%s1 + $0x1b8] sm:$0xff]
  %v86 = vld [vmem:[%s1 + $0x1c0] sm:$0xff]
  %v87 = vld [vmem:[%s1 + $0x1c8] sm:$0xff]
  %v88 = vld [vmem:[%s1 + $0x1d0] sm:$0xff]
  %v89 = vld [vmem:[%s1 + $0x1d8] sm:$0xff]
  %v90 = vld [vmem:[%s1 + $0x1e0] sm:$0xff]
  %v91 = vld [vmem:[%s1 + $0x1e8] sm:$0xff]
  %v92 = vld [vmem:[%s1 + $0x1f0] sm:$0xff]
  %v93 = vld [vmem:[%s1 + $0x1f8] sm:$0xff]
  %v94 = vld [vmem:[%s1 + $0x200] sm:$0xff]
  %v95 = vld [vmem:[%s1 + $0x208] sm:$0xff]
  %v96 = vld [vmem:[%s1 + $0x210] sm:$0xff]
  %v97 = vld [vmem:[%s1 + $0x218] sm:$0xff]
  %v98 = vld [vmem:[%s1 + $0x220] sm:$0xff]
  %v99 = vld [vmem:[%s1 + $0x228] sm:$0xff]
  %v100 = vld [vmem:[%s1 + $0x230] sm:$0xff]
  %v101 = vld [vmem:[%s1 + $0x238] sm:$0xff]
  %v102 = vld [vmem:[%s1 + $0x240] sm:$0xff]
  %v103 = vld [vmem:[%s1 + $0x248] sm:$0xff]
  %v104 = vld [vmem:[%s1 + $0x250] sm:$0xff]
  %v105 = vld [vmem:[%s1 + $0x258] sm:$0xff]
  %v106 = vld [vmem:[%s1 + $0x260] sm:$0xff]
  %v107 = vld [vmem:[%s1 + $0x268] sm:$0xff]
  %v108 = vld [vmem:[%s1 + $0x270] sm:$0xff]
  %v109 = vld [vmem:[%s1 + $0x278] sm:$0xff]
  %v110 = vld [vmem:[%s1 + $0x280] sm:$0xff]
  %v111 = vld [vmem:[%s1 + $0x288] sm:$0xff]
  %v112 = vld [vmem:[%s1 + $0x290] sm:$0xff]
  %v113 = vld [vmem:[%s1 + $0x298] sm:$0xff]
  %v114 = vld [vmem:[%s1 + $0x2a0] sm:$0xff]
  %v115 = vld [vmem:[%s1 + $0x2a8] sm:$0xff]
  %v116 = vld [vmem:[%s1 + $0x2b0] sm:$0xff]
  %v117 = vld [vmem:[%s1 + $0x2b8] sm:$0xff]
  %v118 = vld [vmem:[%s1 + $0x2c0] sm:$0xff]
  %v119 = vld [vmem:[%s1 + $0x2c8] sm:$0xff]
  %v120 = vld [vmem:[%s1 + $0x2d0] sm:$0xff]
  %v121 = vld [vmem:[%s1 + $0x2d8] sm:$0xff]
  %v122 = vld [vmem:[%s1 + $0x2e0] sm:$0xff]
  %v123 = vld [vmem:[%s1 + $0x2e8] sm:$0xff]
  %v124 = vld [vmem:[%s1 + $0x2f0] sm:$0xff]
  %v125 = vld [vmem:[%s1 + $0x2f8] sm:$0xff]
  %v126 = vld [vmem:[%s1 + $0x300] sm:$0xff]
  %v127 = vld [vmem:[%s1 + $0x308] sm:$0xff]
  %v128 = vld [vmem:[%s1 + $0x310] sm:$0xff]
  %v129 = vld [vmem:[%s1 + $0x318] sm:$0xff]
  %v130 = vld [vmem:[%s1 + $0x320] sm:$0xff]
  %v131 = vld [vmem:[%s1 + $0x328] sm:$0xff]
  %v132 = vld [vmem:[%s1 + $0x330] sm:$0xff]
  %v133 = vld [vmem:[%s1 + $0x338] sm:$0xff]
  %v134 = vld [vmem:[%s1 + $0x340] sm:$0xff]
  %v135 = vld [vmem:[%s1 + $0x348] sm:$0xff]
  %v136 = vld [vmem:[%s1 + $0x350] sm:$0xff]
  %v137 = vld [vmem:[%s1 + $0x358] sm:$0xff]
  %v138 = vld [vmem:[%s1 + $0x360] sm:$0xff]
  %v139 = vld [vmem:[%s1 + $0x368] sm:$0xff]
  %v140 = vld [vmem:[%s1 + $0x370] sm:$0xff]
  %v141 = vld [vmem:[%s1 + $0x378] sm:$0xff]
  %v142 = vld [vmem:[%s1 + $0x380] sm:$0xff]
  %v143 = vld [vmem:[%s1 + $0x388] sm:$0xff]
  %v144 = vld [vmem:[%s1 + $0x390] sm:$0xff]
  %v145 = vld [vmem:[%s1 + $0x398] sm:$0xff]
  %v146 = vld [vmem:[%s1 + $0x3a0] sm:$0xff]
  %v147 = vld [vmem:[%s1 + $0x3a8] sm:$0xff]
  %v148 = vld [vmem:[%s1 + $0x3b0] sm:$0xff]
  %v149 = vld [vmem:[%s1 + $0x3b8] sm:$0xff]
  %v150 = vld [vmem:[%s1 + $0x3c0] sm:$0xff]
  %v151 = vld [vmem:[%s1 + $0x3c8] sm:$0xff]
  %v152 = vld [vmem:[%s1 + $0x3d0] sm:$0xff]
  %v153 = vld [vmem:[%s1 + $0x3d8] sm:$0xff]
  %v154 = vld [vmem:[%s1 + $0x3e0] sm:$0xff]
  %v155 = vld [vmem:[%s1 + $0x3e8] sm:$0xff]
  %v156 = vld [vmem:[%s1 + $0x3f0] sm:$0xff]
  %v157 = vld [vmem:[%s1 + $0x3f8] sm:$0xff]
  %v158 = vld [vmem:[%s1 + $0x400] sm:$0xff]
  %v159 = vld [vmem:[%s1 + $0x408] sm:$0xff]
  %v160 = vld [vmem:[%s1 + $0x410] sm:$0xff]
  %v161 = vld [vmem:[%s1 + $0x418] sm:$0xff]
  %v162 = vld [vmem:[%s1 + $0x420] sm:$0xff]
  %v163 = vld [vmem:[%s1 + $0x428] sm:$0xff]
  %v164 = vld [vmem:[%s1 + $0x430] sm:$0xff]
  %v165 = vld [vmem:[%s1 + $0x438] sm:$0xff]
  %v166 = vld [vmem:[%s1 + $0x440] sm:$0xff]
  %v167 = vld [vmem:[%s1 + $0x448] sm:$0xff]
  %v168 = vld [vmem:[%s1 + $0x450] sm:$0xff]
  %v169 = vld [vmem:[%s1 + $0x458] sm:$0xff]
  %v170 = vld [vmem:[%s1 + $0x460] sm:$0xff]
  %v171 = vld [vmem:[%s1 + $0x468] sm:$0xff]
  %v172 = vld [vmem:[%s1 + $0x470] sm:$0xff]
  %v173 = vld [vmem:[%s1 + $0x478] sm:$0xff]
  %v174 = vld [vmem:[%s1 + $0x480] sm:$0xff]
  %v175 = vld [vmem:[%s1 + $0x488] sm:$0xff]
  %v176 = vld [vmem:[%s1 + $0x490] sm:$0xff]
  %v177 = vld [vmem:[%s1 + $0x498] sm:$0xff]
  %v178 = vld [vmem:[%s1 + $0x4a0] sm:$0xff]
  %v179 = vld [vmem:[%s1 + $0x4a8] sm:$0xff]
  %v180 = vld [vmem:[%s1 + $0x4b0] sm:$0xff]
  %v181 = vld [vmem:[%s1 + $0x4b8] sm:$0xff]
  %v182 = vld [vmem:[%s1 + $0x4c0] sm:$0xff]
  %v183 = vld [vmem:[%s1 + $0x4c8] sm:$0xff]
  %v184 = vld [vmem:[%s1 + $0x4d0] sm:$0xff]
  %v185 = vld [vmem:[%s1 + $0x4d8] sm:$0xff]
  %v186 = vld [vmem:[%s1 + $0x4e0] sm:$0xff]
  %v187 = vld [vmem:[%s1 + $0x4e8] sm:$0xff]
  %v188 = vld [vmem:[%s1 + $0x4f0] sm:$0xff]
  %v189 = vld [vmem:[%s1 + $0x4f8] sm:$0xff]
  %v190 = vld [vmem:[%s1 + $0x500] sm:$0xff]
  %v191 = vld [vmem:[%s1 + $0x508] sm:$0xff]
  %v192 = vld [vmem:[%s1 + $0x510] sm:$0xff]
  %v193 = vld [vmem:[%s1 + $0x518] sm:$0xff]
  %v194 = vld [vmem:[%s1 + $0x520] sm:$0xff]
  %v195 = vld [vmem:[%s1 + $0x528] sm:$0xff]
  %v196 = vld [vmem:[%s1 + $0x530] sm:$0xff]
  %v197 = vld [vmem:[%s1 + $0x538] sm:$0xff]
  %v198 = vld [vmem:[%s1 + $0x540] sm:$0xff]
  %v199 = vld [vmem:[%s1 + $0x548] sm:$0xff]
  %v200 = vld [vmem:[%s1 + $0x550] sm:$0xff]
  %v201 = vld [vmem:[%s1 + $0x558] sm:$0xff]
  %v202 = vld [vmem:[%s1 + $0x560] sm:$0xff]
  %v203 = vld [vmem:[%s1 + $0x568] sm:$0xff]
  %v204 = vld [vmem:[%s1 + $0x570] sm:$0xff]
  %v205 = vld [vmem:[%s1 + $0x578] sm:$0xff]
  %v206 = vld [vmem:[%s1 + $0x580] sm:$0xff]
  %v207 = vld [vmem:[%s1 + $0x588] sm:$0xff]
  %v208 = vld [vmem:[%s1 + $0x590] sm:$0xff]
  %v209 = vld [vmem:[%s1 + $0x598] sm:$0xff]
  %v210 = vld [vmem:[%s1 + $0x5a0] sm:$0xff]
  %v211 = vld [vmem:[%s1 + $0x5a8] sm:$0xff]
  %v212 = vld [vmem:[%s1 + $0x5b0] sm:$0xff]
  %v213 = vld [vmem:[%s1 + $0x5b8] sm:$0xff]
  %v214 = vld [vmem:[%s1 + $0x5c0] sm:$0xff]
  %v215 = vld [vmem:[%s1 + $0x5c8] sm:$0xff]
  %v216 = vld [vmem:[%s1 + $0x5d0] sm:$0xff]
  %v217 = vld [vmem:[%s1 + $0x5d8] sm:$0xff]
  %v218 = vld [vmem:[%s1 + $0x5e0] sm:$0xff]
  %v219 = vld [vmem:[%s1 + $0x5e8] sm:$0xff]
  %v220 = vld [vmem:[%s1 + $0x5f0] sm:$0xff]
  %v221 = vld [vmem:[%s1 + $0x5f8] sm:$0xff]
  %v222 = vld [vmem:[%s1 + $0x600] sm:$0xff]
  %v223 = vld [vmem:[%s1 + $0x608] sm:$0xff]
  %v224 = vld [vmem:[%s1 + $0x610] sm:$0xff]
  %v225 = vld [vmem:[%s1 + $0x618] sm:$0xff]
  %v226 = vld [vmem:[%s1 + $0x620] sm:$0xff]
  %v227 = vld [vmem:[%s1 + $0x628] sm:$0xff]
  %v228 = vld [vmem:[%s1 + $0x630] sm:$0xff]
  %v229 = vld [vmem:[%s1 + $0x638] sm:$0xff]
  %v230 = vld [vmem:[%s1 + $0x640] sm:$0xff]
  %v231 = vld [vmem:[%s1 + $0x648] sm:$0xff]
  %v232 = vld [vmem:[%s1 + $0x650] sm:$0xff]
  %v233 = vld [vmem:[%s1 + $0x658] sm:$0xff]
  %v234 = vld [vmem:[%s1 + $0x660] sm:$0xff]
  %v235 = vld [vmem:[%s1 + $0x668] sm:$0xff]
  %v236 = vld [vmem:[%s1 + $0x670] sm:$0xff]
  %v237 = vld [vmem:[%s1 + $0x678] sm:$0xff]
  %v238 = vld [vmem:[%s1 + $0x680] sm:$0xff]
  %v239 = vld [vmem:[%s1 + $0x688] sm:$0xff]
  %v240 = vld [vmem:[%s1 + $0x690] sm:$0xff]
  %v241 = vld [vmem:[%s1 + $0x698] sm:$0xff]
  %v242 = vld [vmem:[%s1 + $0x6a0] sm:$0xff]
  %v243 = vld [vmem:[%s1 + $0x6a8] sm:$0xff]
  %v244 = vld [vmem:[%s1 + $0x6b0] sm:$0xff]
  %v245 = vld [vmem:[%s1 + $0x6b8] sm:$0xff]
  %v253 = vunpack.c.l.b16 %v23
  %v254 = vunpack.c.h.b16 %v23
  %v255 = vunpack.c.l.b16 %v24
  %v256 = vunpack.c.h.b16 %v24
  %v257 = vunpack.c.l.b16 %v25
  %v258 = vunpack.c.h.b16 %v25
  %v259 = vunpack.c.l.b16 %v26
  %v260 = vunpack.c.h.b16 %v26
  %v261 = vunpack.c.l.b16 %v27
  %v262 = vunpack.c.h.b16 %v27
  %v263 = vunpack.c.l.b16 %v28
  %v264 = vunpack.c.h.b16 %v28
  %v265 = vunpack.c.l.b16 %v29
  %v266 = vunpack.c.h.b16 %v29
  %v267 = vpack.c.b16 %v253, %v253
  %v268 = vpack.c.b16 %v254, %v254
  %v269 = vpack.c.b16 %v255, %v255
  %v270 = vpack.c.b16 %v256, %v256
  %v271 = vpack.c.b16 %v257, %v257
  %v272 = vpack.c.b16 %v258, %v258
  %v273 = vpack.c.b16 %v259, %v259
  %v274 = vpack.c.b16 %v260, %v260
  %v275 = vpack.c.b16 %v261, %v261
  %v276 = vpack.c.b16 %v262, %v262
  %v277 = vpack.c.b16 %v263, %v263
  %v278 = vpack.c.b16 %v264, %v264
  %v279 = vpack.c.b16 %v265, %v265
  %v280 = vpack.c.b16 %v266, %v266
  %v510 = vunpack.c.l.b16 %v30
  %v511 = vunpack.c.h.b16 %v30
  %v512 = vunpack.c.l.b16 %v31
  %v513 = vunpack.c.h.b16 %v31
  %v514 = vunpack.c.l.b16 %v32
  %v515 = vunpack.c.h.b16 %v32
  %v516 = vunpack.c.l.b16 %v33
  %v517 = vunpack.c.h.b16 %v33
  %v518 = vunpack.c.l.b16 %v34
  %v519 = vunpack.c.h.b16 %v34
  %v520 = vunpack.c.l.b16 %v35
  %v521 = vunpack.c.h.b16 %v35
  %v522 = vunpack.c.l.b16 %v36
  %v523 = vunpack.c.h.b16 %v36
  %v524 = vunpack.c.l.b16 %v37
  %v525 = vunpack.c.h.b16 %v37
  %v526 = vunpack.c.l.b16 %v38
  %v527 = vunpack.c.h.b16 %v38
  %v528 = vunpack.c.l.b16 %v39
  %v529 = vunpack.c.h.b16 %v39
  %v530 = vunpack.c.l.b16 %v40
  %v531 = vunpack.c.h.b16 %v40
  %v532 = vunpack.c.l.b16 %v41
  %v533 = vunpack.c.h.b16 %v41
  %v534 = vunpack.c.l.b16 %v42
  %v535 = vunpack.c.h.b16 %v42
  %v536 = vunpack.c.l.b16 %v43
  %v537 = vunpack.c.h.b16 %v43
  %v538 = vunpack.c.l.b16 %v44
  %v539 = vunpack.c.h.b16 %v44
  %v540 = vunpack.c.l.b16 %v45
  %v541 = vunpack.c.h.b16 %v45
  %v542 = vunpack.c.l.b16 %v46
  %v543 = vunpack.c.h.b16 %v46
  %v544 = vunpack.c.l.b16 %v47
  %v545 = vunpack.c.h.b16 %v47
  %v546 = vunpack.c.l.b16 %v48
  %v547 = vunpack.c.h.b16 %v48
  %v548 = vunpack.c.l.b16 %v49
  %v549 = vunpack.c.h.b16 %v49
  %v550 = vunpack.c.l.b16 %v50
  %v551 = vunpack.c.h.b16 %v50
  %v552 = vunpack.c.l.b16 %v51
  %v553 = vunpack.c.h.b16 %v51
  %v554 = vunpack.c.l.b16 %v52
  %v555 = vunpack.c.h.b16 %v52
  %v556 = vunpack.c.l.b16 %v53
  %v557 = vunpack.c.h.b16 %v53
  %v558 = vunpack.c.l.b16 %v54
  %v559 = vunpack.c.h.b16 %v54
  %v560 = vunpack.c.l.b16 %v55
  %v561 = vunpack.c.h.b16 %v55
  %v562 = vunpack.c.l.b16 %v56
  %v563 = vunpack.c.h.b16 %v56
  %v564 = vunpack.c.l.b16 %v57
  %v565 = vunpack.c.h.b16 %v57
  %v566 = vunpack.c.l.b16 %v58
  %v567 = vunpack.c.h.b16 %v58
  %v568 = vunpack.c.l.b16 %v59
  %v569 = vunpack.c.h.b16 %v59
  %v570 = vunpack.c.l.b16 %v60
  %v571 = vunpack.c.h.b16 %v60
  %v572 = vunpack.c.l.b16 %v61
  %v573 = vunpack.c.h.b16 %v61
  %v574 = vunpack.c.l.b16 %v62
  %v575 = vunpack.c.h.b16 %v62
  %v576 = vunpack.c.l.b16 %v63
  %v577 = vunpack.c.h.b16 %v63
  %v578 = vunpack.c.l.b16 %v64
  %v579 = vunpack.c.h.b16 %v64
  %v580 = vunpack.c.l.b16 %v65
  %v581 = vunpack.c.h.b16 %v65
  %v582 = vunpack.c.l.b16 %v66
  %v583 = vunpack.c.h.b16 %v66
  %v584 = vunpack.c.l.b16 %v67
  %v585 = vunpack.c.h.b16 %v67
  %v586 = vunpack.c.l.b16 %v68
  %v587 = vunpack.c.h.b16 %v68
  %v588 = vunpack.c.l.b16 %v69
  %v589 = vunpack.c.h.b16 %v69
  %v590 = vunpack.c.l.b16 %v70
  %v591 = vunpack.c.h.b16 %v70
  %v592 = vunpack.c.l.b16 %v71
  %v593 = vunpack.c.h.b16 %v71
  %v594 = vunpack.c.l.b16 %v72
  %v595 = vunpack.c.h.b16 %v72
  %v596 = vunpack.c.l.b16 %v73
  %v597 = vunpack.c.h.b16 %v73
  %v598 = vunpack.c.l.b16 %v74
  %v599 = vunpack.c.h.b16 %v74
  %v600 = vunpack.c.l.b16 %v75
  %v601 = vunpack.c.h.b16 %v75
  %v602 = vunpack.c.l.b16 %v76
  %v603 = vunpack.c.h.b16 %v76
  %v604 = vunpack.c.l.b16 %v77
  %v605 = vunpack.c.h.b16 %v77
  %v606 = vunpack.c.l.b16 %v78
  %v607 = vunpack.c.h.b16 %v78
  %v608 = vunpack.c.l.b16 %v79
  %v609 = vunpack.c.h.b16 %v79
  %v610 = vunpack.c.l.b16 %v80
  %v611 = vunpack.c.h.b16 %v80
  %v612 = vunpack.c.l.b16 %v81
  %v613 = vunpack.c.h.b16 %v81
  %v614 = vunpack.c.l.b16 %v82
  %v615 = vunpack.c.h.b16 %v82
  %v616 = vunpack.c.l.b16 %v83
  %v617 = vunpack.c.h.b16 %v83
  %v618 = vunpack.c.l.b16 %v84
  %v619 = vunpack.c.h.b16 %v84
  %v620 = vunpack.c.l.b16 %v85
  %v621 = vunpack.c.h.b16 %v85
  %v622 = vunpack.c.l.b16 %v86
  %v623 = vunpack.c.h.b16 %v86
  %v624 = vunpack.c.l.b16 %v87
  %v625 = vunpack.c.h.b16 %v87
  %v626 = vunpack.c.l.b16 %v88
  %v627 = vunpack.c.h.b16 %v88
  %v628 = vunpack.c.l.b16 %v89
  %v629 = vunpack.c.h.b16 %v89
  %v630 = vunpack.c.l.b16 %v90
  %v631 = vunpack.c.h.b16 %v90
  %v632 = vunpack.c.l.b16 %v91
  %v633 = vunpack.c.h.b16 %v91
  %v634 = vunpack.c.l.b16 %v92
  %v635 = vunpack.c.h.b16 %v92
  %v636 = vunpack.c.l.b16 %v93
  %v637 = vunpack.c.h.b16 %v93
  %v638 = vunpack.c.l.b16 %v94
  %v639 = vunpack.c.h.b16 %v94
  %v640 = vunpack.c.l.b16 %v95
  %v641 = vunpack.c.h.b16 %v95
  %v642 = vunpack.c.l.b16 %v96
  %v643 = vunpack.c.h.b16 %v96
  %v644 = vunpack.c.l.b16 %v97
  %v645 = vunpack.c.h.b16 %v97
  %v646 = vunpack.c.l.b16 %v98
  %v647 = vunpack.c.h.b16 %v98
  %v648 = vunpack.c.l.b16 %v99
  %v649 = vunpack.c.h.b16 %v99
  %v650 = vunpack.c.l.b16 %v100
  %v651 = vunpack.c.h.b16 %v100
  %v652 = vunpack.c.l.b16 %v101
  %v653 = vunpack.c.h.b16 %v101
  %v654 = vunpack.c.l.b16 %v102
  %v655 = vunpack.c.h.b16 %v102
  %v656 = vunpack.c.l.b16 %v103
  %v657 = vunpack.c.h.b16 %v103
  %v658 = vunpack.c.l.b16 %v104
  %v659 = vunpack.c.h.b16 %v104
  %v660 = vunpack.c.l.b16 %v105
  %v661 = vunpack.c.h.b16 %v105
  %v662 = vunpack.c.l.b16 %v106
  %v663 = vunpack.c.h.b16 %v106
  %v664 = vunpack.c.l.b16 %v107
  %v665 = vunpack.c.h.b16 %v107
  %v666 = vunpack.c.l.b16 %v108
  %v667 = vunpack.c.h.b16 %v108
  %v668 = vunpack.c.l.b16 %v109
  %v669 = vunpack.c.h.b16 %v109
  %v670 = vunpack.c.l.b16 %v110
  %v671 = vunpack.c.h.b16 %v110
  %v672 = vunpack.c.l.b16 %v111
  %v673 = vunpack.c.h.b16 %v111
  %v674 = vunpack.c.l.b16 %v112
  %v675 = vunpack.c.h.b16 %v112
  %v676 = vunpack.c.l.b16 %v113
  %v677 = vunpack.c.h.b16 %v113
  %v678 = vunpack.c.l.b16 %v114
  %v679 = vunpack.c.h.b16 %v114
  %v680 = vunpack.c.l.b16 %v115
  %v681 = vunpack.c.h.b16 %v115
  %v682 = vunpack.c.l.b16 %v116
  %v683 = vunpack.c.h.b16 %v116
  %v684 = vunpack.c.l.b16 %v117
  %v685 = vunpack.c.h.b16 %v117
  %v686 = vunpack.c.l.b16 %v118
  %v687 = vunpack.c.h.b16 %v118
  %v688 = vunpack.c.l.b16 %v119
  %v689 = vunpack.c.h.b16 %v119
  %v690 = vunpack.c.l.b16 %v120
  %v691 = vunpack.c.h.b16 %v120
  %v692 = vunpack.c.l.b16 %v121
  %v693 = vunpack.c.h.b16 %v121
  %v694 = vunpack.c.l.b16 %v122
  %v695 = vunpack.c.h.b16 %v122
  %v696 = vunpack.c.l.b16 %v123
  %v697 = vunpack.c.h.b16 %v123
  %v698 = vunpack.c.l.b16 %v124
  %v699 = vunpack.c.h.b16 %v124
  %v700 = vunpack.c.l.b16 %v125
  %v701 = vunpack.c.h.b16 %v125
  %v702 = vunpack.c.l.b16 %v126
  %v703 = vunpack.c.h.b16 %v126
  %v704 = vunpack.c.l.b16 %v127
  %v705 = vunpack.c.h.b16 %v127
  %v706 = vunpack.c.l.b16 %v128
  %v707 = vunpack.c.h.b16 %v128
  %v708 = vunpack.c.l.b16 %v129
  %v709 = vunpack.c.h.b16 %v129
  %v710 = vunpack.c.l.b16 %v130
  %v711 = vunpack.c.h.b16 %v130
  %v712 = vunpack.c.l.b16 %v131
  %v713 = vunpack.c.h.b16 %v131
  %v714 = vunpack.c.l.b16 %v132
  %v715 = vunpack.c.h.b16 %v132
  %v716 = vunpack.c.l.b16 %v133
  %v717 = vunpack.c.h.b16 %v133
  %v718 = vunpack.c.l.b16 %v134
  %v719 = vunpack.c.h.b16 %v134
  %v720 = vunpack.c.l.b16 %v135
  %v721 = vunpack.c.h.b16 %v135
  %v722 = vunpack.c.l.b16 %v136
  %v723 = vunpack.c.h.b16 %v136
  %v724 = vunpack.c.l.b16 %v137
  %v725 = vunpack.c.h.b16 %v137
  %v726 = vunpack.c.l.b16 %v138
  %v727 = vunpack.c.h.b16 %v138
  %v728 = vunpack.c.l.b16 %v139
  %v729 = vunpack.c.h.b16 %v139
  %v730 = vunpack.c.l.b16 %v140
  %v731 = vunpack.c.h.b16 %v140
  %v732 = vunpack.c.l.b16 %v141
  %v733 = vunpack.c.h.b16 %v141
  %v734 = vunpack.c.l.b16 %v142
  %v735 = vunpack.c.h.b16 %v142
  %v736 = vunpack.c.l.b16 %v143
  %v737 = vunpack.c.h.b16 %v143
  %v738 = vunpack.c.l.b16 %v144
  %v739 = vunpack.c.h.b16 %v144
  %v740 = vunpack.c.l.b16 %v145
  %v741 = vunpack.c.h.b16 %v145
  %v742 = vunpack.c.l.b16 %v146
  %v743 = vunpack.c.h.b16 %v146
  %v744 = vunpack.c.l.b16 %v147
  %v745 = vunpack.c.h.b16 %v147
  %v746 = vunpack.c.l.b16 %v148
  %v747 = vunpack.c.h.b16 %v148
  %v748 = vunpack.c.l.b16 %v149
  %v749 = vunpack.c.h.b16 %v149
  %v750 = vunpack.c.l.b16 %v150
  %v751 = vunpack.c.h.b16 %v150
  %v752 = vunpack.c.l.b16 %v151
  %v753 = vunpack.c.h.b16 %v151
  %v754 = vunpack.c.l.b16 %v152
  %v755 = vunpack.c.h.b16 %v152
  %v756 = vunpack.c.l.b16 %v153
  %v757 = vunpack.c.h.b16 %v153
  %v758 = vunpack.c.l.b16 %v154
  %v759 = vunpack.c.h.b16 %v154
  %v760 = vunpack.c.l.b16 %v155
  %v761 = vunpack.c.h.b16 %v155
  %v762 = vunpack.c.l.b16 %v156
  %v763 = vunpack.c.h.b16 %v156
  %v764 = vunpack.c.l.b16 %v157
  %v765 = vunpack.c.h.b16 %v157
  %v766 = vunpack.c.l.b16 %v158
  %v767 = vunpack.c.h.b16 %v158
  %v768 = vunpack.c.l.b16 %v159
  %v769 = vunpack.c.h.b16 %v159
  %v770 = vunpack.c.l.b16 %v160
  %v771 = vunpack.c.h.b16 %v160
  %v772 = vunpack.c.l.b16 %v161
  %v773 = vunpack.c.h.b16 %v161
  %v774 = vunpack.c.l.b16 %v162
  %v775 = vunpack.c.h.b16 %v162
  %v776 = vunpack.c.l.b16 %v163
  %v777 = vunpack.c.h.b16 %v163
  %v778 = vunpack.c.l.b16 %v164
  %v779 = vunpack.c.h.b16 %v164
  %v780 = vunpack.c.l.b16 %v165
  %v781 = vunpack.c.h.b16 %v165
  %v782 = vunpack.c.l.b16 %v166
  %v783 = vunpack.c.h.b16 %v166
  %v784 = vunpack.c.l.b16 %v167
  %v785 = vunpack.c.h.b16 %v167
  %v786 = vunpack.c.l.b16 %v168
  %v787 = vunpack.c.h.b16 %v168
  %v788 = vunpack.c.l.b16 %v169
  %v789 = vunpack.c.h.b16 %v169
  %v790 = vunpack.c.l.b16 %v170
  %v791 = vunpack.c.h.b16 %v170
  %v792 = vunpack.c.l.b16 %v171
  %v793 = vunpack.c.h.b16 %v171
  %v794 = vunpack.c.l.b16 %v172
  %v795 = vunpack.c.h.b16 %v172
  %v796 = vunpack.c.l.b16 %v173
  %v797 = vunpack.c.h.b16 %v173
  %v798 = vunpack.c.l.b16 %v174
  %v799 = vunpack.c.h.b16 %v174
  %v800 = vunpack.c.l.b16 %v175
  %v801 = vunpack.c.h.b16 %v175
  %v802 = vunpack.c.l.b16 %v176
  %v803 = vunpack.c.h.b16 %v176
  %v804 = vunpack.c.l.b16 %v177
  %v805 = vunpack.c.h.b16 %v177
  %v806 = vunpack.c.l.b16 %v178
  %v807 = vunpack.c.h.b16 %v178
  %v808 = vunpack.c.l.b16 %v179
  %v809 = vunpack.c.h.b16 %v179
  %v810 = vunpack.c.l.b16 %v180
  %v811 = vunpack.c.h.b16 %v180
  %v812 = vunpack.c.l.b16 %v181
  %v813 = vunpack.c.h.b16 %v181
  %v814 = vunpack.c.l.b16 %v182
  %v815 = vunpack.c.h.b16 %v182
  %v816 = vunpack.c.l.b16 %v183
  %v817 = vunpack.c.h.b16 %v183
  %v818 = vunpack.c.l.b16 %v184
  %v819 = vunpack.c.h.b16 %v184
  %v820 = vunpack.c.l.b16 %v185
  %v821 = vunpack.c.h.b16 %v185
  %v822 = vunpack.c.l.b16 %v186
  %v823 = vunpack.c.h.b16 %v186
  %v824 = vunpack.c.l.b16 %v187
  %v825 = vunpack.c.h.b16 %v187
  %v826 = vunpack.c.l.b16 %v188
  %v827 = vunpack.c.h.b16 %v188
  %v828 = vunpack.c.l.b16 %v189
  %v829 = vunpack.c.h.b16 %v189
  %v830 = vunpack.c.l.b16 %v190
  %v831 = vunpack.c.h.b16 %v190
  %v832 = vunpack.c.l.b16 %v191
  %v833 = vunpack.c.h.b16 %v191
  %v834 = vunpack.c.l.b16 %v192
  %v835 = vunpack.c.h.b16 %v192
  %v836 = vunpack.c.l.b16 %v193
  %v837 = vunpack.c.h.b16 %v193
  %v838 = vunpack.c.l.b16 %v194
  %v839 = vunpack.c.h.b16 %v194
  %v840 = vunpack.c.l.b16 %v195
  %v841 = vunpack.c.h.b16 %v195
  %v842 = vunpack.c.l.b16 %v196
  %v843 = vunpack.c.h.b16 %v196
  %v844 = vunpack.c.l.b16 %v197
  %v845 = vunpack.c.h.b16 %v197
  %v846 = vunpack.c.l.b16 %v198
  %v847 = vunpack.c.h.b16 %v198
  %v848 = vunpack.c.l.b16 %v199
  %v849 = vunpack.c.h.b16 %v199
  %v850 = vunpack.c.l.b16 %v200
  %v851 = vunpack.c.h.b16 %v200
  %v852 = vunpack.c.l.b16 %v201
  %v853 = vunpack.c.h.b16 %v201
  %v854 = vunpack.c.l.b16 %v202
  %v855 = vunpack.c.h.b16 %v202
  %v856 = vunpack.c.l.b16 %v203
  %v857 = vunpack.c.h.b16 %v203
  %v858 = vunpack.c.l.b16 %v204
  %v859 = vunpack.c.h.b16 %v204
  %v860 = vunpack.c.l.b16 %v205
  %v861 = vunpack.c.h.b16 %v205
  %v862 = vunpack.c.l.b16 %v206
  %v863 = vunpack.c.h.b16 %v206
  %v864 = vunpack.c.l.b16 %v207
  %v865 = vunpack.c.h.b16 %v207
  %v866 = vunpack.c.l.b16 %v208
  %v867 = vunpack.c.h.b16 %v208
  %v868 = vunpack.c.l.b16 %v209
  %v869 = vunpack.c.h.b16 %v209
  %v870 = vunpack.c.l.b16 %v210
  %v871 = vunpack.c.h.b16 %v210
  %v872 = vunpack.c.l.b16 %v211
  %v873 = vunpack.c.h.b16 %v211
  %v874 = vunpack.c.l.b16 %v212
  %v875 = vunpack.c.h.b16 %v212
  %v876 = vunpack.c.l.b16 %v213
  %v877 = vunpack.c.h.b16 %v213
  %v878 = vunpack.c.l.b16 %v214
  %v879 = vunpack.c.h.b16 %v214
  %v880 = vunpack.c.l.b16 %v215
  %v881 = vunpack.c.h.b16 %v215
  %v882 = vunpack.c.l.b16 %v216
  %v883 = vunpack.c.h.b16 %v216
  %v884 = vunpack.c.l.b16 %v217
  %v885 = vunpack.c.h.b16 %v217
  %v886 = vunpack.c.l.b16 %v218
  %v887 = vunpack.c.h.b16 %v218
  %v888 = vunpack.c.l.b16 %v219
  %v889 = vunpack.c.h.b16 %v219
  %v890 = vunpack.c.l.b16 %v220
  %v891 = vunpack.c.h.b16 %v220
  %v892 = vunpack.c.l.b16 %v221
  %v893 = vunpack.c.h.b16 %v221
  %v894 = vunpack.c.l.b16 %v222
  %v895 = vunpack.c.h.b16 %v222
  %v896 = vunpack.c.l.b16 %v223
  %v897 = vunpack.c.h.b16 %v223
  %v898 = vunpack.c.l.b16 %v224
  %v899 = vunpack.c.h.b16 %v224
  %v900 = vunpack.c.l.b16 %v225
  %v901 = vunpack.c.h.b16 %v225
  %v902 = vunpack.c.l.b16 %v226
  %v903 = vunpack.c.h.b16 %v226
  %v904 = vunpack.c.l.b16 %v227
  %v905 = vunpack.c.h.b16 %v227
  %v906 = vunpack.c.l.b16 %v228
  %v907 = vunpack.c.h.b16 %v228
  %v908 = vunpack.c.l.b16 %v229
  %v909 = vunpack.c.h.b16 %v229
  %v910 = vunpack.c.l.b16 %v230
  %v911 = vunpack.c.h.b16 %v230
  %v912 = vunpack.c.l.b16 %v231
  %v913 = vunpack.c.h.b16 %v231
  %v914 = vunpack.c.l.b16 %v232
  %v915 = vunpack.c.h.b16 %v232
  %v916 = vunpack.c.l.b16 %v233
  %v917 = vunpack.c.h.b16 %v233
  %v918 = vunpack.c.l.b16 %v234
  %v919 = vunpack.c.h.b16 %v234
  %v920 = vunpack.c.l.b16 %v235
  %v921 = vunpack.c.h.b16 %v235
  %v922 = vunpack.c.l.b16 %v236
  %v923 = vunpack.c.h.b16 %v236
  %v924 = vunpack.c.l.b16 %v237
  %v925 = vunpack.c.h.b16 %v237
  %v926 = vunpack.c.l.b16 %v238
  %v927 = vunpack.c.h.b16 %v238
  %v928 = vunpack.c.l.b16 %v239
  %v929 = vunpack.c.h.b16 %v239
  %v930 = vunpack.c.l.b16 %v240
  %v931 = vunpack.c.h.b16 %v240
  %v932 = vunpack.c.l.b16 %v241
  %v933 = vunpack.c.h.b16 %v241
  %v934 = vunpack.c.l.b16 %v242
  %v935 = vunpack.c.h.b16 %v242
  %v936 = vunpack.c.l.b16 %v243
  %v937 = vunpack.c.h.b16 %v243
  %v938 = vunpack.c.l.b16 %v244
  %v939 = vunpack.c.h.b16 %v244
  %v940 = vunpack.c.l.b16 %v245
  %v941 = vunpack.c.h.b16 %v245
  %v942 = vpack.c.b16 %v512, %v510
  %v943 = vpack.c.b16 %v513, %v511
  %v944 = vpack.c.b16 %v516, %v514
  %v945 = vpack.c.b16 %v517, %v515
  %v946 = vpack.c.b16 %v520, %v518
  %v947 = vpack.c.b16 %v521, %v519
  %v948 = vpack.c.b16 %v524, %v522
  %v949 = vpack.c.b16 %v525, %v523
  %v950 = vpack.c.b16 %v528, %v526
  %v951 = vpack.c.b16 %v529, %v527
  %v952 = vpack.c.b16 %v532, %v530
  %v953 = vpack.c.b16 %v533, %v531
  %v954 = vpack.c.b16 %v536, %v534
  %v955 = vpack.c.b16 %v537, %v535
  %v956 = vpack.c.b16 %v540, %v538
  %v957 = vpack.c.b16 %v541, %v539
  %v958 = vpack.c.b16 %v544, %v542
  %v959 = vpack.c.b16 %v545, %v543
  %v960 = vpack.c.b16 %v548, %v546
  %v961 = vpack.c.b16 %v549, %v547
  %v962 = vpack.c.b16 %v552, %v550
  %v963 = vpack.c.b16 %v553, %v551
  %v964 = vpack.c.b16 %v556, %v554
  %v965 = vpack.c.b16 %v557, %v555
  %v966 = vpack.c.b16 %v560, %v558
  %v967 = vpack.c.b16 %v561, %v559
  %v968 = vpack.c.b16 %v564, %v562
  %v969 = vpack.c.b16 %v565, %v563
  %v970 = vpack.c.b16 %v568, %v566
  %v971 = vpack.c.b16 %v569, %v567
  %v972 = vpack.c.b16 %v572, %v570
  %v973 = vpack.c.b16 %v573, %v571
  %v974 = vpack.c.b16 %v576, %v574
  %v975 = vpack.c.b16 %v577, %v575
  %v976 = vpack.c.b16 %v580, %v578
  %v977 = vpack.c.b16 %v581, %v579
  %v978 = vpack.c.b16 %v584, %v582
  %v979 = vpack.c.b16 %v585, %v583
  %v980 = vpack.c.b16 %v588, %v586
  %v981 = vpack.c.b16 %v589, %v587
  %v982 = vpack.c.b16 %v592, %v590
  %v983 = vpack.c.b16 %v593, %v591
  %v984 = vpack.c.b16 %v596, %v594
  %v985 = vpack.c.b16 %v597, %v595
  %v986 = vpack.c.b16 %v600, %v598
  %v987 = vpack.c.b16 %v601, %v599
  %v988 = vpack.c.b16 %v604, %v602
  %v989 = vpack.c.b16 %v605, %v603
  %v990 = vpack.c.b16 %v608, %v606
  %v991 = vpack.c.b16 %v609, %v607
  %v992 = vpack.c.b16 %v612, %v610
  %v993 = vpack.c.b16 %v613, %v611
  %v994 = vpack.c.b16 %v616, %v614
  %v995 = vpack.c.b16 %v617, %v615
  %v996 = vpack.c.b16 %v620, %v618
  %v997 = vpack.c.b16 %v621, %v619
  %v998 = vpack.c.b16 %v624, %v622
  %v999 = vpack.c.b16 %v625, %v623
  %v1000 = vpack.c.b16 %v628, %v626
  %v1001 = vpack.c.b16 %v629, %v627
  %v1002 = vpack.c.b16 %v632, %v630
  %v1003 = vpack.c.b16 %v633, %v631
  %v1004 = vpack.c.b16 %v636, %v634
  %v1005 = vpack.c.b16 %v637, %v635
  %v1006 = vpack.c.b16 %v640, %v638
  %v1007 = vpack.c.b16 %v641, %v639
  %v1008 = vpack.c.b16 %v644, %v642
  %v1009 = vpack.c.b16 %v645, %v643
  %v1010 = vpack.c.b16 %v648, %v646
  %v1011 = vpack.c.b16 %v649, %v647
  %v1012 = vpack.c.b16 %v652, %v650
  %v1013 = vpack.c.b16 %v653, %v651
  %v1014 = vpack.c.b16 %v656, %v654
  %v1015 = vpack.c.b16 %v657, %v655
  %v1016 = vpack.c.b16 %v660, %v658
  %v1017 = vpack.c.b16 %v661, %v659
  %v1018 = vpack.c.b16 %v664, %v662
  %v1019 = vpack.c.b16 %v665, %v663
  %v1020 = vpack.c.b16 %v668, %v666
  %v1021 = vpack.c.b16 %v669, %v667
  %v1022 = vpack.c.b16 %v672, %v670
  %v1023 = vpack.c.b16 %v673, %v671
  %v1024 = vpack.c.b16 %v676, %v674
  %v1025 = vpack.c.b16 %v677, %v675
  %v1026 = vpack.c.b16 %v680, %v678
  %v1027 = vpack.c.b16 %v681, %v679
  %v1028 = vpack.c.b16 %v684, %v682
  %v1029 = vpack.c.b16 %v685, %v683
  %v1030 = vpack.c.b16 %v688, %v686
  %v1031 = vpack.c.b16 %v689, %v687
  %v1032 = vpack.c.b16 %v692, %v690
  %v1033 = vpack.c.b16 %v693, %v691
  %v1034 = vpack.c.b16 %v696, %v694
  %v1035 = vpack.c.b16 %v697, %v695
  %v1036 = vpack.c.b16 %v700, %v698
  %v1037 = vpack.c.b16 %v701, %v699
  %v1038 = vpack.c.b16 %v704, %v702
  %v1039 = vpack.c.b16 %v705, %v703
  %v1040 = vpack.c.b16 %v708, %v706
  %v1041 = vpack.c.b16 %v709, %v707
  %v1042 = vpack.c.b16 %v712, %v710
  %v1043 = vpack.c.b16 %v713, %v711
  %v1044 = vpack.c.b16 %v716, %v714
  %v1045 = vpack.c.b16 %v717, %v715
  %v1046 = vpack.c.b16 %v720, %v718
  %v1047 = vpack.c.b16 %v721, %v719
  %v1048 = vpack.c.b16 %v724, %v722
  %v1049 = vpack.c.b16 %v725, %v723
  %v1050 = vpack.c.b16 %v728, %v726
  %v1051 = vpack.c.b16 %v729, %v727
  %v1052 = vpack.c.b16 %v732, %v730
  %v1053 = vpack.c.b16 %v733, %v731
  %v1054 = vpack.c.b16 %v736, %v734
  %v1055 = vpack.c.b16 %v737, %v735
  %v1056 = vpack.c.b16 %v740, %v738
  %v1057 = vpack.c.b16 %v741, %v739
  %v1058 = vpack.c.b16 %v744, %v742
  %v1059 = vpack.c.b16 %v745, %v743
  %v1060 = vpack.c.b16 %v748, %v746
  %v1061 = vpack.c.b16 %v749, %v747
  %v1062 = vpack.c.b16 %v752, %v750
  %v1063 = vpack.c.b16 %v753, %v751
  %v1064 = vpack.c.b16 %v756, %v754
  %v1065 = vpack.c.b16 %v757, %v755
  %v1066 = vpack.c.b16 %v760, %v758
  %v1067 = vpack.c.b16 %v761, %v759
  %v1068 = vpack.c.b16 %v764, %v762
  %v1069 = vpack.c.b16 %v765, %v763
  %v1070 = vpack.c.b16 %v768, %v766
  %v1071 = vpack.c.b16 %v769, %v767
  %v1072 = vpack.c.b16 %v772, %v770
  %v1073 = vpack.c.b16 %v773, %v771
  %v1074 = vpack.c.b16 %v776, %v774
  %v1075 = vpack.c.b16 %v777, %v775
  %v1076 = vpack.c.b16 %v780, %v778
  %v1077 = vpack.c.b16 %v781, %v779
  %v1078 = vpack.c.b16 %v784, %v782
  %v1079 = vpack.c.b16 %v785, %v783
  %v1080 = vpack.c.b16 %v788, %v786
  %v1081 = vpack.c.b16 %v789, %v787
  %v1082 = vpack.c.b16 %v792, %v790
  %v1083 = vpack.c.b16 %v793, %v791
  %v1084 = vpack.c.b16 %v796, %v794
  %v1085 = vpack.c.b16 %v797, %v795
  %v1086 = vpack.c.b16 %v800, %v798
  %v1087 = vpack.c.b16 %v801, %v799
  %v1088 = vpack.c.b16 %v804, %v802
  %v1089 = vpack.c.b16 %v805, %v803
  %v1090 = vpack.c.b16 %v808, %v806
  %v1091 = vpack.c.b16 %v809, %v807
  %v1092 = vpack.c.b16 %v812, %v810
  %v1093 = vpack.c.b16 %v813, %v811
  %v1094 = vpack.c.b16 %v816, %v814
  %v1095 = vpack.c.b16 %v817, %v815
  %v1096 = vpack.c.b16 %v820, %v818
  %v1097 = vpack.c.b16 %v821, %v819
  %v1098 = vpack.c.b16 %v824, %v822
  %v1099 = vpack.c.b16 %v825, %v823
  %v1100 = vpack.c.b16 %v828, %v826
  %v1101 = vpack.c.b16 %v829, %v827
  %v1102 = vpack.c.b16 %v832, %v830
  %v1103 = vpack.c.b16 %v833, %v831
  %v1104 = vpack.c.b16 %v836, %v834
  %v1105 = vpack.c.b16 %v837, %v835
  %v1106 = vpack.c.b16 %v840, %v838
  %v1107 = vpack.c.b16 %v841, %v839
  %v1108 = vpack.c.b16 %v844, %v842
  %v1109 = vpack.c.b16 %v845, %v843
  %v1110 = vpack.c.b16 %v848, %v846
  %v1111 = vpack.c.b16 %v849, %v847
  %v1112 = vpack.c.b16 %v852, %v850
  %v1113 = vpack.c.b16 %v853, %v851
  %v1114 = vpack.c.b16 %v856, %v854
  %v1115 = vpack.c.b16 %v857, %v855
  %v1116 = vpack.c.b16 %v860, %v858
  %v1117 = vpack.c.b16 %v861, %v859
  %v1118 = vpack.c.b16 %v864, %v862
  %v1119 = vpack.c.b16 %v865, %v863
  %v1120 = vpack.c.b16 %v868, %v866
  %v1121 = vpack.c.b16 %v869, %v867
  %v1122 = vpack.c.b16 %v872, %v870
  %v1123 = vpack.c.b16 %v873, %v871
  %v1124 = vpack.c.b16 %v876, %v874
  %v1125 = vpack.c.b16 %v877, %v875
  %v1126 = vpack.c.b16 %v880, %v878
  %v1127 = vpack.c.b16 %v881, %v879
  %v1128 = vpack.c.b16 %v884, %v882
  %v1129 = vpack.c.b16 %v885, %v883
  %v1130 = vpack.c.b16 %v888, %v886
  %v1131 = vpack.c.b16 %v889, %v887
  %v1132 = vpack.c.b16 %v892, %v890
  %v1133 = vpack.c.b16 %v893, %v891
  %v1134 = vpack.c.b16 %v896, %v894
  %v1135 = vpack.c.b16 %v897, %v895
  %v1136 = vpack.c.b16 %v900, %v898
  %v1137 = vpack.c.b16 %v901, %v899
  %v1138 = vpack.c.b16 %v904, %v902
  %v1139 = vpack.c.b16 %v905, %v903
  %v1140 = vpack.c.b16 %v908, %v906
  %v1141 = vpack.c.b16 %v909, %v907
  %v1142 = vpack.c.b16 %v912, %v910
  %v1143 = vpack.c.b16 %v913, %v911
  %v1144 = vpack.c.b16 %v916, %v914
  %v1145 = vpack.c.b16 %v917, %v915
  %v1146 = vpack.c.b16 %v920, %v918
  %v1147 = vpack.c.b16 %v921, %v919
  %v1148 = vpack.c.b16 %v924, %v922
  %v1149 = vpack.c.b16 %v925, %v923
  %v1150 = vpack.c.b16 %v928, %v926
  %v1151 = vpack.c.b16 %v929, %v927
  %v1152 = vpack.c.b16 %v932, %v930
  %v1153 = vpack.c.b16 %v933, %v931
  %v1154 = vpack.c.b16 %v936, %v934
  %v1155 = vpack.c.b16 %v937, %v935
  %v1156 = vpack.c.b16 %v940, %v938
  %v1157 = vpack.c.b16 %v941, %v939
  %vm1374 = vcmask 523264
  %v1376 = vsel %vm1374, %v280, 0
  %1378 = vmatprep.subr.bf16.mxu0 %v943
  %1379 = vmatpush1.bf16.msra.mxu0 %v942
  %1380 = vmatprep.subr.bf16.mxu0 %v945
  %1381 = vmatpush1.bf16.msra.mxu0 %v944
  %1382 = vmatprep.subr.bf16.mxu0 %v947
  %1383 = vmatpush1.bf16.msra.mxu0 %v946
  %1384 = vmatprep.subr.bf16.mxu0 %v949
  %1385 = vmatpush1.bf16.msra.mxu0 %v948
  %1386 = vmatprep.subr.bf16.mxu0 %v951
  %1387 = vmatpush1.bf16.msra.mxu0 %v950
  %1388 = vmatprep.subr.bf16.mxu0 %v953
  %1389 = vmatpush1.bf16.msra.mxu0 %v952
  %1390 = vmatprep.subr.bf16.mxu0 %v955
  %1391 = vmatpush1.bf16.msra.mxu0 %v954
  %1392 = vmatprep.subr.bf16.mxu0 %v957
  %1393 = vmatpush1.bf16.msra.mxu0 %v956
  %1394 = vmatprep.subr.bf16.mxu0 %v959
  %1395 = vmatpush1.bf16.msra.mxu0 %v958
  %1396 = vmatprep.subr.bf16.mxu0 %v961
  %1397 = vmatpush1.bf16.msra.mxu0 %v960
  %1398 = vmatprep.subr.bf16.mxu0 %v963
  %1399 = vmatpush1.bf16.msra.mxu0 %v962
  %1400 = vmatprep.subr.bf16.mxu0 %v965
  %1401 = vmatpush1.bf16.msra.mxu0 %v964
  %1402 = vmatprep.subr.bf16.mxu0 %v967
  %1403 = vmatpush1.bf16.msra.mxu0 %v966
  %1404 = vmatprep.subr.bf16.mxu0 %v969
  %1405 = vmatpush1.bf16.msra.mxu0 %v968
  %1406 = vmatprep.subr.bf16.mxu0 %v971
  %1407 = vmatpush1.bf16.msra.mxu0 %v970
  %1408 = vmatprep.subr.bf16.mxu0 %v973
  %1409 = vmatpush1.bf16.msra.mxu0 %v972
  %1410 = vmatprep.mubr.bf16.mxu0 %v268
  %1411 = vmatmul.mubr.bf16.gmra.mrb[0].mxu0 %v267
  %v1412 = vpop.f32.mrb[0].mxu0
  %v1413 = vadd.f32 0.0, %v1412
  %v1414 = vpop.f32.mrb[0].mxu0
  %v1415 = vadd.f32 0.0, %v1414
  %v1416 = vpop.f32.mrb[0].mxu0
  %v1417 = vpop.f32.mrb[0].mxu0
  %1418 = vdwg.mxu0
  %1419 = vmatprep.subr.bf16.mxu0 %v975
  %1420 = vmatpush1.bf16.msra.mxu0 %v974
  %1421 = vmatprep.subr.bf16.mxu0 %v977
  %1422 = vmatpush1.bf16.msra.mxu0 %v976
  %1423 = vmatprep.subr.bf16.mxu0 %v979
  %1424 = vmatpush1.bf16.msra.mxu0 %v978
  %1425 = vmatprep.subr.bf16.mxu0 %v981
  %1426 = vmatpush1.bf16.msra.mxu0 %v980
  %1427 = vmatprep.subr.bf16.mxu0 %v983
  %1428 = vmatpush1.bf16.msra.mxu0 %v982
  %1429 = vmatprep.subr.bf16.mxu0 %v985
  %1430 = vmatpush1.bf16.msra.mxu0 %v984
  %1431 = vmatprep.subr.bf16.mxu0 %v987
  %1432 = vmatpush1.bf16.msra.mxu0 %v986
  %1433 = vmatprep.subr.bf16.mxu0 %v989
  %1434 = vmatpush1.bf16.msra.mxu0 %v988
  %1435 = vmatprep.subr.bf16.mxu0 %v991
  %1436 = vmatpush1.bf16.msra.mxu0 %v990
  %1437 = vmatprep.subr.bf16.mxu0 %v993
  %1438 = vmatpush1.bf16.msra.mxu0 %v992
  %1439 = vmatprep.subr.bf16.mxu0 %v995
  %1440 = vmatpush1.bf16.msra.mxu0 %v994
  %1441 = vmatprep.subr.bf16.mxu0 %v997
  %1442 = vmatpush1.bf16.msra.mxu0 %v996
  %1443 = vmatprep.subr.bf16.mxu0 %v999
  %1444 = vmatpush1.bf16.msra.mxu0 %v998
  %1445 = vmatprep.subr.bf16.mxu0 %v1001
  %1446 = vmatpush1.bf16.msra.mxu0 %v1000
  %1447 = vmatprep.subr.bf16.mxu0 %v1003
  %1448 = vmatpush1.bf16.msra.mxu0 %v1002
  %1449 = vmatprep.subr.bf16.mxu0 %v1005
  %1450 = vmatpush1.bf16.msra.mxu0 %v1004
  %1451 = vmatprep.mubr.bf16.mxu0 %v270
  %1452 = vmatmul.mubr.bf16.gmra.mrb[0].mxu0 %v269
  %v1453 = vpop.f32.mrb[0].mxu0
  %v1454 = vadd.f32 %v1413, %v1453
  %v1455 = vpop.f32.mrb[0].mxu0
  %v1456 = vadd.f32 %v1415, %v1455
  %v1457 = vpop.f32.mrb[0].mxu0
  %v1458 = vpop.f32.mrb[0].mxu0
  %1459 = vdwg.mxu0
  %1460 = vmatprep.subr.bf16.mxu0 %v1007
  %1461 = vmatpush1.bf16.msra.mxu0 %v1006
  %1462 = vmatprep.subr.bf16.mxu0 %v1009
  %1463 = vmatpush1.bf16.msra.mxu0 %v1008
  %1464 = vmatprep.subr.bf16.mxu0 %v1011
  %1465 = vmatpush1.bf16.msra.mxu0 %v1010
  %1466 = vmatprep.subr.bf16.mxu0 %v1013
  %1467 = vmatpush1.bf16.msra.mxu0 %v1012
  %1468 = vmatprep.subr.bf16.mxu0 %v1015
  %1469 = vmatpush1.bf16.msra.mxu0 %v1014
  %1470 = vmatprep.subr.bf16.mxu0 %v1017
  %1471 = vmatpush1.bf16.msra.mxu0 %v1016
  %1472 = vmatprep.subr.bf16.mxu0 %v1019
  %1473 = vmatpush1.bf16.msra.mxu0 %v1018
  %1474 = vmatprep.subr.bf16.mxu0 %v1021
  %1475 = vmatpush1.bf16.msra.mxu0 %v1020
  %1476 = vmatprep.subr.bf16.mxu0 %v1023
  %1477 = vmatpush1.bf16.msra.mxu0 %v1022
  %1478 = vmatprep.subr.bf16.mxu0 %v1025
  %1479 = vmatpush1.bf16.msra.mxu0 %v1024
  %1480 = vmatprep.subr.bf16.mxu0 %v1027
  %1481 = vmatpush1.bf16.msra.mxu0 %v1026
  %1482 = vmatprep.subr.bf16.mxu0 %v1029
  %1483 = vmatpush1.bf16.msra.mxu0 %v1028
  %1484 = vmatprep.subr.bf16.mxu0 %v1031
  %1485 = vmatpush1.bf16.msra.mxu0 %v1030
  %1486 = vmatprep.subr.bf16.mxu0 %v1033
  %1487 = vmatpush1.bf16.msra.mxu0 %v1032
  %1488 = vmatprep.subr.bf16.mxu0 %v1035
  %1489 = vmatpush1.bf16.msra.mxu0 %v1034
  %1490 = vmatprep.subr.bf16.mxu0 %v1037
  %1491 = vmatpush1.bf16.msra.mxu0 %v1036
  %1492 = vmatprep.mubr.bf16.mxu0 %v272
  %1493 = vmatmul.mubr.bf16.gmra.mrb[0].mxu0 %v271
  %v1494 = vpop.f32.mrb[0].mxu0
  %v1495 = vadd.f32 %v1454, %v1494
  %v1496 = vpop.f32.mrb[0].mxu0
  %v1497 = vadd.f32 %v1456, %v1496
  %v1498 = vpop.f32.mrb[0].mxu0
  %v1499 = vpop.f32.mrb[0].mxu0
  %1500 = vdwg.mxu0
  %1501 = vmatprep.subr.bf16.mxu0 %v1039
  %1502 = vmatpush1.bf16.msra.mxu0 %v1038
  %1503 = vmatprep.subr.bf16.mxu0 %v1041
  %1504 = vmatpush1.bf16.msra.mxu0 %v1040
  %1505 = vmatprep.subr.bf16.mxu0 %v1043
  %1506 = vmatpush1.bf16.msra.mxu0 %v1042
  %1507 = vmatprep.subr.bf16.mxu0 %v1045
  %1508 = vmatpush1.bf16.msra.mxu0 %v1044
  %1509 = vmatprep.subr.bf16.mxu0 %v1047
  %1510 = vmatpush1.bf16.msra.mxu0 %v1046
  %1511 = vmatprep.subr.bf16.mxu0 %v1049
  %1512 = vmatpush1.bf16.msra.mxu0 %v1048
  %1513 = vmatprep.subr.bf16.mxu0 %v1051
  %1514 = vmatpush1.bf16.msra.mxu0 %v1050
  %1515 = vmatprep.subr.bf16.mxu0 %v1053
  %1516 = vmatpush1.bf16.msra.mxu0 %v1052
  %1517 = vmatprep.subr.bf16.mxu0 %v1055
  %1518 = vmatpush1.bf16.msra.mxu0 %v1054
  %1519 = vmatprep.subr.bf16.mxu0 %v1057
  %1520 = vmatpush1.bf16.msra.mxu0 %v1056
  %1521 = vmatprep.subr.bf16.mxu0 %v1059
  %1522 = vmatpush1.bf16.msra.mxu0 %v1058
  %1523 = vmatprep.subr.bf16.mxu0 %v1061
  %1524 = vmatpush1.bf16.msra.mxu0 %v1060
  %1525 = vmatprep.subr.bf16.mxu0 %v1063
  %1526 = vmatpush1.bf16.msra.mxu0 %v1062
  %1527 = vmatprep.subr.bf16.mxu0 %v1065
  %1528 = vmatpush1.bf16.msra.mxu0 %v1064
  %1529 = vmatprep.subr.bf16.mxu0 %v1067
  %1530 = vmatpush1.bf16.msra.mxu0 %v1066
  %1531 = vmatprep.subr.bf16.mxu0 %v1069
  %1532 = vmatpush1.bf16.msra.mxu0 %v1068
  %1533 = vmatprep.mubr.bf16.mxu0 %v274
  %1534 = vmatmul.mubr.bf16.gmra.mrb[0].mxu0 %v273
  %v1535 = vpop.f32.mrb[0].mxu0
  %v1536 = vadd.f32 %v1495, %v1535
  %v1537 = vpop.f32.mrb[0].mxu0
  %v1538 = vadd.f32 %v1497, %v1537
  %v1539 = vpop.f32.mrb[0].mxu0
  %v1540 = vpop.f32.mrb[0].mxu0
  %1541 = vdwg.mxu0
  %1542 = vmatprep.subr.bf16.mxu0 %v1071
  %1543 = vmatpush1.bf16.msra.mxu0 %v1070
  %1544 = vmatprep.subr.bf16.mxu0 %v1073
  %1545 = vmatpush1.bf16.msra.mxu0 %v1072
  %1546 = vmatprep.subr.bf16.mxu0 %v1075
  %1547 = vmatpush1.bf16.msra.mxu0 %v1074
  %1548 = vmatprep.subr.bf16.mxu0 %v1077
  %1549 = vmatpush1.bf16.msra.mxu0 %v1076
  %1550 = vmatprep.subr.bf16.mxu0 %v1079
  %1551 = vmatpush1.bf16.msra.mxu0 %v1078
  %1552 = vmatprep.subr.bf16.mxu0 %v1081
  %1553 = vmatpush1.bf16.msra.mxu0 %v1080
  %1554 = vmatprep.subr.bf16.mxu0 %v1083
  %1555 = vmatpush1.bf16.msra.mxu0 %v1082
  %1556 = vmatprep.subr.bf16.mxu0 %v1085
  %1557 = vmatpush1.bf16.msra.mxu0 %v1084
  %1558 = vmatprep.subr.bf16.mxu0 %v1087
  %1559 = vmatpush1.bf16.msra.mxu0 %v1086
  %1560 = vmatprep.subr.bf16.mxu0 %v1089
  %1561 = vmatpush1.bf16.msra.mxu0 %v1088
  %1562 = vmatprep.subr.bf16.mxu0 %v1091
  %1563 = vmatpush1.bf16.msra.mxu0 %v1090
  %1564 = vmatprep.subr.bf16.mxu0 %v1093
  %1565 = vmatpush1.bf16.msra.mxu0 %v1092
  %1566 = vmatprep.subr.bf16.mxu0 %v1095
  %1567 = vmatpush1.bf16.msra.mxu0 %v1094
  %1568 = vmatprep.subr.bf16.mxu0 %v1097
  %1569 = vmatpush1.bf16.msra.mxu0 %v1096
  %1570 = vmatprep.subr.bf16.mxu0 %v1099
  %1571 = vmatpush1.bf16.msra.mxu0 %v1098
  %1572 = vmatprep.subr.bf16.mxu0 %v1101
  %1573 = vmatpush1.bf16.msra.mxu0 %v1100
  %1574 = vmatprep.mubr.bf16.mxu0 %v276
  %1575 = vmatmul.mubr.bf16.gmra.mrb[0].mxu0 %v275
  %v1576 = vpop.f32.mrb[0].mxu0
  %v1577 = vadd.f32 %v1536, %v1576
  %v1578 = vpop.f32.mrb[0].mxu0
  %v1579 = vadd.f32 %v1538, %v1578
  %v1580 = vpop.f32.mrb[0].mxu0
  %v1581 = vpop.f32.mrb[0].mxu0
  %1582 = vdwg.mxu0
  %1583 = vmatprep.subr.bf16.mxu0 %v1103
  %1584 = vmatpush1.bf16.msra.mxu0 %v1102
  %1585 = vmatprep.subr.bf16.mxu0 %v1105
  %1586 = vmatpush1.bf16.msra.mxu0 %v1104
  %1587 = vmatprep.subr.bf16.mxu0 %v1107
  %1588 = vmatpush1.bf16.msra.mxu0 %v1106
  %1589 = vmatprep.subr.bf16.mxu0 %v1109
  %1590 = vmatpush1.bf16.msra.mxu0 %v1108
  %1591 = vmatprep.subr.bf16.mxu0 %v1111
  %1592 = vmatpush1.bf16.msra.mxu0 %v1110
  %1593 = vmatprep.subr.bf16.mxu0 %v1113
  %1594 = vmatpush1.bf16.msra.mxu0 %v1112
  %1595 = vmatprep.subr.bf16.mxu0 %v1115
  %1596 = vmatpush1.bf16.msra.mxu0 %v1114
  %1597 = vmatprep.subr.bf16.mxu0 %v1117
  %1598 = vmatpush1.bf16.msra.mxu0 %v1116
  %1599 = vmatprep.subr.bf16.mxu0 %v1119
  %1600 = vmatpush1.bf16.msra.mxu0 %v1118
  %1601 = vmatprep.subr.bf16.mxu0 %v1121
  %1602 = vmatpush1.bf16.msra.mxu0 %v1120
  %1603 = vmatprep.subr.bf16.mxu0 %v1123
  %1604 = vmatpush1.bf16.msra.mxu0 %v1122
  %1605 = vmatprep.subr.bf16.mxu0 %v1125
  %1606 = vmatpush1.bf16.msra.mxu0 %v1124
  %1607 = vmatprep.subr.bf16.mxu0 %v1127
  %1608 = vmatpush1.bf16.msra.mxu0 %v1126
  %1609 = vmatprep.subr.bf16.mxu0 %v1129
  %1610 = vmatpush1.bf16.msra.mxu0 %v1128
  %1611 = vmatprep.subr.bf16.mxu0 %v1131
  %1612 = vmatpush1.bf16.msra.mxu0 %v1130
  %1613 = vmatprep.subr.bf16.mxu0 %v1133
  %1614 = vmatpush1.bf16.msra.mxu0 %v1132
  %1615 = vmatprep.mubr.bf16.mxu0 %v278
  %1616 = vmatmul.mubr.bf16.gmra.mrb[0].mxu0 %v277
  %v1617 = vpop.f32.mrb[0].mxu0
  %v1618 = vadd.f32 %v1577, %v1617
  %v1619 = vpop.f32.mrb[0].mxu0
  %v1620 = vadd.f32 %v1579, %v1619
  %v1621 = vpop.f32.mrb[0].mxu0
  %v1622 = vpop.f32.mrb[0].mxu0
  %1623 = vdwg.mxu0
  %1624 = vmatprep.subr.bf16.mxu0 %v1135
  %1625 = vmatpush1.bf16.msra.mxu0 %v1134
  %1626 = vmatprep.subr.bf16.mxu0 %v1137
  %1627 = vmatpush1.bf16.msra.mxu0 %v1136
  %1628 = vmatprep.subr.bf16.mxu0 %v1139
  %1629 = vmatpush1.bf16.msra.mxu0 %v1138
  %1630 = vmatprep.subr.bf16.mxu0 %v1141
  %1631 = vmatpush1.bf16.msra.mxu0 %v1140
  %1632 = vmatprep.subr.bf16.mxu0 %v1143
  %1633 = vmatpush1.bf16.msra.mxu0 %v1142
  %1634 = vmatprep.subr.bf16.mxu0 %v1145
  %1635 = vmatpush1.bf16.msra.mxu0 %v1144
  %1636 = vmatprep.subr.bf16.mxu0 %v1147
  %1637 = vmatpush1.bf16.msra.mxu0 %v1146
  %1638 = vmatprep.subr.bf16.mxu0 %v1149
  %1639 = vmatpush1.bf16.msra.mxu0 %v1148
  %1640 = vmatprep.subr.bf16.mxu0 %v1151
  %1641 = vmatpush1.bf16.msra.mxu0 %v1150
  %1642 = vmatprep.subr.bf16.mxu0 %v1153
  %1643 = vmatpush1.bf16.msra.mxu0 %v1152
  %1644 = vmatprep.subr.bf16.mxu0 %v1155
  %1645 = vmatpush1.bf16.msra.mxu0 %v1154
  %1646 = vmatprep.subr.bf16.mxu0 %v1157
  %1647 = vmatpush1.bf16.msra.mxu0 %v1156
  %1648 = vmatprep.subr.bf16.mxu0 0
  %1649 = vmatpush1.bf16.msra.mxu0 0
  %1650 = vmatprep.subr.bf16.mxu0 0
  %1651 = vmatpush1.bf16.msra.mxu0 0
  %1652 = vmatprep.subr.bf16.mxu0 0
  %1653 = vmatpush1.bf16.msra.mxu0 0
  %1654 = vmatprep.subr.bf16.mxu0 0
  %1655 = vmatpush1.bf16.msra.mxu0 0
  %1656 = vmatprep.mubr.bf16.mxu0 %v1376
  %1657 = vmatmul.mubr.bf16.gmra.mrb[0].mxu0 %v279
  %v1658 = vpop.f32.mrb[0].mxu0
  %v1659 = vadd.f32 %v1618, %v1658
  %v1660 = vpop.f32.mrb[0].mxu0
  %v1661 = vadd.f32 %v1620, %v1660
  %v1662 = vpop.f32.mrb[0].mxu0
  %v1663 = vpop.f32.mrb[0].mxu0
  %1664 = vdwg.mxu0
  %v1665 = vld [vmem:[%s2] sm:$0x3]
  %v1667 = vlaneseq
  %v1668 = vshrl.u32 %v1667, 7
  %v1669 = vsub.s32 0, %v1668
  %v1670 = vrot.slane %v1665, %v1669
  %v1671 = vlaneseq
  %v1672 = vshrl.u32 %v1671, 7
  %v1673 = vsub.s32 1, %v1672
  %v1674 = vrot.slane %v1665, %v1673
  %v1677 = vmul.f32 %v1659, %v1670
  %v1678 = vmul.f32 %v1661, %v1674
  %v1679 = vld [vmem:[%s3] sm:$0x3]
  %v1681 = vlaneseq
  %v1682 = vshrl.u32 %v1681, 7
  %v1683 = vsub.s32 0, %v1682
  %v1684 = vrot.slane %v1679, %v1683
  %v1685 = vlaneseq
  %v1686 = vshrl.u32 %v1685, 7
  %v1687 = vsub.s32 1, %v1686
  %v1688 = vrot.slane %v1679, %v1687
  %v1691 = vadd.f32 %v1677, %v1684
  %v1692 = vadd.f32 %v1678, %v1688
  %v1693 = vmax.f32 %v1691, 0.0
  %v1694 = vmax.f32 %v1692, 0.0
  %v1695 = vpack.c.bf16 %v1693, %v1693
  %v1696 = vpack.c.bf16 %v1694, %v1694
  %v1699 = vunpack.c.l.b16 %v1695
  %v1700 = vunpack.c.l.b16 %v1696
  %v1701 = vpack.c.b16 %v1700, %v1699
  %vm1703 = vcmask 1043456
  %vm1704 = vcmask 523268
  %vm1705 = vmor %vm1704, %vm1703
  %1706 = vst.msk [vmem:[%s5] sm:$0xff] %vm1705, %v1701
  %v1707 = vld [vmem:[%s4] sm:$0xff]
  %v1708 = vld [vmem:[%s4 + $0x8] sm:$0xff]
  %v1709 = vld [vmem:[%s4 + $0x10] sm:$0xff]
  %v1710 = vld [vmem:[%s4 + $0x18] sm:$0xff]
  %v1711 = vld [vmem:[%s4 + $0x20] sm:$0xff]
  %v1712 = vld [vmem:[%s4 + $0x28] sm:$0xff]
  %v1713 = vld [vmem:[%s4 + $0x30] sm:$0xff]
  %v1714 = vld [vmem:[%s4 + $0x38] sm:$0xff]
  %v1715 = vld [vmem:[%s4 + $0x40] sm:$0xff]
  %v1716 = vunpack.c.l.bf16 %v1707
  %v1717 = vunpack.c.h.bf16 %v1707
  %v1718 = vunpack.c.l.bf16 %v1708
  %v1719 = vunpack.c.h.bf16 %v1708
  %v1720 = vunpack.c.l.bf16 %v1709
  %v1721 = vunpack.c.h.bf16 %v1709
  %v1722 = vunpack.c.l.bf16 %v1710
  %v1723 = vunpack.c.h.bf16 %v1710
  %v1724 = vunpack.c.l.bf16 %v1711
  %v1725 = vunpack.c.h.bf16 %v1711
  %v1726 = vunpack.c.l.bf16 %v1712
  %v1727 = vunpack.c.h.bf16 %v1712
  %v1728 = vunpack.c.l.bf16 %v1713
  %v1729 = vunpack.c.h.bf16 %v1713
  %v1730 = vunpack.c.l.bf16 %v1714
  %v1731 = vunpack.c.h.bf16 %v1714
  %v1732 = vunpack.c.l.bf16 %v1715
  %v1733 = vunpack.c.h.bf16 %v1715
  %v1734 = vmax.f32 %v1716, %v1720
  %v1735 = vmax.f32 %v1718, %v1722
  %v1736 = vmax.f32 %v1734, %v1724
  %v1737 = vmax.f32 %v1735, %v1726
  %v1738 = vmax.f32 %v1736, %v1728
  %v1739 = vmax.f32 %v1737, %v1730
  %v1740 = vmax.f32 %v1738, %v1732
  %v1741 = vmax.f32 %v1740, %v1739
  %v1742 = vsel %vm1374, %v1717, -inf
  %v1743 = vsel %vm1374, %v1719, -inf
  %v1744 = vsel %vm1374, %v1721, -inf
  %v1745 = vmax.f32 %v1742, %v1744
  %v1746 = vsel %vm1374, %v1723, -inf
  %v1747 = vmax.f32 %v1743, %v1746
  %v1748 = vsel %vm1374, %v1725, -inf
  %v1749 = vmax.f32 %v1745, %v1748
  %v1750 = vsel %vm1374, %v1727, -inf
  %v1751 = vmax.f32 %v1747, %v1750
  %v1752 = vsel %vm1374, %v1729, -inf
  %v1753 = vmax.f32 %v1749, %v1752
  %v1754 = vsel %vm1374, %v1731, -inf
  %v1755 = vmax.f32 %v1751, %v1754
  %v1756 = vsel %vm1374, %v1733, -inf
  %v1757 = vmax.f32 %v1753, %v1756
  %v1758 = vmax.f32 %v1757, %v1755
  %v1759 = vpack.c.bf16 %v1741, %v1741
  %v1760 = vpack.c.bf16 %v1758, %v1758
  %v1763 = vunpack.c.l.b16 %v1759
  %v1764 = vunpack.c.l.b16 %v1760
  %v1765 = vpack.c.b16 %v1764, %v1763
  %1767 = vst.msk [vmem:[%s6] sm:$0xff] %vm1705, %v1765
  // Predicated region
  $region22: #{incept_init_block.17} parent=0 // pred_check
    _
  $region23: #{incept_init_block.17} parent=0 // pred_check_branch
    %1769 = sbr.rel (0) target = $region25
  $region24: #{incept_init_block.17} parent=0 // pred_region
    _
  $region25: #{incept_init_block.17} parent=0 // pred_fallthru
    _
  // Predicated region
  $region26: #{incept_init_block.17} parent=0 // pred_check
    _
  $region27: #{incept_init_block.17} parent=0 // pred_check_branch
    %1771 = sbr.rel (0) target = $region29
  $region28: #{incept_init_block.17} parent=0 // pred_region
    _
  $region29: #{incept_init_block.17} parent=0 // pred_fallthru
    _
  // Predicated region
  $region30: #{incept_init_block.17} parent=0 // pred_check
    _
  $region31: #{incept_init_block.17} parent=0 // pred_check_branch
    %1773 = sbr.rel (0) target = $region33
  $region32: #{incept_init_block.17} parent=0 // pred_region
    _
  $region33: #{incept_init_block.17} parent=0 // pred_fallthru
    _
  // Predicated region
  $region34: #{incept_init_block.17} parent=0 // pred_check
    _
  $region35: #{incept_init_block.17} parent=0 // pred_check_branch
    %1775 = sbr.rel (0) target = $region37
  $region36: #{incept_init_block.17} parent=0 // pred_region
    _
  $region37: #{incept_init_block.17} parent=0 // pred_fallthru
    _

</llo_original>
